<compile_context>
chip_gen: v7x
topology: tpu7x:2x2x1
jax: 0.10.0
libtpu: 0.0.40
codegen_flags: <defaults>
</compile_context>

<pallas_src>
import functools

import numpy as np
import jax
import jax.numpy as jnp
from jax import lax
from jax.experimental import pallas as pl
from jax.experimental.pallas import tpu as pltpu

_LANE = 128
_SUBLANE = 8


def _round_up(x, m):
    return (x + m - 1) // m * m


def _vmem_limit_bytes():
    """Generation-aware scoped-VMEM limit (~80% of physical, conservative default)."""
    cap = 64 * 1024 * 1024          # conservative default (v7x physical VMEM)
    try:
        info = pltpu.get_tpu_info()
        cap = int(getattr(info, "vmem_capacity_bytes", cap))
    except Exception:
        pass
    return max(32 * 1024 * 1024, min(int(cap * 4 // 5), 104 * 1024 * 1024))


# ----------------------------- Pallas kernel ------------------------------

def _uni_lstm_kernel(x_ref, w_ih_ref, w_hh_ref, b_ref,
                     w1a_ref, w1b_ref, b1_ref, w2_ref, b2_ref,
                     out_ref, hbuf_ref, gx_ref,
                     *, batch, half, len_a, len_b, hp, T):
    """One grid step == one LSTM layer (per-layer weights streamed by BlockSpec).

    Padded shapes (hp = padded hidden, half = padded per-sequence batch,
    bp = 2*half stacked rows, cp = padded classes):
      x_ref    : (T, bp, hp)     embedded premise rows [0,half), hypothesis [half,bp)
      w_ih_ref : (1, hp, 4hp)    this layer's input weights  (bf16, gate-lane padded)
      w_hh_ref : (1, hp, 4hp)    this layer's recurrent weights (bf16)
      b_ref    : (1, 1, 4hp)     b_ih + b_hh (f32)
      w1a/w1b  : (hp, hp)        int_layer weight halves (bf16)
      b1_ref   : (1, hp)         f32
      w2_ref   : (hp, cp)        out_layer weight (bf16)
      b2_ref   : (1, cp)         f32
      out_ref  : (L, half, cp)   per-layer logits (premise-row aligned)
    Scratch (persists across grid steps):
      hbuf_ref : (T, bp, hp)     this layer's output sequence (next layer's input)
      gx_ref   : (T, bp, 4hp)    hoisted pre-gates  x_t @ W_ih + b
    """
    bp = 2 * half
    layer = pl.program_id(0)

    bias = b_ref[0]                                     # (1, 4hp) f32

    # ---- Hoisted input projection: one (T*bp, hp) x (hp, 4hp) GEMM per layer.
    def pre_gates(seq):                                 # seq: (T, bp, hp) f32
        flat = seq.reshape(T * bp, hp).astype(jnp.bfloat16)
        gx = jnp.dot(flat, w_ih_ref[0], preferred_element_type=jnp.float32)
        gx_ref[...] = (gx + bias).reshape(T, bp, 4 * hp)

    @pl.when(layer == 0)
    def _():
        pre_gates(x_ref[...])           # layer 0 reads x directly (no hbuf copy)

    @pl.when(layer != 0)
    def _():
        pre_gates(hbuf_ref[...])        # deeper layers read previous layer's h

    # ---- Per-row valid length (hoisted out of the loop): premise rows run
    #      len_a steps, hypothesis rows len_b, padding rows never update.
    row = lax.broadcasted_iota(jnp.int32, (bp, hp), 0)
    len_row = jnp.where(row < batch, len_a,
                        jnp.where((row >= half) & (row < half + batch), len_b, 0))

    w_hh = w_hh_ref[0]                                  # (hp, 4hp) bf16

    def step(t, carry):
        h, c = carry                                    # vreg-resident state
        gates = gx_ref[t] + jnp.dot(h.astype(jnp.bfloat16), w_hh,
                                    preferred_element_type=jnp.float32)
        # hp is a multiple of 128 -> every gate slice is lane-tile aligned.
        i = jax.nn.sigmoid(gates[:, 0 * hp:1 * hp])
        f = jax.nn.sigmoid(gates[:, 1 * hp:2 * hp])
        g = jnp.tanh(gates[:, 2 * hp:3 * hp])
        o = jax.nn.sigmoid(gates[:, 3 * hp:4 * hp])
        c_new = f * c + i * g
        h_new = o * jnp.tanh(c_new)
        live = t < len_row                              # freeze finished rows
        c = jnp.where(live, c_new, c)
        h = jnp.where(live, h_new, h)
        hbuf_ref[t] = h                                 # next layer's input
        return h, c

    zeros = jnp.zeros((bp, hp), jnp.float32)
    _, c_fin = lax.fori_loop(0, T, step, (zeros, zeros),
                             unroll=min(8, max(T, 1)))

    # ---- Fused MLP head for this layer (overlaps next layer's weight DMA).
    ca = c_fin[0:half]                                  # premise rows (aligned)
    cb = c_fin[half:2 * half]                           # hypothesis rows (aligned)
    z = (jnp.dot(ca.astype(jnp.bfloat16), w1a_ref[...],
                 preferred_element_type=jnp.float32)
         + jnp.dot(cb.astype(jnp.bfloat16), w1b_ref[...],
                   preferred_element_type=jnp.float32)
         + b1_ref[...])
    z = jnp.maximum(z, 0.0)
    out_ref[layer] = (jnp.dot(z.astype(jnp.bfloat16), w2_ref[...],
                              preferred_element_type=jnp.float32)
                      + b2_ref[...])


# ----------------------------- Pallas wrapper ------------------------------

def uni_lstm_pallas(x, w_ih, w_hh, b, w1a, w1b, b1, w2, b2, *,
                    batch, half, len_a, len_b, hidden_pad, num_layers,
                    num_classes_pad):
    T, bp, hp = x.shape
    assert bp == 2 * half and hp == hidden_pad
    L = num_layers
    cp = num_classes_pad

    kernel = functools.partial(
        _uni_lstm_kernel, batch=batch, half=half, len_a=len_a, len_b=len_b,
        hp=hp, T=T)

    def build(single_buffer_consts):
        # Constant-index operands get zero benefit from double buffering but
        # pay 2x VMEM -> request a single buffer when supported.
        pm = dict(pipeline_mode=pl.Buffered(1)) if single_buffer_consts else {}
        grid_spec = pltpu.PrefetchScalarGridSpec(
            num_scalar_prefetch=0,
            grid=(L,),
            in_specs=[
                pl.BlockSpec((T, bp, hp), lambda l: (0, 0, 0), **pm),       # x (resident)
                pl.BlockSpec((1, hp, 4 * hp), lambda l: (l, 0, 0)),         # W_ih / layer
                pl.BlockSpec((1, hp, 4 * hp), lambda l: (l, 0, 0)),         # W_hh / layer
                pl.BlockSpec((1, 1, 4 * hp), lambda l: (l, 0, 0)),          # bias / layer
                pl.BlockSpec((hp, hp), lambda l: (0, 0), **pm),             # w1a
                pl.BlockSpec((hp, hp), lambda l: (0, 0), **pm),             # w1b
                pl.BlockSpec((1, hp), lambda l: (0, 0), **pm),              # b1
                pl.BlockSpec((hp, cp), lambda l: (0, 0), **pm),             # w2
                pl.BlockSpec((1, cp), lambda l: (0, 0), **pm),              # b2
            ],
            out_specs=pl.BlockSpec((L, half, cp), lambda l: (0, 0, 0)),
            scratch_shapes=[
                pltpu.VMEM((T, bp, hp), jnp.float32),        # layer output sequence
                pltpu.VMEM((T, bp, 4 * hp), jnp.float32),    # hoisted pre-gates
            ],
        )
        return pl.pallas_call(
            kernel,
            out_shape=jax.ShapeDtypeStruct((L, half, cp), jnp.float32),
            grid_spec=grid_spec,
            compiler_params=pltpu.CompilerParams(
                dimension_semantics=("arbitrary",),          # layers are sequential
                vmem_limit_bytes=_vmem_limit_bytes(),
            ),
        )(x, w_ih, w_hh, b, w1a, w1b, b1, w2, b2)

    try:
        return jax.block_until_ready(build(True))
    except Exception:
        # pipeline_mode=pl.Buffered(1) not accepted on this jax version ->
        # fall back to default (double) buffering; correctness unaffected.
        return build(False)


# ----------------------------- model glue ------------------------------

def fix_padding(batch_premises, batch_hypotheses):
    """Pad variable-length int sequences with 0 (batch_first), like the torch code."""
    def pad(seqs):
        T = max(len(s) for s in seqs)
        arr = np.zeros((len(seqs), T), dtype=np.int32)
        for i, s in enumerate(seqs):
            arr[i, :len(s)] = np.asarray(s, dtype=np.int32)
        return jnp.asarray(arr)
    a = pad(batch_premises)
    b = pad(batch_hypotheses)
    a_rev = pad([list(reversed(s)) for s in batch_premises])
    b_rev = pad([list(reversed(s)) for s in batch_hypotheses])
    return a, b, a_rev, b_rev


def init_params(key, vocab_size, hidden_dim, num_layers, num_classes):
    H = hidden_dim
    k = 1.0 / np.sqrt(H)
    n_keys = 1 + 4 * num_layers + 4
    keys = jax.random.split(key, n_keys)
    idx = 0
    p = {}
    p["embedding"] = jax.random.uniform(keys[idx], (vocab_size, H), jnp.float32, -1.0, 1.0); idx += 1
    w_ih, w_hh, b_ih, b_hh = [], [], [], []
    for _ in range(num_layers):
        w_ih.append(jax.random.uniform(keys[idx], (4 * H, H), jnp.float32, -k, k)); idx += 1
        w_hh.append(jax.random.uniform(keys[idx], (4 * H, H), jnp.float32, -k, k)); idx += 1
        b_ih.append(jax.random.uniform(keys[idx], (4 * H,), jnp.float32, -k, k)); idx += 1
        b_hh.append(jax.random.uniform(keys[idx], (4 * H,), jnp.float32, -k, k)); idx += 1
    p["w_ih"] = jnp.stack(w_ih)   # (L, 4H, H)
    p["w_hh"] = jnp.stack(w_hh)   # (L, 4H, H)
    p["b_ih"] = jnp.stack(b_ih)   # (L, 4H)
    p["b_hh"] = jnp.stack(b_hh)   # (L, 4H)
    k2 = 1.0 / np.sqrt(2 * H)
    p["w_int"] = jax.random.uniform(keys[idx], (H, 2 * H), jnp.float32, -k2, k2); idx += 1
    p["b_int"] = jax.random.uniform(keys[idx], (H,), jnp.float32, -k2, k2); idx += 1
    k3 = 1.0 / np.sqrt(H)
    p["w_out"] = jax.random.uniform(keys[idx], (num_classes, H), jnp.float32, -k3, k3); idx += 1
    p["b_out"] = jax.random.uniform(keys[idx], (num_classes,), jnp.float32, -k3, k3); idx += 1
    return p


def uni_lstm_forward(params, a_padded, b_padded, hidden_dim, num_classes):
    H = hidden_dim
    C = num_classes
    Hp = _round_up(max(H, 1), _LANE)
    Cp = _round_up(max(C, 1), _LANE)
    L = params["w_ih"].shape[0]
    B, Ta = a_padded.shape
    _, Tb = b_padded.shape
    T = max(Ta, Tb)
    half = _round_up(B, _SUBLANE)        # premise rows [0,half), hypothesis [half,2*half)
    bp = 2 * half

    # Embedding lookup stays in XLA (data-dependent gather).
    emb = params["embedding"]
    a_emb = jnp.take(emb, a_padded, axis=0)              # (B, Ta, H)
    b_emb = jnp.take(emb, b_padded, axis=0)              # (B, Tb, H)
    a_tm = jnp.transpose(a_emb, (1, 0, 2))               # (Ta, B, H) time-major
    b_tm = jnp.transpose(b_emb, (1, 0, 2))               # (Tb, B, H)
    a_p = jnp.pad(a_tm, ((0, T - Ta), (0, half - B), (0, Hp - H)))
    b_p = jnp.pad(b_tm, ((0, T - Tb), (0, half - B), (0, Hp - H)))
    x = jnp.concatenate([a_p, b_p], axis=1)              # (T, bp, Hp)

    # LSTM weights: torch (L, 4H, H) -> transposed, gate-lane-padded, bf16.
    w_ih_t = jnp.transpose(params["w_ih"], (0, 2, 1))    # (L, H, 4H)
    w_hh_t = jnp.transpose(params["w_hh"], (0, 2, 1))

    def gate_pad_w(w):  # (L, H, 4H) -> (L, Hp, 4Hp): gate k lives at [k*Hp, k*Hp+H)
        w = jnp.concatenate(
            [jnp.pad(w[:, :, k * H:(k + 1) * H], ((0, 0), (0, 0), (0, Hp - H)))
             for k in range(4)], axis=2)
        return jnp.pad(w, ((0, 0), (0, Hp - H), (0, 0)))

    w_ih_p = gate_pad_w(w_ih_t).astype(jnp.bfloat16)     # (L, Hp, 4Hp) bf16
    w_hh_p = gate_pad_w(w_hh_t).astype(jnp.bfloat16)
    b_sum = params["b_ih"] + params["b_hh"]              # (L, 4H) f32
    b_pack = jnp.concatenate(
        [jnp.pad(b_sum[:, k * H:(k + 1) * H], ((0, 0), (0, Hp - H)))
         for k in range(4)], axis=1)[:, None, :]         # (L, 1, 4Hp) f32

    # MLP head weights (lane-padded; matmul operands bf16, biases f32).
    w_int = params["w_int"]                              # (H, 2H)
    w1a = jnp.pad(w_int[:, :H].T, ((0, Hp - H), (0, Hp - H))).astype(jnp.bfloat16)
    w1b = jnp.pad(w_int[:, H:].T, ((0, Hp - H), (0, Hp - H))).astype(jnp.bfloat16)
    b1 = jnp.pad(params["b_int"], (0, Hp - H))[None, :]
    w2 = jnp.pad(params["w_out"].T, ((0, Hp - H), (0, Cp - C))).astype(jnp.bfloat16)
    b2 = jnp.pad(params["b_out"], (0, Cp - C))[None, :]

    out = uni_lstm_pallas(x, w_ih_p, w_hh_p, b_pack, w1a, w1b, b1, w2, b2,
                          batch=B, half=half, len_a=Ta, len_b=Tb,
                          hidden_pad=Hp, num_layers=L,
                          num_classes_pad=Cp)             # (L, half, Cp)
    return out[:, :B, :C].reshape(L * B, C)


# ----------------------------- pure-JAX reference ------------------------------

def _lstm_ref(x_bth, w_ih, w_hh, b_ih, b_hh):
    B, T, H = x_bth.shape
    L = w_ih.shape[0]
    layer_in = x_bth
    cns = []
    for l in range(L):
        h = jnp.zeros((B, H), jnp.float32)
        c = jnp.zeros((B, H), jnp.float32)
        outs = []
        for t in range(T):
            x_t = layer_in[:, t, :]
            gates = x_t @ w_ih[l].T + b_ih[l] + h @ w_hh[l].T + b_hh[l]
            i = jax.nn.sigmoid(gates[:, 0:H])
            f = jax.nn.sigmoid(gates[:, H:2 * H])
            g = jnp.tanh(gates[:, 2 * H:3 * H])
            o = jax.nn.sigmoid(gates[:, 3 * H:4 * H])
            c = f * c + i * g
            h = o * jnp.tanh(c)
            outs.append(h)
        layer_in = jnp.stack(outs, axis=1)
        cns.append(c)
    return jnp.stack(cns)


def forward_ref(params, a_padded, b_padded, hidden_dim):
    H = hidden_dim
    emb = params["embedding"]
    a_emb = jnp.take(emb, a_padded, axis=0)
    b_emb = jnp.take(emb, b_padded, axis=0)
    cn_a = _lstm_ref(a_emb, params["w_ih"], params["w_hh"], params["b_ih"], params["b_hh"])
    cn_b = _lstm_ref(b_emb, params["w_ih"], params["w_hh"], params["b_ih"], params["b_hh"])
    cn = jnp.concatenate([cn_a, cn_b], axis=2).reshape(-1, 2 * H)
    h = jnp.maximum(cn @ params["w_int"].T + params["b_int"], 0.0)
    return h @ params["w_out"].T + params["b_out"]


# ----------------------------- main ------------------------------

if __name__ == "__main__":
    vocab_size, hidden_dim, num_layers, num_classes = 50, 32, 2, 3

    key = jax.random.PRNGKey(0)
    params = init_params(key, vocab_size, hidden_dim, num_layers, num_classes)

    # Deterministic variable-length token-id sequences (mirrors the torch inputs).
    rng = np.random.RandomState(0)
    batch_premises = [list(rng.randint(1, vocab_size, size=n)) for n in (5, 8)]
    batch_hypotheses = [list(rng.randint(1, vocab_size, size=n)) for n in (6, 4)]

    a_pad, b_pad, _a_rev, _b_rev = fix_padding(batch_premises, batch_hypotheses)

    out = uni_lstm_forward(params, a_pad, b_pad, hidden_dim, num_classes)
    out = jax.block_until_ready(out)

    ref = forward_ref(params, a_pad, b_pad, hidden_dim)
    ref = jax.block_until_ready(ref)

    assert out.shape == (num_layers * a_pad.shape[0], num_classes), out.shape
    # bf16 MXU operands (f32 accumulation & gate math) -> tolerance looser than
    # a pure-f32 pipeline; estimated worst-case error is well inside 2e-2.
    np.testing.assert_allclose(np.asarray(out), np.asarray(ref), atol=2e-2, rtol=2e-2)

    print("KERNEL_OK")
</pallas_src>

<mosaic_0001>
module attributes {stable_mosaic.version = 11 : i64} {
  func.func @_uni_lstm_kernel(%arg0: i32, %arg1: memref<8x16x128xf32, #tpu.memory_space<vmem>>, %arg2: memref<1x128x512xbf16, #tpu.memory_space<vmem>>, %arg3: memref<1x128x512xbf16, #tpu.memory_space<vmem>>, %arg4: memref<1x1x512xf32, #tpu.memory_space<vmem>>, %arg5: memref<128x128xbf16, #tpu.memory_space<vmem>>, %arg6: memref<128x128xbf16, #tpu.memory_space<vmem>>, %arg7: memref<1x128xf32, #tpu.memory_space<vmem>>, %arg8: memref<128x128xbf16, #tpu.memory_space<vmem>>, %arg9: memref<1x128xf32, #tpu.memory_space<vmem>>, %arg10: memref<2x8x128xf32, #tpu.memory_space<vmem>>, %arg11: memref<8x16x128xf32, #tpu.memory_space<vmem>>, %arg12: memref<8x16x512xf32, #tpu.memory_space<vmem>>) attributes {dimension_semantics = [#tpu.dimension_semantics<arbitrary>], iteration_bounds = array<i64: 2>, scalar_prefetch = 0 : i64, scratch_operands = 2 : i64, tpu.core_type = #tpu.core_type<tc>, window_params = [{pipeline_mode = #tpu.pipeline_mode<synchronous>, transform_indices = @transform_0, window_bounds = array<i64: 8, 16, 128>}, {transform_indices = @transform_1, window_bounds = array<i64: 1, 128, 512>}, {transform_indices = @transform_2, window_bounds = array<i64: 1, 128, 512>}, {transform_indices = @transform_3, window_bounds = array<i64: 1, 1, 512>}, {pipeline_mode = #tpu.pipeline_mode<synchronous>, transform_indices = @transform_4, window_bounds = array<i64: 128, 128>}, {pipeline_mode = #tpu.pipeline_mode<synchronous>, transform_indices = @transform_5, window_bounds = array<i64: 128, 128>}, {pipeline_mode = #tpu.pipeline_mode<synchronous>, transform_indices = @transform_6, window_bounds = array<i64: 1, 128>}, {pipeline_mode = #tpu.pipeline_mode<synchronous>, transform_indices = @transform_7, window_bounds = array<i64: 128, 128>}, {pipeline_mode = #tpu.pipeline_mode<synchronous>, transform_indices = @transform_8, window_bounds = array<i64: 1, 128>}, {pipeline_mode = #tpu.pipeline_mode<synchronous>, transform_indices = @transform_9, window_bounds = array<i64: 2, 8, 128>}]} {
    %c0 = arith.constant 0 : index
    %c0_0 = arith.constant 0 : index
    %c0_1 = arith.constant 0 : index
    %0 = vector.load %arg4[%c0, %c0_0, %c0_1] : memref<1x1x512xf32, #tpu.memory_space<vmem>>, vector<1x1x512xf32>
    %1 = vector.shape_cast %0 : vector<1x1x512xf32> to vector<1x512xf32>
    %c0_i32 = arith.constant 0 : i32
    %2 = arith.cmpi eq, %arg0, %c0_i32 : i32
    %3 = arith.extui %2 : i1 to i32
    %c0_i32_2 = arith.constant 0 : i32
    %4 = arith.cmpi ne, %3, %c0_i32_2 : i32
    scf.if %4 {
      %c0_94 = arith.constant 0 : index
      %c0_95 = arith.constant 0 : index
      %c0_96 = arith.constant 0 : index
      %360 = vector.load %arg1[%c0_94, %c0_95, %c0_96] : memref<8x16x128xf32, #tpu.memory_space<vmem>>, vector<8x16x128xf32>
      %361 = vector.shape_cast %360 : vector<8x16x128xf32> to vector<128x128xf32>
      %362 = arith.truncf %361 : vector<128x128xf32> to vector<128x128xbf16>
      %c0_97 = arith.constant 0 : index
      %c0_98 = arith.constant 0 : index
      %c0_99 = arith.constant 0 : index
      %363 = vector.load %arg2[%c0_97, %c0_98, %c0_99] : memref<1x128x512xbf16, #tpu.memory_space<vmem>>, vector<1x128x512xbf16>
      %364 = vector.shape_cast %363 : vector<1x128x512xbf16> to vector<128x512xbf16>
      %cst_100 = arith.constant dense<0.000000e+00> : vector<128x512xf32>
      %365 = tpu.matmul %362, %364, %cst_100 {dimension_numbers = #tpu.dot_dimension_numbers<[1], [0], [0], [1], [0, 0, 1, 1], [], []>} : vector<128x128xbf16>, vector<128x512xbf16>, vector<128x512xf32> -> vector<128x512xf32>
      %366 = vector.broadcast %1 : vector<1x512xf32> to vector<128x512xf32>
      %367 = arith.addf %365, %366 : vector<128x512xf32>
      %368 = vector.shape_cast %367 : vector<128x512xf32> to vector<8x16x512xf32>
      %c0_101 = arith.constant 0 : index
      %c0_102 = arith.constant 0 : index
      %c0_103 = arith.constant 0 : index
      %369 = vector.load %arg12[%c0_101, %c0_102, %c0_103] : memref<8x16x512xf32, #tpu.memory_space<vmem>>, vector<8x16x512xf32>
      tpu.vector_store %arg12[%c0_101, %c0_102, %c0_103], %368 {strides = array<i32>} : memref<8x16x512xf32, #tpu.memory_space<vmem>>, vector<8x16x512xf32>,
    } else {
    }
    %c0_i32_3 = arith.constant 0 : i32
    %5 = arith.cmpi ne, %arg0, %c0_i32_3 : i32
    %6 = arith.extui %5 : i1 to i32
    %c0_i32_4 = arith.constant 0 : i32
    %7 = arith.cmpi ne, %6, %c0_i32_4 : i32
    scf.if %7 {
      %c0_94 = arith.constant 0 : index
      %c0_95 = arith.constant 0 : index
      %c0_96 = arith.constant 0 : index
      %360 = vector.load %arg11[%c0_94, %c0_95, %c0_96] : memref<8x16x128xf32, #tpu.memory_space<vmem>>, vector<8x16x128xf32>
      %361 = vector.shape_cast %360 : vector<8x16x128xf32> to vector<128x128xf32>
      %362 = arith.truncf %361 : vector<128x128xf32> to vector<128x128xbf16>
      %c0_97 = arith.constant 0 : index
      %c0_98 = arith.constant 0 : index
      %c0_99 = arith.constant 0 : index
      %363 = vector.load %arg2[%c0_97, %c0_98, %c0_99] : memref<1x128x512xbf16, #tpu.memory_space<vmem>>, vector<1x128x512xbf16>
      %364 = vector.shape_cast %363 : vector<1x128x512xbf16> to vector<128x512xbf16>
      %cst_100 = arith.constant dense<0.000000e+00> : vector<128x512xf32>
      %365 = tpu.matmul %362, %364, %cst_100 {dimension_numbers = #tpu.dot_dimension_numbers<[1], [0], [0], [1], [0, 0, 1, 1], [], []>} : vector<128x128xbf16>, vector<128x512xbf16>, vector<128x512xf32> -> vector<128x512xf32>
      %366 = vector.broadcast %1 : vector<1x512xf32> to vector<128x512xf32>
      %367 = arith.addf %365, %366 : vector<128x512xf32>
      %368 = vector.shape_cast %367 : vector<128x512xf32> to vector<8x16x512xf32>
      %c0_101 = arith.constant 0 : index
      %c0_102 = arith.constant 0 : index
      %c0_103 = arith.constant 0 : index
      %369 = vector.load %arg12[%c0_101, %c0_102, %c0_103] : memref<8x16x512xf32, #tpu.memory_space<vmem>>, vector<8x16x512xf32>
      tpu.vector_store %arg12[%c0_101, %c0_102, %c0_103], %368 {strides = array<i32>} : memref<8x16x512xf32, #tpu.memory_space<vmem>>, vector<8x16x512xf32>,
    } else {
    }
    %8 = tpu.iota {dimensions = array<i32: 0>} : vector<16x128xi32>
    %c2_i32 = arith.constant 2 : i32
    %9 = vector.broadcast %c2_i32 : i32 to vector<16x128xi32>
    %10 = arith.cmpi slt, %8, %9 : vector<16x128xi32>
    %c8_i32 = arith.constant 8 : i32
    %11 = vector.broadcast %c8_i32 : i32 to vector<16x128xi32>
    %12 = arith.cmpi sge, %8, %11 : vector<16x128xi32>
    %c10_i32 = arith.constant 10 : i32
    %13 = vector.broadcast %c10_i32 : i32 to vector<16x128xi32>
    %14 = arith.cmpi slt, %8, %13 : vector<16x128xi32>
    %15 = arith.andi %12, %14 : vector<16x128xi1>
    %c6_i32 = arith.constant 6 : i32
    %c0_i32_5 = arith.constant 0 : i32
    %16 = vector.broadcast %c6_i32 : i32 to vector<16x128xi32>
    %17 = vector.broadcast %c0_i32_5 : i32 to vector<16x128xi32>
    %18 = arith.select %15, %16, %17 : vector<16x128xi1>, vector<16x128xi32>
    %c8_i32_6 = arith.constant 8 : i32
    %19 = vector.broadcast %c8_i32_6 : i32 to vector<16x128xi32>
    %20 = arith.select %10, %19, %18 : vector<16x128xi1>, vector<16x128xi32>
    %c0_7 = arith.constant 0 : index
    %c0_8 = arith.constant 0 : index
    %c0_9 = arith.constant 0 : index
    %21 = vector.load %arg3[%c0_7, %c0_8, %c0_9] : memref<1x128x512xbf16, #tpu.memory_space<vmem>>, vector<1x128x512xbf16>
    %22 = vector.shape_cast %21 : vector<1x128x512xbf16> to vector<128x512xbf16>
    %cst = arith.constant 0.000000e+00 : f32
    %23 = vector.broadcast %cst : f32 to vector<16x128xf32>
    %c0_i32_10 = arith.constant 0 : i32
    %24 = arith.index_cast %c0_i32_10 : i32 to index
    %c0_11 = arith.constant 0 : index
    %c0_12 = arith.constant 0 : index
    %25 = vector.load %arg12[%24, %c0_11, %c0_12] : memref<8x16x512xf32, #tpu.memory_space<vmem>>, vector<1x16x512xf32>
    %26 = vector.shape_cast %25 : vector<1x16x512xf32> to vector<16x512xf32>
    %27 = arith.truncf %23 : vector<16x128xf32> to vector<16x128xbf16>
    %cst_13 = arith.constant dense<0.000000e+00> : vector<16x512xf32>
    %28 = tpu.matmul %27, %22, %cst_13 {dimension_numbers = #tpu.dot_dimension_numbers<[1], [0], [0], [1], [0, 0, 1, 1], [], []>} : vector<16x128xbf16>, vector<128x512xbf16>, vector<16x512xf32> -> vector<16x512xf32>
    %29 = arith.addf %26, %28 : vector<16x512xf32>
    %30 = vector.extract_strided_slice %29 {offsets = [0, 0], sizes = [16, 128], strides = [1, 1]} : vector<16x512xf32> to vector<16x128xf32>
    %31 = arith.negf %30 : vector<16x128xf32>
    %32 = math.exp %31 : vector<16x128xf32>
    %cst_14 = arith.constant 1.000000e+00 : f32
    %33 = vector.broadcast %cst_14 : f32 to vector<16x128xf32>
    %34 = arith.addf %33, %32 : vector<16x128xf32>
    %35 = arith.divf %33, %34 : vector<16x128xf32>
    %36 = vector.extract_strided_slice %29 {offsets = [0, 128], sizes = [16, 128], strides = [1, 1]} : vector<16x512xf32> to vector<16x128xf32>
    %37 = arith.negf %36 : vector<16x128xf32>
    %38 = math.exp %37 : vector<16x128xf32>
    %cst_15 = arith.constant 1.000000e+00 : f32
    %39 = vector.broadcast %cst_15 : f32 to vector<16x128xf32>
    %40 = arith.addf %39, %38 : vector<16x128xf32>
    %41 = arith.divf %39, %40 : vector<16x128xf32>
    %42 = vector.extract_strided_slice %29 {offsets = [0, 256], sizes = [16, 128], strides = [1, 1]} : vector<16x512xf32> to vector<16x128xf32>
    %43 = math.tanh %42 : vector<16x128xf32>
    %44 = vector.extract_strided_slice %29 {offsets = [0, 384], sizes = [16, 128], strides = [1, 1]} : vector<16x512xf32> to vector<16x128xf32>
    %45 = arith.negf %44 : vector<16x128xf32>
    %46 = math.exp %45 : vector<16x128xf32>
    %cst_16 = arith.constant 1.000000e+00 : f32
    %47 = vector.broadcast %cst_16 : f32 to vector<16x128xf32>
    %48 = arith.addf %47, %46 : vector<16x128xf32>
    %49 = arith.divf %47, %48 : vector<16x128xf32>
    %50 = arith.mulf %41, %23 : vector<16x128xf32>
    %51 = arith.mulf %35, %43 : vector<16x128xf32>
    %52 = arith.addf %50, %51 : vector<16x128xf32>
    %53 = math.tanh %52 : vector<16x128xf32>
    %54 = arith.mulf %49, %53 : vector<16x128xf32>
    %55 = vector.broadcast %c0_i32_10 : i32 to vector<16x128xi32>
    %56 = arith.cmpi slt, %55, %20 : vector<16x128xi32>
    %57 = arith.select %56, %52, %23 : vector<16x128xi1>, vector<16x128xf32>
    %58 = arith.select %56, %54, %23 : vector<16x128xi1>, vector<16x128xf32>
    %59 = arith.index_cast %c0_i32_10 : i32 to index
    %c0_17 = arith.constant 0 : index
    %c0_18 = arith.constant 0 : index
    %60 = vector.load %arg11[%59, %c0_17, %c0_18] : memref<8x16x128xf32, #tpu.memory_space<vmem>>, vector<1x16x128xf32>
    %61 = vector.shape_cast %60 : vector<1x16x128xf32> to vector<16x128xf32>
    %62 = vector.shape_cast %58 : vector<16x128xf32> to vector<1x16x128xf32>
    tpu.vector_store %arg11[%59, %c0_17, %c0_18], %62 {strides = array<i32>} : memref<8x16x128xf32, #tpu.memory_space<vmem>>, vector<1x16x128xf32>,
    %c1_i32 = arith.constant 1 : i32
    %63 = arith.index_cast %c1_i32 : i32 to index
    %c0_19 = arith.constant 0 : index
    %c0_20 = arith.constant 0 : index
    %64 = vector.load %arg12[%63, %c0_19, %c0_20] : memref<8x16x512xf32, #tpu.memory_space<vmem>>, vector<1x16x512xf32>
    %65 = vector.shape_cast %64 : vector<1x16x512xf32> to vector<16x512xf32>
    %66 = arith.truncf %58 : vector<16x128xf32> to vector<16x128xbf16>
    %cst_21 = arith.constant dense<0.000000e+00> : vector<16x512xf32>
    %67 = tpu.matmul %66, %22, %cst_21 {dimension_numbers = #tpu.dot_dimension_numbers<[1], [0], [0], [1], [0, 0, 1, 1], [], []>} : vector<16x128xbf16>, vector<128x512xbf16>, vector<16x512xf32> -> vector<16x512xf32>
    %68 = arith.addf %65, %67 : vector<16x512xf32>
    %69 = vector.extract_strided_slice %68 {offsets = [0, 0], sizes = [16, 128], strides = [1, 1]} : vector<16x512xf32> to vector<16x128xf32>
    %70 = arith.negf %69 : vector<16x128xf32>
    %71 = math.exp %70 : vector<16x128xf32>
    %cst_22 = arith.constant 1.000000e+00 : f32
    %72 = vector.broadcast %cst_22 : f32 to vector<16x128xf32>
    %73 = arith.addf %72, %71 : vector<16x128xf32>
    %74 = arith.divf %72, %73 : vector<16x128xf32>
    %75 = vector.extract_strided_slice %68 {offsets = [0, 128], sizes = [16, 128], strides = [1, 1]} : vector<16x512xf32> to vector<16x128xf32>
    %76 = arith.negf %75 : vector<16x128xf32>
    %77 = math.exp %76 : vector<16x128xf32>
    %cst_23 = arith.constant 1.000000e+00 : f32
    %78 = vector.broadcast %cst_23 : f32 to vector<16x128xf32>
    %79 = arith.addf %78, %77 : vector<16x128xf32>
    %80 = arith.divf %78, %79 : vector<16x128xf32>
    %81 = vector.extract_strided_slice %68 {offsets = [0, 256], sizes = [16, 128], strides = [1, 1]} : vector<16x512xf32> to vector<16x128xf32>
    %82 = math.tanh %81 : vector<16x128xf32>
    %83 = vector.extract_strided_slice %68 {offsets = [0, 384], sizes = [16, 128], strides = [1, 1]} : vector<16x512xf32> to vector<16x128xf32>
    %84 = arith.negf %83 : vector<16x128xf32>
    %85 = math.exp %84 : vector<16x128xf32>
    %cst_24 = arith.constant 1.000000e+00 : f32
    %86 = vector.broadcast %cst_24 : f32 to vector<16x128xf32>
    %87 = arith.addf %86, %85 : vector<16x128xf32>
    %88 = arith.divf %86, %87 : vector<16x128xf32>
    %89 = arith.mulf %80, %57 : vector<16x128xf32>
    %90 = arith.mulf %74, %82 : vector<16x128xf32>
    %91 = arith.addf %89, %90 : vector<16x128xf32>
    %92 = math.tanh %91 : vector<16x128xf32>
    %93 = arith.mulf %88, %92 : vector<16x128xf32>
    %94 = vector.broadcast %c1_i32 : i32 to vector<16x128xi32>
    %95 = arith.cmpi slt, %94, %20 : vector<16x128xi32>
    %96 = arith.select %95, %91, %57 : vector<16x128xi1>, vector<16x128xf32>
    %97 = arith.select %95, %93, %58 : vector<16x128xi1>, vector<16x128xf32>
    %98 = arith.index_cast %c1_i32 : i32 to index
    %c0_25 = arith.constant 0 : index
    %c0_26 = arith.constant 0 : index
    %99 = vector.load %arg11[%98, %c0_25, %c0_26] : memref<8x16x128xf32, #tpu.memory_space<vmem>>, vector<1x16x128xf32>
    %100 = vector.shape_cast %99 : vector<1x16x128xf32> to vector<16x128xf32>
    %101 = vector.shape_cast %97 : vector<16x128xf32> to vector<1x16x128xf32>
    tpu.vector_store %arg11[%98, %c0_25, %c0_26], %101 {strides = array<i32>} : memref<8x16x128xf32, #tpu.memory_space<vmem>>, vector<1x16x128xf32>,
    %c2_i32_27 = arith.constant 2 : i32
    %102 = arith.index_cast %c2_i32_27 : i32 to index
    %c0_28 = arith.constant 0 : index
    %c0_29 = arith.constant 0 : index
    %103 = vector.load %arg12[%102, %c0_28, %c0_29] : memref<8x16x512xf32, #tpu.memory_space<vmem>>, vector<1x16x512xf32>
    %104 = vector.shape_cast %103 : vector<1x16x512xf32> to vector<16x512xf32>
    %105 = arith.truncf %97 : vector<16x128xf32> to vector<16x128xbf16>
    %cst_30 = arith.constant dense<0.000000e+00> : vector<16x512xf32>
    %106 = tpu.matmul %105, %22, %cst_30 {dimension_numbers = #tpu.dot_dimension_numbers<[1], [0], [0], [1], [0, 0, 1, 1], [], []>} : vector<16x128xbf16>, vector<128x512xbf16>, vector<16x512xf32> -> vector<16x512xf32>
    %107 = arith.addf %104, %106 : vector<16x512xf32>
    %108 = vector.extract_strided_slice %107 {offsets = [0, 0], sizes = [16, 128], strides = [1, 1]} : vector<16x512xf32> to vector<16x128xf32>
    %109 = arith.negf %108 : vector<16x128xf32>
    %110 = math.exp %109 : vector<16x128xf32>
    %cst_31 = arith.constant 1.000000e+00 : f32
    %111 = vector.broadcast %cst_31 : f32 to vector<16x128xf32>
    %112 = arith.addf %111, %110 : vector<16x128xf32>
    %113 = arith.divf %111, %112 : vector<16x128xf32>
    %114 = vector.extract_strided_slice %107 {offsets = [0, 128], sizes = [16, 128], strides = [1, 1]} : vector<16x512xf32> to vector<16x128xf32>
    %115 = arith.negf %114 : vector<16x128xf32>
    %116 = math.exp %115 : vector<16x128xf32>
    %cst_32 = arith.constant 1.000000e+00 : f32
    %117 = vector.broadcast %cst_32 : f32 to vector<16x128xf32>
    %118 = arith.addf %117, %116 : vector<16x128xf32>
    %119 = arith.divf %117, %118 : vector<16x128xf32>
    %120 = vector.extract_strided_slice %107 {offsets = [0, 256], sizes = [16, 128], strides = [1, 1]} : vector<16x512xf32> to vector<16x128xf32>
    %121 = math.tanh %120 : vector<16x128xf32>
    %122 = vector.extract_strided_slice %107 {offsets = [0, 384], sizes = [16, 128], strides = [1, 1]} : vector<16x512xf32> to vector<16x128xf32>
    %123 = arith.negf %122 : vector<16x128xf32>
    %124 = math.exp %123 : vector<16x128xf32>
    %cst_33 = arith.constant 1.000000e+00 : f32
    %125 = vector.broadcast %cst_33 : f32 to vector<16x128xf32>
    %126 = arith.addf %125, %124 : vector<16x128xf32>
    %127 = arith.divf %125, %126 : vector<16x128xf32>
    %128 = arith.mulf %119, %96 : vector<16x128xf32>
    %129 = arith.mulf %113, %121 : vector<16x128xf32>
    %130 = arith.addf %128, %129 : vector<16x128xf32>
    %131 = math.tanh %130 : vector<16x128xf32>
    %132 = arith.mulf %127, %131 : vector<16x128xf32>
    %133 = vector.broadcast %c2_i32_27 : i32 to vector<16x128xi32>
    %134 = arith.cmpi slt, %133, %20 : vector<16x128xi32>
    %135 = arith.select %134, %130, %96 : vector<16x128xi1>, vector<16x128xf32>
    %136 = arith.select %134, %132, %97 : vector<16x128xi1>, vector<16x128xf32>
    %137 = arith.index_cast %c2_i32_27 : i32 to index
    %c0_34 = arith.constant 0 : index
    %c0_35 = arith.constant 0 : index
    %138 = vector.load %arg11[%137, %c0_34, %c0_35] : memref<8x16x128xf32, #tpu.memory_space<vmem>>, vector<1x16x128xf32>
    %139 = vector.shape_cast %138 : vector<1x16x128xf32> to vector<16x128xf32>
    %140 = vector.shape_cast %136 : vector<16x128xf32> to vector<1x16x128xf32>
    tpu.vector_store %arg11[%137, %c0_34, %c0_35], %140 {strides = array<i32>} : memref<8x16x128xf32, #tpu.memory_space<vmem>>, vector<1x16x128xf32>,
    %c3_i32 = arith.constant 3 : i32
    %141 = arith.index_cast %c3_i32 : i32 to index
    %c0_36 = arith.constant 0 : index
    %c0_37 = arith.constant 0 : index
    %142 = vector.load %arg12[%141, %c0_36, %c0_37] : memref<8x16x512xf32, #tpu.memory_space<vmem>>, vector<1x16x512xf32>
    %143 = vector.shape_cast %142 : vector<1x16x512xf32> to vector<16x512xf32>
    %144 = arith.truncf %136 : vector<16x128xf32> to vector<16x128xbf16>
    %cst_38 = arith.constant dense<0.000000e+00> : vector<16x512xf32>
    %145 = tpu.matmul %144, %22, %cst_38 {dimension_numbers = #tpu.dot_dimension_numbers<[1], [0], [0], [1], [0, 0, 1, 1], [], []>} : vector<16x128xbf16>, vector<128x512xbf16>, vector<16x512xf32> -> vector<16x512xf32>
    %146 = arith.addf %143, %145 : vector<16x512xf32>
    %147 = vector.extract_strided_slice %146 {offsets = [0, 0], sizes = [16, 128], strides = [1, 1]} : vector<16x512xf32> to vector<16x128xf32>
    %148 = arith.negf %147 : vector<16x128xf32>
    %149 = math.exp %148 : vector<16x128xf32>
    %cst_39 = arith.constant 1.000000e+00 : f32
    %150 = vector.broadcast %cst_39 : f32 to vector<16x128xf32>
    %151 = arith.addf %150, %149 : vector<16x128xf32>
    %152 = arith.divf %150, %151 : vector<16x128xf32>
    %153 = vector.extract_strided_slice %146 {offsets = [0, 128], sizes = [16, 128], strides = [1, 1]} : vector<16x512xf32> to vector<16x128xf32>
    %154 = arith.negf %153 : vector<16x128xf32>
    %155 = math.exp %154 : vector<16x128xf32>
    %cst_40 = arith.constant 1.000000e+00 : f32
    %156 = vector.broadcast %cst_40 : f32 to vector<16x128xf32>
    %157 = arith.addf %156, %155 : vector<16x128xf32>
    %158 = arith.divf %156, %157 : vector<16x128xf32>
    %159 = vector.extract_strided_slice %146 {offsets = [0, 256], sizes = [16, 128], strides = [1, 1]} : vector<16x512xf32> to vector<16x128xf32>
    %160 = math.tanh %159 : vector<16x128xf32>
    %161 = vector.extract_strided_slice %146 {offsets = [0, 384], sizes = [16, 128], strides = [1, 1]} : vector<16x512xf32> to vector<16x128xf32>
    %162 = arith.negf %161 : vector<16x128xf32>
    %163 = math.exp %162 : vector<16x128xf32>
    %cst_41 = arith.constant 1.000000e+00 : f32
    %164 = vector.broadcast %cst_41 : f32 to vector<16x128xf32>
    %165 = arith.addf %164, %163 : vector<16x128xf32>
    %166 = arith.divf %164, %165 : vector<16x128xf32>
    %167 = arith.mulf %158, %135 : vector<16x128xf32>
    %168 = arith.mulf %152, %160 : vector<16x128xf32>
    %169 = arith.addf %167, %168 : vector<16x128xf32>
    %170 = math.tanh %169 : vector<16x128xf32>
    %171 = arith.mulf %166, %170 : vector<16x128xf32>
    %172 = vector.broadcast %c3_i32 : i32 to vector<16x128xi32>
    %173 = arith.cmpi slt, %172, %20 : vector<16x128xi32>
    %174 = arith.select %173, %169, %135 : vector<16x128xi1>, vector<16x128xf32>
    %175 = arith.select %173, %171, %136 : vector<16x128xi1>, vector<16x128xf32>
    %176 = arith.index_cast %c3_i32 : i32 to index
    %c0_42 = arith.constant 0 : index
    %c0_43 = arith.constant 0 : index
    %177 = vector.load %arg11[%176, %c0_42, %c0_43] : memref<8x16x128xf32, #tpu.memory_space<vmem>>, vector<1x16x128xf32>
    %178 = vector.shape_cast %177 : vector<1x16x128xf32> to vector<16x128xf32>
    %179 = vector.shape_cast %175 : vector<16x128xf32> to vector<1x16x128xf32>
    tpu.vector_store %arg11[%176, %c0_42, %c0_43], %179 {strides = array<i32>} : memref<8x16x128xf32, #tpu.memory_space<vmem>>, vector<1x16x128xf32>,
    %c4_i32 = arith.constant 4 : i32
    %180 = arith.index_cast %c4_i32 : i32 to index
    %c0_44 = arith.constant 0 : index
    %c0_45 = arith.constant 0 : index
    %181 = vector.load %arg12[%180, %c0_44, %c0_45] : memref<8x16x512xf32, #tpu.memory_space<vmem>>, vector<1x16x512xf32>
    %182 = vector.shape_cast %181 : vector<1x16x512xf32> to vector<16x512xf32>
    %183 = arith.truncf %175 : vector<16x128xf32> to vector<16x128xbf16>
    %cst_46 = arith.constant dense<0.000000e+00> : vector<16x512xf32>
    %184 = tpu.matmul %183, %22, %cst_46 {dimension_numbers = #tpu.dot_dimension_numbers<[1], [0], [0], [1], [0, 0, 1, 1], [], []>} : vector<16x128xbf16>, vector<128x512xbf16>, vector<16x512xf32> -> vector<16x512xf32>
    %185 = arith.addf %182, %184 : vector<16x512xf32>
    %186 = vector.extract_strided_slice %185 {offsets = [0, 0], sizes = [16, 128], strides = [1, 1]} : vector<16x512xf32> to vector<16x128xf32>
    %187 = arith.negf %186 : vector<16x128xf32>
    %188 = math.exp %187 : vector<16x128xf32>
    %cst_47 = arith.constant 1.000000e+00 : f32
    %189 = vector.broadcast %cst_47 : f32 to vector<16x128xf32>
    %190 = arith.addf %189, %188 : vector<16x128xf32>
    %191 = arith.divf %189, %190 : vector<16x128xf32>
    %192 = vector.extract_strided_slice %185 {offsets = [0, 128], sizes = [16, 128], strides = [1, 1]} : vector<16x512xf32> to vector<16x128xf32>
    %193 = arith.negf %192 : vector<16x128xf32>
    %194 = math.exp %193 : vector<16x128xf32>
    %cst_48 = arith.constant 1.000000e+00 : f32
    %195 = vector.broadcast %cst_48 : f32 to vector<16x128xf32>
    %196 = arith.addf %195, %194 : vector<16x128xf32>
    %197 = arith.divf %195, %196 : vector<16x128xf32>
    %198 = vector.extract_strided_slice %185 {offsets = [0, 256], sizes = [16, 128], strides = [1, 1]} : vector<16x512xf32> to vector<16x128xf32>
    %199 = math.tanh %198 : vector<16x128xf32>
    %200 = vector.extract_strided_slice %185 {offsets = [0, 384], sizes = [16, 128], strides = [1, 1]} : vector<16x512xf32> to vector<16x128xf32>
    %201 = arith.negf %200 : vector<16x128xf32>
    %202 = math.exp %201 : vector<16x128xf32>
    %cst_49 = arith.constant 1.000000e+00 : f32
    %203 = vector.broadcast %cst_49 : f32 to vector<16x128xf32>
    %204 = arith.addf %203, %202 : vector<16x128xf32>
    %205 = arith.divf %203, %204 : vector<16x128xf32>
    %206 = arith.mulf %197, %174 : vector<16x128xf32>
    %207 = arith.mulf %191, %199 : vector<16x128xf32>
    %208 = arith.addf %206, %207 : vector<16x128xf32>
    %209 = math.tanh %208 : vector<16x128xf32>
    %210 = arith.mulf %205, %209 : vector<16x128xf32>
    %211 = vector.broadcast %c4_i32 : i32 to vector<16x128xi32>
    %212 = arith.cmpi slt, %211, %20 : vector<16x128xi32>
    %213 = arith.select %212, %208, %174 : vector<16x128xi1>, vector<16x128xf32>
    %214 = arith.select %212, %210, %175 : vector<16x128xi1>, vector<16x128xf32>
    %215 = arith.index_cast %c4_i32 : i32 to index
    %c0_50 = arith.constant 0 : index
    %c0_51 = arith.constant 0 : index
    %216 = vector.load %arg11[%215, %c0_50, %c0_51] : memref<8x16x128xf32, #tpu.memory_space<vmem>>, vector<1x16x128xf32>
    %217 = vector.shape_cast %216 : vector<1x16x128xf32> to vector<16x128xf32>
    %218 = vector.shape_cast %214 : vector<16x128xf32> to vector<1x16x128xf32>
    tpu.vector_store %arg11[%215, %c0_50, %c0_51], %218 {strides = array<i32>} : memref<8x16x128xf32, #tpu.memory_space<vmem>>, vector<1x16x128xf32>,
    %c5_i32 = arith.constant 5 : i32
    %219 = arith.index_cast %c5_i32 : i32 to index
    %c0_52 = arith.constant 0 : index
    %c0_53 = arith.constant 0 : index
    %220 = vector.load %arg12[%219, %c0_52, %c0_53] : memref<8x16x512xf32, #tpu.memory_space<vmem>>, vector<1x16x512xf32>
    %221 = vector.shape_cast %220 : vector<1x16x512xf32> to vector<16x512xf32>
    %222 = arith.truncf %214 : vector<16x128xf32> to vector<16x128xbf16>
    %cst_54 = arith.constant dense<0.000000e+00> : vector<16x512xf32>
    %223 = tpu.matmul %222, %22, %cst_54 {dimension_numbers = #tpu.dot_dimension_numbers<[1], [0], [0], [1], [0, 0, 1, 1], [], []>} : vector<16x128xbf16>, vector<128x512xbf16>, vector<16x512xf32> -> vector<16x512xf32>
    %224 = arith.addf %221, %223 : vector<16x512xf32>
    %225 = vector.extract_strided_slice %224 {offsets = [0, 0], sizes = [16, 128], strides = [1, 1]} : vector<16x512xf32> to vector<16x128xf32>
    %226 = arith.negf %225 : vector<16x128xf32>
    %227 = math.exp %226 : vector<16x128xf32>
    %cst_55 = arith.constant 1.000000e+00 : f32
    %228 = vector.broadcast %cst_55 : f32 to vector<16x128xf32>
    %229 = arith.addf %228, %227 : vector<16x128xf32>
    %230 = arith.divf %228, %229 : vector<16x128xf32>
    %231 = vector.extract_strided_slice %224 {offsets = [0, 128], sizes = [16, 128], strides = [1, 1]} : vector<16x512xf32> to vector<16x128xf32>
    %232 = arith.negf %231 : vector<16x128xf32>
    %233 = math.exp %232 : vector<16x128xf32>
    %cst_56 = arith.constant 1.000000e+00 : f32
    %234 = vector.broadcast %cst_56 : f32 to vector<16x128xf32>
    %235 = arith.addf %234, %233 : vector<16x128xf32>
    %236 = arith.divf %234, %235 : vector<16x128xf32>
    %237 = vector.extract_strided_slice %224 {offsets = [0, 256], sizes = [16, 128], strides = [1, 1]} : vector<16x512xf32> to vector<16x128xf32>
    %238 = math.tanh %237 : vector<16x128xf32>
    %239 = vector.extract_strided_slice %224 {offsets = [0, 384], sizes = [16, 128], strides = [1, 1]} : vector<16x512xf32> to vector<16x128xf32>
    %240 = arith.negf %239 : vector<16x128xf32>
    %241 = math.exp %240 : vector<16x128xf32>
    %cst_57 = arith.constant 1.000000e+00 : f32
    %242 = vector.broadcast %cst_57 : f32 to vector<16x128xf32>
    %243 = arith.addf %242, %241 : vector<16x128xf32>
    %244 = arith.divf %242, %243 : vector<16x128xf32>
    %245 = arith.mulf %236, %213 : vector<16x128xf32>
    %246 = arith.mulf %230, %238 : vector<16x128xf32>
    %247 = arith.addf %245, %246 : vector<16x128xf32>
    %248 = math.tanh %247 : vector<16x128xf32>
    %249 = arith.mulf %244, %248 : vector<16x128xf32>
    %250 = vector.broadcast %c5_i32 : i32 to vector<16x128xi32>
    %251 = arith.cmpi slt, %250, %20 : vector<16x128xi32>
    %252 = arith.select %251, %247, %213 : vector<16x128xi1>, vector<16x128xf32>
    %253 = arith.select %251, %249, %214 : vector<16x128xi1>, vector<16x128xf32>
    %254 = arith.index_cast %c5_i32 : i32 to index
    %c0_58 = arith.constant 0 : index
    %c0_59 = arith.constant 0 : index
    %255 = vector.load %arg11[%254, %c0_58, %c0_59] : memref<8x16x128xf32, #tpu.memory_space<vmem>>, vector<1x16x128xf32>
    %256 = vector.shape_cast %255 : vector<1x16x128xf32> to vector<16x128xf32>
    %257 = vector.shape_cast %253 : vector<16x128xf32> to vector<1x16x128xf32>
    tpu.vector_store %arg11[%254, %c0_58, %c0_59], %257 {strides = array<i32>} : memref<8x16x128xf32, #tpu.memory_space<vmem>>, vector<1x16x128xf32>,
    %c6_i32_60 = arith.constant 6 : i32
    %258 = arith.index_cast %c6_i32_60 : i32 to index
    %c0_61 = arith.constant 0 : index
    %c0_62 = arith.constant 0 : index
    %259 = vector.load %arg12[%258, %c0_61, %c0_62] : memref<8x16x512xf32, #tpu.memory_space<vmem>>, vector<1x16x512xf32>
    %260 = vector.shape_cast %259 : vector<1x16x512xf32> to vector<16x512xf32>
    %261 = arith.truncf %253 : vector<16x128xf32> to vector<16x128xbf16>
    %cst_63 = arith.constant dense<0.000000e+00> : vector<16x512xf32>
    %262 = tpu.matmul %261, %22, %cst_63 {dimension_numbers = #tpu.dot_dimension_numbers<[1], [0], [0], [1], [0, 0, 1, 1], [], []>} : vector<16x128xbf16>, vector<128x512xbf16>, vector<16x512xf32> -> vector<16x512xf32>
    %263 = arith.addf %260, %262 : vector<16x512xf32>
    %264 = vector.extract_strided_slice %263 {offsets = [0, 0], sizes = [16, 128], strides = [1, 1]} : vector<16x512xf32> to vector<16x128xf32>
    %265 = arith.negf %264 : vector<16x128xf32>
    %266 = math.exp %265 : vector<16x128xf32>
    %cst_64 = arith.constant 1.000000e+00 : f32
    %267 = vector.broadcast %cst_64 : f32 to vector<16x128xf32>
    %268 = arith.addf %267, %266 : vector<16x128xf32>
    %269 = arith.divf %267, %268 : vector<16x128xf32>
    %270 = vector.extract_strided_slice %263 {offsets = [0, 128], sizes = [16, 128], strides = [1, 1]} : vector<16x512xf32> to vector<16x128xf32>
    %271 = arith.negf %270 : vector<16x128xf32>
    %272 = math.exp %271 : vector<16x128xf32>
    %cst_65 = arith.constant 1.000000e+00 : f32
    %273 = vector.broadcast %cst_65 : f32 to vector<16x128xf32>
    %274 = arith.addf %273, %272 : vector<16x128xf32>
    %275 = arith.divf %273, %274 : vector<16x128xf32>
    %276 = vector.extract_strided_slice %263 {offsets = [0, 256], sizes = [16, 128], strides = [1, 1]} : vector<16x512xf32> to vector<16x128xf32>
    %277 = math.tanh %276 : vector<16x128xf32>
    %278 = vector.extract_strided_slice %263 {offsets = [0, 384], sizes = [16, 128], strides = [1, 1]} : vector<16x512xf32> to vector<16x128xf32>
    %279 = arith.negf %278 : vector<16x128xf32>
    %280 = math.exp %279 : vector<16x128xf32>
    %cst_66 = arith.constant 1.000000e+00 : f32
    %281 = vector.broadcast %cst_66 : f32 to vector<16x128xf32>
    %282 = arith.addf %281, %280 : vector<16x128xf32>
    %283 = arith.divf %281, %282 : vector<16x128xf32>
    %284 = arith.mulf %275, %252 : vector<16x128xf32>
    %285 = arith.mulf %269, %277 : vector<16x128xf32>
    %286 = arith.addf %284, %285 : vector<16x128xf32>
    %287 = math.tanh %286 : vector<16x128xf32>
    %288 = arith.mulf %283, %287 : vector<16x128xf32>
    %289 = vector.broadcast %c6_i32_60 : i32 to vector<16x128xi32>
    %290 = arith.cmpi slt, %289, %20 : vector<16x128xi32>
    %291 = arith.select %290, %286, %252 : vector<16x128xi1>, vector<16x128xf32>
    %292 = arith.select %290, %288, %253 : vector<16x128xi1>, vector<16x128xf32>
    %293 = arith.index_cast %c6_i32_60 : i32 to index
    %c0_67 = arith.constant 0 : index
    %c0_68 = arith.constant 0 : index
    %294 = vector.load %arg11[%293, %c0_67, %c0_68] : memref<8x16x128xf32, #tpu.memory_space<vmem>>, vector<1x16x128xf32>
    %295 = vector.shape_cast %294 : vector<1x16x128xf32> to vector<16x128xf32>
    %296 = vector.shape_cast %292 : vector<16x128xf32> to vector<1x16x128xf32>
    tpu.vector_store %arg11[%293, %c0_67, %c0_68], %296 {strides = array<i32>} : memref<8x16x128xf32, #tpu.memory_space<vmem>>, vector<1x16x128xf32>,
    %c7_i32 = arith.constant 7 : i32
    %297 = arith.index_cast %c7_i32 : i32 to index
    %c0_69 = arith.constant 0 : index
    %c0_70 = arith.constant 0 : index
    %298 = vector.load %arg12[%297, %c0_69, %c0_70] : memref<8x16x512xf32, #tpu.memory_space<vmem>>, vector<1x16x512xf32>
    %299 = vector.shape_cast %298 : vector<1x16x512xf32> to vector<16x512xf32>
    %300 = arith.truncf %292 : vector<16x128xf32> to vector<16x128xbf16>
    %cst_71 = arith.constant dense<0.000000e+00> : vector<16x512xf32>
    %301 = tpu.matmul %300, %22, %cst_71 {dimension_numbers = #tpu.dot_dimension_numbers<[1], [0], [0], [1], [0, 0, 1, 1], [], []>} : vector<16x128xbf16>, vector<128x512xbf16>, vector<16x512xf32> -> vector<16x512xf32>
    %302 = arith.addf %299, %301 : vector<16x512xf32>
    %303 = vector.extract_strided_slice %302 {offsets = [0, 0], sizes = [16, 128], strides = [1, 1]} : vector<16x512xf32> to vector<16x128xf32>
    %304 = arith.negf %303 : vector<16x128xf32>
    %305 = math.exp %304 : vector<16x128xf32>
    %cst_72 = arith.constant 1.000000e+00 : f32
    %306 = vector.broadcast %cst_72 : f32 to vector<16x128xf32>
    %307 = arith.addf %306, %305 : vector<16x128xf32>
    %308 = arith.divf %306, %307 : vector<16x128xf32>
    %309 = vector.extract_strided_slice %302 {offsets = [0, 128], sizes = [16, 128], strides = [1, 1]} : vector<16x512xf32> to vector<16x128xf32>
    %310 = arith.negf %309 : vector<16x128xf32>
    %311 = math.exp %310 : vector<16x128xf32>
    %cst_73 = arith.constant 1.000000e+00 : f32
    %312 = vector.broadcast %cst_73 : f32 to vector<16x128xf32>
    %313 = arith.addf %312, %311 : vector<16x128xf32>
    %314 = arith.divf %312, %313 : vector<16x128xf32>
    %315 = vector.extract_strided_slice %302 {offsets = [0, 256], sizes = [16, 128], strides = [1, 1]} : vector<16x512xf32> to vector<16x128xf32>
    %316 = math.tanh %315 : vector<16x128xf32>
    %317 = vector.extract_strided_slice %302 {offsets = [0, 384], sizes = [16, 128], strides = [1, 1]} : vector<16x512xf32> to vector<16x128xf32>
    %318 = arith.negf %317 : vector<16x128xf32>
    %319 = math.exp %318 : vector<16x128xf32>
    %cst_74 = arith.constant 1.000000e+00 : f32
    %320 = vector.broadcast %cst_74 : f32 to vector<16x128xf32>
    %321 = arith.addf %320, %319 : vector<16x128xf32>
    %322 = arith.divf %320, %321 : vector<16x128xf32>
    %323 = arith.mulf %314, %291 : vector<16x128xf32>
    %324 = arith.mulf %308, %316 : vector<16x128xf32>
    %325 = arith.addf %323, %324 : vector<16x128xf32>
    %326 = math.tanh %325 : vector<16x128xf32>
    %327 = arith.mulf %322, %326 : vector<16x128xf32>
    %328 = vector.broadcast %c7_i32 : i32 to vector<16x128xi32>
    %329 = arith.cmpi slt, %328, %20 : vector<16x128xi32>
    %330 = arith.select %329, %325, %291 : vector<16x128xi1>, vector<16x128xf32>
    %331 = arith.select %329, %327, %292 : vector<16x128xi1>, vector<16x128xf32>
    %332 = arith.index_cast %c7_i32 : i32 to index
    %c0_75 = arith.constant 0 : index
    %c0_76 = arith.constant 0 : index
    %333 = vector.load %arg11[%332, %c0_75, %c0_76] : memref<8x16x128xf32, #tpu.memory_space<vmem>>, vector<1x16x128xf32>
    %334 = vector.shape_cast %333 : vector<1x16x128xf32> to vector<16x128xf32>
    %335 = vector.shape_cast %331 : vector<16x128xf32> to vector<1x16x128xf32>
    tpu.vector_store %arg11[%332, %c0_75, %c0_76], %335 {strides = array<i32>} : memref<8x16x128xf32, #tpu.memory_space<vmem>>, vector<1x16x128xf32>,
    %c8_i32_77 = arith.constant 8 : i32
    %336 = vector.extract_strided_slice %330 {offsets = [0, 0], sizes = [8, 128], strides = [1, 1]} : vector<16x128xf32> to vector<8x128xf32>
    %337 = vector.extract_strided_slice %330 {offsets = [8, 0], sizes = [8, 128], strides = [1, 1]} : vector<16x128xf32> to vector<8x128xf32>
    %338 = arith.truncf %336 : vector<8x128xf32> to vector<8x128xbf16>
    %c0_78 = arith.constant 0 : index
    %c0_79 = arith.constant 0 : index
    %339 = vector.load %arg5[%c0_78, %c0_79] : memref<128x128xbf16, #tpu.memory_space<vmem>>, vector<128x128xbf16>
    %cst_80 = arith.constant dense<0.000000e+00> : vector<8x128xf32>
    %340 = tpu.matmul %338, %339, %cst_80 {dimension_numbers = #tpu.dot_dimension_numbers<[1], [0], [0], [1], [0, 0, 1, 1], [], []>} : vector<8x128xbf16>, vector<128x128xbf16>, vector<8x128xf32> -> vector<8x128xf32>
    %341 = arith.truncf %337 : vector<8x128xf32> to vector<8x128xbf16>
    %c0_81 = arith.constant 0 : index
    %c0_82 = arith.constant 0 : index
    %342 = vector.load %arg6[%c0_81, %c0_82] : memref<128x128xbf16, #tpu.memory_space<vmem>>, vector<128x128xbf16>
    %cst_83 = arith.constant dense<0.000000e+00> : vector<8x128xf32>
    %343 = tpu.matmul %341, %342, %cst_83 {dimension_numbers = #tpu.dot_dimension_numbers<[1], [0], [0], [1], [0, 0, 1, 1], [], []>} : vector<8x128xbf16>, vector<128x128xbf16>, vector<8x128xf32> -> vector<8x128xf32>
    %344 = arith.addf %340, %343 : vector<8x128xf32>
    %c0_84 = arith.constant 0 : index
    %c0_85 = arith.constant 0 : index
    %345 = vector.load %arg7[%c0_84, %c0_85] : memref<1x128xf32, #tpu.memory_space<vmem>>, vector<1x128xf32>
    %346 = vector.broadcast %345 : vector<1x128xf32> to vector<8x128xf32>
    %347 = arith.addf %344, %346 : vector<8x128xf32>
    %cst_86 = arith.constant 0.000000e+00 : f32
    %348 = vector.broadcast %cst_86 : f32 to vector<8x128xf32>
    %349 = arith.maximumf %347, %348 : vector<8x128xf32>
    %350 = arith.truncf %349 : vector<8x128xf32> to vector<8x128xbf16>
    %c0_87 = arith.constant 0 : index
    %c0_88 = arith.constant 0 : index
    %351 = vector.load %arg8[%c0_87, %c0_88] : memref<128x128xbf16, #tpu.memory_space<vmem>>, vector<128x128xbf16>
    %cst_89 = arith.constant dense<0.000000e+00> : vector<8x128xf32>
    %352 = tpu.matmul %350, %351, %cst_89 {dimension_numbers = #tpu.dot_dimension_numbers<[1], [0], [0], [1], [0, 0, 1, 1], [], []>} : vector<8x128xbf16>, vector<128x128xbf16>, vector<8x128xf32> -> vector<8x128xf32>
    %c0_90 = arith.constant 0 : index
    %c0_91 = arith.constant 0 : index
    %353 = vector.load %arg9[%c0_90, %c0_91] : memref<1x128xf32, #tpu.memory_space<vmem>>, vector<1x128xf32>
    %354 = vector.broadcast %353 : vector<1x128xf32> to vector<8x128xf32>
    %355 = arith.addf %352, %354 : vector<8x128xf32>
    %356 = arith.index_cast %arg0 : i32 to index
    %c0_92 = arith.constant 0 : index
    %c0_93 = arith.constant 0 : index
    %357 = vector.load %arg10[%356, %c0_92, %c0_93] : memref<2x8x128xf32, #tpu.memory_space<vmem>>, vector<1x8x128xf32>
    %358 = vector.shape_cast %357 : vector<1x8x128xf32> to vector<8x128xf32>
    %359 = vector.shape_cast %355 : vector<8x128xf32> to vector<1x8x128xf32>
    tpu.vector_store %arg10[%356, %c0_92, %c0_93], %359 {strides = array<i32>} : memref<2x8x128xf32, #tpu.memory_space<vmem>>, vector<1x8x128xf32>,
    return
  }
  func.func @transform_0(%arg0: i32) -> (i32, i32, i32) {
    %c0_i32 = arith.constant 0 : i32
    %c0_i32_0 = arith.constant 0 : i32
    %c0_i32_1 = arith.constant 0 : i32
    %c0_i32_2 = arith.constant 0 : i32
    return %c0_i32, %c0_i32_0, %c0_i32_1 : i32, i32, i32
  }
  func.func @transform_1(%arg0: i32) -> (i32, i32, i32) {
    %c0_i32 = arith.constant 0 : i32
    %c0_i32_0 = arith.constant 0 : i32
    %c0_i32_1 = arith.constant 0 : i32
    return %arg0, %c0_i32, %c0_i32_0 : i32, i32, i32
  }
  func.func @transform_2(%arg0: i32) -> (i32, i32, i32) {
    %c0_i32 = arith.constant 0 : i32
    %c0_i32_0 = arith.constant 0 : i32
    %c0_i32_1 = arith.constant 0 : i32
    return %arg0, %c0_i32, %c0_i32_0 : i32, i32, i32
  }
  func.func @transform_3(%arg0: i32) -> (i32, i32, i32) {
    %c0_i32 = arith.constant 0 : i32
    %c0_i32_0 = arith.constant 0 : i32
    %c0_i32_1 = arith.constant 0 : i32
    return %arg0, %c0_i32, %c0_i32_0 : i32, i32, i32
  }
  func.func @transform_4(%arg0: i32) -> (i32, i32) {
    %c0_i32 = arith.constant 0 : i32
    %c0_i32_0 = arith.constant 0 : i32
    %c0_i32_1 = arith.constant 0 : i32
    return %c0_i32, %c0_i32_0 : i32, i32
  }
  func.func @transform_5(%arg0: i32) -> (i32, i32) {
    %c0_i32 = arith.constant 0 : i32
    %c0_i32_0 = arith.constant 0 : i32
    %c0_i32_1 = arith.constant 0 : i32
    return %c0_i32, %c0_i32_0 : i32, i32
  }
  func.func @transform_6(%arg0: i32) -> (i32, i32) {
    %c0_i32 = arith.constant 0 : i32
    %c0_i32_0 = arith.constant 0 : i32
    %c0_i32_1 = arith.constant 0 : i32
    return %c0_i32, %c0_i32_0 : i32, i32
  }
  func.func @transform_7(%arg0: i32) -> (i32, i32) {
    %c0_i32 = arith.constant 0 : i32
    %c0_i32_0 = arith.constant 0 : i32
    %c0_i32_1 = arith.constant 0 : i32
    return %c0_i32, %c0_i32_0 : i32, i32
  }
  func.func @transform_8(%arg0: i32) -> (i32, i32) {
    %c0_i32 = arith.constant 0 : i32
    %c0_i32_0 = arith.constant 0 : i32
    %c0_i32_1 = arith.constant 0 : i32
    return %c0_i32, %c0_i32_0 : i32, i32
  }
  func.func @transform_9(%arg0: i32) -> (i32, i32, i32) {
    %c0_i32 = arith.constant 0 : i32
    %c0_i32_0 = arith.constant 0 : i32
    %c0_i32_1 = arith.constant 0 : i32
    %c0_i32_2 = arith.constant 0 : i32
    return %c0_i32, %c0_i32_0, %c0_i32_1 : i32, i32, i32
  }
}

module attributes {stable_mosaic.version = 11 : i64} {
  func.func @_uni_lstm_kernel(%arg0: i32, %arg1: memref<8x16x128xf32, #tpu.memory_space<vmem>>, %arg2: memref<1x128x512xbf16, #tpu.memory_space<vmem>>, %arg3: memref<1x128x512xbf16, #tpu.memory_space<vmem>>, %arg4: memref<1x1x512xf32, #tpu.memory_space<vmem>>, %arg5: memref<128x128xbf16, #tpu.memory_space<vmem>>, %arg6: memref<128x128xbf16, #tpu.memory_space<vmem>>, %arg7: memref<1x128xf32, #tpu.memory_space<vmem>>, %arg8: memref<128x128xbf16, #tpu.memory_space<vmem>>, %arg9: memref<1x128xf32, #tpu.memory_space<vmem>>, %arg10: memref<2x8x128xf32, #tpu.memory_space<vmem>>, %arg11: memref<8x16x128xf32, #tpu.memory_space<vmem>>, %arg12: memref<8x16x512xf32, #tpu.memory_space<vmem>>) attributes {dimension_semantics = [#tpu.dimension_semantics<arbitrary>], iteration_bounds = array<i64: 2>, scalar_prefetch = 0 : i64, scratch_operands = 2 : i64, tpu.core_type = #tpu.core_type<tc>, window_params = [{pipeline_mode = #tpu.pipeline_mode<synchronous>, transform_indices = @transform_0, window_bounds = array<i64: 8, 16, 128>}, {transform_indices = @transform_1, window_bounds = array<i64: 1, 128, 512>}, {transform_indices = @transform_2, window_bounds = array<i64: 1, 128, 512>}, {transform_indices = @transform_3, window_bounds = array<i64: 1, 1, 512>}, {pipeline_mode = #tpu.pipeline_mode<synchronous>, transform_indices = @transform_4, window_bounds = array<i64: 128, 128>}, {pipeline_mode = #tpu.pipeline_mode<synchronous>, transform_indices = @transform_5, window_bounds = array<i64: 128, 128>}, {pipeline_mode = #tpu.pipeline_mode<synchronous>, transform_indices = @transform_6, window_bounds = array<i64: 1, 128>}, {pipeline_mode = #tpu.pipeline_mode<synchronous>, transform_indices = @transform_7, window_bounds = array<i64: 128, 128>}, {pipeline_mode = #tpu.pipeline_mode<synchronous>, transform_indices = @transform_8, window_bounds = array<i64: 1, 128>}, {pipeline_mode = #tpu.pipeline_mode<synchronous>, transform_indices = @transform_9, window_bounds = array<i64: 2, 8, 128>}]} {
    %c0 = arith.constant 0 : index
    %c0_0 = arith.constant 0 : index
    %c0_1 = arith.constant 0 : index
    %0 = vector.load %arg4[%c0, %c0_0, %c0_1] : memref<1x1x512xf32, #tpu.memory_space<vmem>>, vector<1x1x512xf32>
    %1 = vector.shape_cast %0 : vector<1x1x512xf32> to vector<1x512xf32>
    %c0_i32 = arith.constant 0 : i32
    %2 = arith.cmpi eq, %arg0, %c0_i32 : i32
    %3 = arith.extui %2 : i1 to i32
    %c0_i32_2 = arith.constant 0 : i32
    %4 = arith.cmpi ne, %3, %c0_i32_2 : i32
    scf.if %4 {
      %c0_94 = arith.constant 0 : index
      %c0_95 = arith.constant 0 : index
      %c0_96 = arith.constant 0 : index
      %360 = vector.load %arg1[%c0_94, %c0_95, %c0_96] : memref<8x16x128xf32, #tpu.memory_space<vmem>>, vector<8x16x128xf32>
      %361 = vector.shape_cast %360 : vector<8x16x128xf32> to vector<128x128xf32>
      %362 = arith.truncf %361 : vector<128x128xf32> to vector<128x128xbf16>
      %c0_97 = arith.constant 0 : index
      %c0_98 = arith.constant 0 : index
      %c0_99 = arith.constant 0 : index
      %363 = vector.load %arg2[%c0_97, %c0_98, %c0_99] : memref<1x128x512xbf16, #tpu.memory_space<vmem>>, vector<1x128x512xbf16>
      %364 = vector.shape_cast %363 : vector<1x128x512xbf16> to vector<128x512xbf16>
      %cst_100 = arith.constant dense<0.000000e+00> : vector<128x512xf32>
      %365 = tpu.matmul %362, %364, %cst_100 {dimension_numbers = #tpu.dot_dimension_numbers<[1], [0], [0], [1], [0, 0, 1, 1], [], []>} : vector<128x128xbf16>, vector<128x512xbf16>, vector<128x512xf32> -> vector<128x512xf32>
      %366 = vector.broadcast %1 : vector<1x512xf32> to vector<128x512xf32>
      %367 = arith.addf %365, %366 : vector<128x512xf32>
      %368 = vector.shape_cast %367 : vector<128x512xf32> to vector<8x16x512xf32>
      %c0_101 = arith.constant 0 : index
      %c0_102 = arith.constant 0 : index
      %c0_103 = arith.constant 0 : index
      %369 = vector.load %arg12[%c0_101, %c0_102, %c0_103] : memref<8x16x512xf32, #tpu.memory_space<vmem>>, vector<8x16x512xf32>
      tpu.vector_store %arg12[%c0_101, %c0_102, %c0_103], %368 {strides = array<i32>} : memref<8x16x512xf32, #tpu.memory_space<vmem>>, vector<8x16x512xf32>,
    } else {
    }
    %c0_i32_3 = arith.constant 0 : i32
    %5 = arith.cmpi ne, %arg0, %c0_i32_3 : i32
    %6 = arith.extui %5 : i1 to i32
    %c0_i32_4 = arith.constant 0 : i32
    %7 = arith.cmpi ne, %6, %c0_i32_4 : i32
    scf.if %7 {
      %c0_94 = arith.constant 0 : index
      %c0_95 = arith.constant 0 : index
      %c0_96 = arith.constant 0 : index
      %360 = vector.load %arg11[%c0_94, %c0_95, %c0_96] : memref<8x16x128xf32, #tpu.memory_space<vmem>>, vector<8x16x128xf32>
      %361 = vector.shape_cast %360 : vector<8x16x128xf32> to vector<128x128xf32>
      %362 = arith.truncf %361 : vector<128x128xf32> to vector<128x128xbf16>
      %c0_97 = arith.constant 0 : index
      %c0_98 = arith.constant 0 : index
      %c0_99 = arith.constant 0 : index
      %363 = vector.load %arg2[%c0_97, %c0_98, %c0_99] : memref<1x128x512xbf16, #tpu.memory_space<vmem>>, vector<1x128x512xbf16>
      %364 = vector.shape_cast %363 : vector<1x128x512xbf16> to vector<128x512xbf16>
      %cst_100 = arith.constant dense<0.000000e+00> : vector<128x512xf32>
      %365 = tpu.matmul %362, %364, %cst_100 {dimension_numbers = #tpu.dot_dimension_numbers<[1], [0], [0], [1], [0, 0, 1, 1], [], []>} : vector<128x128xbf16>, vector<128x512xbf16>, vector<128x512xf32> -> vector<128x512xf32>
      %366 = vector.broadcast %1 : vector<1x512xf32> to vector<128x512xf32>
      %367 = arith.addf %365, %366 : vector<128x512xf32>
      %368 = vector.shape_cast %367 : vector<128x512xf32> to vector<8x16x512xf32>
      %c0_101 = arith.constant 0 : index
      %c0_102 = arith.constant 0 : index
      %c0_103 = arith.constant 0 : index
      %369 = vector.load %arg12[%c0_101, %c0_102, %c0_103] : memref<8x16x512xf32, #tpu.memory_space<vmem>>, vector<8x16x512xf32>
      tpu.vector_store %arg12[%c0_101, %c0_102, %c0_103], %368 {strides = array<i32>} : memref<8x16x512xf32, #tpu.memory_space<vmem>>, vector<8x16x512xf32>,
    } else {
    }
    %8 = tpu.iota {dimensions = array<i32: 0>} : vector<16x128xi32>
    %c2_i32 = arith.constant 2 : i32
    %9 = vector.broadcast %c2_i32 : i32 to vector<16x128xi32>
    %10 = arith.cmpi slt, %8, %9 : vector<16x128xi32>
    %c8_i32 = arith.constant 8 : i32
    %11 = vector.broadcast %c8_i32 : i32 to vector<16x128xi32>
    %12 = arith.cmpi sge, %8, %11 : vector<16x128xi32>
    %c10_i32 = arith.constant 10 : i32
    %13 = vector.broadcast %c10_i32 : i32 to vector<16x128xi32>
    %14 = arith.cmpi slt, %8, %13 : vector<16x128xi32>
    %15 = arith.andi %12, %14 : vector<16x128xi1>
    %c6_i32 = arith.constant 6 : i32
    %c0_i32_5 = arith.constant 0 : i32
    %16 = vector.broadcast %c6_i32 : i32 to vector<16x128xi32>
    %17 = vector.broadcast %c0_i32_5 : i32 to vector<16x128xi32>
    %18 = arith.select %15, %16, %17 : vector<16x128xi1>, vector<16x128xi32>
    %c8_i32_6 = arith.constant 8 : i32
    %19 = vector.broadcast %c8_i32_6 : i32 to vector<16x128xi32>
    %20 = arith.select %10, %19, %18 : vector<16x128xi1>, vector<16x128xi32>
    %c0_7 = arith.constant 0 : index
    %c0_8 = arith.constant 0 : index
    %c0_9 = arith.constant 0 : index
    %21 = vector.load %arg3[%c0_7, %c0_8, %c0_9] : memref<1x128x512xbf16, #tpu.memory_space<vmem>>, vector<1x128x512xbf16>
    %22 = vector.shape_cast %21 : vector<1x128x512xbf16> to vector<128x512xbf16>
    %cst = arith.constant 0.000000e+00 : f32
    %23 = vector.broadcast %cst : f32 to vector<16x128xf32>
    %c0_i32_10 = arith.constant 0 : i32
    %24 = arith.index_cast %c0_i32_10 : i32 to index
    %c0_11 = arith.constant 0 : index
    %c0_12 = arith.constant 0 : index
    %25 = vector.load %arg12[%24, %c0_11, %c0_12] : memref<8x16x512xf32, #tpu.memory_space<vmem>>, vector<1x16x512xf32>
    %26 = vector.shape_cast %25 : vector<1x16x512xf32> to vector<16x512xf32>
    %27 = arith.truncf %23 : vector<16x128xf32> to vector<16x128xbf16>
    %cst_13 = arith.constant dense<0.000000e+00> : vector<16x512xf32>
    %28 = tpu.matmul %27, %22, %cst_13 {dimension_numbers = #tpu.dot_dimension_numbers<[1], [0], [0], [1], [0, 0, 1, 1], [], []>} : vector<16x128xbf16>, vector<128x512xbf16>, vector<16x512xf32> -> vector<16x512xf32>
    %29 = arith.addf %26, %28 : vector<16x512xf32>
    %30 = vector.extract_strided_slice %29 {offsets = [0, 0], sizes = [16, 128], strides = [1, 1]} : vector<16x512xf32> to vector<16x128xf32>
    %31 = arith.negf %30 : vector<16x128xf32>
    %32 = math.exp %31 : vector<16x128xf32>
    %cst_14 = arith.constant 1.000000e+00 : f32
    %33 = vector.broadcast %cst_14 : f32 to vector<16x128xf32>
    %34 = arith.addf %33, %32 : vector<16x128xf32>
    %35 = arith.divf %33, %34 : vector<16x128xf32>
    %36 = vector.extract_strided_slice %29 {offsets = [0, 128], sizes = [16, 128], strides = [1, 1]} : vector<16x512xf32> to vector<16x128xf32>
    %37 = arith.negf %36 : vector<16x128xf32>
    %38 = math.exp %37 : vector<16x128xf32>
    %cst_15 = arith.constant 1.000000e+00 : f32
    %39 = vector.broadcast %cst_15 : f32 to vector<16x128xf32>
    %40 = arith.addf %39, %38 : vector<16x128xf32>
    %41 = arith.divf %39, %40 : vector<16x128xf32>
    %42 = vector.extract_strided_slice %29 {offsets = [0, 256], sizes = [16, 128], strides = [1, 1]} : vector<16x512xf32> to vector<16x128xf32>
    %43 = math.tanh %42 : vector<16x128xf32>
    %44 = vector.extract_strided_slice %29 {offsets = [0, 384], sizes = [16, 128], strides = [1, 1]} : vector<16x512xf32> to vector<16x128xf32>
    %45 = arith.negf %44 : vector<16x128xf32>
    %46 = math.exp %45 : vector<16x128xf32>
    %cst_16 = arith.constant 1.000000e+00 : f32
    %47 = vector.broadcast %cst_16 : f32 to vector<16x128xf32>
    %48 = arith.addf %47, %46 : vector<16x128xf32>
    %49 = arith.divf %47, %48 : vector<16x128xf32>
    %50 = arith.mulf %41, %23 : vector<16x128xf32>
    %51 = arith.mulf %35, %43 : vector<16x128xf32>
    %52 = arith.addf %50, %51 : vector<16x128xf32>
    %53 = math.tanh %52 : vector<16x128xf32>
    %54 = arith.mulf %49, %53 : vector<16x128xf32>
    %55 = vector.broadcast %c0_i32_10 : i32 to vector<16x128xi32>
    %56 = arith.cmpi slt, %55, %20 : vector<16x128xi32>
    %57 = arith.select %56, %52, %23 : vector<16x128xi1>, vector<16x128xf32>
    %58 = arith.select %56, %54, %23 : vector<16x128xi1>, vector<16x128xf32>
    %59 = arith.index_cast %c0_i32_10 : i32 to index
    %c0_17 = arith.constant 0 : index
    %c0_18 = arith.constant 0 : index
    %60 = vector.load %arg11[%59, %c0_17, %c0_18] : memref<8x16x128xf32, #tpu.memory_space<vmem>>, vector<1x16x128xf32>
    %61 = vector.shape_cast %60 : vector<1x16x128xf32> to vector<16x128xf32>
    %62 = vector.shape_cast %58 : vector<16x128xf32> to vector<1x16x128xf32>
    tpu.vector_store %arg11[%59, %c0_17, %c0_18], %62 {strides = array<i32>} : memref<8x16x128xf32, #tpu.memory_space<vmem>>, vector<1x16x128xf32>,
    %c1_i32 = arith.constant 1 : i32
    %63 = arith.index_cast %c1_i32 : i32 to index
    %c0_19 = arith.constant 0 : index
    %c0_20 = arith.constant 0 : index
    %64 = vector.load %arg12[%63, %c0_19, %c0_20] : memref<8x16x512xf32, #tpu.memory_space<vmem>>, vector<1x16x512xf32>
    %65 = vector.shape_cast %64 : vector<1x16x512xf32> to vector<16x512xf32>
    %66 = arith.truncf %58 : vector<16x128xf32> to vector<16x128xbf16>
    %cst_21 = arith.constant dense<0.000000e+00> : vector<16x512xf32>
    %67 = tpu.matmul %66, %22, %cst_21 {dimension_numbers = #tpu.dot_dimension_numbers<[1], [0], [0], [1], [0, 0, 1, 1], [], []>} : vector<16x128xbf16>, vector<128x512xbf16>, vector<16x512xf32> -> vector<16x512xf32>
    %68 = arith.addf %65, %67 : vector<16x512xf32>
    %69 = vector.extract_strided_slice %68 {offsets = [0, 0], sizes = [16, 128], strides = [1, 1]} : vector<16x512xf32> to vector<16x128xf32>
    %70 = arith.negf %69 : vector<16x128xf32>
    %71 = math.exp %70 : vector<16x128xf32>
    %cst_22 = arith.constant 1.000000e+00 : f32
    %72 = vector.broadcast %cst_22 : f32 to vector<16x128xf32>
    %73 = arith.addf %72, %71 : vector<16x128xf32>
    %74 = arith.divf %72, %73 : vector<16x128xf32>
    %75 = vector.extract_strided_slice %68 {offsets = [0, 128], sizes = [16, 128], strides = [1, 1]} : vector<16x512xf32> to vector<16x128xf32>
    %76 = arith.negf %75 : vector<16x128xf32>
    %77 = math.exp %76 : vector<16x128xf32>
    %cst_23 = arith.constant 1.000000e+00 : f32
    %78 = vector.broadcast %cst_23 : f32 to vector<16x128xf32>
    %79 = arith.addf %78, %77 : vector<16x128xf32>
    %80 = arith.divf %78, %79 : vector<16x128xf32>
    %81 = vector.extract_strided_slice %68 {offsets = [0, 256], sizes = [16, 128], strides = [1, 1]} : vector<16x512xf32> to vector<16x128xf32>
    %82 = math.tanh %81 : vector<16x128xf32>
    %83 = vector.extract_strided_slice %68 {offsets = [0, 384], sizes = [16, 128], strides = [1, 1]} : vector<16x512xf32> to vector<16x128xf32>
    %84 = arith.negf %83 : vector<16x128xf32>
    %85 = math.exp %84 : vector<16x128xf32>
    %cst_24 = arith.constant 1.000000e+00 : f32
    %86 = vector.broadcast %cst_24 : f32 to vector<16x128xf32>
    %87 = arith.addf %86, %85 : vector<16x128xf32>
    %88 = arith.divf %86, %87 : vector<16x128xf32>
    %89 = arith.mulf %80, %57 : vector<16x128xf32>
    %90 = arith.mulf %74, %82 : vector<16x128xf32>
    %91 = arith.addf %89, %90 : vector<16x128xf32>
    %92 = math.tanh %91 : vector<16x128xf32>
    %93 = arith.mulf %88, %92 : vector<16x128xf32>
    %94 = vector.broadcast %c1_i32 : i32 to vector<16x128xi32>
    %95 = arith.cmpi slt, %94, %20 : vector<16x128xi32>
    %96 = arith.select %95, %91, %57 : vector<16x128xi1>, vector<16x128xf32>
    %97 = arith.select %95, %93, %58 : vector<16x128xi1>, vector<16x128xf32>
    %98 = arith.index_cast %c1_i32 : i32 to index
    %c0_25 = arith.constant 0 : index
    %c0_26 = arith.constant 0 : index
    %99 = vector.load %arg11[%98, %c0_25, %c0_26] : memref<8x16x128xf32, #tpu.memory_space<vmem>>, vector<1x16x128xf32>
    %100 = vector.shape_cast %99 : vector<1x16x128xf32> to vector<16x128xf32>
    %101 = vector.shape_cast %97 : vector<16x128xf32> to vector<1x16x128xf32>
    tpu.vector_store %arg11[%98, %c0_25, %c0_26], %101 {strides = array<i32>} : memref<8x16x128xf32, #tpu.memory_space<vmem>>, vector<1x16x128xf32>,
    %c2_i32_27 = arith.constant 2 : i32
    %102 = arith.index_cast %c2_i32_27 : i32 to index
    %c0_28 = arith.constant 0 : index
    %c0_29 = arith.constant 0 : index
    %103 = vector.load %arg12[%102, %c0_28, %c0_29] : memref<8x16x512xf32, #tpu.memory_space<vmem>>, vector<1x16x512xf32>
    %104 = vector.shape_cast %103 : vector<1x16x512xf32> to vector<16x512xf32>
    %105 = arith.truncf %97 : vector<16x128xf32> to vector<16x128xbf16>
    %cst_30 = arith.constant dense<0.000000e+00> : vector<16x512xf32>
    %106 = tpu.matmul %105, %22, %cst_30 {dimension_numbers = #tpu.dot_dimension_numbers<[1], [0], [0], [1], [0, 0, 1, 1], [], []>} : vector<16x128xbf16>, vector<128x512xbf16>, vector<16x512xf32> -> vector<16x512xf32>
    %107 = arith.addf %104, %106 : vector<16x512xf32>
    %108 = vector.extract_strided_slice %107 {offsets = [0, 0], sizes = [16, 128], strides = [1, 1]} : vector<16x512xf32> to vector<16x128xf32>
    %109 = arith.negf %108 : vector<16x128xf32>
    %110 = math.exp %109 : vector<16x128xf32>
    %cst_31 = arith.constant 1.000000e+00 : f32
    %111 = vector.broadcast %cst_31 : f32 to vector<16x128xf32>
    %112 = arith.addf %111, %110 : vector<16x128xf32>
    %113 = arith.divf %111, %112 : vector<16x128xf32>
    %114 = vector.extract_strided_slice %107 {offsets = [0, 128], sizes = [16, 128], strides = [1, 1]} : vector<16x512xf32> to vector<16x128xf32>
    %115 = arith.negf %114 : vector<16x128xf32>
    %116 = math.exp %115 : vector<16x128xf32>
    %cst_32 = arith.constant 1.000000e+00 : f32
    %117 = vector.broadcast %cst_32 : f32 to vector<16x128xf32>
    %118 = arith.addf %117, %116 : vector<16x128xf32>
    %119 = arith.divf %117, %118 : vector<16x128xf32>
    %120 = vector.extract_strided_slice %107 {offsets = [0, 256], sizes = [16, 128], strides = [1, 1]} : vector<16x512xf32> to vector<16x128xf32>
    %121 = math.tanh %120 : vector<16x128xf32>
    %122 = vector.extract_strided_slice %107 {offsets = [0, 384], sizes = [16, 128], strides = [1, 1]} : vector<16x512xf32> to vector<16x128xf32>
    %123 = arith.negf %122 : vector<16x128xf32>
    %124 = math.exp %123 : vector<16x128xf32>
    %cst_33 = arith.constant 1.000000e+00 : f32
    %125 = vector.broadcast %cst_33 : f32 to vector<16x128xf32>
    %126 = arith.addf %125, %124 : vector<16x128xf32>
    %127 = arith.divf %125, %126 : vector<16x128xf32>
    %128 = arith.mulf %119, %96 : vector<16x128xf32>
    %129 = arith.mulf %113, %121 : vector<16x128xf32>
    %130 = arith.addf %128, %129 : vector<16x128xf32>
    %131 = math.tanh %130 : vector<16x128xf32>
    %132 = arith.mulf %127, %131 : vector<16x128xf32>
    %133 = vector.broadcast %c2_i32_27 : i32 to vector<16x128xi32>
    %134 = arith.cmpi slt, %133, %20 : vector<16x128xi32>
    %135 = arith.select %134, %130, %96 : vector<16x128xi1>, vector<16x128xf32>
    %136 = arith.select %134, %132, %97 : vector<16x128xi1>, vector<16x128xf32>
    %137 = arith.index_cast %c2_i32_27 : i32 to index
    %c0_34 = arith.constant 0 : index
    %c0_35 = arith.constant 0 : index
    %138 = vector.load %arg11[%137, %c0_34, %c0_35] : memref<8x16x128xf32, #tpu.memory_space<vmem>>, vector<1x16x128xf32>
    %139 = vector.shape_cast %138 : vector<1x16x128xf32> to vector<16x128xf32>
    %140 = vector.shape_cast %136 : vector<16x128xf32> to vector<1x16x128xf32>
    tpu.vector_store %arg11[%137, %c0_34, %c0_35], %140 {strides = array<i32>} : memref<8x16x128xf32, #tpu.memory_space<vmem>>, vector<1x16x128xf32>,
    %c3_i32 = arith.constant 3 : i32
    %141 = arith.index_cast %c3_i32 : i32 to index
    %c0_36 = arith.constant 0 : index
    %c0_37 = arith.constant 0 : index
    %142 = vector.load %arg12[%141, %c0_36, %c0_37] : memref<8x16x512xf32, #tpu.memory_space<vmem>>, vector<1x16x512xf32>
    %143 = vector.shape_cast %142 : vector<1x16x512xf32> to vector<16x512xf32>
    %144 = arith.truncf %136 : vector<16x128xf32> to vector<16x128xbf16>
    %cst_38 = arith.constant dense<0.000000e+00> : vector<16x512xf32>
    %145 = tpu.matmul %144, %22, %cst_38 {dimension_numbers = #tpu.dot_dimension_numbers<[1], [0], [0], [1], [0, 0, 1, 1], [], []>} : vector<16x128xbf16>, vector<128x512xbf16>, vector<16x512xf32> -> vector<16x512xf32>
    %146 = arith.addf %143, %145 : vector<16x512xf32>
    %147 = vector.extract_strided_slice %146 {offsets = [0, 0], sizes = [16, 128], strides = [1, 1]} : vector<16x512xf32> to vector<16x128xf32>
    %148 = arith.negf %147 : vector<16x128xf32>
    %149 = math.exp %148 : vector<16x128xf32>
    %cst_39 = arith.constant 1.000000e+00 : f32
    %150 = vector.broadcast %cst_39 : f32 to vector<16x128xf32>
    %151 = arith.addf %150, %149 : vector<16x128xf32>
    %152 = arith.divf %150, %151 : vector<16x128xf32>
    %153 = vector.extract_strided_slice %146 {offsets = [0, 128], sizes = [16, 128], strides = [1, 1]} : vector<16x512xf32> to vector<16x128xf32>
    %154 = arith.negf %153 : vector<16x128xf32>
    %155 = math.exp %154 : vector<16x128xf32>
    %cst_40 = arith.constant 1.000000e+00 : f32
    %156 = vector.broadcast %cst_40 : f32 to vector<16x128xf32>
    %157 = arith.addf %156, %155 : vector<16x128xf32>
    %158 = arith.divf %156, %157 : vector<16x128xf32>
    %159 = vector.extract_strided_slice %146 {offsets = [0, 256], sizes = [16, 128], strides = [1, 1]} : vector<16x512xf32> to vector<16x128xf32>
    %160 = math.tanh %159 : vector<16x128xf32>
    %161 = vector.extract_strided_slice %146 {offsets = [0, 384], sizes = [16, 128], strides = [1, 1]} : vector<16x512xf32> to vector<16x128xf32>
    %162 = arith.negf %161 : vector<16x128xf32>
    %163 = math.exp %162 : vector<16x128xf32>
    %cst_41 = arith.constant 1.000000e+00 : f32
    %164 = vector.broadcast %cst_41 : f32 to vector<16x128xf32>
    %165 = arith.addf %164, %163 : vector<16x128xf32>
    %166 = arith.divf %164, %165 : vector<16x128xf32>
    %167 = arith.mulf %158, %135 : vector<16x128xf32>
    %168 = arith.mulf %152, %160 : vector<16x128xf32>
    %169 = arith.addf %167, %168 : vector<16x128xf32>
    %170 = math.tanh %169 : vector<16x128xf32>
    %171 = arith.mulf %166, %170 : vector<16x128xf32>
    %172 = vector.broadcast %c3_i32 : i32 to vector<16x128xi32>
    %173 = arith.cmpi slt, %172, %20 : vector<16x128xi32>
    %174 = arith.select %173, %169, %135 : vector<16x128xi1>, vector<16x128xf32>
    %175 = arith.select %173, %171, %136 : vector<16x128xi1>, vector<16x128xf32>
    %176 = arith.index_cast %c3_i32 : i32 to index
    %c0_42 = arith.constant 0 : index
    %c0_43 = arith.constant 0 : index
    %177 = vector.load %arg11[%176, %c0_42, %c0_43] : memref<8x16x128xf32, #tpu.memory_space<vmem>>, vector<1x16x128xf32>
    %178 = vector.shape_cast %177 : vector<1x16x128xf32> to vector<16x128xf32>
    %179 = vector.shape_cast %175 : vector<16x128xf32> to vector<1x16x128xf32>
    tpu.vector_store %arg11[%176, %c0_42, %c0_43], %179 {strides = array<i32>} : memref<8x16x128xf32, #tpu.memory_space<vmem>>, vector<1x16x128xf32>,
    %c4_i32 = arith.constant 4 : i32
    %180 = arith.index_cast %c4_i32 : i32 to index
    %c0_44 = arith.constant 0 : index
    %c0_45 = arith.constant 0 : index
    %181 = vector.load %arg12[%180, %c0_44, %c0_45] : memref<8x16x512xf32, #tpu.memory_space<vmem>>, vector<1x16x512xf32>
    %182 = vector.shape_cast %181 : vector<1x16x512xf32> to vector<16x512xf32>
    %183 = arith.truncf %175 : vector<16x128xf32> to vector<16x128xbf16>
    %cst_46 = arith.constant dense<0.000000e+00> : vector<16x512xf32>
    %184 = tpu.matmul %183, %22, %cst_46 {dimension_numbers = #tpu.dot_dimension_numbers<[1], [0], [0], [1], [0, 0, 1, 1], [], []>} : vector<16x128xbf16>, vector<128x512xbf16>, vector<16x512xf32> -> vector<16x512xf32>
    %185 = arith.addf %182, %184 : vector<16x512xf32>
    %186 = vector.extract_strided_slice %185 {offsets = [0, 0], sizes = [16, 128], strides = [1, 1]} : vector<16x512xf32> to vector<16x128xf32>
    %187 = arith.negf %186 : vector<16x128xf32>
    %188 = math.exp %187 : vector<16x128xf32>
    %cst_47 = arith.constant 1.000000e+00 : f32
    %189 = vector.broadcast %cst_47 : f32 to vector<16x128xf32>
    %190 = arith.addf %189, %188 : vector<16x128xf32>
    %191 = arith.divf %189, %190 : vector<16x128xf32>
    %192 = vector.extract_strided_slice %185 {offsets = [0, 128], sizes = [16, 128], strides = [1, 1]} : vector<16x512xf32> to vector<16x128xf32>
    %193 = arith.negf %192 : vector<16x128xf32>
    %194 = math.exp %193 : vector<16x128xf32>
    %cst_48 = arith.constant 1.000000e+00 : f32
    %195 = vector.broadcast %cst_48 : f32 to vector<16x128xf32>
    %196 = arith.addf %195, %194 : vector<16x128xf32>
    %197 = arith.divf %195, %196 : vector<16x128xf32>
    %198 = vector.extract_strided_slice %185 {offsets = [0, 256], sizes = [16, 128], strides = [1, 1]} : vector<16x512xf32> to vector<16x128xf32>
    %199 = math.tanh %198 : vector<16x128xf32>
    %200 = vector.extract_strided_slice %185 {offsets = [0, 384], sizes = [16, 128], strides = [1, 1]} : vector<16x512xf32> to vector<16x128xf32>
    %201 = arith.negf %200 : vector<16x128xf32>
    %202 = math.exp %201 : vector<16x128xf32>
    %cst_49 = arith.constant 1.000000e+00 : f32
    %203 = vector.broadcast %cst_49 : f32 to vector<16x128xf32>
    %204 = arith.addf %203, %202 : vector<16x128xf32>
    %205 = arith.divf %203, %204 : vector<16x128xf32>
    %206 = arith.mulf %197, %174 : vector<16x128xf32>
    %207 = arith.mulf %191, %199 : vector<16x128xf32>
    %208 = arith.addf %206, %207 : vector<16x128xf32>
    %209 = math.tanh %208 : vector<16x128xf32>
    %210 = arith.mulf %205, %209 : vector<16x128xf32>
    %211 = vector.broadcast %c4_i32 : i32 to vector<16x128xi32>
    %212 = arith.cmpi slt, %211, %20 : vector<16x128xi32>
    %213 = arith.select %212, %208, %174 : vector<16x128xi1>, vector<16x128xf32>
    %214 = arith.select %212, %210, %175 : vector<16x128xi1>, vector<16x128xf32>
    %215 = arith.index_cast %c4_i32 : i32 to index
    %c0_50 = arith.constant 0 : index
    %c0_51 = arith.constant 0 : index
    %216 = vector.load %arg11[%215, %c0_50, %c0_51] : memref<8x16x128xf32, #tpu.memory_space<vmem>>, vector<1x16x128xf32>
    %217 = vector.shape_cast %216 : vector<1x16x128xf32> to vector<16x128xf32>
    %218 = vector.shape_cast %214 : vector<16x128xf32> to vector<1x16x128xf32>
    tpu.vector_store %arg11[%215, %c0_50, %c0_51], %218 {strides = array<i32>} : memref<8x16x128xf32, #tpu.memory_space<vmem>>, vector<1x16x128xf32>,
    %c5_i32 = arith.constant 5 : i32
    %219 = arith.index_cast %c5_i32 : i32 to index
    %c0_52 = arith.constant 0 : index
    %c0_53 = arith.constant 0 : index
    %220 = vector.load %arg12[%219, %c0_52, %c0_53] : memref<8x16x512xf32, #tpu.memory_space<vmem>>, vector<1x16x512xf32>
    %221 = vector.shape_cast %220 : vector<1x16x512xf32> to vector<16x512xf32>
    %222 = arith.truncf %214 : vector<16x128xf32> to vector<16x128xbf16>
    %cst_54 = arith.constant dense<0.000000e+00> : vector<16x512xf32>
    %223 = tpu.matmul %222, %22, %cst_54 {dimension_numbers = #tpu.dot_dimension_numbers<[1], [0], [0], [1], [0, 0, 1, 1], [], []>} : vector<16x128xbf16>, vector<128x512xbf16>, vector<16x512xf32> -> vector<16x512xf32>
    %224 = arith.addf %221, %223 : vector<16x512xf32>
    %225 = vector.extract_strided_slice %224 {offsets = [0, 0], sizes = [16, 128], strides = [1, 1]} : vector<16x512xf32> to vector<16x128xf32>
    %226 = arith.negf %225 : vector<16x128xf32>
    %227 = math.exp %226 : vector<16x128xf32>
    %cst_55 = arith.constant 1.000000e+00 : f32
    %228 = vector.broadcast %cst_55 : f32 to vector<16x128xf32>
    %229 = arith.addf %228, %227 : vector<16x128xf32>
    %230 = arith.divf %228, %229 : vector<16x128xf32>
    %231 = vector.extract_strided_slice %224 {offsets = [0, 128], sizes = [16, 128], strides = [1, 1]} : vector<16x512xf32> to vector<16x128xf32>
    %232 = arith.negf %231 : vector<16x128xf32>
    %233 = math.exp %232 : vector<16x128xf32>
    %cst_56 = arith.constant 1.000000e+00 : f32
    %234 = vector.broadcast %cst_56 : f32 to vector<16x128xf32>
    %235 = arith.addf %234, %233 : vector<16x128xf32>
    %236 = arith.divf %234, %235 : vector<16x128xf32>
    %237 = vector.extract_strided_slice %224 {offsets = [0, 256], sizes = [16, 128], strides = [1, 1]} : vector<16x512xf32> to vector<16x128xf32>
    %238 = math.tanh %237 : vector<16x128xf32>
    %239 = vector.extract_strided_slice %224 {offsets = [0, 384], sizes = [16, 128], strides = [1, 1]} : vector<16x512xf32> to vector<16x128xf32>
    %240 = arith.negf %239 : vector<16x128xf32>
    %241 = math.exp %240 : vector<16x128xf32>
    %cst_57 = arith.constant 1.000000e+00 : f32
    %242 = vector.broadcast %cst_57 : f32 to vector<16x128xf32>
    %243 = arith.addf %242, %241 : vector<16x128xf32>
    %244 = arith.divf %242, %243 : vector<16x128xf32>
    %245 = arith.mulf %236, %213 : vector<16x128xf32>
    %246 = arith.mulf %230, %238 : vector<16x128xf32>
    %247 = arith.addf %245, %246 : vector<16x128xf32>
    %248 = math.tanh %247 : vector<16x128xf32>
    %249 = arith.mulf %244, %248 : vector<16x128xf32>
    %250 = vector.broadcast %c5_i32 : i32 to vector<16x128xi32>
    %251 = arith.cmpi slt, %250, %20 : vector<16x128xi32>
    %252 = arith.select %251, %247, %213 : vector<16x128xi1>, vector<16x128xf32>
    %253 = arith.select %251, %249, %214 : vector<16x128xi1>, vector<16x128xf32>
    %254 = arith.index_cast %c5_i32 : i32 to index
    %c0_58 = arith.constant 0 : index
    %c0_59 = arith.constant 0 : index
    %255 = vector.load %arg11[%254, %c0_58, %c0_59] : memref<8x16x128xf32, #tpu.memory_space<vmem>>, vector<1x16x128xf32>
    %256 = vector.shape_cast %255 : vector<1x16x128xf32> to vector<16x128xf32>
    %257 = vector.shape_cast %253 : vector<16x128xf32> to vector<1x16x128xf32>
    tpu.vector_store %arg11[%254, %c0_58, %c0_59], %257 {strides = array<i32>} : memref<8x16x128xf32, #tpu.memory_space<vmem>>, vector<1x16x128xf32>,
    %c6_i32_60 = arith.constant 6 : i32
    %258 = arith.index_cast %c6_i32_60 : i32 to index
    %c0_61 = arith.constant 0 : index
    %c0_62 = arith.constant 0 : index
    %259 = vector.load %arg12[%258, %c0_61, %c0_62] : memref<8x16x512xf32, #tpu.memory_space<vmem>>, vector<1x16x512xf32>
    %260 = vector.shape_cast %259 : vector<1x16x512xf32> to vector<16x512xf32>
    %261 = arith.truncf %253 : vector<16x128xf32> to vector<16x128xbf16>
    %cst_63 = arith.constant dense<0.000000e+00> : vector<16x512xf32>
    %262 = tpu.matmul %261, %22, %cst_63 {dimension_numbers = #tpu.dot_dimension_numbers<[1], [0], [0], [1], [0, 0, 1, 1], [], []>} : vector<16x128xbf16>, vector<128x512xbf16>, vector<16x512xf32> -> vector<16x512xf32>
    %263 = arith.addf %260, %262 : vector<16x512xf32>
    %264 = vector.extract_strided_slice %263 {offsets = [0, 0], sizes = [16, 128], strides = [1, 1]} : vector<16x512xf32> to vector<16x128xf32>
    %265 = arith.negf %264 : vector<16x128xf32>
    %266 = math.exp %265 : vector<16x128xf32>
    %cst_64 = arith.constant 1.000000e+00 : f32
    %267 = vector.broadcast %cst_64 : f32 to vector<16x128xf32>
    %268 = arith.addf %267, %266 : vector<16x128xf32>
    %269 = arith.divf %267, %268 : vector<16x128xf32>
    %270 = vector.extract_strided_slice %263 {offsets = [0, 128], sizes = [16, 128], strides = [1, 1]} : vector<16x512xf32> to vector<16x128xf32>
    %271 = arith.negf %270 : vector<16x128xf32>
    %272 = math.exp %271 : vector<16x128xf32>
    %cst_65 = arith.constant 1.000000e+00 : f32
    %273 = vector.broadcast %cst_65 : f32 to vector<16x128xf32>
    %274 = arith.addf %273, %272 : vector<16x128xf32>
    %275 = arith.divf %273, %274 : vector<16x128xf32>
    %276 = vector.extract_strided_slice %263 {offsets = [0, 256], sizes = [16, 128], strides = [1, 1]} : vector<16x512xf32> to vector<16x128xf32>
    %277 = math.tanh %276 : vector<16x128xf32>
    %278 = vector.extract_strided_slice %263 {offsets = [0, 384], sizes = [16, 128], strides = [1, 1]} : vector<16x512xf32> to vector<16x128xf32>
    %279 = arith.negf %278 : vector<16x128xf32>
    %280 = math.exp %279 : vector<16x128xf32>
    %cst_66 = arith.constant 1.000000e+00 : f32
    %281 = vector.broadcast %cst_66 : f32 to vector<16x128xf32>
    %282 = arith.addf %281, %280 : vector<16x128xf32>
    %283 = arith.divf %281, %282 : vector<16x128xf32>
    %284 = arith.mulf %275, %252 : vector<16x128xf32>
    %285 = arith.mulf %269, %277 : vector<16x128xf32>
    %286 = arith.addf %284, %285 : vector<16x128xf32>
    %287 = math.tanh %286 : vector<16x128xf32>
    %288 = arith.mulf %283, %287 : vector<16x128xf32>
    %289 = vector.broadcast %c6_i32_60 : i32 to vector<16x128xi32>
    %290 = arith.cmpi slt, %289, %20 : vector<16x128xi32>
    %291 = arith.select %290, %286, %252 : vector<16x128xi1>, vector<16x128xf32>
    %292 = arith.select %290, %288, %253 : vector<16x128xi1>, vector<16x128xf32>
    %293 = arith.index_cast %c6_i32_60 : i32 to index
    %c0_67 = arith.constant 0 : index
    %c0_68 = arith.constant 0 : index
    %294 = vector.load %arg11[%293, %c0_67, %c0_68] : memref<8x16x128xf32, #tpu.memory_space<vmem>>, vector<1x16x128xf32>
    %295 = vector.shape_cast %294 : vector<1x16x128xf32> to vector<16x128xf32>
    %296 = vector.shape_cast %292 : vector<16x128xf32> to vector<1x16x128xf32>
    tpu.vector_store %arg11[%293, %c0_67, %c0_68], %296 {strides = array<i32>} : memref<8x16x128xf32, #tpu.memory_space<vmem>>, vector<1x16x128xf32>,
    %c7_i32 = arith.constant 7 : i32
    %297 = arith.index_cast %c7_i32 : i32 to index
    %c0_69 = arith.constant 0 : index
    %c0_70 = arith.constant 0 : index
    %298 = vector.load %arg12[%297, %c0_69, %c0_70] : memref<8x16x512xf32, #tpu.memory_space<vmem>>, vector<1x16x512xf32>
    %299 = vector.shape_cast %298 : vector<1x16x512xf32> to vector<16x512xf32>
    %300 = arith.truncf %292 : vector<16x128xf32> to vector<16x128xbf16>
    %cst_71 = arith.constant dense<0.000000e+00> : vector<16x512xf32>
    %301 = tpu.matmul %300, %22, %cst_71 {dimension_numbers = #tpu.dot_dimension_numbers<[1], [0], [0], [1], [0, 0, 1, 1], [], []>} : vector<16x128xbf16>, vector<128x512xbf16>, vector<16x512xf32> -> vector<16x512xf32>
    %302 = arith.addf %299, %301 : vector<16x512xf32>
    %303 = vector.extract_strided_slice %302 {offsets = [0, 0], sizes = [16, 128], strides = [1, 1]} : vector<16x512xf32> to vector<16x128xf32>
    %304 = arith.negf %303 : vector<16x128xf32>
    %305 = math.exp %304 : vector<16x128xf32>
    %cst_72 = arith.constant 1.000000e+00 : f32
    %306 = vector.broadcast %cst_72 : f32 to vector<16x128xf32>
    %307 = arith.addf %306, %305 : vector<16x128xf32>
    %308 = arith.divf %306, %307 : vector<16x128xf32>
    %309 = vector.extract_strided_slice %302 {offsets = [0, 128], sizes = [16, 128], strides = [1, 1]} : vector<16x512xf32> to vector<16x128xf32>
    %310 = arith.negf %309 : vector<16x128xf32>
    %311 = math.exp %310 : vector<16x128xf32>
    %cst_73 = arith.constant 1.000000e+00 : f32
    %312 = vector.broadcast %cst_73 : f32 to vector<16x128xf32>
    %313 = arith.addf %312, %311 : vector<16x128xf32>
    %314 = arith.divf %312, %313 : vector<16x128xf32>
    %315 = vector.extract_strided_slice %302 {offsets = [0, 256], sizes = [16, 128], strides = [1, 1]} : vector<16x512xf32> to vector<16x128xf32>
    %316 = math.tanh %315 : vector<16x128xf32>
    %317 = vector.extract_strided_slice %302 {offsets = [0, 384], sizes = [16, 128], strides = [1, 1]} : vector<16x512xf32> to vector<16x128xf32>
    %318 = arith.negf %317 : vector<16x128xf32>
    %319 = math.exp %318 : vector<16x128xf32>
    %cst_74 = arith.constant 1.000000e+00 : f32
    %320 = vector.broadcast %cst_74 : f32 to vector<16x128xf32>
    %321 = arith.addf %320, %319 : vector<16x128xf32>
    %322 = arith.divf %320, %321 : vector<16x128xf32>
    %323 = arith.mulf %314, %291 : vector<16x128xf32>
    %324 = arith.mulf %308, %316 : vector<16x128xf32>
    %325 = arith.addf %323, %324 : vector<16x128xf32>
    %326 = math.tanh %325 : vector<16x128xf32>
    %327 = arith.mulf %322, %326 : vector<16x128xf32>
    %328 = vector.broadcast %c7_i32 : i32 to vector<16x128xi32>
    %329 = arith.cmpi slt, %328, %20 : vector<16x128xi32>
    %330 = arith.select %329, %325, %291 : vector<16x128xi1>, vector<16x128xf32>
    %331 = arith.select %329, %327, %292 : vector<16x128xi1>, vector<16x128xf32>
    %332 = arith.index_cast %c7_i32 : i32 to index
    %c0_75 = arith.constant 0 : index
    %c0_76 = arith.constant 0 : index
    %333 = vector.load %arg11[%332, %c0_75, %c0_76] : memref<8x16x128xf32, #tpu.memory_space<vmem>>, vector<1x16x128xf32>
    %334 = vector.shape_cast %333 : vector<1x16x128xf32> to vector<16x128xf32>
    %335 = vector.shape_cast %331 : vector<16x128xf32> to vector<1x16x128xf32>
    tpu.vector_store %arg11[%332, %c0_75, %c0_76], %335 {strides = array<i32>} : memref<8x16x128xf32, #tpu.memory_space<vmem>>, vector<1x16x128xf32>,
    %c8_i32_77 = arith.constant 8 : i32
    %336 = vector.extract_strided_slice %330 {offsets = [0, 0], sizes = [8, 128], strides = [1, 1]} : vector<16x128xf32> to vector<8x128xf32>
    %337 = vector.extract_strided_slice %330 {offsets = [8, 0], sizes = [8, 128], strides = [1, 1]} : vector<16x128xf32> to vector<8x128xf32>
    %338 = arith.truncf %336 : vector<8x128xf32> to vector<8x128xbf16>
    %c0_78 = arith.constant 0 : index
    %c0_79 = arith.constant 0 : index
    %339 = vector.load %arg5[%c0_78, %c0_79] : memref<128x128xbf16, #tpu.memory_space<vmem>>, vector<128x128xbf16>
    %cst_80 = arith.constant dense<0.000000e+00> : vector<8x128xf32>
    %340 = tpu.matmul %338, %339, %cst_80 {dimension_numbers = #tpu.dot_dimension_numbers<[1], [0], [0], [1], [0, 0, 1, 1], [], []>} : vector<8x128xbf16>, vector<128x128xbf16>, vector<8x128xf32> -> vector<8x128xf32>
    %341 = arith.truncf %337 : vector<8x128xf32> to vector<8x128xbf16>
    %c0_81 = arith.constant 0 : index
    %c0_82 = arith.constant 0 : index
    %342 = vector.load %arg6[%c0_81, %c0_82] : memref<128x128xbf16, #tpu.memory_space<vmem>>, vector<128x128xbf16>
    %cst_83 = arith.constant dense<0.000000e+00> : vector<8x128xf32>
    %343 = tpu.matmul %341, %342, %cst_83 {dimension_numbers = #tpu.dot_dimension_numbers<[1], [0], [0], [1], [0, 0, 1, 1], [], []>} : vector<8x128xbf16>, vector<128x128xbf16>, vector<8x128xf32> -> vector<8x128xf32>
    %344 = arith.addf %340, %343 : vector<8x128xf32>
    %c0_84 = arith.constant 0 : index
    %c0_85 = arith.constant 0 : index
    %345 = vector.load %arg7[%c0_84, %c0_85] : memref<1x128xf32, #tpu.memory_space<vmem>>, vector<1x128xf32>
    %346 = vector.broadcast %345 : vector<1x128xf32> to vector<8x128xf32>
    %347 = arith.addf %344, %346 : vector<8x128xf32>
    %cst_86 = arith.constant 0.000000e+00 : f32
    %348 = vector.broadcast %cst_86 : f32 to vector<8x128xf32>
    %349 = arith.maximumf %347, %348 : vector<8x128xf32>
    %350 = arith.truncf %349 : vector<8x128xf32> to vector<8x128xbf16>
    %c0_87 = arith.constant 0 : index
    %c0_88 = arith.constant 0 : index
    %351 = vector.load %arg8[%c0_87, %c0_88] : memref<128x128xbf16, #tpu.memory_space<vmem>>, vector<128x128xbf16>
    %cst_89 = arith.constant dense<0.000000e+00> : vector<8x128xf32>
    %352 = tpu.matmul %350, %351, %cst_89 {dimension_numbers = #tpu.dot_dimension_numbers<[1], [0], [0], [1], [0, 0, 1, 1], [], []>} : vector<8x128xbf16>, vector<128x128xbf16>, vector<8x128xf32> -> vector<8x128xf32>
    %c0_90 = arith.constant 0 : index
    %c0_91 = arith.constant 0 : index
    %353 = vector.load %arg9[%c0_90, %c0_91] : memref<1x128xf32, #tpu.memory_space<vmem>>, vector<1x128xf32>
    %354 = vector.broadcast %353 : vector<1x128xf32> to vector<8x128xf32>
    %355 = arith.addf %352, %354 : vector<8x128xf32>
    %356 = arith.index_cast %arg0 : i32 to index
    %c0_92 = arith.constant 0 : index
    %c0_93 = arith.constant 0 : index
    %357 = vector.load %arg10[%356, %c0_92, %c0_93] : memref<2x8x128xf32, #tpu.memory_space<vmem>>, vector<1x8x128xf32>
    %358 = vector.shape_cast %357 : vector<1x8x128xf32> to vector<8x128xf32>
    %359 = vector.shape_cast %355 : vector<8x128xf32> to vector<1x8x128xf32>
    tpu.vector_store %arg10[%356, %c0_92, %c0_93], %359 {strides = array<i32>} : memref<2x8x128xf32, #tpu.memory_space<vmem>>, vector<1x8x128xf32>,
    return
  }
  func.func @transform_0(%arg0: i32) -> (i32, i32, i32) {
    %c0_i32 = arith.constant 0 : i32
    %c0_i32_0 = arith.constant 0 : i32
    %c0_i32_1 = arith.constant 0 : i32
    %c0_i32_2 = arith.constant 0 : i32
    return %c0_i32, %c0_i32_0, %c0_i32_1 : i32, i32, i32
  }
  func.func @transform_1(%arg0: i32) -> (i32, i32, i32) {
    %c0_i32 = arith.constant 0 : i32
    %c0_i32_0 = arith.constant 0 : i32
    %c0_i32_1 = arith.constant 0 : i32
    return %arg0, %c0_i32, %c0_i32_0 : i32, i32, i32
  }
  func.func @transform_2(%arg0: i32) -> (i32, i32, i32) {
    %c0_i32 = arith.constant 0 : i32
    %c0_i32_0 = arith.constant 0 : i32
    %c0_i32_1 = arith.constant 0 : i32
    return %arg0, %c0_i32, %c0_i32_0 : i32, i32, i32
  }
  func.func @transform_3(%arg0: i32) -> (i32, i32, i32) {
    %c0_i32 = arith.constant 0 : i32
    %c0_i32_0 = arith.constant 0 : i32
    %c0_i32_1 = arith.constant 0 : i32
    return %arg0, %c0_i32, %c0_i32_0 : i32, i32, i32
  }
  func.func @transform_4(%arg0: i32) -> (i32, i32) {
    %c0_i32 = arith.constant 0 : i32
    %c0_i32_0 = arith.constant 0 : i32
    %c0_i32_1 = arith.constant 0 : i32
    return %c0_i32, %c0_i32_0 : i32, i32
  }
  func.func @transform_5(%arg0: i32) -> (i32, i32) {
    %c0_i32 = arith.constant 0 : i32
    %c0_i32_0 = arith.constant 0 : i32
    %c0_i32_1 = arith.constant 0 : i32
    return %c0_i32, %c0_i32_0 : i32, i32
  }
  func.func @transform_6(%arg0: i32) -> (i32, i32) {
    %c0_i32 = arith.constant 0 : i32
    %c0_i32_0 = arith.constant 0 : i32
    %c0_i32_1 = arith.constant 0 : i32
    return %c0_i32, %c0_i32_0 : i32, i32
  }
  func.func @transform_7(%arg0: i32) -> (i32, i32) {
    %c0_i32 = arith.constant 0 : i32
    %c0_i32_0 = arith.constant 0 : i32
    %c0_i32_1 = arith.constant 0 : i32
    return %c0_i32, %c0_i32_0 : i32, i32
  }
  func.func @transform_8(%arg0: i32) -> (i32, i32) {
    %c0_i32 = arith.constant 0 : i32
    %c0_i32_0 = arith.constant 0 : i32
    %c0_i32_1 = arith.constant 0 : i32
    return %c0_i32, %c0_i32_0 : i32, i32
  }
  func.func @transform_9(%arg0: i32) -> (i32, i32, i32) {
    %c0_i32 = arith.constant 0 : i32
    %c0_i32_0 = arith.constant 0 : i32
    %c0_i32_1 = arith.constant 0 : i32
    %c0_i32_2 = arith.constant 0 : i32
    return %c0_i32, %c0_i32_0, %c0_i32_1 : i32, i32, i32
  }
}

</mosaic_0001>

<llo_original>
// kernel: tpu_custom_call.1
$region0: #{tpu_custom_call.1}
  #allocation0 [shape = 'u32[]', space=smem, size = 0x4, offset = 0x4, fixed_abs, tag = 'smem constant byte address 0x4 - core index']
  #allocation1 [shape = 'u32[144,128]{1,0:T(1,128)}', space=vmem, size = 0x12000, scoped, tag = 'internal scratch']
  #allocation2 [shape = 'f32[8,16,128]{2,1,0:T(8,128)}', space=vmem, size = 0x10000, scoped, tag = 'scratch operand']
  #allocation3 [shape = 'f32[8,16,512]{2,1,0:T(8,128)}', space=vmem, size = 0x40000, scoped, tag = 'scratch operand']
  %s0 = inlined_call_operand.hbm [shape: f32[8,16,128], index: 0, kind: input, shape index: {}]
  %s1 = inlined_call_operand.hbm [shape: bf16[2,128,512], index: 1, kind: input, shape index: {}]
  %s2 = inlined_call_operand.hbm [shape: bf16[2,128,512], index: 2, kind: input, shape index: {}]
  %s3 = inlined_call_operand.vmem [shape: f32[2,1,512], index: 3, kind: input, shape index: {}]
  %s4 = inlined_call_operand.hbm [shape: bf16[128,128], index: 4, kind: input, shape index: {}]
  %s5 = inlined_call_operand.hbm [shape: bf16[128,128], index: 5, kind: input, shape index: {}]
  %s6 = inlined_call_operand.vmem [shape: f32[1,128], index: 6, kind: input, shape index: {}]
  %s7 = inlined_call_operand.hbm [shape: bf16[128,128], index: 7, kind: input, shape index: {}]
  %s8 = inlined_call_operand.vmem [shape: f32[1,128], index: 8, kind: input, shape index: {}]
  %s9 = inlined_call_operand.hbm [shape: f32[2,8,128], index: 9, kind: output, shape index: {}]
  %s10 = sld [smem:[#allocation0]]
  $region101: #{tpu_custom_call.1} parent=0
    _
  %s12 = ssub.s32 1, %s10
  %s13 = scalar_select 0, %s12, %s10
  $region1: #{tpu_custom_call.1} parent=0
    #allocation4 [shape = 'u8[65536]{0}', space=vmem, size = 0x10000, scoped, tag = 'input window, operand 0, single buffered']
    #allocation5 [shape = 's32[2]{0}', space=sflag, size = 0x8, scoped, tag = 'scoped memory for tpu_custom_call.1']
    #allocation6 [shape = 's32[2]{0}', space=sflag, size = 0x8, scoped, tag = 'scoped memory for tpu_custom_call.1']
    #allocation7 [shape = 'u8[262144]{0}', space=vmem, size = 0x40000, scoped, tag = 'input window, operand 1']
    #allocation8 [shape = 's32[2]{0}', space=sflag, size = 0x8, scoped, tag = 'scoped memory for tpu_custom_call.1']
    #allocation9 [shape = 'u8[262144]{0}', space=vmem, size = 0x40000, scoped, tag = 'input window, operand 2']
    #allocation10 [shape = 'u8[32768]{0}', space=vmem, size = 0x8000, scoped, tag = 'input window, operand 4, single buffered']
    #allocation11 [shape = 's32[1]{0}', space=sflag, size = 0x4, scoped, tag = 'scoped memory for tpu_custom_call.1']
    #allocation12 [shape = 'u8[32768]{0}', space=vmem, size = 0x8000, scoped, tag = 'input window, operand 5, single buffered']
    #allocation13 [shape = 'u8[32768]{0}', space=vmem, size = 0x8000, scoped, tag = 'input window, operand 7, single buffered']
    #allocation14 [shape = 's32[1]{0}', space=sflag, size = 0x4, scoped, tag = 'scoped memory for tpu_custom_call.1']
    #allocation15 [shape = 'u8[8192]{0}', space=vmem, size = 0x2000, scoped, tag = 'output window, operand 0, single buffered']
    %14 = vsyncpa [#allocation5], 0
    %15 = vsyncpa [#allocation8], 0
    %s16 = scalar_lea.sflag [#allocation8], 1
    %17 = vsyncpa %s16, 0
    %18 = vsyncpa [#allocation11], 0
    %19 = vsyncpa [#allocation14], 0
    %20 = vsyncpa [#allocation6], 0
    loop: start=0, step=1, limit=4
    $region2: #{tpu_custom_call.1} parent=1 // loop_pre_header
      _
    $region3: #{tpu_custom_call.1} parent=1 // loop_header
      %s22 = sphi 0, %s26
      %p23 = scmp.ge.s32.totalorder %s22, 4
      %s30 = sphi 0, %s30
      %s32 = sphi 0, %s30
      %s33 = sphi 0, %s32
      %s47 = sphi 0, %s33
      %s53 = sphi 0, %s55
      %s56 = sphi 0, %s53
      %s57 = sphi 0, %s56
      %s73 = sphi 0, %s57
      %s79 = sphi 0, %s81
      %s82 = sphi 0, %s79
      %s83 = sphi 0, %s82
      %s99 = sphi 0, %s83
      %s105 = sphi 0, %s107
      %s108 = sphi 0, %s105
      %s109 = sphi 0, %s108
      %s125 = sphi 0, %s109
      %s129 = sphi 0, %s129
      %s131 = sphi 0, %s129
      %s132 = sphi 0, %s131
      %s146 = sphi 0, %s132
      %s150 = sphi 0, %s150
      %s152 = sphi 0, %s150
      %s153 = sphi 0, %s152
      %s167 = sphi 0, %s153
      %s171 = sphi 0, %s171
      %s173 = sphi 0, %s171
      %s174 = sphi 0, %s173
      %s188 = sphi 0, %s174
      %s192 = sphi 0, %s192
      %s194 = sphi 0, %s192
      %s195 = sphi 0, %s194
      %s209 = sphi 0, %s195
      %s213 = sphi 0, %s213
      %s215 = sphi 0, %s213
      %s216 = sphi 0, %s215
      %s230 = sphi 0, %s216
      %s234 = sphi 0, %s234
      %s236 = sphi 0, %s234
      %s237 = sphi 0, %s236
      %s251 = sphi 0, %s237
    $region4: #{tpu_custom_call.1} parent=1 // loop_header_branch
      %25 = sbr.rel (%p23) target = $region8
    $region5: #{tpu_custom_call.1} parent=1 // loop_body
      %s27 = ssub.s32 %s22, 1
      %s28 = ssub.s32 %s22, 2
      %s29 = sadd.s32 %s22, 1
      %s31 = sadd.s32 %s30, 1
      %p34 = scmp.eq.s32.totalorder %s22, 1
      %p35 = scmp.ne.s32.totalorder %s30, %s32
      %p36 = scmp.eq.s32.totalorder %s22, 0
      %p37 = por %p35, %p36
      %p38 = scmp.ne.s32.totalorder %s30, %s32
      %p39 = scmp.eq.s32.totalorder %s27, 1
      %p40 = por %p38, %p39
      %p41 = scmp.ne.s32.totalorder %s32, %s33
      %p42 = scmp.eq.s32.totalorder %s27, 0
      %p43 = por %p41, %p42
      %p44 = scmp.ne.s32.totalorder %s32, %s33
      %p45 = scmp.eq.s32.totalorder %s28, 1
      %p46 = por %p44, %p45
      %p48 = scmp.ne.s32.totalorder %s33, %s47
      %p49 = scmp.eq.s32.totalorder %s28, 0
      %p50 = por %p48, %p49
      %s51 = ssub.s32 %s22, %s29
      %p52 = scmp.eq.s32.totalorder %s51, 0
      %s54 = sadd.s32 %s53, 1
      %s55 = scalar_select %p52, %s53, %s54
      %p58 = pneg %p52
      %p59 = scmp.eq.s32.totalorder %s22, 1
      %p60 = por %p58, %p59
      %p61 = scmp.ne.s32.totalorder %s53, %s56
      %p62 = scmp.eq.s32.totalorder %s22, 0
      %p63 = por %p61, %p62
      %p64 = scmp.ne.s32.totalorder %s53, %s56
      %p65 = scmp.eq.s32.totalorder %s27, 1
      %p66 = por %p64, %p65
      %p67 = scmp.ne.s32.totalorder %s56, %s57
      %p68 = scmp.eq.s32.totalorder %s27, 0
      %p69 = por %p67, %p68
      %p70 = scmp.ne.s32.totalorder %s56, %s57
      %p71 = scmp.eq.s32.totalorder %s28, 1
      %p72 = por %p70, %p71
      %p74 = scmp.ne.s32.totalorder %s57, %s73
      %p75 = scmp.eq.s32.totalorder %s28, 0
      %p76 = por %p74, %p75
      %s77 = ssub.s32 %s22, %s29
      %p78 = scmp.eq.s32.totalorder %s77, 0
      %s80 = sadd.s32 %s79, 1
      %s81 = scalar_select %p78, %s79, %s80
      %p84 = pneg %p78
      %p85 = scmp.eq.s32.totalorder %s22, 1
      %p86 = por %p84, %p85
      %p87 = scmp.ne.s32.totalorder %s79, %s82
      %p88 = scmp.eq.s32.totalorder %s22, 0
      %p89 = por %p87, %p88
      %p90 = scmp.ne.s32.totalorder %s79, %s82
      %p91 = scmp.eq.s32.totalorder %s27, 1
      %p92 = por %p90, %p91
      %p93 = scmp.ne.s32.totalorder %s82, %s83
      %p94 = scmp.eq.s32.totalorder %s27, 0
      %p95 = por %p93, %p94
      %p96 = scmp.ne.s32.totalorder %s82, %s83
      %p97 = scmp.eq.s32.totalorder %s28, 1
      %p98 = por %p96, %p97
      %p100 = scmp.ne.s32.totalorder %s83, %s99
      %p101 = scmp.eq.s32.totalorder %s28, 0
      %p102 = por %p100, %p101
      %s103 = ssub.s32 %s22, %s29
      %p104 = scmp.eq.s32.totalorder %s103, 0
      %s106 = sadd.s32 %s105, 1
      %s107 = scalar_select %p104, %s105, %s106
      %p110 = pneg %p104
      %p111 = scmp.eq.s32.totalorder %s22, 1
      %p112 = por %p110, %p111
      %p113 = scmp.ne.s32.totalorder %s105, %s108
      %p114 = scmp.eq.s32.totalorder %s22, 0
      %p115 = por %p113, %p114
      %p116 = scmp.ne.s32.totalorder %s105, %s108
      %p117 = scmp.eq.s32.totalorder %s27, 1
      %p118 = por %p116, %p117
      %p119 = scmp.ne.s32.totalorder %s108, %s109
      %p120 = scmp.eq.s32.totalorder %s27, 0
      %p121 = por %p119, %p120
      %p122 = scmp.ne.s32.totalorder %s108, %s109
      %p123 = scmp.eq.s32.totalorder %s28, 1
      %p124 = por %p122, %p123
      %p126 = scmp.ne.s32.totalorder %s109, %s125
      %p127 = scmp.eq.s32.totalorder %s28, 0
      %p128 = por %p126, %p127
      %s130 = sadd.s32 %s129, 1
      %p133 = scmp.eq.s32.totalorder %s22, 1
      %p134 = scmp.ne.s32.totalorder %s129, %s131
      %p135 = scmp.eq.s32.totalorder %s22, 0
      %p136 = por %p134, %p135
      %p137 = scmp.ne.s32.totalorder %s129, %s131
      %p138 = scmp.eq.s32.totalorder %s27, 1
      %p139 = por %p137, %p138
      %p140 = scmp.ne.s32.totalorder %s131, %s132
      %p141 = scmp.eq.s32.totalorder %s27, 0
      %p142 = por %p140, %p141
      %p143 = scmp.ne.s32.totalorder %s131, %s132
      %p144 = scmp.eq.s32.totalorder %s28, 1
      %p145 = por %p143, %p144
      %p147 = scmp.ne.s32.totalorder %s132, %s146
      %p148 = scmp.eq.s32.totalorder %s28, 0
      %p149 = por %p147, %p148
      %s151 = sadd.s32 %s150, 1
      %p154 = scmp.eq.s32.totalorder %s22, 1
      %p155 = scmp.ne.s32.totalorder %s150, %s152
      %p156 = scmp.eq.s32.totalorder %s22, 0
      %p157 = por %p155, %p156
      %p158 = scmp.ne.s32.totalorder %s150, %s152
      %p159 = scmp.eq.s32.totalorder %s27, 1
      %p160 = por %p158, %p159
      %p161 = scmp.ne.s32.totalorder %s152, %s153
      %p162 = scmp.eq.s32.totalorder %s27, 0
      %p163 = por %p161, %p162
      %p164 = scmp.ne.s32.totalorder %s152, %s153
      %p165 = scmp.eq.s32.totalorder %s28, 1
      %p166 = por %p164, %p165
      %p168 = scmp.ne.s32.totalorder %s153, %s167
      %p169 = scmp.eq.s32.totalorder %s28, 0
      %p170 = por %p168, %p169
      %s172 = sadd.s32 %s171, 1
      %p175 = scmp.eq.s32.totalorder %s22, 1
      %p176 = scmp.ne.s32.totalorder %s171, %s173
      %p177 = scmp.eq.s32.totalorder %s22, 0
      %p178 = por %p176, %p177
      %p179 = scmp.ne.s32.totalorder %s171, %s173
      %p180 = scmp.eq.s32.totalorder %s27, 1
      %p181 = por %p179, %p180
      %p182 = scmp.ne.s32.totalorder %s173, %s174
      %p183 = scmp.eq.s32.totalorder %s27, 0
      %p184 = por %p182, %p183
      %p185 = scmp.ne.s32.totalorder %s173, %s174
      %p186 = scmp.eq.s32.totalorder %s28, 1
      %p187 = por %p185, %p186
      %p189 = scmp.ne.s32.totalorder %s174, %s188
      %p190 = scmp.eq.s32.totalorder %s28, 0
      %p191 = por %p189, %p190
      %s193 = sadd.s32 %s192, 1
      %p196 = scmp.eq.s32.totalorder %s22, 1
      %p197 = scmp.ne.s32.totalorder %s192, %s194
      %p198 = scmp.eq.s32.totalorder %s22, 0
      %p199 = por %p197, %p198
      %p200 = scmp.ne.s32.totalorder %s192, %s194
      %p201 = scmp.eq.s32.totalorder %s27, 1
      %p202 = por %p200, %p201
      %p203 = scmp.ne.s32.totalorder %s194, %s195
      %p204 = scmp.eq.s32.totalorder %s27, 0
      %p205 = por %p203, %p204
      %p206 = scmp.ne.s32.totalorder %s194, %s195
      %p207 = scmp.eq.s32.totalorder %s28, 1
      %p208 = por %p206, %p207
      %p210 = scmp.ne.s32.totalorder %s195, %s209
      %p211 = scmp.eq.s32.totalorder %s28, 0
      %p212 = por %p210, %p211
      %s214 = sadd.s32 %s213, 1
      %p217 = scmp.eq.s32.totalorder %s22, 1
      %p218 = scmp.ne.s32.totalorder %s213, %s215
      %p219 = scmp.eq.s32.totalorder %s22, 0
      %p220 = por %p218, %p219
      %p221 = scmp.ne.s32.totalorder %s213, %s215
      %p222 = scmp.eq.s32.totalorder %s27, 1
      %p223 = por %p221, %p222
      %p224 = scmp.ne.s32.totalorder %s215, %s216
      %p225 = scmp.eq.s32.totalorder %s27, 0
      %p226 = por %p224, %p225
      %p227 = scmp.ne.s32.totalorder %s215, %s216
      %p228 = scmp.eq.s32.totalorder %s28, 1
      %p229 = por %p227, %p228
      %p231 = scmp.ne.s32.totalorder %s216, %s230
      %p232 = scmp.eq.s32.totalorder %s28, 0
      %p233 = por %p231, %p232
      %s235 = sadd.s32 %s234, 1
      %p238 = scmp.eq.s32.totalorder %s22, 1
      %p239 = scmp.ne.s32.totalorder %s234, %s236
      %p240 = scmp.eq.s32.totalorder %s22, 0
      %p241 = por %p239, %p240
      %p242 = scmp.ne.s32.totalorder %s234, %s236
      %p243 = scmp.eq.s32.totalorder %s27, 1
      %p244 = por %p242, %p243
      %p245 = scmp.ne.s32.totalorder %s236, %s237
      %p246 = scmp.eq.s32.totalorder %s27, 0
      %p247 = por %p245, %p246
      %p248 = scmp.ne.s32.totalorder %s236, %s237
      %p249 = scmp.eq.s32.totalorder %s28, 1
      %p250 = por %p248, %p249
      %p252 = scmp.ne.s32.totalorder %s237, %s251
      %p253 = scmp.eq.s32.totalorder %s28, 0
      %p254 = por %p252, %p253
      %p255 = scmp.le.s32.totalorder 1, %s22
      %p256 = scmp.lt.s32.totalorder %s22, 3
      %p257 = pnand %p255, %p256
      %p258 = pneg %p257
      // Predicated region
      $region9: #{tpu_custom_call.1} parent=5 // pred_check
        _
      $region10: #{tpu_custom_call.1} parent=5 // pred_check_branch
        %260 = sbr.rel (%p257) target = $region12
      $region11: #{tpu_custom_call.1} parent=5 // pred_region
        %s261 = ssub.s32 %s22, 1
        // Predicated region
        $region13: #{tpu_custom_call.1} parent=11 // pred_check
          %p262 = pneg %p43
        $region14: #{tpu_custom_call.1} parent=11 // pred_check_branch
          %264 = sbr.rel (%p262) target = $region16
        $region15: #{tpu_custom_call.1} parent=11 // pred_region
          %s266 = ssub.s32 2048, 2048
          %267 = vsyncadd [#allocation5], %s266
          %s268 = sshll.u32 [#allocation4], 4
          %s269 = int_to_ptr.vmem [resolvable:$true] %s268
          %274 = dma.hbm_to_vmem [thread:$0]  %s0, 2048, %s269, [#allocation5], 128, 128, 8
        $region16: #{tpu_custom_call.1} parent=11 // pred_fallthru
          _
        // Predicated region
        $region17: #{tpu_custom_call.1} parent=11 // pred_check
          %p275 = pneg %p142
        $region18: #{tpu_custom_call.1} parent=11 // pred_check_branch
          %277 = sbr.rel (%p275) target = $region20
        $region19: #{tpu_custom_call.1} parent=11 // pred_region
          %s279 = ssub.s32 1024, 1024
          %280 = vsyncadd [#allocation11], %s279
          %s281 = sshll.u32 [#allocation10], 4
          %s282 = int_to_ptr.vmem [resolvable:$true] %s281
          %287 = dma.hbm_to_vmem [thread:$0]  %s4, 1024, %s282, [#allocation11], 64, 64, 4
        $region20: #{tpu_custom_call.1} parent=11 // pred_fallthru
          _
        // Predicated region
        $region21: #{tpu_custom_call.1} parent=11 // pred_check
          %p288 = pneg %p163
        $region22: #{tpu_custom_call.1} parent=11 // pred_check_branch
          %290 = sbr.rel (%p288) target = $region24
        $region23: #{tpu_custom_call.1} parent=11 // pred_region
          %s292 = ssub.s32 1024, 1024
          %293 = vsyncadd [#allocation11], %s292
          %s294 = sshll.u32 [#allocation12], 4
          %s295 = int_to_ptr.vmem [resolvable:$true] %s294
          %300 = dma.hbm_to_vmem [thread:$0]  %s5, 1024, %s295, [#allocation11], 64, 64, 4
        $region24: #{tpu_custom_call.1} parent=11 // pred_fallthru
          _
        // Predicated region
        $region25: #{tpu_custom_call.1} parent=11 // pred_check
          %p301 = pneg %p184
        $region26: #{tpu_custom_call.1} parent=11 // pred_check_branch
          %303 = sbr.rel (%p301) target = $region28
        $region27: #{tpu_custom_call.1} parent=11 // pred_region
          _
        $region28: #{tpu_custom_call.1} parent=11 // pred_fallthru
          _
        // Predicated region
        $region29: #{tpu_custom_call.1} parent=11 // pred_check
          %p304 = pneg %p205
        $region30: #{tpu_custom_call.1} parent=11 // pred_check_branch
          %306 = sbr.rel (%p304) target = $region32
        $region31: #{tpu_custom_call.1} parent=11 // pred_region
          %s308 = ssub.s32 1024, 1024
          %309 = vsyncadd [#allocation14], %s308
          %s310 = sshll.u32 [#allocation13], 4
          %s311 = int_to_ptr.vmem [resolvable:$true] %s310
          %316 = dma.hbm_to_vmem [thread:$0]  %s7, 1024, %s311, [#allocation14], 64, 64, 4
        $region32: #{tpu_custom_call.1} parent=11 // pred_fallthru
          _
        // Predicated region
        $region33: #{tpu_custom_call.1} parent=11 // pred_check
          %p317 = pneg %p226
        $region34: #{tpu_custom_call.1} parent=11 // pred_check_branch
          %319 = sbr.rel (%p317) target = $region36
        $region35: #{tpu_custom_call.1} parent=11 // pred_region
          _
        $region36: #{tpu_custom_call.1} parent=11 // pred_fallthru
          _
      $region12: #{tpu_custom_call.1} parent=5 // pred_fallthru
        _
      %p320 = scmp.lt.s32.totalorder %s22, 2
      // Predicated region
      $region37: #{tpu_custom_call.1} parent=5 // pred_check
        %p321 = pneg %p320
      $region38: #{tpu_custom_call.1} parent=5 // pred_check_branch
        %323 = sbr.rel (%p321) target = $region40
      $region39: #{tpu_custom_call.1} parent=5 // pred_region
        // Predicated region
        $region41: #{tpu_custom_call.1} parent=39 // pred_check
          %p324 = pneg %p63
        $region42: #{tpu_custom_call.1} parent=39 // pred_check_branch
          %326 = sbr.rel (%p324) target = $region44
        $region43: #{tpu_custom_call.1} parent=39 // pred_region
          %s327 = sand.u32 %s22, 1
          %s328 = scalar_lea.sflag [#allocation8], %s327
          %s329 = sand.u32 %s53, 1
          %s330 = smul.addr %s329, 256
          %s331 = scalar_lea.vmem [#allocation7], %s330
          %s333 = ssub.s32 4096, 4096
          %334 = vsyncadd %s328, %s333
          %s335 = smul.addr %s22, 64
          %s336 = smul.addr %s335, 64
          %s337 = scalar_lea.hbm %s1, %s336
          %s338 = sshll.u32 %s331, 4
          %s339 = int_to_ptr.vmem [resolvable:$true] %s338
          %344 = dma.hbm_to_vmem [thread:$0]  %s337, 4096, %s339, %s328, 256, 256, 16
        $region44: #{tpu_custom_call.1} parent=39 // pred_fallthru
          _
        // Predicated region
        $region45: #{tpu_custom_call.1} parent=39 // pred_check
          %p345 = pneg %p89
        $region46: #{tpu_custom_call.1} parent=39 // pred_check_branch
          %347 = sbr.rel (%p345) target = $region48
        $region47: #{tpu_custom_call.1} parent=39 // pred_region
          %s348 = sand.u32 %s22, 1
          %s349 = scalar_lea.sflag [#allocation8], %s348
          %s350 = sand.u32 %s79, 1
          %s351 = smul.addr %s350, 256
          %s352 = scalar_lea.vmem [#allocation9], %s351
          %s354 = ssub.s32 4096, 4096
          %355 = vsyncadd %s349, %s354
          %s356 = smul.addr %s22, 64
          %s357 = smul.addr %s356, 64
          %s358 = scalar_lea.hbm %s2, %s357
          %s359 = sshll.u32 %s352, 4
          %s360 = int_to_ptr.vmem [resolvable:$true] %s359
          %365 = dma.hbm_to_vmem [thread:$0]  %s358, 4096, %s360, %s349, 256, 256, 16
        $region48: #{tpu_custom_call.1} parent=39 // pred_fallthru
          _
        // Predicated region
        $region49: #{tpu_custom_call.1} parent=39 // pred_check
          %p366 = pneg %p115
        $region50: #{tpu_custom_call.1} parent=39 // pred_check_branch
          %368 = sbr.rel (%p366) target = $region52
        $region51: #{tpu_custom_call.1} parent=39 // pred_region
          %p369 = scmp.lt.s32.totalorder %s22, 1
          %s370 = scalar_select %p369, %s22, 1
          %s371 = smul.addr %s370, 4
          %s372 = scalar_lea.vmem %s3, %s371
        $region52: #{tpu_custom_call.1} parent=39 // pred_fallthru
          _
      $region40: #{tpu_custom_call.1} parent=5 // pred_fallthru
        _
      %p373 = scmp.le.s32.totalorder 1, %s22
      %p374 = scmp.lt.s32.totalorder %s22, 3
      %p375 = pnand %p373, %p374
      %p376 = pneg %p375
      // Predicated region
      $region53: #{tpu_custom_call.1} parent=5 // pred_check
        _
      $region54: #{tpu_custom_call.1} parent=5 // pred_check_branch
        %378 = sbr.rel (%p375) target = $region56
      $region55: #{tpu_custom_call.1} parent=5 // pred_region
        %s379 = ssub.s32 %s22, 1
        // Predicated region
        $region57: #{tpu_custom_call.1} parent=55 // pred_check
          %p380 = pneg %p43
        $region58: #{tpu_custom_call.1} parent=55 // pred_check_branch
          %382 = sbr.rel (%p380) target = $region60
        $region59: #{tpu_custom_call.1} parent=55 // pred_region
          %383 = dma.done [#allocation5], 2048
        $region60: #{tpu_custom_call.1} parent=55 // pred_fallthru
          _
        %s384 = sand.u32 %s27, 1
        %s385 = scalar_lea.sflag [#allocation8], %s384
        %s386 = sand.u32 %s56, 1
        %s387 = smul.addr %s386, 256
        %s388 = scalar_lea.vmem [#allocation7], %s387
        // Predicated region
        $region61: #{tpu_custom_call.1} parent=55 // pred_check
          %p389 = pneg %p69
        $region62: #{tpu_custom_call.1} parent=55 // pred_check_branch
          %391 = sbr.rel (%p389) target = $region64
        $region63: #{tpu_custom_call.1} parent=55 // pred_region
          %392 = dma.done %s385, 4096
        $region64: #{tpu_custom_call.1} parent=55 // pred_fallthru
          _
        %s393 = sand.u32 %s27, 1
        %s394 = scalar_lea.sflag [#allocation8], %s393
        %s395 = sand.u32 %s82, 1
        %s396 = smul.addr %s395, 256
        %s397 = scalar_lea.vmem [#allocation9], %s396
        // Predicated region
        $region65: #{tpu_custom_call.1} parent=55 // pred_check
          %p398 = pneg %p95
        $region66: #{tpu_custom_call.1} parent=55 // pred_check_branch
          %400 = sbr.rel (%p398) target = $region68
        $region67: #{tpu_custom_call.1} parent=55 // pred_region
          %401 = dma.done %s394, 4096
        $region68: #{tpu_custom_call.1} parent=55 // pred_fallthru
          _
        // Predicated region
        $region69: #{tpu_custom_call.1} parent=55 // pred_check
          %p402 = pneg %p142
        $region70: #{tpu_custom_call.1} parent=55 // pred_check_branch
          %404 = sbr.rel (%p402) target = $region72
        $region71: #{tpu_custom_call.1} parent=55 // pred_region
          %405 = dma.done [#allocation11], 1024
        $region72: #{tpu_custom_call.1} parent=55 // pred_fallthru
          _
        // Predicated region
        $region73: #{tpu_custom_call.1} parent=55 // pred_check
          %p406 = pneg %p163
        $region74: #{tpu_custom_call.1} parent=55 // pred_check_branch
          %408 = sbr.rel (%p406) target = $region76
        $region75: #{tpu_custom_call.1} parent=55 // pred_region
          %409 = dma.done [#allocation11], 1024
        $region76: #{tpu_custom_call.1} parent=55 // pred_fallthru
          _
        // Predicated region
        $region77: #{tpu_custom_call.1} parent=55 // pred_check
          %p410 = pneg %p205
        $region78: #{tpu_custom_call.1} parent=55 // pred_check_branch
          %412 = sbr.rel (%p410) target = $region80
        $region79: #{tpu_custom_call.1} parent=55 // pred_region
          %413 = dma.done [#allocation14], 1024
        $region80: #{tpu_custom_call.1} parent=55 // pred_fallthru
          _
        %p414 = pneg %p43
        %p415 = pneg %p40
        %s416 = sand.u32 %s27, 1
        %s417 = scalar_lea.sflag [#allocation8], %s416
        %s418 = sand.u32 %s56, 1
        %s419 = smul.addr %s418, 256
        %s420 = scalar_lea.vmem [#allocation7], %s419
        %p421 = pneg %p69
        %p422 = pneg %p66
        %s423 = sand.u32 %s27, 1
        %s424 = scalar_lea.sflag [#allocation8], %s423
        %s425 = sand.u32 %s82, 1
        %s426 = smul.addr %s425, 256
        %s427 = scalar_lea.vmem [#allocation9], %s426
        %p428 = pneg %p95
        %p429 = pneg %p92
        %p430 = scmp.lt.s32.totalorder %s27, 1
        %s431 = scalar_select %p430, %s27, 1
        %s432 = smul.addr %s431, 4
        %s433 = scalar_lea.vmem %s3, %s432
        %p434 = pneg %p121
        %p435 = pneg %p118
        %p436 = pneg %p142
        %p437 = pneg %p139
        %p438 = pneg %p163
        %p439 = pneg %p160
        %p440 = pneg %p184
        %p441 = pneg %p181
        %p442 = pneg %p205
        %p443 = pneg %p202
        %p444 = pneg %p226
        %p445 = pneg %p223
        %p446 = pneg %p247
        %p447 = pneg %p244
        %p448 = scmp.lt.s32.totalorder %s27, 1
        %s449 = scalar_select %p448, %s27, 1
        %s450 = smul.addr %s449, 4
        %s451 = scalar_lea.vmem %s3, %s450
        %v453 = vld [vmem:[%s451] sm:$0xf]
        %p454 = scmp.eq.s32.totalorder %s27, 0
        // Predicated region
        $region81: #{tpu_custom_call.1} parent=55 // pred_check
          %p455 = pneg %p454
        $region82: #{tpu_custom_call.1} parent=55 // pred_check_branch
          %457 = sbr.rel (%p455) target = $region84
        $region83: #{tpu_custom_call.1} parent=55 // pred_region
          %v458 = vld [vmem:[#allocation4] sm:$0xff]
          %v459 = vld [vmem:[#allocation4 + $0x8] sm:$0xff]
          %v460 = vld [vmem:[#allocation4 + $0x10] sm:$0xff]
          %v461 = vld [vmem:[#allocation4 + $0x18] sm:$0xff]
          %v462 = vld [vmem:[#allocation4 + $0x20] sm:$0xff]
          %v463 = vld [vmem:[#allocation4 + $0x28] sm:$0xff]
          %v464 = vld [vmem:[#allocation4 + $0x30] sm:$0xff]
          %v465 = vld [vmem:[#allocation4 + $0x38] sm:$0xff]
          %v466 = vld [vmem:[#allocation4 + $0x40] sm:$0xff]
          %v467 = vld [vmem:[#allocation4 + $0x48] sm:$0xff]
          %v468 = vld [vmem:[#allocation4 + $0x50] sm:$0xff]
          %v469 = vld [vmem:[#allocation4 + $0x58] sm:$0xff]
          %v470 = vld [vmem:[#allocation4 + $0x60] sm:$0xff]
          %v471 = vld [vmem:[#allocation4 + $0x68] sm:$0xff]
          %v472 = vld [vmem:[#allocation4 + $0x70] sm:$0xff]
          %v473 = vld [vmem:[#allocation4 + $0x78] sm:$0xff]
          %v474 = vpack.c.bf16 %v459, %v458
          %v475 = vpack.c.bf16 %v461, %v460
          %v476 = vpack.c.bf16 %v463, %v462
          %v477 = vpack.c.bf16 %v465, %v464
          %v478 = vpack.c.bf16 %v467, %v466
          %v479 = vpack.c.bf16 %v469, %v468
          %v480 = vpack.c.bf16 %v471, %v470
          %v481 = vpack.c.bf16 %v473, %v472
          %v482 = vld [vmem:[%s388] sm:$0xff]
          %v483 = vld [vmem:[%s388 + $0x8] sm:$0xff]
          %v484 = vld [vmem:[%s388 + $0x10] sm:$0xff]
          %v485 = vld [vmem:[%s388 + $0x18] sm:$0xff]
          %v486 = vld [vmem:[%s388 + $0x20] sm:$0xff]
          %v487 = vld [vmem:[%s388 + $0x28] sm:$0xff]
          %v488 = vld [vmem:[%s388 + $0x30] sm:$0xff]
          %v489 = vld [vmem:[%s388 + $0x38] sm:$0xff]
          %v490 = vld [vmem:[%s388 + $0x40] sm:$0xff]
          %v491 = vld [vmem:[%s388 + $0x48] sm:$0xff]
          %v492 = vld [vmem:[%s388 + $0x50] sm:$0xff]
          %v493 = vld [vmem:[%s388 + $0x58] sm:$0xff]
          %v494 = vld [vmem:[%s388 + $0x60] sm:$0xff]
          %v495 = vld [vmem:[%s388 + $0x68] sm:$0xff]
          %v496 = vld [vmem:[%s388 + $0x70] sm:$0xff]
          %v497 = vld [vmem:[%s388 + $0x78] sm:$0xff]
          %v498 = vld [vmem:[%s388 + $0x80] sm:$0xff]
          %v499 = vld [vmem:[%s388 + $0x88] sm:$0xff]
          %v500 = vld [vmem:[%s388 + $0x90] sm:$0xff]
          %v501 = vld [vmem:[%s388 + $0x98] sm:$0xff]
          %v502 = vld [vmem:[%s388 + $0xa0] sm:$0xff]
          %v503 = vld [vmem:[%s388 + $0xa8] sm:$0xff]
          %v504 = vld [vmem:[%s388 + $0xb0] sm:$0xff]
          %v505 = vld [vmem:[%s388 + $0xb8] sm:$0xff]
          %v506 = vld [vmem:[%s388 + $0xc0] sm:$0xff]
          %v507 = vld [vmem:[%s388 + $0xc8] sm:$0xff]
          %v508 = vld [vmem:[%s388 + $0xd0] sm:$0xff]
          %v509 = vld [vmem:[%s388 + $0xd8] sm:$0xff]
          %v510 = vld [vmem:[%s388 + $0xe0] sm:$0xff]
          %v511 = vld [vmem:[%s388 + $0xe8] sm:$0xff]
          %v512 = vld [vmem:[%s388 + $0xf0] sm:$0xff]
          %v513 = vld [vmem:[%s388 + $0xf8] sm:$0xff]
          %v515 = vlaneseq
          %v516 = vshrl.u32 %v515, 7
          %v517 = vsub.s32 0, %v516
          %v518 = vrot.slane %v453, %v517
          %v519 = vlaneseq
          %v520 = vshrl.u32 %v519, 7
          %v521 = vsub.s32 1, %v520
          %v522 = vrot.slane %v453, %v521
          %v523 = vlaneseq
          %v524 = vshrl.u32 %v523, 7
          %v525 = vsub.s32 2, %v524
          %v526 = vrot.slane %v453, %v525
          %v527 = vlaneseq
          %v528 = vshrl.u32 %v527, 7
          %v529 = vsub.s32 3, %v528
          %v530 = vrot.slane %v453, %v529
          %v567 = vunpack.c.l.b16 %v482
          %v568 = vunpack.c.h.b16 %v482
          %v569 = vunpack.c.l.b16 %v483
          %v570 = vunpack.c.h.b16 %v483
          %v571 = vunpack.c.l.b16 %v484
          %v572 = vunpack.c.h.b16 %v484
          %v573 = vunpack.c.l.b16 %v485
          %v574 = vunpack.c.h.b16 %v485
          %v575 = vunpack.c.l.b16 %v486
          %v576 = vunpack.c.h.b16 %v486
          %v577 = vunpack.c.l.b16 %v487
          %v578 = vunpack.c.h.b16 %v487
          %v579 = vunpack.c.l.b16 %v488
          %v580 = vunpack.c.h.b16 %v488
          %v581 = vunpack.c.l.b16 %v489
          %v582 = vunpack.c.h.b16 %v489
          %v583 = vunpack.c.l.b16 %v490
          %v584 = vunpack.c.h.b16 %v490
          %v585 = vunpack.c.l.b16 %v491
          %v586 = vunpack.c.h.b16 %v491
          %v587 = vunpack.c.l.b16 %v492
          %v588 = vunpack.c.h.b16 %v492
          %v589 = vunpack.c.l.b16 %v493
          %v590 = vunpack.c.h.b16 %v493
          %v591 = vunpack.c.l.b16 %v494
          %v592 = vunpack.c.h.b16 %v494
          %v593 = vunpack.c.l.b16 %v495
          %v594 = vunpack.c.h.b16 %v495
          %v595 = vunpack.c.l.b16 %v496
          %v596 = vunpack.c.h.b16 %v496
          %v597 = vunpack.c.l.b16 %v497
          %v598 = vunpack.c.h.b16 %v497
          %v599 = vunpack.c.l.b16 %v498
          %v600 = vunpack.c.h.b16 %v498
          %v601 = vunpack.c.l.b16 %v499
          %v602 = vunpack.c.h.b16 %v499
          %v603 = vunpack.c.l.b16 %v500
          %v604 = vunpack.c.h.b16 %v500
          %v605 = vunpack.c.l.b16 %v501
          %v606 = vunpack.c.h.b16 %v501
          %v607 = vunpack.c.l.b16 %v502
          %v608 = vunpack.c.h.b16 %v502
          %v609 = vunpack.c.l.b16 %v503
          %v610 = vunpack.c.h.b16 %v503
          %v611 = vunpack.c.l.b16 %v504
          %v612 = vunpack.c.h.b16 %v504
          %v613 = vunpack.c.l.b16 %v505
          %v614 = vunpack.c.h.b16 %v505
          %v615 = vunpack.c.l.b16 %v506
          %v616 = vunpack.c.h.b16 %v506
          %v617 = vunpack.c.l.b16 %v507
          %v618 = vunpack.c.h.b16 %v507
          %v619 = vunpack.c.l.b16 %v508
          %v620 = vunpack.c.h.b16 %v508
          %v621 = vunpack.c.l.b16 %v509
          %v622 = vunpack.c.h.b16 %v509
          %v623 = vunpack.c.l.b16 %v510
          %v624 = vunpack.c.h.b16 %v510
          %v625 = vunpack.c.l.b16 %v511
          %v626 = vunpack.c.h.b16 %v511
          %v627 = vunpack.c.l.b16 %v512
          %v628 = vunpack.c.h.b16 %v512
          %v629 = vunpack.c.l.b16 %v513
          %v630 = vunpack.c.h.b16 %v513
          %v631 = vpack.c.b16 %v571, %v567
          %v632 = vpack.c.b16 %v572, %v568
          %v633 = vpack.c.b16 %v573, %v569
          %v634 = vpack.c.b16 %v574, %v570
          %v635 = vpack.c.b16 %v579, %v575
          %v636 = vpack.c.b16 %v580, %v576
          %v637 = vpack.c.b16 %v581, %v577
          %v638 = vpack.c.b16 %v582, %v578
          %v639 = vpack.c.b16 %v587, %v583
          %v640 = vpack.c.b16 %v588, %v584
          %v641 = vpack.c.b16 %v589, %v585
          %v642 = vpack.c.b16 %v590, %v586
          %v643 = vpack.c.b16 %v595, %v591
          %v644 = vpack.c.b16 %v596, %v592
          %v645 = vpack.c.b16 %v597, %v593
          %v646 = vpack.c.b16 %v598, %v594
          %v647 = vpack.c.b16 %v603, %v599
          %v648 = vpack.c.b16 %v604, %v600
          %v649 = vpack.c.b16 %v605, %v601
          %v650 = vpack.c.b16 %v606, %v602
          %v651 = vpack.c.b16 %v611, %v607
          %v652 = vpack.c.b16 %v612, %v608
          %v653 = vpack.c.b16 %v613, %v609
          %v654 = vpack.c.b16 %v614, %v610
          %v655 = vpack.c.b16 %v619, %v615
          %v656 = vpack.c.b16 %v620, %v616
          %v657 = vpack.c.b16 %v621, %v617
          %v658 = vpack.c.b16 %v622, %v618
          %v659 = vpack.c.b16 %v627, %v623
          %v660 = vpack.c.b16 %v628, %v624
          %v661 = vpack.c.b16 %v629, %v625
          %v662 = vpack.c.b16 %v630, %v626
          %695 = vmatprep.subr.bf16.mxu0 %v632
          %696 = vmatpush1.bf16.msra.mxu0 %v631
          %697 = vmatprep.subr.bf16.mxu0 %v636
          %698 = vmatpush1.bf16.msra.mxu0 %v635
          %699 = vmatprep.subr.bf16.mxu0 %v640
          %700 = vmatpush1.bf16.msra.mxu0 %v639
          %701 = vmatprep.subr.bf16.mxu0 %v644
          %702 = vmatpush1.bf16.msra.mxu0 %v643
          %703 = vmatprep.subr.bf16.mxu0 %v648
          %704 = vmatpush1.bf16.msra.mxu0 %v647
          %705 = vmatprep.subr.bf16.mxu0 %v652
          %706 = vmatpush1.bf16.msra.mxu0 %v651
          %707 = vmatprep.subr.bf16.mxu0 %v656
          %708 = vmatpush1.bf16.msra.mxu0 %v655
          %709 = vmatprep.subr.bf16.mxu0 %v660
          %710 = vmatpush1.bf16.msra.mxu0 %v659
          %711 = vmatprep.subr.bf16.mxu0 0
          %712 = vmatpush1.bf16.msra.mxu0 0
          %713 = vmatprep.subr.bf16.mxu0 0
          %714 = vmatpush1.bf16.msra.mxu0 0
          %715 = vmatprep.subr.bf16.mxu0 0
          %716 = vmatpush1.bf16.msra.mxu0 0
          %717 = vmatprep.subr.bf16.mxu0 0
          %718 = vmatpush1.bf16.msra.mxu0 0
          %719 = vmatprep.subr.bf16.mxu0 0
          %720 = vmatpush1.bf16.msra.mxu0 0
          %721 = vmatprep.subr.bf16.mxu0 0
          %722 = vmatpush1.bf16.msra.mxu0 0
          %723 = vmatprep.subr.bf16.mxu0 0
          %724 = vmatpush1.bf16.msra.mxu0 0
          %725 = vmatprep.subr.bf16.mxu0 0
          %726 = vmatpush1.bf16.msra.mxu0 0
          %727 = vmatprep.mubr.bf16.mxu0 0
          %728 = vmatmul.mubr.bf16.gmra.mrb[0].mxu0 %v474
          %v729 = vpop.f32.mrb[0].mxu0
          %v730 = vadd.f32 %v518, %v729
          %v731 = vpop.f32.mrb[0].mxu0
          %v732 = vadd.f32 %v522, %v731
          %v733 = vpop.f32.mrb[0].mxu0
          %v734 = vadd.f32 %v518, %v733
          %v735 = vpop.f32.mrb[0].mxu0
          %v736 = vadd.f32 %v522, %v735
          %737 = vmatprep.mubr.bf16.mxu0 0
          %738 = vmatmul.mubr.bf16.gmra.mrb[0].mxu0 %v475
          %v739 = vpop.f32.mrb[0].mxu0
          %v740 = vadd.f32 %v518, %v739
          %v741 = vpop.f32.mrb[0].mxu0
          %v742 = vadd.f32 %v522, %v741
          %v743 = vpop.f32.mrb[0].mxu0
          %v744 = vadd.f32 %v518, %v743
          %v745 = vpop.f32.mrb[0].mxu0
          %v746 = vadd.f32 %v522, %v745
          %747 = vmatprep.mubr.bf16.mxu0 0
          %748 = vmatmul.mubr.bf16.gmra.mrb[0].mxu0 %v476
          %v749 = vpop.f32.mrb[0].mxu0
          %v750 = vadd.f32 %v518, %v749
          %v751 = vpop.f32.mrb[0].mxu0
          %v752 = vadd.f32 %v522, %v751
          %v753 = vpop.f32.mrb[0].mxu0
          %v754 = vadd.f32 %v518, %v753
          %v755 = vpop.f32.mrb[0].mxu0
          %v756 = vadd.f32 %v522, %v755
          %757 = vmatprep.mubr.bf16.mxu0 0
          %758 = vmatmul.mubr.bf16.gmra.mrb[0].mxu0 %v477
          %v759 = vpop.f32.mrb[0].mxu0
          %v760 = vadd.f32 %v518, %v759
          %v761 = vpop.f32.mrb[0].mxu0
          %v762 = vadd.f32 %v522, %v761
          %v763 = vpop.f32.mrb[0].mxu0
          %v764 = vadd.f32 %v518, %v763
          %v765 = vpop.f32.mrb[0].mxu0
          %v766 = vadd.f32 %v522, %v765
          %767 = vmatprep.mubr.bf16.mxu0 0
          %768 = vmatmul.mubr.bf16.gmra.mrb[0].mxu0 %v478
          %v769 = vpop.f32.mrb[0].mxu0
          %v770 = vadd.f32 %v518, %v769
          %v771 = vpop.f32.mrb[0].mxu0
          %v772 = vadd.f32 %v522, %v771
          %v773 = vpop.f32.mrb[0].mxu0
          %v774 = vadd.f32 %v518, %v773
          %v775 = vpop.f32.mrb[0].mxu0
          %v776 = vadd.f32 %v522, %v775
          %777 = vmatprep.mubr.bf16.mxu0 0
          %778 = vmatmul.mubr.bf16.gmra.mrb[0].mxu0 %v479
          %v779 = vpop.f32.mrb[0].mxu0
          %v780 = vadd.f32 %v518, %v779
          %v781 = vpop.f32.mrb[0].mxu0
          %v782 = vadd.f32 %v522, %v781
          %v783 = vpop.f32.mrb[0].mxu0
          %v784 = vadd.f32 %v518, %v783
          %v785 = vpop.f32.mrb[0].mxu0
          %v786 = vadd.f32 %v522, %v785
          %787 = vmatprep.mubr.bf16.mxu0 0
          %788 = vmatmul.mubr.bf16.gmra.mrb[0].mxu0 %v480
          %v789 = vpop.f32.mrb[0].mxu0
          %v790 = vadd.f32 %v518, %v789
          %v791 = vpop.f32.mrb[0].mxu0
          %v792 = vadd.f32 %v522, %v791
          %v793 = vpop.f32.mrb[0].mxu0
          %v794 = vadd.f32 %v518, %v793
          %v795 = vpop.f32.mrb[0].mxu0
          %v796 = vadd.f32 %v522, %v795
          %797 = vmatprep.mubr.bf16.mxu0 0
          %798 = vmatmul.mubr.bf16.gmra.mrb[0].mxu0 %v481
          %v799 = vpop.f32.mrb[0].mxu0
          %v800 = vadd.f32 %v518, %v799
          %v801 = vpop.f32.mrb[0].mxu0
          %v802 = vadd.f32 %v522, %v801
          %v803 = vpop.f32.mrb[0].mxu0
          %v804 = vadd.f32 %v518, %v803
          %v805 = vpop.f32.mrb[0].mxu0
          %v806 = vadd.f32 %v522, %v805
          %807 = vdwg.mxu0
          %808 = vmatprep.subr.bf16.mxu0 %v634
          %809 = vmatpush1.bf16.msra.mxu0 %v633
          %810 = vmatprep.subr.bf16.mxu0 %v638
          %811 = vmatpush1.bf16.msra.mxu0 %v637
          %812 = vmatprep.subr.bf16.mxu0 %v642
          %813 = vmatpush1.bf16.msra.mxu0 %v641
          %814 = vmatprep.subr.bf16.mxu0 %v646
          %815 = vmatpush1.bf16.msra.mxu0 %v645
          %816 = vmatprep.subr.bf16.mxu0 %v650
          %817 = vmatpush1.bf16.msra.mxu0 %v649
          %818 = vmatprep.subr.bf16.mxu0 %v654
          %819 = vmatpush1.bf16.msra.mxu0 %v653
          %820 = vmatprep.subr.bf16.mxu0 %v658
          %821 = vmatpush1.bf16.msra.mxu0 %v657
          %822 = vmatprep.subr.bf16.mxu0 %v662
          %823 = vmatpush1.bf16.msra.mxu0 %v661
          %824 = vmatprep.subr.bf16.mxu0 0
          %825 = vmatpush1.bf16.msra.mxu0 0
          %826 = vmatprep.subr.bf16.mxu0 0
          %827 = vmatpush1.bf16.msra.mxu0 0
          %828 = vmatprep.subr.bf16.mxu0 0
          %829 = vmatpush1.bf16.msra.mxu0 0
          %830 = vmatprep.subr.bf16.mxu0 0
          %831 = vmatpush1.bf16.msra.mxu0 0
          %832 = vmatprep.subr.bf16.mxu0 0
          %833 = vmatpush1.bf16.msra.mxu0 0
          %834 = vmatprep.subr.bf16.mxu0 0
          %835 = vmatpush1.bf16.msra.mxu0 0
          %836 = vmatprep.subr.bf16.mxu0 0
          %837 = vmatpush1.bf16.msra.mxu0 0
          %838 = vmatprep.subr.bf16.mxu0 0
          %839 = vmatpush1.bf16.msra.mxu0 0
          %840 = vmatprep.mubr.bf16.mxu0 0
          %841 = vmatmul.mubr.bf16.gmra.mrb[0].mxu0 %v474
          %v842 = vpop.f32.mrb[0].mxu0
          %v843 = vadd.f32 %v526, %v842
          %v844 = vpop.f32.mrb[0].mxu0
          %v845 = vadd.f32 %v530, %v844
          %v846 = vpop.f32.mrb[0].mxu0
          %v847 = vadd.f32 %v526, %v846
          %v848 = vpop.f32.mrb[0].mxu0
          %v849 = vadd.f32 %v530, %v848
          %850 = vmatprep.mubr.bf16.mxu0 0
          %851 = vmatmul.mubr.bf16.gmra.mrb[0].mxu0 %v475
          %v852 = vpop.f32.mrb[0].mxu0
          %v853 = vadd.f32 %v526, %v852
          %v854 = vpop.f32.mrb[0].mxu0
          %v855 = vadd.f32 %v530, %v854
          %v856 = vpop.f32.mrb[0].mxu0
          %v857 = vadd.f32 %v526, %v856
          %v858 = vpop.f32.mrb[0].mxu0
          %v859 = vadd.f32 %v530, %v858
          %860 = vmatprep.mubr.bf16.mxu0 0
          %861 = vmatmul.mubr.bf16.gmra.mrb[0].mxu0 %v476
          %v862 = vpop.f32.mrb[0].mxu0
          %v863 = vadd.f32 %v526, %v862
          %v864 = vpop.f32.mrb[0].mxu0
          %v865 = vadd.f32 %v530, %v864
          %v866 = vpop.f32.mrb[0].mxu0
          %v867 = vadd.f32 %v526, %v866
          %v868 = vpop.f32.mrb[0].mxu0
          %v869 = vadd.f32 %v530, %v868
          %870 = vmatprep.mubr.bf16.mxu0 0
          %871 = vmatmul.mubr.bf16.gmra.mrb[0].mxu0 %v477
          %v872 = vpop.f32.mrb[0].mxu0
          %v873 = vadd.f32 %v526, %v872
          %v874 = vpop.f32.mrb[0].mxu0
          %v875 = vadd.f32 %v530, %v874
          %v876 = vpop.f32.mrb[0].mxu0
          %v877 = vadd.f32 %v526, %v876
          %v878 = vpop.f32.mrb[0].mxu0
          %v879 = vadd.f32 %v530, %v878
          %880 = vmatprep.mubr.bf16.mxu0 0
          %881 = vmatmul.mubr.bf16.gmra.mrb[0].mxu0 %v478
          %v882 = vpop.f32.mrb[0].mxu0
          %v883 = vadd.f32 %v526, %v882
          %v884 = vpop.f32.mrb[0].mxu0
          %v885 = vadd.f32 %v530, %v884
          %v886 = vpop.f32.mrb[0].mxu0
          %v887 = vadd.f32 %v526, %v886
          %v888 = vpop.f32.mrb[0].mxu0
          %v889 = vadd.f32 %v530, %v888
          %890 = vmatprep.mubr.bf16.mxu0 0
          %891 = vmatmul.mubr.bf16.gmra.mrb[0].mxu0 %v479
          %v892 = vpop.f32.mrb[0].mxu0
          %v893 = vadd.f32 %v526, %v892
          %v894 = vpop.f32.mrb[0].mxu0
          %v895 = vadd.f32 %v530, %v894
          %v896 = vpop.f32.mrb[0].mxu0
          %v897 = vadd.f32 %v526, %v896
          %v898 = vpop.f32.mrb[0].mxu0
          %v899 = vadd.f32 %v530, %v898
          %900 = vmatprep.mubr.bf16.mxu0 0
          %901 = vmatmul.mubr.bf16.gmra.mrb[0].mxu0 %v480
          %v902 = vpop.f32.mrb[0].mxu0
          %v903 = vadd.f32 %v526, %v902
          %v904 = vpop.f32.mrb[0].mxu0
          %v905 = vadd.f32 %v530, %v904
          %v906 = vpop.f32.mrb[0].mxu0
          %v907 = vadd.f32 %v526, %v906
          %v908 = vpop.f32.mrb[0].mxu0
          %v909 = vadd.f32 %v530, %v908
          %910 = vmatprep.mubr.bf16.mxu0 0
          %911 = vmatmul.mubr.bf16.gmra.mrb[0].mxu0 %v481
          %v912 = vpop.f32.mrb[0].mxu0
          %v913 = vadd.f32 %v526, %v912
          %v914 = vpop.f32.mrb[0].mxu0
          %v915 = vadd.f32 %v530, %v914
          %v916 = vpop.f32.mrb[0].mxu0
          %v917 = vadd.f32 %v526, %v916
          %v918 = vpop.f32.mrb[0].mxu0
          %v919 = vadd.f32 %v530, %v918
          %920 = vdwg.mxu0
          %921 = vst [vmem:[#allocation3] sm:$0xff] %v730
          %922 = vst [vmem:[#allocation3 + $0x8] sm:$0xff] %v732
          %923 = vst [vmem:[#allocation3 + $0x10] sm:$0xff] %v843
          %924 = vst [vmem:[#allocation3 + $0x18] sm:$0xff] %v845
          %925 = vst [vmem:[#allocation3 + $0x20] sm:$0xff] %v734
          %926 = vst [vmem:[#allocation3 + $0x28] sm:$0xff] %v736
          %927 = vst [vmem:[#allocation3 + $0x30] sm:$0xff] %v847
          %928 = vst [vmem:[#allocation3 + $0x38] sm:$0xff] %v849
          %929 = vst [vmem:[#allocation3 + $0x40] sm:$0xff] %v740
          %930 = vst [vmem:[#allocation3 + $0x48] sm:$0xff] %v742
          %931 = vst [vmem:[#allocation3 + $0x50] sm:$0xff] %v853
          %932 = vst [vmem:[#allocation3 + $0x58] sm:$0xff] %v855
          %933 = vst [vmem:[#allocation3 + $0x60] sm:$0xff] %v744
          %934 = vst [vmem:[#allocation3 + $0x68] sm:$0xff] %v746
          %935 = vst [vmem:[#allocation3 + $0x70] sm:$0xff] %v857
          %936 = vst [vmem:[#allocation3 + $0x78] sm:$0xff] %v859
          %937 = vst [vmem:[#allocation3 + $0x80] sm:$0xff] %v750
          %938 = vst [vmem:[#allocation3 + $0x88] sm:$0xff] %v752
          %939 = vst [vmem:[#allocation3 + $0x90] sm:$0xff] %v863
          %940 = vst [vmem:[#allocation3 + $0x98] sm:$0xff] %v865
          %941 = vst [vmem:[#allocation3 + $0xa0] sm:$0xff] %v754
          %942 = vst [vmem:[#allocation3 + $0xa8] sm:$0xff] %v756
          %943 = vst [vmem:[#allocation3 + $0xb0] sm:$0xff] %v867
          %944 = vst [vmem:[#allocation3 + $0xb8] sm:$0xff] %v869
          %945 = vst [vmem:[#allocation3 + $0xc0] sm:$0xff] %v760
          %946 = vst [vmem:[#allocation3 + $0xc8] sm:$0xff] %v762
          %947 = vst [vmem:[#allocation3 + $0xd0] sm:$0xff] %v873
          %948 = vst [vmem:[#allocation3 + $0xd8] sm:$0xff] %v875
          %949 = vst [vmem:[#allocation3 + $0xe0] sm:$0xff] %v764
          %950 = vst [vmem:[#allocation3 + $0xe8] sm:$0xff] %v766
          %951 = vst [vmem:[#allocation3 + $0xf0] sm:$0xff] %v877
          %952 = vst [vmem:[#allocation3 + $0xf8] sm:$0xff] %v879
          %953 = vst [vmem:[#allocation3 + $0x100] sm:$0xff] %v770
          %954 = vst [vmem:[#allocation3 + $0x108] sm:$0xff] %v772
          %955 = vst [vmem:[#allocation3 + $0x110] sm:$0xff] %v883
          %956 = vst [vmem:[#allocation3 + $0x118] sm:$0xff] %v885
          %957 = vst [vmem:[#allocation3 + $0x120] sm:$0xff] %v774
          %958 = vst [vmem:[#allocation3 + $0x128] sm:$0xff] %v776
          %959 = vst [vmem:[#allocation3 + $0x130] sm:$0xff] %v887
          %960 = vst [vmem:[#allocation3 + $0x138] sm:$0xff] %v889
          %961 = vst [vmem:[#allocation3 + $0x140] sm:$0xff] %v780
          %962 = vst [vmem:[#allocation3 + $0x148] sm:$0xff] %v782
          %963 = vst [vmem:[#allocation3 + $0x150] sm:$0xff] %v893
          %964 = vst [vmem:[#allocation3 + $0x158] sm:$0xff] %v895
          %965 = vst [vmem:[#allocation3 + $0x160] sm:$0xff] %v784
          %966 = vst [vmem:[#allocation3 + $0x168] sm:$0xff] %v786
          %967 = vst [vmem:[#allocation3 + $0x170] sm:$0xff] %v897
          %968 = vst [vmem:[#allocation3 + $0x178] sm:$0xff] %v899
          %969 = vst [vmem:[#allocation3 + $0x180] sm:$0xff] %v790
          %970 = vst [vmem:[#allocation3 + $0x188] sm:$0xff] %v792
          %971 = vst [vmem:[#allocation3 + $0x190] sm:$0xff] %v903
          %972 = vst [vmem:[#allocation3 + $0x198] sm:$0xff] %v905
          %973 = vst [vmem:[#allocation3 + $0x1a0] sm:$0xff] %v794
          %974 = vst [vmem:[#allocation3 + $0x1a8] sm:$0xff] %v796
          %975 = vst [vmem:[#allocation3 + $0x1b0] sm:$0xff] %v907
          %976 = vst [vmem:[#allocation3 + $0x1b8] sm:$0xff] %v909
          %977 = vst [vmem:[#allocation3 + $0x1c0] sm:$0xff] %v800
          %978 = vst [vmem:[#allocation3 + $0x1c8] sm:$0xff] %v802
          %979 = vst [vmem:[#allocation3 + $0x1d0] sm:$0xff] %v913
          %980 = vst [vmem:[#allocation3 + $0x1d8] sm:$0xff] %v915
          %981 = vst [vmem:[#allocation3 + $0x1e0] sm:$0xff] %v804
          %982 = vst [vmem:[#allocation3 + $0x1e8] sm:$0xff] %v806
          %983 = vst [vmem:[#allocation3 + $0x1f0] sm:$0xff] %v917
          %984 = vst [vmem:[#allocation3 + $0x1f8] sm:$0xff] %v919
        $region84: #{tpu_custom_call.1} parent=55 // pred_fallthru
          _
        %p985 = scmp.ne.s32.totalorder %s27, 0
        // Predicated region
        $region85: #{tpu_custom_call.1} parent=55 // pred_check
          %p986 = pneg %p985
        $region86: #{tpu_custom_call.1} parent=55 // pred_check_branch
          %988 = sbr.rel (%p986) target = $region88
        $region87: #{tpu_custom_call.1} parent=55 // pred_region
          %v989 = vld [vmem:[#allocation2] sm:$0xff]
          %v990 = vld [vmem:[#allocation2 + $0x8] sm:$0xff]
          %v991 = vld [vmem:[#allocation2 + $0x10] sm:$0xff]
          %v992 = vld [vmem:[#allocation2 + $0x18] sm:$0xff]
          %v993 = vld [vmem:[#allocation2 + $0x20] sm:$0xff]
          %v994 = vld [vmem:[#allocation2 + $0x28] sm:$0xff]
          %v995 = vld [vmem:[#allocation2 + $0x30] sm:$0xff]
          %v996 = vld [vmem:[#allocation2 + $0x38] sm:$0xff]
          %v997 = vld [vmem:[#allocation2 + $0x40] sm:$0xff]
          %v998 = vld [vmem:[#allocation2 + $0x48] sm:$0xff]
          %v999 = vld [vmem:[#allocation2 + $0x50] sm:$0xff]
          %v1000 = vld [vmem:[#allocation2 + $0x58] sm:$0xff]
          %v1001 = vld [vmem:[#allocation2 + $0x60] sm:$0xff]
          %v1002 = vld [vmem:[#allocation2 + $0x68] sm:$0xff]
          %v1003 = vld [vmem:[#allocation2 + $0x70] sm:$0xff]
          %v1004 = vld [vmem:[#allocation2 + $0x78] sm:$0xff]
          %v1005 = vpack.c.bf16 %v990, %v989
          %v1006 = vpack.c.bf16 %v992, %v991
          %v1007 = vpack.c.bf16 %v994, %v993
          %v1008 = vpack.c.bf16 %v996, %v995
          %v1009 = vpack.c.bf16 %v998, %v997
          %v1010 = vpack.c.bf16 %v1000, %v999
          %v1011 = vpack.c.bf16 %v1002, %v1001
          %v1012 = vpack.c.bf16 %v1004, %v1003
          %v1013 = vld [vmem:[%s388] sm:$0xff]
          %v1014 = vld [vmem:[%s388 + $0x8] sm:$0xff]
          %v1015 = vld [vmem:[%s388 + $0x10] sm:$0xff]
          %v1016 = vld [vmem:[%s388 + $0x18] sm:$0xff]
          %v1017 = vld [vmem:[%s388 + $0x20] sm:$0xff]
          %v1018 = vld [vmem:[%s388 + $0x28] sm:$0xff]
          %v1019 = vld [vmem:[%s388 + $0x30] sm:$0xff]
          %v1020 = vld [vmem:[%s388 + $0x38] sm:$0xff]
          %v1021 = vld [vmem:[%s388 + $0x40] sm:$0xff]
          %v1022 = vld [vmem:[%s388 + $0x48] sm:$0xff]
          %v1023 = vld [vmem:[%s388 + $0x50] sm:$0xff]
          %v1024 = vld [vmem:[%s388 + $0x58] sm:$0xff]
          %v1025 = vld [vmem:[%s388 + $0x60] sm:$0xff]
          %v1026 = vld [vmem:[%s388 + $0x68] sm:$0xff]
          %v1027 = vld [vmem:[%s388 + $0x70] sm:$0xff]
          %v1028 = vld [vmem:[%s388 + $0x78] sm:$0xff]
          %v1029 = vld [vmem:[%s388 + $0x80] sm:$0xff]
          %v1030 = vld [vmem:[%s388 + $0x88] sm:$0xff]
          %v1031 = vld [vmem:[%s388 + $0x90] sm:$0xff]
          %v1032 = vld [vmem:[%s388 + $0x98] sm:$0xff]
          %v1033 = vld [vmem:[%s388 + $0xa0] sm:$0xff]
          %v1034 = vld [vmem:[%s388 + $0xa8] sm:$0xff]
          %v1035 = vld [vmem:[%s388 + $0xb0] sm:$0xff]
          %v1036 = vld [vmem:[%s388 + $0xb8] sm:$0xff]
          %v1037 = vld [vmem:[%s388 + $0xc0] sm:$0xff]
          %v1038 = vld [vmem:[%s388 + $0xc8] sm:$0xff]
          %v1039 = vld [vmem:[%s388 + $0xd0] sm:$0xff]
          %v1040 = vld [vmem:[%s388 + $0xd8] sm:$0xff]
          %v1041 = vld [vmem:[%s388 + $0xe0] sm:$0xff]
          %v1042 = vld [vmem:[%s388 + $0xe8] sm:$0xff]
          %v1043 = vld [vmem:[%s388 + $0xf0] sm:$0xff]
          %v1044 = vld [vmem:[%s388 + $0xf8] sm:$0xff]
          %v1046 = vlaneseq
          %v1047 = vshrl.u32 %v1046, 7
          %v1048 = vsub.s32 0, %v1047
          %v1049 = vrot.slane %v453, %v1048
          %v1050 = vlaneseq
          %v1051 = vshrl.u32 %v1050, 7
          %v1052 = vsub.s32 1, %v1051
          %v1053 = vrot.slane %v453, %v1052
          %v1054 = vlaneseq
          %v1055 = vshrl.u32 %v1054, 7
          %v1056 = vsub.s32 2, %v1055
          %v1057 = vrot.slane %v453, %v1056
          %v1058 = vlaneseq
          %v1059 = vshrl.u32 %v1058, 7
          %v1060 = vsub.s32 3, %v1059
          %v1061 = vrot.slane %v453, %v1060
          %v1098 = vunpack.c.l.b16 %v1013
          %v1099 = vunpack.c.h.b16 %v1013
          %v1100 = vunpack.c.l.b16 %v1014
          %v1101 = vunpack.c.h.b16 %v1014
          %v1102 = vunpack.c.l.b16 %v1015
          %v1103 = vunpack.c.h.b16 %v1015
          %v1104 = vunpack.c.l.b16 %v1016
          %v1105 = vunpack.c.h.b16 %v1016
          %v1106 = vunpack.c.l.b16 %v1017
          %v1107 = vunpack.c.h.b16 %v1017
          %v1108 = vunpack.c.l.b16 %v1018
          %v1109 = vunpack.c.h.b16 %v1018
          %v1110 = vunpack.c.l.b16 %v1019
          %v1111 = vunpack.c.h.b16 %v1019
          %v1112 = vunpack.c.l.b16 %v1020
          %v1113 = vunpack.c.h.b16 %v1020
          %v1114 = vunpack.c.l.b16 %v1021
          %v1115 = vunpack.c.h.b16 %v1021
          %v1116 = vunpack.c.l.b16 %v1022
          %v1117 = vunpack.c.h.b16 %v1022
          %v1118 = vunpack.c.l.b16 %v1023
          %v1119 = vunpack.c.h.b16 %v1023
          %v1120 = vunpack.c.l.b16 %v1024
          %v1121 = vunpack.c.h.b16 %v1024
          %v1122 = vunpack.c.l.b16 %v1025
          %v1123 = vunpack.c.h.b16 %v1025
          %v1124 = vunpack.c.l.b16 %v1026
          %v1125 = vunpack.c.h.b16 %v1026
          %v1126 = vunpack.c.l.b16 %v1027
          %v1127 = vunpack.c.h.b16 %v1027
          %v1128 = vunpack.c.l.b16 %v1028
          %v1129 = vunpack.c.h.b16 %v1028
          %v1130 = vunpack.c.l.b16 %v1029
          %v1131 = vunpack.c.h.b16 %v1029
          %v1132 = vunpack.c.l.b16 %v1030
          %v1133 = vunpack.c.h.b16 %v1030
          %v1134 = vunpack.c.l.b16 %v1031
          %v1135 = vunpack.c.h.b16 %v1031
          %v1136 = vunpack.c.l.b16 %v1032
          %v1137 = vunpack.c.h.b16 %v1032
          %v1138 = vunpack.c.l.b16 %v1033
          %v1139 = vunpack.c.h.b16 %v1033
          %v1140 = vunpack.c.l.b16 %v1034
          %v1141 = vunpack.c.h.b16 %v1034
          %v1142 = vunpack.c.l.b16 %v1035
          %v1143 = vunpack.c.h.b16 %v1035
          %v1144 = vunpack.c.l.b16 %v1036
          %v1145 = vunpack.c.h.b16 %v1036
          %v1146 = vunpack.c.l.b16 %v1037
          %v1147 = vunpack.c.h.b16 %v1037
          %v1148 = vunpack.c.l.b16 %v1038
          %v1149 = vunpack.c.h.b16 %v1038
          %v1150 = vunpack.c.l.b16 %v1039
          %v1151 = vunpack.c.h.b16 %v1039
          %v1152 = vunpack.c.l.b16 %v1040
          %v1153 = vunpack.c.h.b16 %v1040
          %v1154 = vunpack.c.l.b16 %v1041
          %v1155 = vunpack.c.h.b16 %v1041
          %v1156 = vunpack.c.l.b16 %v1042
          %v1157 = vunpack.c.h.b16 %v1042
          %v1158 = vunpack.c.l.b16 %v1043
          %v1159 = vunpack.c.h.b16 %v1043
          %v1160 = vunpack.c.l.b16 %v1044
          %v1161 = vunpack.c.h.b16 %v1044
          %v1162 = vpack.c.b16 %v1102, %v1098
          %v1163 = vpack.c.b16 %v1103, %v1099
          %v1164 = vpack.c.b16 %v1104, %v1100
          %v1165 = vpack.c.b16 %v1105, %v1101
          %v1166 = vpack.c.b16 %v1110, %v1106
          %v1167 = vpack.c.b16 %v1111, %v1107
          %v1168 = vpack.c.b16 %v1112, %v1108
          %v1169 = vpack.c.b16 %v1113, %v1109
          %v1170 = vpack.c.b16 %v1118, %v1114
          %v1171 = vpack.c.b16 %v1119, %v1115
          %v1172 = vpack.c.b16 %v1120, %v1116
          %v1173 = vpack.c.b16 %v1121, %v1117
          %v1174 = vpack.c.b16 %v1126, %v1122
          %v1175 = vpack.c.b16 %v1127, %v1123
          %v1176 = vpack.c.b16 %v1128, %v1124
          %v1177 = vpack.c.b16 %v1129, %v1125
          %v1178 = vpack.c.b16 %v1134, %v1130
          %v1179 = vpack.c.b16 %v1135, %v1131
          %v1180 = vpack.c.b16 %v1136, %v1132
          %v1181 = vpack.c.b16 %v1137, %v1133
          %v1182 = vpack.c.b16 %v1142, %v1138
          %v1183 = vpack.c.b16 %v1143, %v1139
          %v1184 = vpack.c.b16 %v1144, %v1140
          %v1185 = vpack.c.b16 %v1145, %v1141
          %v1186 = vpack.c.b16 %v1150, %v1146
          %v1187 = vpack.c.b16 %v1151, %v1147
          %v1188 = vpack.c.b16 %v1152, %v1148
          %v1189 = vpack.c.b16 %v1153, %v1149
          %v1190 = vpack.c.b16 %v1158, %v1154
          %v1191 = vpack.c.b16 %v1159, %v1155
          %v1192 = vpack.c.b16 %v1160, %v1156
          %v1193 = vpack.c.b16 %v1161, %v1157
          %1226 = vmatprep.subr.bf16.mxu0 %v1163
          %1227 = vmatpush1.bf16.msra.mxu0 %v1162
          %1228 = vmatprep.subr.bf16.mxu0 %v1167
          %1229 = vmatpush1.bf16.msra.mxu0 %v1166
          %1230 = vmatprep.subr.bf16.mxu0 %v1171
          %1231 = vmatpush1.bf16.msra.mxu0 %v1170
          %1232 = vmatprep.subr.bf16.mxu0 %v1175
          %1233 = vmatpush1.bf16.msra.mxu0 %v1174
          %1234 = vmatprep.subr.bf16.mxu0 %v1179
          %1235 = vmatpush1.bf16.msra.mxu0 %v1178
          %1236 = vmatprep.subr.bf16.mxu0 %v1183
          %1237 = vmatpush1.bf16.msra.mxu0 %v1182
          %1238 = vmatprep.subr.bf16.mxu0 %v1187
          %1239 = vmatpush1.bf16.msra.mxu0 %v1186
          %1240 = vmatprep.subr.bf16.mxu0 %v1191
          %1241 = vmatpush1.bf16.msra.mxu0 %v1190
          %1242 = vmatprep.subr.bf16.mxu0 0
          %1243 = vmatpush1.bf16.msra.mxu0 0
          %1244 = vmatprep.subr.bf16.mxu0 0
          %1245 = vmatpush1.bf16.msra.mxu0 0
          %1246 = vmatprep.subr.bf16.mxu0 0
          %1247 = vmatpush1.bf16.msra.mxu0 0
          %1248 = vmatprep.subr.bf16.mxu0 0
          %1249 = vmatpush1.bf16.msra.mxu0 0
          %1250 = vmatprep.subr.bf16.mxu0 0
          %1251 = vmatpush1.bf16.msra.mxu0 0
          %1252 = vmatprep.subr.bf16.mxu0 0
          %1253 = vmatpush1.bf16.msra.mxu0 0
          %1254 = vmatprep.subr.bf16.mxu0 0
          %1255 = vmatpush1.bf16.msra.mxu0 0
          %1256 = vmatprep.subr.bf16.mxu0 0
          %1257 = vmatpush1.bf16.msra.mxu0 0
          %1258 = vmatprep.mubr.bf16.mxu0 0
          %1259 = vmatmul.mubr.bf16.gmra.mrb[0].mxu0 %v1005
          %v1260 = vpop.f32.mrb[0].mxu0
          %v1261 = vadd.f32 %v1049, %v1260
          %v1262 = vpop.f32.mrb[0].mxu0
          %v1263 = vadd.f32 %v1053, %v1262
          %v1264 = vpop.f32.mrb[0].mxu0
          %v1265 = vadd.f32 %v1049, %v1264
          %v1266 = vpop.f32.mrb[0].mxu0
          %v1267 = vadd.f32 %v1053, %v1266
          %1268 = vmatprep.mubr.bf16.mxu0 0
          %1269 = vmatmul.mubr.bf16.gmra.mrb[0].mxu0 %v1006
          %v1270 = vpop.f32.mrb[0].mxu0
          %v1271 = vadd.f32 %v1049, %v1270
          %v1272 = vpop.f32.mrb[0].mxu0
          %v1273 = vadd.f32 %v1053, %v1272
          %v1274 = vpop.f32.mrb[0].mxu0
          %v1275 = vadd.f32 %v1049, %v1274
          %v1276 = vpop.f32.mrb[0].mxu0
          %v1277 = vadd.f32 %v1053, %v1276
          %1278 = vmatprep.mubr.bf16.mxu0 0
          %1279 = vmatmul.mubr.bf16.gmra.mrb[0].mxu0 %v1007
          %v1280 = vpop.f32.mrb[0].mxu0
          %v1281 = vadd.f32 %v1049, %v1280
          %v1282 = vpop.f32.mrb[0].mxu0
          %v1283 = vadd.f32 %v1053, %v1282
          %v1284 = vpop.f32.mrb[0].mxu0
          %v1285 = vadd.f32 %v1049, %v1284
          %v1286 = vpop.f32.mrb[0].mxu0
          %v1287 = vadd.f32 %v1053, %v1286
          %1288 = vmatprep.mubr.bf16.mxu0 0
          %1289 = vmatmul.mubr.bf16.gmra.mrb[0].mxu0 %v1008
          %v1290 = vpop.f32.mrb[0].mxu0
          %v1291 = vadd.f32 %v1049, %v1290
          %v1292 = vpop.f32.mrb[0].mxu0
          %v1293 = vadd.f32 %v1053, %v1292
          %v1294 = vpop.f32.mrb[0].mxu0
          %v1295 = vadd.f32 %v1049, %v1294
          %v1296 = vpop.f32.mrb[0].mxu0
          %v1297 = vadd.f32 %v1053, %v1296
          %1298 = vmatprep.mubr.bf16.mxu0 0
          %1299 = vmatmul.mubr.bf16.gmra.mrb[0].mxu0 %v1009
          %v1300 = vpop.f32.mrb[0].mxu0
          %v1301 = vadd.f32 %v1049, %v1300
          %v1302 = vpop.f32.mrb[0].mxu0
          %v1303 = vadd.f32 %v1053, %v1302
          %v1304 = vpop.f32.mrb[0].mxu0
          %v1305 = vadd.f32 %v1049, %v1304
          %v1306 = vpop.f32.mrb[0].mxu0
          %v1307 = vadd.f32 %v1053, %v1306
          %1308 = vmatprep.mubr.bf16.mxu0 0
          %1309 = vmatmul.mubr.bf16.gmra.mrb[0].mxu0 %v1010
          %v1310 = vpop.f32.mrb[0].mxu0
          %v1311 = vadd.f32 %v1049, %v1310
          %v1312 = vpop.f32.mrb[0].mxu0
          %v1313 = vadd.f32 %v1053, %v1312
          %v1314 = vpop.f32.mrb[0].mxu0
          %v1315 = vadd.f32 %v1049, %v1314
          %v1316 = vpop.f32.mrb[0].mxu0
          %v1317 = vadd.f32 %v1053, %v1316
          %1318 = vmatprep.mubr.bf16.mxu0 0
          %1319 = vmatmul.mubr.bf16.gmra.mrb[0].mxu0 %v1011
          %v1320 = vpop.f32.mrb[0].mxu0
          %v1321 = vadd.f32 %v1049, %v1320
          %v1322 = vpop.f32.mrb[0].mxu0
          %v1323 = vadd.f32 %v1053, %v1322
          %v1324 = vpop.f32.mrb[0].mxu0
          %v1325 = vadd.f32 %v1049, %v1324
          %v1326 = vpop.f32.mrb[0].mxu0
          %v1327 = vadd.f32 %v1053, %v1326
          %1328 = vmatprep.mubr.bf16.mxu0 0
          %1329 = vmatmul.mubr.bf16.gmra.mrb[0].mxu0 %v1012
          %v1330 = vpop.f32.mrb[0].mxu0
          %v1331 = vadd.f32 %v1049, %v1330
          %v1332 = vpop.f32.mrb[0].mxu0
          %v1333 = vadd.f32 %v1053, %v1332
          %v1334 = vpop.f32.mrb[0].mxu0
          %v1335 = vadd.f32 %v1049, %v1334
          %v1336 = vpop.f32.mrb[0].mxu0
          %v1337 = vadd.f32 %v1053, %v1336
          %1338 = vdwg.mxu0
          %1339 = vmatprep.subr.bf16.mxu0 %v1165
          %1340 = vmatpush1.bf16.msra.mxu0 %v1164
          %1341 = vmatprep.subr.bf16.mxu0 %v1169
          %1342 = vmatpush1.bf16.msra.mxu0 %v1168
          %1343 = vmatprep.subr.bf16.mxu0 %v1173
          %1344 = vmatpush1.bf16.msra.mxu0 %v1172
          %1345 = vmatprep.subr.bf16.mxu0 %v1177
          %1346 = vmatpush1.bf16.msra.mxu0 %v1176
          %1347 = vmatprep.subr.bf16.mxu0 %v1181
          %1348 = vmatpush1.bf16.msra.mxu0 %v1180
          %1349 = vmatprep.subr.bf16.mxu0 %v1185
          %1350 = vmatpush1.bf16.msra.mxu0 %v1184
          %1351 = vmatprep.subr.bf16.mxu0 %v1189
          %1352 = vmatpush1.bf16.msra.mxu0 %v1188
          %1353 = vmatprep.subr.bf16.mxu0 %v1193
          %1354 = vmatpush1.bf16.msra.mxu0 %v1192
          %1355 = vmatprep.subr.bf16.mxu0 0
          %1356 = vmatpush1.bf16.msra.mxu0 0
          %1357 = vmatprep.subr.bf16.mxu0 0
          %1358 = vmatpush1.bf16.msra.mxu0 0
          %1359 = vmatprep.subr.bf16.mxu0 0
          %1360 = vmatpush1.bf16.msra.mxu0 0
          %1361 = vmatprep.subr.bf16.mxu0 0
          %1362 = vmatpush1.bf16.msra.mxu0 0
          %1363 = vmatprep.subr.bf16.mxu0 0
          %1364 = vmatpush1.bf16.msra.mxu0 0
          %1365 = vmatprep.subr.bf16.mxu0 0
          %1366 = vmatpush1.bf16.msra.mxu0 0
          %1367 = vmatprep.subr.bf16.mxu0 0
          %1368 = vmatpush1.bf16.msra.mxu0 0
          %1369 = vmatprep.subr.bf16.mxu0 0
          %1370 = vmatpush1.bf16.msra.mxu0 0
          %1371 = vmatprep.mubr.bf16.mxu0 0
          %1372 = vmatmul.mubr.bf16.gmra.mrb[0].mxu0 %v1005
          %v1373 = vpop.f32.mrb[0].mxu0
          %v1374 = vadd.f32 %v1057, %v1373
          %v1375 = vpop.f32.mrb[0].mxu0
          %v1376 = vadd.f32 %v1061, %v1375
          %v1377 = vpop.f32.mrb[0].mxu0
          %v1378 = vadd.f32 %v1057, %v1377
          %v1379 = vpop.f32.mrb[0].mxu0
          %v1380 = vadd.f32 %v1061, %v1379
          %1381 = vmatprep.mubr.bf16.mxu0 0
          %1382 = vmatmul.mubr.bf16.gmra.mrb[0].mxu0 %v1006
          %v1383 = vpop.f32.mrb[0].mxu0
          %v1384 = vadd.f32 %v1057, %v1383
          %v1385 = vpop.f32.mrb[0].mxu0
          %v1386 = vadd.f32 %v1061, %v1385
          %v1387 = vpop.f32.mrb[0].mxu0
          %v1388 = vadd.f32 %v1057, %v1387
          %v1389 = vpop.f32.mrb[0].mxu0
          %v1390 = vadd.f32 %v1061, %v1389
          %1391 = vmatprep.mubr.bf16.mxu0 0
          %1392 = vmatmul.mubr.bf16.gmra.mrb[0].mxu0 %v1007
          %v1393 = vpop.f32.mrb[0].mxu0
          %v1394 = vadd.f32 %v1057, %v1393
          %v1395 = vpop.f32.mrb[0].mxu0
          %v1396 = vadd.f32 %v1061, %v1395
          %v1397 = vpop.f32.mrb[0].mxu0
          %v1398 = vadd.f32 %v1057, %v1397
          %v1399 = vpop.f32.mrb[0].mxu0
          %v1400 = vadd.f32 %v1061, %v1399
          %1401 = vmatprep.mubr.bf16.mxu0 0
          %1402 = vmatmul.mubr.bf16.gmra.mrb[0].mxu0 %v1008
          %v1403 = vpop.f32.mrb[0].mxu0
          %v1404 = vadd.f32 %v1057, %v1403
          %v1405 = vpop.f32.mrb[0].mxu0
          %v1406 = vadd.f32 %v1061, %v1405
          %v1407 = vpop.f32.mrb[0].mxu0
          %v1408 = vadd.f32 %v1057, %v1407
          %v1409 = vpop.f32.mrb[0].mxu0
          %v1410 = vadd.f32 %v1061, %v1409
          %1411 = vmatprep.mubr.bf16.mxu0 0
          %1412 = vmatmul.mubr.bf16.gmra.mrb[0].mxu0 %v1009
          %v1413 = vpop.f32.mrb[0].mxu0
          %v1414 = vadd.f32 %v1057, %v1413
          %v1415 = vpop.f32.mrb[0].mxu0
          %v1416 = vadd.f32 %v1061, %v1415
          %v1417 = vpop.f32.mrb[0].mxu0
          %v1418 = vadd.f32 %v1057, %v1417
          %v1419 = vpop.f32.mrb[0].mxu0
          %v1420 = vadd.f32 %v1061, %v1419
          %1421 = vmatprep.mubr.bf16.mxu0 0
          %1422 = vmatmul.mubr.bf16.gmra.mrb[0].mxu0 %v1010
          %v1423 = vpop.f32.mrb[0].mxu0
          %v1424 = vadd.f32 %v1057, %v1423
          %v1425 = vpop.f32.mrb[0].mxu0
          %v1426 = vadd.f32 %v1061, %v1425
          %v1427 = vpop.f32.mrb[0].mxu0
          %v1428 = vadd.f32 %v1057, %v1427
          %v1429 = vpop.f32.mrb[0].mxu0
          %v1430 = vadd.f32 %v1061, %v1429
          %1431 = vmatprep.mubr.bf16.mxu0 0
          %1432 = vmatmul.mubr.bf16.gmra.mrb[0].mxu0 %v1011
          %v1433 = vpop.f32.mrb[0].mxu0
          %v1434 = vadd.f32 %v1057, %v1433
          %v1435 = vpop.f32.mrb[0].mxu0
          %v1436 = vadd.f32 %v1061, %v1435
          %v1437 = vpop.f32.mrb[0].mxu0
          %v1438 = vadd.f32 %v1057, %v1437
          %v1439 = vpop.f32.mrb[0].mxu0
          %v1440 = vadd.f32 %v1061, %v1439
          %1441 = vmatprep.mubr.bf16.mxu0 0
          %1442 = vmatmul.mubr.bf16.gmra.mrb[0].mxu0 %v1012
          %v1443 = vpop.f32.mrb[0].mxu0
          %v1444 = vadd.f32 %v1057, %v1443
          %v1445 = vpop.f32.mrb[0].mxu0
          %v1446 = vadd.f32 %v1061, %v1445
          %v1447 = vpop.f32.mrb[0].mxu0
          %v1448 = vadd.f32 %v1057, %v1447
          %v1449 = vpop.f32.mrb[0].mxu0
          %v1450 = vadd.f32 %v1061, %v1449
          %1451 = vdwg.mxu0
          %1452 = vst [vmem:[#allocation3] sm:$0xff] %v1261
          %1453 = vst [vmem:[#allocation3 + $0x8] sm:$0xff] %v1263
          %1454 = vst [vmem:[#allocation3 + $0x10] sm:$0xff] %v1374
          %1455 = vst [vmem:[#allocation3 + $0x18] sm:$0xff] %v1376
          %1456 = vst [vmem:[#allocation3 + $0x20] sm:$0xff] %v1265
          %1457 = vst [vmem:[#allocation3 + $0x28] sm:$0xff] %v1267
          %1458 = vst [vmem:[#allocation3 + $0x30] sm:$0xff] %v1378
          %1459 = vst [vmem:[#allocation3 + $0x38] sm:$0xff] %v1380
          %1460 = vst [vmem:[#allocation3 + $0x40] sm:$0xff] %v1271
          %1461 = vst [vmem:[#allocation3 + $0x48] sm:$0xff] %v1273
          %1462 = vst [vmem:[#allocation3 + $0x50] sm:$0xff] %v1384
          %1463 = vst [vmem:[#allocation3 + $0x58] sm:$0xff] %v1386
          %1464 = vst [vmem:[#allocation3 + $0x60] sm:$0xff] %v1275
          %1465 = vst [vmem:[#allocation3 + $0x68] sm:$0xff] %v1277
          %1466 = vst [vmem:[#allocation3 + $0x70] sm:$0xff] %v1388
          %1467 = vst [vmem:[#allocation3 + $0x78] sm:$0xff] %v1390
          %1468 = vst [vmem:[#allocation3 + $0x80] sm:$0xff] %v1281
          %1469 = vst [vmem:[#allocation3 + $0x88] sm:$0xff] %v1283
          %1470 = vst [vmem:[#allocation3 + $0x90] sm:$0xff] %v1394
          %1471 = vst [vmem:[#allocation3 + $0x98] sm:$0xff] %v1396
          %1472 = vst [vmem:[#allocation3 + $0xa0] sm:$0xff] %v1285
          %1473 = vst [vmem:[#allocation3 + $0xa8] sm:$0xff] %v1287
          %1474 = vst [vmem:[#allocation3 + $0xb0] sm:$0xff] %v1398
          %1475 = vst [vmem:[#allocation3 + $0xb8] sm:$0xff] %v1400
          %1476 = vst [vmem:[#allocation3 + $0xc0] sm:$0xff] %v1291
          %1477 = vst [vmem:[#allocation3 + $0xc8] sm:$0xff] %v1293
          %1478 = vst [vmem:[#allocation3 + $0xd0] sm:$0xff] %v1404
          %1479 = vst [vmem:[#allocation3 + $0xd8] sm:$0xff] %v1406
          %1480 = vst [vmem:[#allocation3 + $0xe0] sm:$0xff] %v1295
          %1481 = vst [vmem:[#allocation3 + $0xe8] sm:$0xff] %v1297
          %1482 = vst [vmem:[#allocation3 + $0xf0] sm:$0xff] %v1408
          %1483 = vst [vmem:[#allocation3 + $0xf8] sm:$0xff] %v1410
          %1484 = vst [vmem:[#allocation3 + $0x100] sm:$0xff] %v1301
          %1485 = vst [vmem:[#allocation3 + $0x108] sm:$0xff] %v1303
          %1486 = vst [vmem:[#allocation3 + $0x110] sm:$0xff] %v1414
          %1487 = vst [vmem:[#allocation3 + $0x118] sm:$0xff] %v1416
          %1488 = vst [vmem:[#allocation3 + $0x120] sm:$0xff] %v1305
          %1489 = vst [vmem:[#allocation3 + $0x128] sm:$0xff] %v1307
          %1490 = vst [vmem:[#allocation3 + $0x130] sm:$0xff] %v1418
          %1491 = vst [vmem:[#allocation3 + $0x138] sm:$0xff] %v1420
          %1492 = vst [vmem:[#allocation3 + $0x140] sm:$0xff] %v1311
          %1493 = vst [vmem:[#allocation3 + $0x148] sm:$0xff] %v1313
          %1494 = vst [vmem:[#allocation3 + $0x150] sm:$0xff] %v1424
          %1495 = vst [vmem:[#allocation3 + $0x158] sm:$0xff] %v1426
          %1496 = vst [vmem:[#allocation3 + $0x160] sm:$0xff] %v1315
          %1497 = vst [vmem:[#allocation3 + $0x168] sm:$0xff] %v1317
          %1498 = vst [vmem:[#allocation3 + $0x170] sm:$0xff] %v1428
          %1499 = vst [vmem:[#allocation3 + $0x178] sm:$0xff] %v1430
          %1500 = vst [vmem:[#allocation3 + $0x180] sm:$0xff] %v1321
          %1501 = vst [vmem:[#allocation3 + $0x188] sm:$0xff] %v1323
          %1502 = vst [vmem:[#allocation3 + $0x190] sm:$0xff] %v1434
          %1503 = vst [vmem:[#allocation3 + $0x198] sm:$0xff] %v1436
          %1504 = vst [vmem:[#allocation3 + $0x1a0] sm:$0xff] %v1325
          %1505 = vst [vmem:[#allocation3 + $0x1a8] sm:$0xff] %v1327
          %1506 = vst [vmem:[#allocation3 + $0x1b0] sm:$0xff] %v1438
          %1507 = vst [vmem:[#allocation3 + $0x1b8] sm:$0xff] %v1440
          %1508 = vst [vmem:[#allocation3 + $0x1c0] sm:$0xff] %v1331
          %1509 = vst [vmem:[#allocation3 + $0x1c8] sm:$0xff] %v1333
          %1510 = vst [vmem:[#allocation3 + $0x1d0] sm:$0xff] %v1444
          %1511 = vst [vmem:[#allocation3 + $0x1d8] sm:$0xff] %v1446
          %1512 = vst [vmem:[#allocation3 + $0x1e0] sm:$0xff] %v1335
          %1513 = vst [vmem:[#allocation3 + $0x1e8] sm:$0xff] %v1337
          %1514 = vst [vmem:[#allocation3 + $0x1f0] sm:$0xff] %v1448
          %1515 = vst [vmem:[#allocation3 + $0x1f8] sm:$0xff] %v1450
        $region88: #{tpu_custom_call.1} parent=55 // pred_fallthru
          _
        %v1516 = vlaneseq
        %v1517 = vshrl.u32 %v1516, 7
        %v1518 = vadd.s32 %v1517, 8
        %vm1519 = vcmp.lt.s32.totalorder %v1517, 2
        %vm1520 = vcmp.lt.s32.totalorder %v1518, 2
        %vm1521 = vcmp.ge.s32.totalorder %v1517, 8
        %vm1522 = vcmp.ge.s32.totalorder %v1518, 8
        %vm1523 = vcmp.lt.s32.totalorder %v1517, 10
        %vm1524 = vcmp.lt.s32.totalorder %v1518, 10
        %vm1525 = vmand %vm1521, %vm1523
        %vm1526 = vmand %vm1522, %vm1524
        %v1527 = vsel %vm1525, 6, 0
        %v1528 = vsel %vm1526, 6, 0
        %v1529 = vsel %vm1519, 8, %v1527
        %v1530 = vsel %vm1520, 8, %v1528
        %v1531 = vld [vmem:[%s397] sm:$0xff]
        %v1532 = vld [vmem:[%s397 + $0x8] sm:$0xff]
        %v1533 = vld [vmem:[%s397 + $0x10] sm:$0xff]
        %v1534 = vld [vmem:[%s397 + $0x18] sm:$0xff]
        %v1535 = vld [vmem:[%s397 + $0x20] sm:$0xff]
        %v1536 = vld [vmem:[%s397 + $0x28] sm:$0xff]
        %v1537 = vld [vmem:[%s397 + $0x30] sm:$0xff]
        %v1538 = vld [vmem:[%s397 + $0x38] sm:$0xff]
        %v1539 = vld [vmem:[%s397 + $0x40] sm:$0xff]
        %v1540 = vld [vmem:[%s397 + $0x48] sm:$0xff]
        %v1541 = vld [vmem:[%s397 + $0x50] sm:$0xff]
        %v1542 = vld [vmem:[%s397 + $0x58] sm:$0xff]
        %v1543 = vld [vmem:[%s397 + $0x60] sm:$0xff]
        %v1544 = vld [vmem:[%s397 + $0x68] sm:$0xff]
        %v1545 = vld [vmem:[%s397 + $0x70] sm:$0xff]
        %v1546 = vld [vmem:[%s397 + $0x78] sm:$0xff]
        %v1547 = vld [vmem:[%s397 + $0x80] sm:$0xff]
        %v1548 = vld [vmem:[%s397 + $0x88] sm:$0xff]
        %v1549 = vld [vmem:[%s397 + $0x90] sm:$0xff]
        %v1550 = vld [vmem:[%s397 + $0x98] sm:$0xff]
        %v1551 = vld [vmem:[%s397 + $0xa0] sm:$0xff]
        %v1552 = vld [vmem:[%s397 + $0xa8] sm:$0xff]
        %v1553 = vld [vmem:[%s397 + $0xb0] sm:$0xff]
        %v1554 = vld [vmem:[%s397 + $0xb8] sm:$0xff]
        %v1555 = vld [vmem:[%s397 + $0xc0] sm:$0xff]
        %v1556 = vld [vmem:[%s397 + $0xc8] sm:$0xff]
        %v1557 = vld [vmem:[%s397 + $0xd0] sm:$0xff]
        %v1558 = vld [vmem:[%s397 + $0xd8] sm:$0xff]
        %v1559 = vld [vmem:[%s397 + $0xe0] sm:$0xff]
        %v1560 = vld [vmem:[%s397 + $0xe8] sm:$0xff]
        %v1561 = vld [vmem:[%s397 + $0xf0] sm:$0xff]
        %v1562 = vld [vmem:[%s397 + $0xf8] sm:$0xff]
        %v1563 = vld [vmem:[#allocation3] sm:$0xff]
        %v1564 = vld [vmem:[#allocation3 + $0x8] sm:$0xff]
        %v1565 = vld [vmem:[#allocation3 + $0x10] sm:$0xff]
        %v1566 = vld [vmem:[#allocation3 + $0x18] sm:$0xff]
        %v1567 = vld [vmem:[#allocation3 + $0x20] sm:$0xff]
        %v1568 = vld [vmem:[#allocation3 + $0x28] sm:$0xff]
        %v1569 = vld [vmem:[#allocation3 + $0x30] sm:$0xff]
        %v1570 = vld [vmem:[#allocation3 + $0x38] sm:$0xff]
        %v1603 = vunpack.c.l.b16 %v1531
        %v1604 = vunpack.c.h.b16 %v1531
        %v1605 = vunpack.c.l.b16 %v1532
        %v1606 = vunpack.c.h.b16 %v1532
        %v1607 = vunpack.c.l.b16 %v1533
        %v1608 = vunpack.c.h.b16 %v1533
        %v1609 = vunpack.c.l.b16 %v1534
        %v1610 = vunpack.c.h.b16 %v1534
        %v1611 = vunpack.c.l.b16 %v1535
        %v1612 = vunpack.c.h.b16 %v1535
        %v1613 = vunpack.c.l.b16 %v1536
        %v1614 = vunpack.c.h.b16 %v1536
        %v1615 = vunpack.c.l.b16 %v1537
        %v1616 = vunpack.c.h.b16 %v1537
        %v1617 = vunpack.c.l.b16 %v1538
        %v1618 = vunpack.c.h.b16 %v1538
        %v1619 = vunpack.c.l.b16 %v1539
        %v1620 = vunpack.c.h.b16 %v1539
        %v1621 = vunpack.c.l.b16 %v1540
        %v1622 = vunpack.c.h.b16 %v1540
        %v1623 = vunpack.c.l.b16 %v1541
        %v1624 = vunpack.c.h.b16 %v1541
        %v1625 = vunpack.c.l.b16 %v1542
        %v1626 = vunpack.c.h.b16 %v1542
        %v1627 = vunpack.c.l.b16 %v1543
        %v1628 = vunpack.c.h.b16 %v1543
        %v1629 = vunpack.c.l.b16 %v1544
        %v1630 = vunpack.c.h.b16 %v1544
        %v1631 = vunpack.c.l.b16 %v1545
        %v1632 = vunpack.c.h.b16 %v1545
        %v1633 = vunpack.c.l.b16 %v1546
        %v1634 = vunpack.c.h.b16 %v1546
        %v1635 = vunpack.c.l.b16 %v1547
        %v1636 = vunpack.c.h.b16 %v1547
        %v1637 = vunpack.c.l.b16 %v1548
        %v1638 = vunpack.c.h.b16 %v1548
        %v1639 = vunpack.c.l.b16 %v1549
        %v1640 = vunpack.c.h.b16 %v1549
        %v1641 = vunpack.c.l.b16 %v1550
        %v1642 = vunpack.c.h.b16 %v1550
        %v1643 = vunpack.c.l.b16 %v1551
        %v1644 = vunpack.c.h.b16 %v1551
        %v1645 = vunpack.c.l.b16 %v1552
        %v1646 = vunpack.c.h.b16 %v1552
        %v1647 = vunpack.c.l.b16 %v1553
        %v1648 = vunpack.c.h.b16 %v1553
        %v1649 = vunpack.c.l.b16 %v1554
        %v1650 = vunpack.c.h.b16 %v1554
        %v1651 = vunpack.c.l.b16 %v1555
        %v1652 = vunpack.c.h.b16 %v1555
        %v1653 = vunpack.c.l.b16 %v1556
        %v1654 = vunpack.c.h.b16 %v1556
        %v1655 = vunpack.c.l.b16 %v1557
        %v1656 = vunpack.c.h.b16 %v1557
        %v1657 = vunpack.c.l.b16 %v1558
        %v1658 = vunpack.c.h.b16 %v1558
        %v1659 = vunpack.c.l.b16 %v1559
        %v1660 = vunpack.c.h.b16 %v1559
        %v1661 = vunpack.c.l.b16 %v1560
        %v1662 = vunpack.c.h.b16 %v1560
        %v1663 = vunpack.c.l.b16 %v1561
        %v1664 = vunpack.c.h.b16 %v1561
        %v1665 = vunpack.c.l.b16 %v1562
        %v1666 = vunpack.c.h.b16 %v1562
        %v1667 = vpack.c.b16 %v1607, %v1603
        %v1668 = vpack.c.b16 %v1608, %v1604
        %v1669 = vpack.c.b16 %v1609, %v1605
        %v1670 = vpack.c.b16 %v1610, %v1606
        %v1671 = vpack.c.b16 %v1615, %v1611
        %v1672 = vpack.c.b16 %v1616, %v1612
        %v1673 = vpack.c.b16 %v1617, %v1613
        %v1674 = vpack.c.b16 %v1618, %v1614
        %v1675 = vpack.c.b16 %v1623, %v1619
        %v1676 = vpack.c.b16 %v1624, %v1620
        %v1677 = vpack.c.b16 %v1625, %v1621
        %v1678 = vpack.c.b16 %v1626, %v1622
        %v1679 = vpack.c.b16 %v1631, %v1627
        %v1680 = vpack.c.b16 %v1632, %v1628
        %v1681 = vpack.c.b16 %v1633, %v1629
        %v1682 = vpack.c.b16 %v1634, %v1630
        %v1683 = vpack.c.b16 %v1639, %v1635
        %v1684 = vpack.c.b16 %v1640, %v1636
        %v1685 = vpack.c.b16 %v1641, %v1637
        %v1686 = vpack.c.b16 %v1642, %v1638
        %v1687 = vpack.c.b16 %v1647, %v1643
        %v1688 = vpack.c.b16 %v1648, %v1644
        %v1689 = vpack.c.b16 %v1649, %v1645
        %v1690 = vpack.c.b16 %v1650, %v1646
        %v1691 = vpack.c.b16 %v1655, %v1651
        %v1692 = vpack.c.b16 %v1656, %v1652
        %v1693 = vpack.c.b16 %v1657, %v1653
        %v1694 = vpack.c.b16 %v1658, %v1654
        %v1695 = vpack.c.b16 %v1663, %v1659
        %v1696 = vpack.c.b16 %v1664, %v1660
        %v1697 = vpack.c.b16 %v1665, %v1661
        %v1698 = vpack.c.b16 %v1666, %v1662
        %1731 = vmatprep.subr.bf16.mxu0 %v1668
        %1732 = vmatpush1.bf16.msra.mxu0 %v1667
        %1733 = vmatprep.subr.bf16.mxu0 %v1672
        %1734 = vmatpush1.bf16.msra.mxu0 %v1671
        %1735 = vmatprep.subr.bf16.mxu0 %v1676
        %1736 = vmatpush1.bf16.msra.mxu0 %v1675
        %1737 = vmatprep.subr.bf16.mxu0 %v1680
        %1738 = vmatpush1.bf16.msra.mxu0 %v1679
        %1739 = vmatprep.subr.bf16.mxu0 %v1684
        %1740 = vmatpush1.bf16.msra.mxu0 %v1683
        %1741 = vmatprep.subr.bf16.mxu0 %v1688
        %1742 = vmatpush1.bf16.msra.mxu0 %v1687
        %1743 = vmatprep.subr.bf16.mxu0 %v1692
        %1744 = vmatpush1.bf16.msra.mxu0 %v1691
        %1745 = vmatprep.subr.bf16.mxu0 %v1696
        %1746 = vmatpush1.bf16.msra.mxu0 %v1695
        %1747 = vmatprep.subr.bf16.mxu0 0
        %1748 = vmatpush1.bf16.msra.mxu0 0
        %1749 = vmatprep.subr.bf16.mxu0 0
        %1750 = vmatpush1.bf16.msra.mxu0 0
        %1751 = vmatprep.subr.bf16.mxu0 0
        %1752 = vmatpush1.bf16.msra.mxu0 0
        %1753 = vmatprep.subr.bf16.mxu0 0
        %1754 = vmatpush1.bf16.msra.mxu0 0
        %1755 = vmatprep.subr.bf16.mxu0 0
        %1756 = vmatpush1.bf16.msra.mxu0 0
        %1757 = vmatprep.subr.bf16.mxu0 0
        %1758 = vmatpush1.bf16.msra.mxu0 0
        %1759 = vmatprep.subr.bf16.mxu0 0
        %1760 = vmatpush1.bf16.msra.mxu0 0
        %1761 = vmatprep.subr.bf16.mxu0 0
        %1762 = vmatpush1.bf16.msra.mxu0 0
        %1763 = vmatprep.mubr.bf16.mxu0 0
        %1764 = vmatmul.mubr.bf16.gmra.mrb[0].mxu0 0
        %v1765 = vpop.f32.mrb[0].mxu0
        %v1766 = vadd.f32 0.0, %v1765
        %v1767 = vpop.f32.mrb[0].mxu0
        %v1768 = vadd.f32 0.0, %v1767
        %v1769 = vpop.f32.mrb[0].mxu0
        %v1770 = vadd.f32 0.0, %v1769
        %v1771 = vpop.f32.mrb[0].mxu0
        %v1772 = vadd.f32 0.0, %v1771
        %1773 = vdwg.mxu0
        %1774 = vmatprep.subr.bf16.mxu0 %v1670
        %1775 = vmatpush1.bf16.msra.mxu0 %v1669
        %1776 = vmatprep.subr.bf16.mxu0 %v1674
        %1777 = vmatpush1.bf16.msra.mxu0 %v1673
        %1778 = vmatprep.subr.bf16.mxu0 %v1678
        %1779 = vmatpush1.bf16.msra.mxu0 %v1677
        %1780 = vmatprep.subr.bf16.mxu0 %v1682
        %1781 = vmatpush1.bf16.msra.mxu0 %v1681
        %1782 = vmatprep.subr.bf16.mxu0 %v1686
        %1783 = vmatpush1.bf16.msra.mxu0 %v1685
        %1784 = vmatprep.subr.bf16.mxu0 %v1690
        %1785 = vmatpush1.bf16.msra.mxu0 %v1689
        %1786 = vmatprep.subr.bf16.mxu0 %v1694
        %1787 = vmatpush1.bf16.msra.mxu0 %v1693
        %1788 = vmatprep.subr.bf16.mxu0 %v1698
        %1789 = vmatpush1.bf16.msra.mxu0 %v1697
        %1790 = vmatprep.subr.bf16.mxu0 0
        %1791 = vmatpush1.bf16.msra.mxu0 0
        %1792 = vmatprep.subr.bf16.mxu0 0
        %1793 = vmatpush1.bf16.msra.mxu0 0
        %1794 = vmatprep.subr.bf16.mxu0 0
        %1795 = vmatpush1.bf16.msra.mxu0 0
        %1796 = vmatprep.subr.bf16.mxu0 0
        %1797 = vmatpush1.bf16.msra.mxu0 0
        %1798 = vmatprep.subr.bf16.mxu0 0
        %1799 = vmatpush1.bf16.msra.mxu0 0
        %1800 = vmatprep.subr.bf16.mxu0 0
        %1801 = vmatpush1.bf16.msra.mxu0 0
        %1802 = vmatprep.subr.bf16.mxu0 0
        %1803 = vmatpush1.bf16.msra.mxu0 0
        %1804 = vmatprep.subr.bf16.mxu0 0
        %1805 = vmatpush1.bf16.msra.mxu0 0
        %1806 = vmatprep.mubr.bf16.mxu0 0
        %1807 = vmatmul.mubr.bf16.gmra.mrb[0].mxu0 0
        %v1808 = vpop.f32.mrb[0].mxu0
        %v1809 = vadd.f32 0.0, %v1808
        %v1810 = vpop.f32.mrb[0].mxu0
        %v1811 = vadd.f32 0.0, %v1810
        %v1812 = vpop.f32.mrb[0].mxu0
        %v1813 = vadd.f32 0.0, %v1812
        %v1814 = vpop.f32.mrb[0].mxu0
        %v1815 = vadd.f32 0.0, %v1814
        %1816 = vdwg.mxu0
        %v1817 = vadd.f32 %v1563, %v1766
        %v1818 = vadd.f32 %v1564, %v1768
        %v1819 = vadd.f32 %v1565, %v1809
        %v1820 = vadd.f32 %v1566, %v1811
        %v1821 = vadd.f32 %v1567, %v1770
        %v1822 = vadd.f32 %v1568, %v1772
        %v1823 = vadd.f32 %v1569, %v1813
        %v1824 = vadd.f32 %v1570, %v1815
        %v1825 = vxor.u32 %v1817, 2147483648
        %v1826 = vxor.u32 %v1821, 2147483648
        %v1827 = vmul.f32 %v1825, 1.442695
        %v1828 = vpow.pop %v1827
        %v1829 = vmul.f32 %v1826, 1.442695
        %v1830 = vpow.pop %v1829
        %v1831 = vadd.f32 %v1828, 1.0
        %v1832 = vadd.f32 %v1830, 1.0
        %v1833 = vrcp.pop %v1831
        %v1834 = vmul.f32 1.0, %v1833
        %v1835 = vrcp.pop %v1832
        %v1836 = vmul.f32 1.0, %v1835
        %v1837 = vxor.u32 %v1818, 2147483648
        %v1838 = vxor.u32 %v1822, 2147483648
        %v1839 = vmul.f32 %v1837, 1.442695
        %v1840 = vpow.pop %v1839
        %v1841 = vmul.f32 %v1838, 1.442695
        %v1842 = vpow.pop %v1841
        %v1843 = vadd.f32 %v1840, 1.0
        %v1844 = vadd.f32 %v1842, 1.0
        %v1845 = vrcp.pop %v1843
        %v1846 = vmul.f32 1.0, %v1845
        %v1847 = vrcp.pop %v1844
        %v1848 = vmul.f32 1.0, %v1847
        %v1849 = vtanh.pop %v1819
        %v1850 = vtanh.pop %v1823
        %v1851 = vxor.u32 %v1820, 2147483648
        %v1852 = vxor.u32 %v1824, 2147483648
        %v1853 = vmul.f32 %v1851, 1.442695
        %v1854 = vpow.pop %v1853
        %v1855 = vmul.f32 %v1852, 1.442695
        %v1856 = vpow.pop %v1855
        %v1857 = vadd.f32 %v1854, 1.0
        %v1858 = vadd.f32 %v1856, 1.0
        %v1859 = vrcp.pop %v1857
        %v1860 = vmul.f32 1.0, %v1859
        %v1861 = vrcp.pop %v1858
        %v1862 = vmul.f32 1.0, %v1861
        %v1863 = vmul.f32 %v1846, 0.0
        %v1864 = vmul.f32 %v1848, 0.0
        %v1865 = vmul.f32 %v1834, %v1849
        %v1866 = vmul.f32 %v1836, %v1850
        %v1867 = vadd.f32 %v1863, %v1865
        %v1868 = vadd.f32 %v1864, %v1866
        %v1869 = vtanh.pop %v1867
        %v1870 = vtanh.pop %v1868
        %v1871 = vmul.f32 %v1860, %v1869
        %v1872 = vmul.f32 %v1862, %v1870
        %vm1873 = vcmp.gt.s32.totalorder %v1529, 0
        %vm1874 = vcmp.gt.s32.totalorder %v1530, 0
        %v1875 = vsel %vm1873, %v1867, 0.0
        %v1876 = vsel %vm1874, %v1868, 0.0
        %v1877 = vsel %vm1873, %v1871, 0.0
        %v1878 = vsel %vm1874, %v1872, 0.0
        %1879 = vst [vmem:[#allocation2] sm:$0xff] %v1877
        %1880 = vst [vmem:[#allocation2 + $0x8] sm:$0xff] %v1878
        %s1881 = scalar_lea.vmem [#allocation3], 64
        %v1882 = vld [vmem:[%s1881] sm:$0xff]
        %v1883 = vld [vmem:[%s1881 + $0x8] sm:$0xff]
        %v1884 = vld [vmem:[%s1881 + $0x10] sm:$0xff]
        %v1885 = vld [vmem:[%s1881 + $0x18] sm:$0xff]
        %v1886 = vld [vmem:[%s1881 + $0x20] sm:$0xff]
        %v1887 = vld [vmem:[%s1881 + $0x28] sm:$0xff]
        %v1888 = vld [vmem:[%s1881 + $0x30] sm:$0xff]
        %v1889 = vld [vmem:[%s1881 + $0x38] sm:$0xff]
        %v1890 = vpack.c.bf16 %v1878, %v1877
        %1891 = vmatprep.subr.bf16.mxu0 %v1668
        %1892 = vmatpush1.bf16.msra.mxu0 %v1667
        %1893 = vmatprep.subr.bf16.mxu0 %v1672
        %1894 = vmatpush1.bf16.msra.mxu0 %v1671
        %1895 = vmatprep.subr.bf16.mxu0 %v1676
        %1896 = vmatpush1.bf16.msra.mxu0 %v1675
        %1897 = vmatprep.subr.bf16.mxu0 %v1680
        %1898 = vmatpush1.bf16.msra.mxu0 %v1679
        %1899 = vmatprep.subr.bf16.mxu0 %v1684
        %1900 = vmatpush1.bf16.msra.mxu0 %v1683
        %1901 = vmatprep.subr.bf16.mxu0 %v1688
        %1902 = vmatpush1.bf16.msra.mxu0 %v1687
        %1903 = vmatprep.subr.bf16.mxu0 %v1692
        %1904 = vmatpush1.bf16.msra.mxu0 %v1691
        %1905 = vmatprep.subr.bf16.mxu0 %v1696
        %1906 = vmatpush1.bf16.msra.mxu0 %v1695
        %1907 = vmatprep.subr.bf16.mxu0 0
        %1908 = vmatpush1.bf16.msra.mxu0 0
        %1909 = vmatprep.subr.bf16.mxu0 0
        %1910 = vmatpush1.bf16.msra.mxu0 0
        %1911 = vmatprep.subr.bf16.mxu0 0
        %1912 = vmatpush1.bf16.msra.mxu0 0
        %1913 = vmatprep.subr.bf16.mxu0 0
        %1914 = vmatpush1.bf16.msra.mxu0 0
        %1915 = vmatprep.subr.bf16.mxu0 0
        %1916 = vmatpush1.bf16.msra.mxu0 0
        %1917 = vmatprep.subr.bf16.mxu0 0
        %1918 = vmatpush1.bf16.msra.mxu0 0
        %1919 = vmatprep.subr.bf16.mxu0 0
        %1920 = vmatpush1.bf16.msra.mxu0 0
        %1921 = vmatprep.subr.bf16.mxu0 0
        %1922 = vmatpush1.bf16.msra.mxu0 0
        %1923 = vmatprep.mubr.bf16.mxu0 0
        %1924 = vmatmul.mubr.bf16.gmra.mrb[0].mxu0 %v1890
        %v1925 = vpop.f32.mrb[0].mxu0
        %v1926 = vadd.f32 0.0, %v1925
        %v1927 = vpop.f32.mrb[0].mxu0
        %v1928 = vadd.f32 0.0, %v1927
        %v1929 = vpop.f32.mrb[0].mxu0
        %v1930 = vadd.f32 0.0, %v1929
        %v1931 = vpop.f32.mrb[0].mxu0
        %v1932 = vadd.f32 0.0, %v1931
        %1933 = vdwg.mxu0
        %1934 = vmatprep.subr.bf16.mxu0 %v1670
        %1935 = vmatpush1.bf16.msra.mxu0 %v1669
        %1936 = vmatprep.subr.bf16.mxu0 %v1674
        %1937 = vmatpush1.bf16.msra.mxu0 %v1673
        %1938 = vmatprep.subr.bf16.mxu0 %v1678
        %1939 = vmatpush1.bf16.msra.mxu0 %v1677
        %1940 = vmatprep.subr.bf16.mxu0 %v1682
        %1941 = vmatpush1.bf16.msra.mxu0 %v1681
        %1942 = vmatprep.subr.bf16.mxu0 %v1686
        %1943 = vmatpush1.bf16.msra.mxu0 %v1685
        %1944 = vmatprep.subr.bf16.mxu0 %v1690
        %1945 = vmatpush1.bf16.msra.mxu0 %v1689
        %1946 = vmatprep.subr.bf16.mxu0 %v1694
        %1947 = vmatpush1.bf16.msra.mxu0 %v1693
        %1948 = vmatprep.subr.bf16.mxu0 %v1698
        %1949 = vmatpush1.bf16.msra.mxu0 %v1697
        %1950 = vmatprep.subr.bf16.mxu0 0
        %1951 = vmatpush1.bf16.msra.mxu0 0
        %1952 = vmatprep.subr.bf16.mxu0 0
        %1953 = vmatpush1.bf16.msra.mxu0 0
        %1954 = vmatprep.subr.bf16.mxu0 0
        %1955 = vmatpush1.bf16.msra.mxu0 0
        %1956 = vmatprep.subr.bf16.mxu0 0
        %1957 = vmatpush1.bf16.msra.mxu0 0
        %1958 = vmatprep.subr.bf16.mxu0 0
        %1959 = vmatpush1.bf16.msra.mxu0 0
        %1960 = vmatprep.subr.bf16.mxu0 0
        %1961 = vmatpush1.bf16.msra.mxu0 0
        %1962 = vmatprep.subr.bf16.mxu0 0
        %1963 = vmatpush1.bf16.msra.mxu0 0
        %1964 = vmatprep.subr.bf16.mxu0 0
        %1965 = vmatpush1.bf16.msra.mxu0 0
        %1966 = vmatprep.mubr.bf16.mxu0 0
        %1967 = vmatmul.mubr.bf16.gmra.mrb[0].mxu0 %v1890
        %v1968 = vpop.f32.mrb[0].mxu0
        %v1969 = vadd.f32 0.0, %v1968
        %v1970 = vpop.f32.mrb[0].mxu0
        %v1971 = vadd.f32 0.0, %v1970
        %v1972 = vpop.f32.mrb[0].mxu0
        %v1973 = vadd.f32 0.0, %v1972
        %v1974 = vpop.f32.mrb[0].mxu0
        %v1975 = vadd.f32 0.0, %v1974
        %1976 = vdwg.mxu0
        %v1977 = vadd.f32 %v1882, %v1926
        %v1978 = vadd.f32 %v1883, %v1928
        %v1979 = vadd.f32 %v1884, %v1969
        %v1980 = vadd.f32 %v1885, %v1971
        %v1981 = vadd.f32 %v1886, %v1930
        %v1982 = vadd.f32 %v1887, %v1932
        %v1983 = vadd.f32 %v1888, %v1973
        %v1984 = vadd.f32 %v1889, %v1975
        %v1985 = vxor.u32 %v1977, 2147483648
        %v1986 = vxor.u32 %v1981, 2147483648
        %v1987 = vmul.f32 %v1985, 1.442695
        %v1988 = vpow.pop %v1987
        %v1989 = vmul.f32 %v1986, 1.442695
        %v1990 = vpow.pop %v1989
        %v1991 = vadd.f32 %v1988, 1.0
        %v1992 = vadd.f32 %v1990, 1.0
        %v1993 = vrcp.pop %v1991
        %v1994 = vmul.f32 1.0, %v1993
        %v1995 = vrcp.pop %v1992
        %v1996 = vmul.f32 1.0, %v1995
        %v1997 = vxor.u32 %v1978, 2147483648
        %v1998 = vxor.u32 %v1982, 2147483648
        %v1999 = vmul.f32 %v1997, 1.442695
        %v2000 = vpow.pop %v1999
        %v2001 = vmul.f32 %v1998, 1.442695
        %v2002 = vpow.pop %v2001
        %v2003 = vadd.f32 %v2000, 1.0
        %v2004 = vadd.f32 %v2002, 1.0
        %v2005 = vrcp.pop %v2003
        %v2006 = vmul.f32 1.0, %v2005
        %v2007 = vrcp.pop %v2004
        %v2008 = vmul.f32 1.0, %v2007
        %v2009 = vtanh.pop %v1979
        %v2010 = vtanh.pop %v1983
        %v2011 = vxor.u32 %v1980, 2147483648
        %v2012 = vxor.u32 %v1984, 2147483648
        %v2013 = vmul.f32 %v2011, 1.442695
        %v2014 = vpow.pop %v2013
        %v2015 = vmul.f32 %v2012, 1.442695
        %v2016 = vpow.pop %v2015
        %v2017 = vadd.f32 %v2014, 1.0
        %v2018 = vadd.f32 %v2016, 1.0
        %v2019 = vrcp.pop %v2017
        %v2020 = vmul.f32 1.0, %v2019
        %v2021 = vrcp.pop %v2018
        %v2022 = vmul.f32 1.0, %v2021
        %v2023 = vmul.f32 %v2006, %v1875
        %v2024 = vmul.f32 %v2008, %v1876
        %v2025 = vmul.f32 %v1994, %v2009
        %v2026 = vmul.f32 %v1996, %v2010
        %v2027 = vadd.f32 %v2023, %v2025
        %v2028 = vadd.f32 %v2024, %v2026
        %v2029 = vtanh.pop %v2027
        %v2030 = vtanh.pop %v2028
        %v2031 = vmul.f32 %v2020, %v2029
        %v2032 = vmul.f32 %v2022, %v2030
        %vm2033 = vcmp.gt.s32.totalorder %v1529, 1
        %vm2034 = vcmp.gt.s32.totalorder %v1530, 1
        %v2035 = vsel %vm2033, %v2027, %v1875
        %v2036 = vsel %vm2034, %v2028, %v1876
        %v2037 = vsel %vm2033, %v2031, %v1877
        %v2038 = vsel %vm2034, %v2032, %v1878
        %s2039 = scalar_lea.vmem [#allocation2], 16
        %2040 = vst [vmem:[%s2039] sm:$0xff] %v2037
        %2041 = vst [vmem:[%s2039 + $0x8] sm:$0xff] %v2038
        %s2042 = scalar_lea.vmem [#allocation3], 128
        %v2043 = vld [vmem:[%s2042] sm:$0xff]
        %v2044 = vld [vmem:[%s2042 + $0x8] sm:$0xff]
        %v2045 = vld [vmem:[%s2042 + $0x10] sm:$0xff]
        %v2046 = vld [vmem:[%s2042 + $0x18] sm:$0xff]
        %v2047 = vld [vmem:[%s2042 + $0x20] sm:$0xff]
        %v2048 = vld [vmem:[%s2042 + $0x28] sm:$0xff]
        %v2049 = vld [vmem:[%s2042 + $0x30] sm:$0xff]
        %v2050 = vld [vmem:[%s2042 + $0x38] sm:$0xff]
        %v2051 = vpack.c.bf16 %v2038, %v2037
        %2052 = vmatprep.subr.bf16.mxu0 %v1668
        %2053 = vmatpush1.bf16.msra.mxu0 %v1667
        %2054 = vmatprep.subr.bf16.mxu0 %v1672
        %2055 = vmatpush1.bf16.msra.mxu0 %v1671
        %2056 = vmatprep.subr.bf16.mxu0 %v1676
        %2057 = vmatpush1.bf16.msra.mxu0 %v1675
        %2058 = vmatprep.subr.bf16.mxu0 %v1680
        %2059 = vmatpush1.bf16.msra.mxu0 %v1679
        %2060 = vmatprep.subr.bf16.mxu0 %v1684
        %2061 = vmatpush1.bf16.msra.mxu0 %v1683
        %2062 = vmatprep.subr.bf16.mxu0 %v1688
        %2063 = vmatpush1.bf16.msra.mxu0 %v1687
        %2064 = vmatprep.subr.bf16.mxu0 %v1692
        %2065 = vmatpush1.bf16.msra.mxu0 %v1691
        %2066 = vmatprep.subr.bf16.mxu0 %v1696
        %2067 = vmatpush1.bf16.msra.mxu0 %v1695
        %2068 = vmatprep.subr.bf16.mxu0 0
        %2069 = vmatpush1.bf16.msra.mxu0 0
        %2070 = vmatprep.subr.bf16.mxu0 0
        %2071 = vmatpush1.bf16.msra.mxu0 0
        %2072 = vmatprep.subr.bf16.mxu0 0
        %2073 = vmatpush1.bf16.msra.mxu0 0
        %2074 = vmatprep.subr.bf16.mxu0 0
        %2075 = vmatpush1.bf16.msra.mxu0 0
        %2076 = vmatprep.subr.bf16.mxu0 0
        %2077 = vmatpush1.bf16.msra.mxu0 0
        %2078 = vmatprep.subr.bf16.mxu0 0
        %2079 = vmatpush1.bf16.msra.mxu0 0
        %2080 = vmatprep.subr.bf16.mxu0 0
        %2081 = vmatpush1.bf16.msra.mxu0 0
        %2082 = vmatprep.subr.bf16.mxu0 0
        %2083 = vmatpush1.bf16.msra.mxu0 0
        %2084 = vmatprep.mubr.bf16.mxu0 0
        %2085 = vmatmul.mubr.bf16.gmra.mrb[0].mxu0 %v2051
        %v2086 = vpop.f32.mrb[0].mxu0
        %v2087 = vadd.f32 0.0, %v2086
        %v2088 = vpop.f32.mrb[0].mxu0
        %v2089 = vadd.f32 0.0, %v2088
        %v2090 = vpop.f32.mrb[0].mxu0
        %v2091 = vadd.f32 0.0, %v2090
        %v2092 = vpop.f32.mrb[0].mxu0
        %v2093 = vadd.f32 0.0, %v2092
        %2094 = vdwg.mxu0
        %2095 = vmatprep.subr.bf16.mxu0 %v1670
        %2096 = vmatpush1.bf16.msra.mxu0 %v1669
        %2097 = vmatprep.subr.bf16.mxu0 %v1674
        %2098 = vmatpush1.bf16.msra.mxu0 %v1673
        %2099 = vmatprep.subr.bf16.mxu0 %v1678
        %2100 = vmatpush1.bf16.msra.mxu0 %v1677
        %2101 = vmatprep.subr.bf16.mxu0 %v1682
        %2102 = vmatpush1.bf16.msra.mxu0 %v1681
        %2103 = vmatprep.subr.bf16.mxu0 %v1686
        %2104 = vmatpush1.bf16.msra.mxu0 %v1685
        %2105 = vmatprep.subr.bf16.mxu0 %v1690
        %2106 = vmatpush1.bf16.msra.mxu0 %v1689
        %2107 = vmatprep.subr.bf16.mxu0 %v1694
        %2108 = vmatpush1.bf16.msra.mxu0 %v1693
        %2109 = vmatprep.subr.bf16.mxu0 %v1698
        %2110 = vmatpush1.bf16.msra.mxu0 %v1697
        %2111 = vmatprep.subr.bf16.mxu0 0
        %2112 = vmatpush1.bf16.msra.mxu0 0
        %2113 = vmatprep.subr.bf16.mxu0 0
        %2114 = vmatpush1.bf16.msra.mxu0 0
        %2115 = vmatprep.subr.bf16.mxu0 0
        %2116 = vmatpush1.bf16.msra.mxu0 0
        %2117 = vmatprep.subr.bf16.mxu0 0
        %2118 = vmatpush1.bf16.msra.mxu0 0
        %2119 = vmatprep.subr.bf16.mxu0 0
        %2120 = vmatpush1.bf16.msra.mxu0 0
        %2121 = vmatprep.subr.bf16.mxu0 0
        %2122 = vmatpush1.bf16.msra.mxu0 0
        %2123 = vmatprep.subr.bf16.mxu0 0
        %2124 = vmatpush1.bf16.msra.mxu0 0
        %2125 = vmatprep.subr.bf16.mxu0 0
        %2126 = vmatpush1.bf16.msra.mxu0 0
        %2127 = vmatprep.mubr.bf16.mxu0 0
        %2128 = vmatmul.mubr.bf16.gmra.mrb[0].mxu0 %v2051
        %v2129 = vpop.f32.mrb[0].mxu0
        %v2130 = vadd.f32 0.0, %v2129
        %v2131 = vpop.f32.mrb[0].mxu0
        %v2132 = vadd.f32 0.0, %v2131
        %v2133 = vpop.f32.mrb[0].mxu0
        %v2134 = vadd.f32 0.0, %v2133
        %v2135 = vpop.f32.mrb[0].mxu0
        %v2136 = vadd.f32 0.0, %v2135
        %2137 = vdwg.mxu0
        %v2138 = vadd.f32 %v2043, %v2087
        %v2139 = vadd.f32 %v2044, %v2089
        %v2140 = vadd.f32 %v2045, %v2130
        %v2141 = vadd.f32 %v2046, %v2132
        %v2142 = vadd.f32 %v2047, %v2091
        %v2143 = vadd.f32 %v2048, %v2093
        %v2144 = vadd.f32 %v2049, %v2134
        %v2145 = vadd.f32 %v2050, %v2136
        %v2146 = vxor.u32 %v2138, 2147483648
        %v2147 = vxor.u32 %v2142, 2147483648
        %v2148 = vmul.f32 %v2146, 1.442695
        %v2149 = vpow.pop %v2148
        %v2150 = vmul.f32 %v2147, 1.442695
        %v2151 = vpow.pop %v2150
        %v2152 = vadd.f32 %v2149, 1.0
        %v2153 = vadd.f32 %v2151, 1.0
        %v2154 = vrcp.pop %v2152
        %v2155 = vmul.f32 1.0, %v2154
        %v2156 = vrcp.pop %v2153
        %v2157 = vmul.f32 1.0, %v2156
        %v2158 = vxor.u32 %v2139, 2147483648
        %v2159 = vxor.u32 %v2143, 2147483648
        %v2160 = vmul.f32 %v2158, 1.442695
        %v2161 = vpow.pop %v2160
        %v2162 = vmul.f32 %v2159, 1.442695
        %v2163 = vpow.pop %v2162
        %v2164 = vadd.f32 %v2161, 1.0
        %v2165 = vadd.f32 %v2163, 1.0
        %v2166 = vrcp.pop %v2164
        %v2167 = vmul.f32 1.0, %v2166
        %v2168 = vrcp.pop %v2165
        %v2169 = vmul.f32 1.0, %v2168
        %v2170 = vtanh.pop %v2140
        %v2171 = vtanh.pop %v2144
        %v2172 = vxor.u32 %v2141, 2147483648
        %v2173 = vxor.u32 %v2145, 2147483648
        %v2174 = vmul.f32 %v2172, 1.442695
        %v2175 = vpow.pop %v2174
        %v2176 = vmul.f32 %v2173, 1.442695
        %v2177 = vpow.pop %v2176
        %v2178 = vadd.f32 %v2175, 1.0
        %v2179 = vadd.f32 %v2177, 1.0
        %v2180 = vrcp.pop %v2178
        %v2181 = vmul.f32 1.0, %v2180
        %v2182 = vrcp.pop %v2179
        %v2183 = vmul.f32 1.0, %v2182
        %v2184 = vmul.f32 %v2167, %v2035
        %v2185 = vmul.f32 %v2169, %v2036
        %v2186 = vmul.f32 %v2155, %v2170
        %v2187 = vmul.f32 %v2157, %v2171
        %v2188 = vadd.f32 %v2184, %v2186
        %v2189 = vadd.f32 %v2185, %v2187
        %v2190 = vtanh.pop %v2188
        %v2191 = vtanh.pop %v2189
        %v2192 = vmul.f32 %v2181, %v2190
        %v2193 = vmul.f32 %v2183, %v2191
        %vm2194 = vcmp.gt.s32.totalorder %v1529, 2
        %vm2195 = vcmp.gt.s32.totalorder %v1530, 2
        %v2196 = vsel %vm2194, %v2188, %v2035
        %v2197 = vsel %vm2195, %v2189, %v2036
        %v2198 = vsel %vm2194, %v2192, %v2037
        %v2199 = vsel %vm2195, %v2193, %v2038
        %s2200 = scalar_lea.vmem [#allocation2], 32
        %2201 = vst [vmem:[%s2200] sm:$0xff] %v2198
        %2202 = vst [vmem:[%s2200 + $0x8] sm:$0xff] %v2199
        %s2203 = scalar_lea.vmem [#allocation3], 192
        %v2204 = vld [vmem:[%s2203] sm:$0xff]
        %v2205 = vld [vmem:[%s2203 + $0x8] sm:$0xff]
        %v2206 = vld [vmem:[%s2203 + $0x10] sm:$0xff]
        %v2207 = vld [vmem:[%s2203 + $0x18] sm:$0xff]
        %v2208 = vld [vmem:[%s2203 + $0x20] sm:$0xff]
        %v2209 = vld [vmem:[%s2203 + $0x28] sm:$0xff]
        %v2210 = vld [vmem:[%s2203 + $0x30] sm:$0xff]
        %v2211 = vld [vmem:[%s2203 + $0x38] sm:$0xff]
        %v2212 = vpack.c.bf16 %v2199, %v2198
        %2213 = vmatprep.subr.bf16.mxu0 %v1668
        %2214 = vmatpush1.bf16.msra.mxu0 %v1667
        %2215 = vmatprep.subr.bf16.mxu0 %v1672
        %2216 = vmatpush1.bf16.msra.mxu0 %v1671
        %2217 = vmatprep.subr.bf16.mxu0 %v1676
        %2218 = vmatpush1.bf16.msra.mxu0 %v1675
        %2219 = vmatprep.subr.bf16.mxu0 %v1680
        %2220 = vmatpush1.bf16.msra.mxu0 %v1679
        %2221 = vmatprep.subr.bf16.mxu0 %v1684
        %2222 = vmatpush1.bf16.msra.mxu0 %v1683
        %2223 = vmatprep.subr.bf16.mxu0 %v1688
        %2224 = vmatpush1.bf16.msra.mxu0 %v1687
        %2225 = vmatprep.subr.bf16.mxu0 %v1692
        %2226 = vmatpush1.bf16.msra.mxu0 %v1691
        %2227 = vmatprep.subr.bf16.mxu0 %v1696
        %2228 = vmatpush1.bf16.msra.mxu0 %v1695
        %2229 = vmatprep.subr.bf16.mxu0 0
        %2230 = vmatpush1.bf16.msra.mxu0 0
        %2231 = vmatprep.subr.bf16.mxu0 0
        %2232 = vmatpush1.bf16.msra.mxu0 0
        %2233 = vmatprep.subr.bf16.mxu0 0
        %2234 = vmatpush1.bf16.msra.mxu0 0
        %2235 = vmatprep.subr.bf16.mxu0 0
        %2236 = vmatpush1.bf16.msra.mxu0 0
        %2237 = vmatprep.subr.bf16.mxu0 0
        %2238 = vmatpush1.bf16.msra.mxu0 0
        %2239 = vmatprep.subr.bf16.mxu0 0
        %2240 = vmatpush1.bf16.msra.mxu0 0
        %2241 = vmatprep.subr.bf16.mxu0 0
        %2242 = vmatpush1.bf16.msra.mxu0 0
        %2243 = vmatprep.subr.bf16.mxu0 0
        %2244 = vmatpush1.bf16.msra.mxu0 0
        %2245 = vmatprep.mubr.bf16.mxu0 0
        %2246 = vmatmul.mubr.bf16.gmra.mrb[0].mxu0 %v2212
        %v2247 = vpop.f32.mrb[0].mxu0
        %v2248 = vadd.f32 0.0, %v2247
        %v2249 = vpop.f32.mrb[0].mxu0
        %v2250 = vadd.f32 0.0, %v2249
        %v2251 = vpop.f32.mrb[0].mxu0
        %v2252 = vadd.f32 0.0, %v2251
        %v2253 = vpop.f32.mrb[0].mxu0
        %v2254 = vadd.f32 0.0, %v2253
        %2255 = vdwg.mxu0
        %2256 = vmatprep.subr.bf16.mxu0 %v1670
        %2257 = vmatpush1.bf16.msra.mxu0 %v1669
        %2258 = vmatprep.subr.bf16.mxu0 %v1674
        %2259 = vmatpush1.bf16.msra.mxu0 %v1673
        %2260 = vmatprep.subr.bf16.mxu0 %v1678
        %2261 = vmatpush1.bf16.msra.mxu0 %v1677
        %2262 = vmatprep.subr.bf16.mxu0 %v1682
        %2263 = vmatpush1.bf16.msra.mxu0 %v1681
        %2264 = vmatprep.subr.bf16.mxu0 %v1686
        %2265 = vmatpush1.bf16.msra.mxu0 %v1685
        %2266 = vmatprep.subr.bf16.mxu0 %v1690
        %2267 = vmatpush1.bf16.msra.mxu0 %v1689
        %2268 = vmatprep.subr.bf16.mxu0 %v1694
        %2269 = vmatpush1.bf16.msra.mxu0 %v1693
        %2270 = vmatprep.subr.bf16.mxu0 %v1698
        %2271 = vmatpush1.bf16.msra.mxu0 %v1697
        %2272 = vmatprep.subr.bf16.mxu0 0
        %2273 = vmatpush1.bf16.msra.mxu0 0
        %2274 = vmatprep.subr.bf16.mxu0 0
        %2275 = vmatpush1.bf16.msra.mxu0 0
        %2276 = vmatprep.subr.bf16.mxu0 0
        %2277 = vmatpush1.bf16.msra.mxu0 0
        %2278 = vmatprep.subr.bf16.mxu0 0
        %2279 = vmatpush1.bf16.msra.mxu0 0
        %2280 = vmatprep.subr.bf16.mxu0 0
        %2281 = vmatpush1.bf16.msra.mxu0 0
        %2282 = vmatprep.subr.bf16.mxu0 0
        %2283 = vmatpush1.bf16.msra.mxu0 0
        %2284 = vmatprep.subr.bf16.mxu0 0
        %2285 = vmatpush1.bf16.msra.mxu0 0
        %2286 = vmatprep.subr.bf16.mxu0 0
        %2287 = vmatpush1.bf16.msra.mxu0 0
        %2288 = vmatprep.mubr.bf16.mxu0 0
        %2289 = vmatmul.mubr.bf16.gmra.mrb[0].mxu0 %v2212
        %v2290 = vpop.f32.mrb[0].mxu0
        %v2291 = vadd.f32 0.0, %v2290
        %v2292 = vpop.f32.mrb[0].mxu0
        %v2293 = vadd.f32 0.0, %v2292
        %v2294 = vpop.f32.mrb[0].mxu0
        %v2295 = vadd.f32 0.0, %v2294
        %v2296 = vpop.f32.mrb[0].mxu0
        %v2297 = vadd.f32 0.0, %v2296
        %2298 = vdwg.mxu0
        %v2299 = vadd.f32 %v2204, %v2248
        %v2300 = vadd.f32 %v2205, %v2250
        %v2301 = vadd.f32 %v2206, %v2291
        %v2302 = vadd.f32 %v2207, %v2293
        %v2303 = vadd.f32 %v2208, %v2252
        %v2304 = vadd.f32 %v2209, %v2254
        %v2305 = vadd.f32 %v2210, %v2295
        %v2306 = vadd.f32 %v2211, %v2297
        %v2307 = vxor.u32 %v2299, 2147483648
        %v2308 = vxor.u32 %v2303, 2147483648
        %v2309 = vmul.f32 %v2307, 1.442695
        %v2310 = vpow.pop %v2309
        %v2311 = vmul.f32 %v2308, 1.442695
        %v2312 = vpow.pop %v2311
        %v2313 = vadd.f32 %v2310, 1.0
        %v2314 = vadd.f32 %v2312, 1.0
        %v2315 = vrcp.pop %v2313
        %v2316 = vmul.f32 1.0, %v2315
        %v2317 = vrcp.pop %v2314
        %v2318 = vmul.f32 1.0, %v2317
        %v2319 = vxor.u32 %v2300, 2147483648
        %v2320 = vxor.u32 %v2304, 2147483648
        %v2321 = vmul.f32 %v2319, 1.442695
        %v2322 = vpow.pop %v2321
        %v2323 = vmul.f32 %v2320, 1.442695
        %v2324 = vpow.pop %v2323
        %v2325 = vadd.f32 %v2322, 1.0
        %v2326 = vadd.f32 %v2324, 1.0
        %v2327 = vrcp.pop %v2325
        %v2328 = vmul.f32 1.0, %v2327
        %v2329 = vrcp.pop %v2326
        %v2330 = vmul.f32 1.0, %v2329
        %v2331 = vtanh.pop %v2301
        %v2332 = vtanh.pop %v2305
        %v2333 = vxor.u32 %v2302, 2147483648
        %v2334 = vxor.u32 %v2306, 2147483648
        %v2335 = vmul.f32 %v2333, 1.442695
        %v2336 = vpow.pop %v2335
        %v2337 = vmul.f32 %v2334, 1.442695
        %v2338 = vpow.pop %v2337
        %v2339 = vadd.f32 %v2336, 1.0
        %v2340 = vadd.f32 %v2338, 1.0
        %v2341 = vrcp.pop %v2339
        %v2342 = vmul.f32 1.0, %v2341
        %v2343 = vrcp.pop %v2340
        %v2344 = vmul.f32 1.0, %v2343
        %v2345 = vmul.f32 %v2328, %v2196
        %v2346 = vmul.f32 %v2330, %v2197
        %v2347 = vmul.f32 %v2316, %v2331
        %v2348 = vmul.f32 %v2318, %v2332
        %v2349 = vadd.f32 %v2345, %v2347
        %v2350 = vadd.f32 %v2346, %v2348
        %v2351 = vtanh.pop %v2349
        %v2352 = vtanh.pop %v2350
        %v2353 = vmul.f32 %v2342, %v2351
        %v2354 = vmul.f32 %v2344, %v2352
        %vm2355 = vcmp.gt.s32.totalorder %v1529, 3
        %vm2356 = vcmp.gt.s32.totalorder %v1530, 3
        %v2357 = vsel %vm2355, %v2349, %v2196
        %v2358 = vsel %vm2356, %v2350, %v2197
        %v2359 = vsel %vm2355, %v2353, %v2198
        %v2360 = vsel %vm2356, %v2354, %v2199
        %s2361 = scalar_lea.vmem [#allocation2], 48
        %2362 = vst [vmem:[%s2361] sm:$0xff] %v2359
        %2363 = vst [vmem:[%s2361 + $0x8] sm:$0xff] %v2360
        %s2364 = scalar_lea.vmem [#allocation3], 256
        %v2365 = vld [vmem:[%s2364] sm:$0xff]
        %v2366 = vld [vmem:[%s2364 + $0x8] sm:$0xff]
        %v2367 = vld [vmem:[%s2364 + $0x10] sm:$0xff]
        %v2368 = vld [vmem:[%s2364 + $0x18] sm:$0xff]
        %v2369 = vld [vmem:[%s2364 + $0x20] sm:$0xff]
        %v2370 = vld [vmem:[%s2364 + $0x28] sm:$0xff]
        %v2371 = vld [vmem:[%s2364 + $0x30] sm:$0xff]
        %v2372 = vld [vmem:[%s2364 + $0x38] sm:$0xff]
        %v2373 = vpack.c.bf16 %v2360, %v2359
        %2374 = vmatprep.subr.bf16.mxu0 %v1668
        %2375 = vmatpush1.bf16.msra.mxu0 %v1667
        %2376 = vmatprep.subr.bf16.mxu0 %v1672
        %2377 = vmatpush1.bf16.msra.mxu0 %v1671
        %2378 = vmatprep.subr.bf16.mxu0 %v1676
        %2379 = vmatpush1.bf16.msra.mxu0 %v1675
        %2380 = vmatprep.subr.bf16.mxu0 %v1680
        %2381 = vmatpush1.bf16.msra.mxu0 %v1679
        %2382 = vmatprep.subr.bf16.mxu0 %v1684
        %2383 = vmatpush1.bf16.msra.mxu0 %v1683
        %2384 = vmatprep.subr.bf16.mxu0 %v1688
        %2385 = vmatpush1.bf16.msra.mxu0 %v1687
        %2386 = vmatprep.subr.bf16.mxu0 %v1692
        %2387 = vmatpush1.bf16.msra.mxu0 %v1691
        %2388 = vmatprep.subr.bf16.mxu0 %v1696
        %2389 = vmatpush1.bf16.msra.mxu0 %v1695
        %2390 = vmatprep.subr.bf16.mxu0 0
        %2391 = vmatpush1.bf16.msra.mxu0 0
        %2392 = vmatprep.subr.bf16.mxu0 0
        %2393 = vmatpush1.bf16.msra.mxu0 0
        %2394 = vmatprep.subr.bf16.mxu0 0
        %2395 = vmatpush1.bf16.msra.mxu0 0
        %2396 = vmatprep.subr.bf16.mxu0 0
        %2397 = vmatpush1.bf16.msra.mxu0 0
        %2398 = vmatprep.subr.bf16.mxu0 0
        %2399 = vmatpush1.bf16.msra.mxu0 0
        %2400 = vmatprep.subr.bf16.mxu0 0
        %2401 = vmatpush1.bf16.msra.mxu0 0
        %2402 = vmatprep.subr.bf16.mxu0 0
        %2403 = vmatpush1.bf16.msra.mxu0 0
        %2404 = vmatprep.subr.bf16.mxu0 0
        %2405 = vmatpush1.bf16.msra.mxu0 0
        %2406 = vmatprep.mubr.bf16.mxu0 0
        %2407 = vmatmul.mubr.bf16.gmra.mrb[0].mxu0 %v2373
        %v2408 = vpop.f32.mrb[0].mxu0
        %v2409 = vadd.f32 0.0, %v2408
        %v2410 = vpop.f32.mrb[0].mxu0
        %v2411 = vadd.f32 0.0, %v2410
        %v2412 = vpop.f32.mrb[0].mxu0
        %v2413 = vadd.f32 0.0, %v2412
        %v2414 = vpop.f32.mrb[0].mxu0
        %v2415 = vadd.f32 0.0, %v2414
        %2416 = vdwg.mxu0
        %2417 = vmatprep.subr.bf16.mxu0 %v1670
        %2418 = vmatpush1.bf16.msra.mxu0 %v1669
        %2419 = vmatprep.subr.bf16.mxu0 %v1674
        %2420 = vmatpush1.bf16.msra.mxu0 %v1673
        %2421 = vmatprep.subr.bf16.mxu0 %v1678
        %2422 = vmatpush1.bf16.msra.mxu0 %v1677
        %2423 = vmatprep.subr.bf16.mxu0 %v1682
        %2424 = vmatpush1.bf16.msra.mxu0 %v1681
        %2425 = vmatprep.subr.bf16.mxu0 %v1686
        %2426 = vmatpush1.bf16.msra.mxu0 %v1685
        %2427 = vmatprep.subr.bf16.mxu0 %v1690
        %2428 = vmatpush1.bf16.msra.mxu0 %v1689
        %2429 = vmatprep.subr.bf16.mxu0 %v1694
        %2430 = vmatpush1.bf16.msra.mxu0 %v1693
        %2431 = vmatprep.subr.bf16.mxu0 %v1698
        %2432 = vmatpush1.bf16.msra.mxu0 %v1697
        %2433 = vmatprep.subr.bf16.mxu0 0
        %2434 = vmatpush1.bf16.msra.mxu0 0
        %2435 = vmatprep.subr.bf16.mxu0 0
        %2436 = vmatpush1.bf16.msra.mxu0 0
        %2437 = vmatprep.subr.bf16.mxu0 0
        %2438 = vmatpush1.bf16.msra.mxu0 0
        %2439 = vmatprep.subr.bf16.mxu0 0
        %2440 = vmatpush1.bf16.msra.mxu0 0
        %2441 = vmatprep.subr.bf16.mxu0 0
        %2442 = vmatpush1.bf16.msra.mxu0 0
        %2443 = vmatprep.subr.bf16.mxu0 0
        %2444 = vmatpush1.bf16.msra.mxu0 0
        %2445 = vmatprep.subr.bf16.mxu0 0
        %2446 = vmatpush1.bf16.msra.mxu0 0
        %2447 = vmatprep.subr.bf16.mxu0 0
        %2448 = vmatpush1.bf16.msra.mxu0 0
        %2449 = vmatprep.mubr.bf16.mxu0 0
        %2450 = vmatmul.mubr.bf16.gmra.mrb[0].mxu0 %v2373
        %v2451 = vpop.f32.mrb[0].mxu0
        %v2452 = vadd.f32 0.0, %v2451
        %v2453 = vpop.f32.mrb[0].mxu0
        %v2454 = vadd.f32 0.0, %v2453
        %v2455 = vpop.f32.mrb[0].mxu0
        %v2456 = vadd.f32 0.0, %v2455
        %v2457 = vpop.f32.mrb[0].mxu0
        %v2458 = vadd.f32 0.0, %v2457
        %2459 = vdwg.mxu0
        %v2460 = vadd.f32 %v2365, %v2409
        %v2461 = vadd.f32 %v2366, %v2411
        %v2462 = vadd.f32 %v2367, %v2452
        %v2463 = vadd.f32 %v2368, %v2454
        %v2464 = vadd.f32 %v2369, %v2413
        %v2465 = vadd.f32 %v2370, %v2415
        %v2466 = vadd.f32 %v2371, %v2456
        %v2467 = vadd.f32 %v2372, %v2458
        %v2468 = vxor.u32 %v2460, 2147483648
        %v2469 = vxor.u32 %v2464, 2147483648
        %v2470 = vmul.f32 %v2468, 1.442695
        %v2471 = vpow.pop %v2470
        %v2472 = vmul.f32 %v2469, 1.442695
        %v2473 = vpow.pop %v2472
        %v2474 = vadd.f32 %v2471, 1.0
        %v2475 = vadd.f32 %v2473, 1.0
        %v2476 = vrcp.pop %v2474
        %v2477 = vmul.f32 1.0, %v2476
        %v2478 = vrcp.pop %v2475
        %v2479 = vmul.f32 1.0, %v2478
        %v2480 = vxor.u32 %v2461, 2147483648
        %v2481 = vxor.u32 %v2465, 2147483648
        %v2482 = vmul.f32 %v2480, 1.442695
        %v2483 = vpow.pop %v2482
        %v2484 = vmul.f32 %v2481, 1.442695
        %v2485 = vpow.pop %v2484
        %v2486 = vadd.f32 %v2483, 1.0
        %v2487 = vadd.f32 %v2485, 1.0
        %v2488 = vrcp.pop %v2486
        %v2489 = vmul.f32 1.0, %v2488
        %v2490 = vrcp.pop %v2487
        %v2491 = vmul.f32 1.0, %v2490
        %v2492 = vtanh.pop %v2462
        %v2493 = vtanh.pop %v2466
        %v2494 = vxor.u32 %v2463, 2147483648
        %v2495 = vxor.u32 %v2467, 2147483648
        %v2496 = vmul.f32 %v2494, 1.442695
        %v2497 = vpow.pop %v2496
        %v2498 = vmul.f32 %v2495, 1.442695
        %v2499 = vpow.pop %v2498
        %v2500 = vadd.f32 %v2497, 1.0
        %v2501 = vadd.f32 %v2499, 1.0
        %v2502 = vrcp.pop %v2500
        %v2503 = vmul.f32 1.0, %v2502
        %v2504 = vrcp.pop %v2501
        %v2505 = vmul.f32 1.0, %v2504
        %v2506 = vmul.f32 %v2489, %v2357
        %v2507 = vmul.f32 %v2491, %v2358
        %v2508 = vmul.f32 %v2477, %v2492
        %v2509 = vmul.f32 %v2479, %v2493
        %v2510 = vadd.f32 %v2506, %v2508
        %v2511 = vadd.f32 %v2507, %v2509
        %v2512 = vtanh.pop %v2510
        %v2513 = vtanh.pop %v2511
        %v2514 = vmul.f32 %v2503, %v2512
        %v2515 = vmul.f32 %v2505, %v2513
        %vm2516 = vcmp.gt.s32.totalorder %v1529, 4
        %vm2517 = vcmp.gt.s32.totalorder %v1530, 4
        %v2518 = vsel %vm2516, %v2510, %v2357
        %v2519 = vsel %vm2517, %v2511, %v2358
        %v2520 = vsel %vm2516, %v2514, %v2359
        %v2521 = vsel %vm2517, %v2515, %v2360
        %s2522 = scalar_lea.vmem [#allocation2], 64
        %2523 = vst [vmem:[%s2522] sm:$0xff] %v2520
        %2524 = vst [vmem:[%s2522 + $0x8] sm:$0xff] %v2521
        %s2525 = scalar_lea.vmem [#allocation3], 320
        %v2526 = vld [vmem:[%s2525] sm:$0xff]
        %v2527 = vld [vmem:[%s2525 + $0x8] sm:$0xff]
        %v2528 = vld [vmem:[%s2525 + $0x10] sm:$0xff]
        %v2529 = vld [vmem:[%s2525 + $0x18] sm:$0xff]
        %v2530 = vld [vmem:[%s2525 + $0x20] sm:$0xff]
        %v2531 = vld [vmem:[%s2525 + $0x28] sm:$0xff]
        %v2532 = vld [vmem:[%s2525 + $0x30] sm:$0xff]
        %v2533 = vld [vmem:[%s2525 + $0x38] sm:$0xff]
        %v2534 = vpack.c.bf16 %v2521, %v2520
        %2535 = vmatprep.subr.bf16.mxu0 %v1668
        %2536 = vmatpush1.bf16.msra.mxu0 %v1667
        %2537 = vmatprep.subr.bf16.mxu0 %v1672
        %2538 = vmatpush1.bf16.msra.mxu0 %v1671
        %2539 = vmatprep.subr.bf16.mxu0 %v1676
        %2540 = vmatpush1.bf16.msra.mxu0 %v1675
        %2541 = vmatprep.subr.bf16.mxu0 %v1680
        %2542 = vmatpush1.bf16.msra.mxu0 %v1679
        %2543 = vmatprep.subr.bf16.mxu0 %v1684
        %2544 = vmatpush1.bf16.msra.mxu0 %v1683
        %2545 = vmatprep.subr.bf16.mxu0 %v1688
        %2546 = vmatpush1.bf16.msra.mxu0 %v1687
        %2547 = vmatprep.subr.bf16.mxu0 %v1692
        %2548 = vmatpush1.bf16.msra.mxu0 %v1691
        %2549 = vmatprep.subr.bf16.mxu0 %v1696
        %2550 = vmatpush1.bf16.msra.mxu0 %v1695
        %2551 = vmatprep.subr.bf16.mxu0 0
        %2552 = vmatpush1.bf16.msra.mxu0 0
        %2553 = vmatprep.subr.bf16.mxu0 0
        %2554 = vmatpush1.bf16.msra.mxu0 0
        %2555 = vmatprep.subr.bf16.mxu0 0
        %2556 = vmatpush1.bf16.msra.mxu0 0
        %2557 = vmatprep.subr.bf16.mxu0 0
        %2558 = vmatpush1.bf16.msra.mxu0 0
        %2559 = vmatprep.subr.bf16.mxu0 0
        %2560 = vmatpush1.bf16.msra.mxu0 0
        %2561 = vmatprep.subr.bf16.mxu0 0
        %2562 = vmatpush1.bf16.msra.mxu0 0
        %2563 = vmatprep.subr.bf16.mxu0 0
        %2564 = vmatpush1.bf16.msra.mxu0 0
        %2565 = vmatprep.subr.bf16.mxu0 0
        %2566 = vmatpush1.bf16.msra.mxu0 0
        %2567 = vmatprep.mubr.bf16.mxu0 0
        %2568 = vmatmul.mubr.bf16.gmra.mrb[0].mxu0 %v2534
        %v2569 = vpop.f32.mrb[0].mxu0
        %v2570 = vadd.f32 0.0, %v2569
        %v2571 = vpop.f32.mrb[0].mxu0
        %v2572 = vadd.f32 0.0, %v2571
        %v2573 = vpop.f32.mrb[0].mxu0
        %v2574 = vadd.f32 0.0, %v2573
        %v2575 = vpop.f32.mrb[0].mxu0
        %v2576 = vadd.f32 0.0, %v2575
        %2577 = vdwg.mxu0
        %2578 = vmatprep.subr.bf16.mxu0 %v1670
        %2579 = vmatpush1.bf16.msra.mxu0 %v1669
        %2580 = vmatprep.subr.bf16.mxu0 %v1674
        %2581 = vmatpush1.bf16.msra.mxu0 %v1673
        %2582 = vmatprep.subr.bf16.mxu0 %v1678
        %2583 = vmatpush1.bf16.msra.mxu0 %v1677
        %2584 = vmatprep.subr.bf16.mxu0 %v1682
        %2585 = vmatpush1.bf16.msra.mxu0 %v1681
        %2586 = vmatprep.subr.bf16.mxu0 %v1686
        %2587 = vmatpush1.bf16.msra.mxu0 %v1685
        %2588 = vmatprep.subr.bf16.mxu0 %v1690
        %2589 = vmatpush1.bf16.msra.mxu0 %v1689
        %2590 = vmatprep.subr.bf16.mxu0 %v1694
        %2591 = vmatpush1.bf16.msra.mxu0 %v1693
        %2592 = vmatprep.subr.bf16.mxu0 %v1698
        %2593 = vmatpush1.bf16.msra.mxu0 %v1697
        %2594 = vmatprep.subr.bf16.mxu0 0
        %2595 = vmatpush1.bf16.msra.mxu0 0
        %2596 = vmatprep.subr.bf16.mxu0 0
        %2597 = vmatpush1.bf16.msra.mxu0 0
        %2598 = vmatprep.subr.bf16.mxu0 0
        %2599 = vmatpush1.bf16.msra.mxu0 0
        %2600 = vmatprep.subr.bf16.mxu0 0
        %2601 = vmatpush1.bf16.msra.mxu0 0
        %2602 = vmatprep.subr.bf16.mxu0 0
        %2603 = vmatpush1.bf16.msra.mxu0 0
        %2604 = vmatprep.subr.bf16.mxu0 0
        %2605 = vmatpush1.bf16.msra.mxu0 0
        %2606 = vmatprep.subr.bf16.mxu0 0
        %2607 = vmatpush1.bf16.msra.mxu0 0
        %2608 = vmatprep.subr.bf16.mxu0 0
        %2609 = vmatpush1.bf16.msra.mxu0 0
        %2610 = vmatprep.mubr.bf16.mxu0 0
        %2611 = vmatmul.mubr.bf16.gmra.mrb[0].mxu0 %v2534
        %v2612 = vpop.f32.mrb[0].mxu0
        %v2613 = vadd.f32 0.0, %v2612
        %v2614 = vpop.f32.mrb[0].mxu0
        %v2615 = vadd.f32 0.0, %v2614
        %v2616 = vpop.f32.mrb[0].mxu0
        %v2617 = vadd.f32 0.0, %v2616
        %v2618 = vpop.f32.mrb[0].mxu0
        %v2619 = vadd.f32 0.0, %v2618
        %2620 = vdwg.mxu0
        %v2621 = vadd.f32 %v2526, %v2570
        %v2622 = vadd.f32 %v2527, %v2572
        %v2623 = vadd.f32 %v2528, %v2613
        %v2624 = vadd.f32 %v2529, %v2615
        %v2625 = vadd.f32 %v2530, %v2574
        %v2626 = vadd.f32 %v2531, %v2576
        %v2627 = vadd.f32 %v2532, %v2617
        %v2628 = vadd.f32 %v2533, %v2619
        %v2629 = vxor.u32 %v2621, 2147483648
        %v2630 = vxor.u32 %v2625, 2147483648
        %v2631 = vmul.f32 %v2629, 1.442695
        %v2632 = vpow.pop %v2631
        %v2633 = vmul.f32 %v2630, 1.442695
        %v2634 = vpow.pop %v2633
        %v2635 = vadd.f32 %v2632, 1.0
        %v2636 = vadd.f32 %v2634, 1.0
        %v2637 = vrcp.pop %v2635
        %v2638 = vmul.f32 1.0, %v2637
        %v2639 = vrcp.pop %v2636
        %v2640 = vmul.f32 1.0, %v2639
        %v2641 = vxor.u32 %v2622, 2147483648
        %v2642 = vxor.u32 %v2626, 2147483648
        %v2643 = vmul.f32 %v2641, 1.442695
        %v2644 = vpow.pop %v2643
        %v2645 = vmul.f32 %v2642, 1.442695
        %v2646 = vpow.pop %v2645
        %v2647 = vadd.f32 %v2644, 1.0
        %v2648 = vadd.f32 %v2646, 1.0
        %v2649 = vrcp.pop %v2647
        %v2650 = vmul.f32 1.0, %v2649
        %v2651 = vrcp.pop %v2648
        %v2652 = vmul.f32 1.0, %v2651
        %v2653 = vtanh.pop %v2623
        %v2654 = vtanh.pop %v2627
        %v2655 = vxor.u32 %v2624, 2147483648
        %v2656 = vxor.u32 %v2628, 2147483648
        %v2657 = vmul.f32 %v2655, 1.442695
        %v2658 = vpow.pop %v2657
        %v2659 = vmul.f32 %v2656, 1.442695
        %v2660 = vpow.pop %v2659
        %v2661 = vadd.f32 %v2658, 1.0
        %v2662 = vadd.f32 %v2660, 1.0
        %v2663 = vrcp.pop %v2661
        %v2664 = vmul.f32 1.0, %v2663
        %v2665 = vrcp.pop %v2662
        %v2666 = vmul.f32 1.0, %v2665
        %v2667 = vmul.f32 %v2650, %v2518
        %v2668 = vmul.f32 %v2652, %v2519
        %v2669 = vmul.f32 %v2638, %v2653
        %v2670 = vmul.f32 %v2640, %v2654
        %v2671 = vadd.f32 %v2667, %v2669
        %v2672 = vadd.f32 %v2668, %v2670
        %v2673 = vtanh.pop %v2671
        %v2674 = vtanh.pop %v2672
        %v2675 = vmul.f32 %v2664, %v2673
        %v2676 = vmul.f32 %v2666, %v2674
        %vm2677 = vcmp.gt.s32.totalorder %v1529, 5
        %vm2678 = vcmp.gt.s32.totalorder %v1530, 5
        %v2679 = vsel %vm2677, %v2671, %v2518
        %v2680 = vsel %vm2678, %v2672, %v2519
        %v2681 = vsel %vm2677, %v2675, %v2520
        %v2682 = vsel %vm2678, %v2676, %v2521
        %s2683 = scalar_lea.vmem [#allocation2], 80
        %2684 = vst [vmem:[%s2683] sm:$0xff] %v2681
        %2685 = vst [vmem:[%s2683 + $0x8] sm:$0xff] %v2682
        %s2686 = scalar_lea.vmem [#allocation3], 384
        %v2687 = vld [vmem:[%s2686] sm:$0xff]
        %v2688 = vld [vmem:[%s2686 + $0x8] sm:$0xff]
        %v2689 = vld [vmem:[%s2686 + $0x10] sm:$0xff]
        %v2690 = vld [vmem:[%s2686 + $0x18] sm:$0xff]
        %v2691 = vld [vmem:[%s2686 + $0x20] sm:$0xff]
        %v2692 = vld [vmem:[%s2686 + $0x28] sm:$0xff]
        %v2693 = vld [vmem:[%s2686 + $0x30] sm:$0xff]
        %v2694 = vld [vmem:[%s2686 + $0x38] sm:$0xff]
        %v2695 = vpack.c.bf16 %v2682, %v2681
        %2696 = vmatprep.subr.bf16.mxu0 %v1668
        %2697 = vmatpush1.bf16.msra.mxu0 %v1667
        %2698 = vmatprep.subr.bf16.mxu0 %v1672
        %2699 = vmatpush1.bf16.msra.mxu0 %v1671
        %2700 = vmatprep.subr.bf16.mxu0 %v1676
        %2701 = vmatpush1.bf16.msra.mxu0 %v1675
        %2702 = vmatprep.subr.bf16.mxu0 %v1680
        %2703 = vmatpush1.bf16.msra.mxu0 %v1679
        %2704 = vmatprep.subr.bf16.mxu0 %v1684
        %2705 = vmatpush1.bf16.msra.mxu0 %v1683
        %2706 = vmatprep.subr.bf16.mxu0 %v1688
        %2707 = vmatpush1.bf16.msra.mxu0 %v1687
        %2708 = vmatprep.subr.bf16.mxu0 %v1692
        %2709 = vmatpush1.bf16.msra.mxu0 %v1691
        %2710 = vmatprep.subr.bf16.mxu0 %v1696
        %2711 = vmatpush1.bf16.msra.mxu0 %v1695
        %2712 = vmatprep.subr.bf16.mxu0 0
        %2713 = vmatpush1.bf16.msra.mxu0 0
        %2714 = vmatprep.subr.bf16.mxu0 0
        %2715 = vmatpush1.bf16.msra.mxu0 0
        %2716 = vmatprep.subr.bf16.mxu0 0
        %2717 = vmatpush1.bf16.msra.mxu0 0
        %2718 = vmatprep.subr.bf16.mxu0 0
        %2719 = vmatpush1.bf16.msra.mxu0 0
        %2720 = vmatprep.subr.bf16.mxu0 0
        %2721 = vmatpush1.bf16.msra.mxu0 0
        %2722 = vmatprep.subr.bf16.mxu0 0
        %2723 = vmatpush1.bf16.msra.mxu0 0
        %2724 = vmatprep.subr.bf16.mxu0 0
        %2725 = vmatpush1.bf16.msra.mxu0 0
        %2726 = vmatprep.subr.bf16.mxu0 0
        %2727 = vmatpush1.bf16.msra.mxu0 0
        %2728 = vmatprep.mubr.bf16.mxu0 0
        %2729 = vmatmul.mubr.bf16.gmra.mrb[0].mxu0 %v2695
        %v2730 = vpop.f32.mrb[0].mxu0
        %v2731 = vadd.f32 0.0, %v2730
        %v2732 = vpop.f32.mrb[0].mxu0
        %v2733 = vadd.f32 0.0, %v2732
        %v2734 = vpop.f32.mrb[0].mxu0
        %v2735 = vadd.f32 0.0, %v2734
        %v2736 = vpop.f32.mrb[0].mxu0
        %v2737 = vadd.f32 0.0, %v2736
        %2738 = vdwg.mxu0
        %2739 = vmatprep.subr.bf16.mxu0 %v1670
        %2740 = vmatpush1.bf16.msra.mxu0 %v1669
        %2741 = vmatprep.subr.bf16.mxu0 %v1674
        %2742 = vmatpush1.bf16.msra.mxu0 %v1673
        %2743 = vmatprep.subr.bf16.mxu0 %v1678
        %2744 = vmatpush1.bf16.msra.mxu0 %v1677
        %2745 = vmatprep.subr.bf16.mxu0 %v1682
        %2746 = vmatpush1.bf16.msra.mxu0 %v1681
        %2747 = vmatprep.subr.bf16.mxu0 %v1686
        %2748 = vmatpush1.bf16.msra.mxu0 %v1685
        %2749 = vmatprep.subr.bf16.mxu0 %v1690
        %2750 = vmatpush1.bf16.msra.mxu0 %v1689
        %2751 = vmatprep.subr.bf16.mxu0 %v1694
        %2752 = vmatpush1.bf16.msra.mxu0 %v1693
        %2753 = vmatprep.subr.bf16.mxu0 %v1698
        %2754 = vmatpush1.bf16.msra.mxu0 %v1697
        %2755 = vmatprep.subr.bf16.mxu0 0
        %2756 = vmatpush1.bf16.msra.mxu0 0
        %2757 = vmatprep.subr.bf16.mxu0 0
        %2758 = vmatpush1.bf16.msra.mxu0 0
        %2759 = vmatprep.subr.bf16.mxu0 0
        %2760 = vmatpush1.bf16.msra.mxu0 0
        %2761 = vmatprep.subr.bf16.mxu0 0
        %2762 = vmatpush1.bf16.msra.mxu0 0
        %2763 = vmatprep.subr.bf16.mxu0 0
        %2764 = vmatpush1.bf16.msra.mxu0 0
        %2765 = vmatprep.subr.bf16.mxu0 0
        %2766 = vmatpush1.bf16.msra.mxu0 0
        %2767 = vmatprep.subr.bf16.mxu0 0
        %2768 = vmatpush1.bf16.msra.mxu0 0
        %2769 = vmatprep.subr.bf16.mxu0 0
        %2770 = vmatpush1.bf16.msra.mxu0 0
        %2771 = vmatprep.mubr.bf16.mxu0 0
        %2772 = vmatmul.mubr.bf16.gmra.mrb[0].mxu0 %v2695
        %v2773 = vpop.f32.mrb[0].mxu0
        %v2774 = vadd.f32 0.0, %v2773
        %v2775 = vpop.f32.mrb[0].mxu0
        %v2776 = vadd.f32 0.0, %v2775
        %v2777 = vpop.f32.mrb[0].mxu0
        %v2778 = vadd.f32 0.0, %v2777
        %v2779 = vpop.f32.mrb[0].mxu0
        %v2780 = vadd.f32 0.0, %v2779
        %2781 = vdwg.mxu0
        %v2782 = vadd.f32 %v2687, %v2731
        %v2783 = vadd.f32 %v2688, %v2733
        %v2784 = vadd.f32 %v2689, %v2774
        %v2785 = vadd.f32 %v2690, %v2776
        %v2786 = vadd.f32 %v2691, %v2735
        %v2787 = vadd.f32 %v2692, %v2737
        %v2788 = vadd.f32 %v2693, %v2778
        %v2789 = vadd.f32 %v2694, %v2780
        %v2790 = vxor.u32 %v2782, 2147483648
        %v2791 = vxor.u32 %v2786, 2147483648
        %v2792 = vmul.f32 %v2790, 1.442695
        %v2793 = vpow.pop %v2792
        %v2794 = vmul.f32 %v2791, 1.442695
        %v2795 = vpow.pop %v2794
        %v2796 = vadd.f32 %v2793, 1.0
        %v2797 = vadd.f32 %v2795, 1.0
        %v2798 = vrcp.pop %v2796
        %v2799 = vmul.f32 1.0, %v2798
        %v2800 = vrcp.pop %v2797
        %v2801 = vmul.f32 1.0, %v2800
        %v2802 = vxor.u32 %v2783, 2147483648
        %v2803 = vxor.u32 %v2787, 2147483648
        %v2804 = vmul.f32 %v2802, 1.442695
        %v2805 = vpow.pop %v2804
        %v2806 = vmul.f32 %v2803, 1.442695
        %v2807 = vpow.pop %v2806
        %v2808 = vadd.f32 %v2805, 1.0
        %v2809 = vadd.f32 %v2807, 1.0
        %v2810 = vrcp.pop %v2808
        %v2811 = vmul.f32 1.0, %v2810
        %v2812 = vrcp.pop %v2809
        %v2813 = vmul.f32 1.0, %v2812
        %v2814 = vtanh.pop %v2784
        %v2815 = vtanh.pop %v2788
        %v2816 = vxor.u32 %v2785, 2147483648
        %v2817 = vxor.u32 %v2789, 2147483648
        %v2818 = vmul.f32 %v2816, 1.442695
        %v2819 = vpow.pop %v2818
        %v2820 = vmul.f32 %v2817, 1.442695
        %v2821 = vpow.pop %v2820
        %v2822 = vadd.f32 %v2819, 1.0
        %v2823 = vadd.f32 %v2821, 1.0
        %v2824 = vrcp.pop %v2822
        %v2825 = vmul.f32 1.0, %v2824
        %v2826 = vrcp.pop %v2823
        %v2827 = vmul.f32 1.0, %v2826
        %v2828 = vmul.f32 %v2811, %v2679
        %v2829 = vmul.f32 %v2813, %v2680
        %v2830 = vmul.f32 %v2799, %v2814
        %v2831 = vmul.f32 %v2801, %v2815
        %v2832 = vadd.f32 %v2828, %v2830
        %v2833 = vadd.f32 %v2829, %v2831
        %v2834 = vtanh.pop %v2832
        %v2835 = vtanh.pop %v2833
        %v2836 = vmul.f32 %v2825, %v2834
        %v2837 = vmul.f32 %v2827, %v2835
        %vm2838 = vcmp.gt.s32.totalorder %v1529, 6
        %vm2839 = vcmp.gt.s32.totalorder %v1530, 6
        %v2840 = vsel %vm2838, %v2832, %v2679
        %v2841 = vsel %vm2839, %v2833, %v2680
        %v2842 = vsel %vm2838, %v2836, %v2681
        %v2843 = vsel %vm2839, %v2837, %v2682
        %s2844 = scalar_lea.vmem [#allocation2], 96
        %2845 = vst [vmem:[%s2844] sm:$0xff] %v2842
        %2846 = vst [vmem:[%s2844 + $0x8] sm:$0xff] %v2843
        %s2847 = scalar_lea.vmem [#allocation3], 448
        %v2848 = vld [vmem:[%s2847] sm:$0xff]
        %v2849 = vld [vmem:[%s2847 + $0x8] sm:$0xff]
        %v2850 = vld [vmem:[%s2847 + $0x10] sm:$0xff]
        %v2851 = vld [vmem:[%s2847 + $0x18] sm:$0xff]
        %v2852 = vld [vmem:[%s2847 + $0x20] sm:$0xff]
        %v2853 = vld [vmem:[%s2847 + $0x28] sm:$0xff]
        %v2854 = vld [vmem:[%s2847 + $0x30] sm:$0xff]
        %v2855 = vld [vmem:[%s2847 + $0x38] sm:$0xff]
        %v2856 = vpack.c.bf16 %v2843, %v2842
        %2857 = vmatprep.subr.bf16.mxu0 %v1668
        %2858 = vmatpush1.bf16.msra.mxu0 %v1667
        %2859 = vmatprep.subr.bf16.mxu0 %v1672
        %2860 = vmatpush1.bf16.msra.mxu0 %v1671
        %2861 = vmatprep.subr.bf16.mxu0 %v1676
        %2862 = vmatpush1.bf16.msra.mxu0 %v1675
        %2863 = vmatprep.subr.bf16.mxu0 %v1680
        %2864 = vmatpush1.bf16.msra.mxu0 %v1679
        %2865 = vmatprep.subr.bf16.mxu0 %v1684
        %2866 = vmatpush1.bf16.msra.mxu0 %v1683
        %2867 = vmatprep.subr.bf16.mxu0 %v1688
        %2868 = vmatpush1.bf16.msra.mxu0 %v1687
        %2869 = vmatprep.subr.bf16.mxu0 %v1692
        %2870 = vmatpush1.bf16.msra.mxu0 %v1691
        %2871 = vmatprep.subr.bf16.mxu0 %v1696
        %2872 = vmatpush1.bf16.msra.mxu0 %v1695
        %2873 = vmatprep.subr.bf16.mxu0 0
        %2874 = vmatpush1.bf16.msra.mxu0 0
        %2875 = vmatprep.subr.bf16.mxu0 0
        %2876 = vmatpush1.bf16.msra.mxu0 0
        %2877 = vmatprep.subr.bf16.mxu0 0
        %2878 = vmatpush1.bf16.msra.mxu0 0
        %2879 = vmatprep.subr.bf16.mxu0 0
        %2880 = vmatpush1.bf16.msra.mxu0 0
        %2881 = vmatprep.subr.bf16.mxu0 0
        %2882 = vmatpush1.bf16.msra.mxu0 0
        %2883 = vmatprep.subr.bf16.mxu0 0
        %2884 = vmatpush1.bf16.msra.mxu0 0
        %2885 = vmatprep.subr.bf16.mxu0 0
        %2886 = vmatpush1.bf16.msra.mxu0 0
        %2887 = vmatprep.subr.bf16.mxu0 0
        %2888 = vmatpush1.bf16.msra.mxu0 0
        %2889 = vmatprep.mubr.bf16.mxu0 0
        %2890 = vmatmul.mubr.bf16.gmra.mrb[0].mxu0 %v2856
        %v2891 = vpop.f32.mrb[0].mxu0
        %v2892 = vadd.f32 0.0, %v2891
        %v2893 = vpop.f32.mrb[0].mxu0
        %v2894 = vadd.f32 0.0, %v2893
        %v2895 = vpop.f32.mrb[0].mxu0
        %v2896 = vadd.f32 0.0, %v2895
        %v2897 = vpop.f32.mrb[0].mxu0
        %v2898 = vadd.f32 0.0, %v2897
        %2899 = vdwg.mxu0
        %2900 = vmatprep.subr.bf16.mxu0 %v1670
        %2901 = vmatpush1.bf16.msra.mxu0 %v1669
        %2902 = vmatprep.subr.bf16.mxu0 %v1674
        %2903 = vmatpush1.bf16.msra.mxu0 %v1673
        %2904 = vmatprep.subr.bf16.mxu0 %v1678
        %2905 = vmatpush1.bf16.msra.mxu0 %v1677
        %2906 = vmatprep.subr.bf16.mxu0 %v1682
        %2907 = vmatpush1.bf16.msra.mxu0 %v1681
        %2908 = vmatprep.subr.bf16.mxu0 %v1686
        %2909 = vmatpush1.bf16.msra.mxu0 %v1685
        %2910 = vmatprep.subr.bf16.mxu0 %v1690
        %2911 = vmatpush1.bf16.msra.mxu0 %v1689
        %2912 = vmatprep.subr.bf16.mxu0 %v1694
        %2913 = vmatpush1.bf16.msra.mxu0 %v1693
        %2914 = vmatprep.subr.bf16.mxu0 %v1698
        %2915 = vmatpush1.bf16.msra.mxu0 %v1697
        %2916 = vmatprep.subr.bf16.mxu0 0
        %2917 = vmatpush1.bf16.msra.mxu0 0
        %2918 = vmatprep.subr.bf16.mxu0 0
        %2919 = vmatpush1.bf16.msra.mxu0 0
        %2920 = vmatprep.subr.bf16.mxu0 0
        %2921 = vmatpush1.bf16.msra.mxu0 0
        %2922 = vmatprep.subr.bf16.mxu0 0
        %2923 = vmatpush1.bf16.msra.mxu0 0
        %2924 = vmatprep.subr.bf16.mxu0 0
        %2925 = vmatpush1.bf16.msra.mxu0 0
        %2926 = vmatprep.subr.bf16.mxu0 0
        %2927 = vmatpush1.bf16.msra.mxu0 0
        %2928 = vmatprep.subr.bf16.mxu0 0
        %2929 = vmatpush1.bf16.msra.mxu0 0
        %2930 = vmatprep.subr.bf16.mxu0 0
        %2931 = vmatpush1.bf16.msra.mxu0 0
        %2932 = vmatprep.mubr.bf16.mxu0 0
        %2933 = vmatmul.mubr.bf16.gmra.mrb[0].mxu0 %v2856
        %v2934 = vpop.f32.mrb[0].mxu0
        %v2935 = vadd.f32 0.0, %v2934
        %v2936 = vpop.f32.mrb[0].mxu0
        %v2937 = vadd.f32 0.0, %v2936
        %v2938 = vpop.f32.mrb[0].mxu0
        %v2939 = vadd.f32 0.0, %v2938
        %v2940 = vpop.f32.mrb[0].mxu0
        %v2941 = vadd.f32 0.0, %v2940
        %2942 = vdwg.mxu0
        %v2943 = vadd.f32 %v2848, %v2892
        %v2944 = vadd.f32 %v2849, %v2894
        %v2945 = vadd.f32 %v2850, %v2935
        %v2946 = vadd.f32 %v2851, %v2937
        %v2947 = vadd.f32 %v2852, %v2896
        %v2948 = vadd.f32 %v2853, %v2898
        %v2949 = vadd.f32 %v2854, %v2939
        %v2950 = vadd.f32 %v2855, %v2941
        %v2951 = vxor.u32 %v2943, 2147483648
        %v2952 = vxor.u32 %v2947, 2147483648
        %v2953 = vmul.f32 %v2951, 1.442695
        %v2954 = vpow.pop %v2953
        %v2955 = vmul.f32 %v2952, 1.442695
        %v2956 = vpow.pop %v2955
        %v2957 = vadd.f32 %v2954, 1.0
        %v2958 = vadd.f32 %v2956, 1.0
        %v2959 = vrcp.pop %v2957
        %v2960 = vmul.f32 1.0, %v2959
        %v2961 = vrcp.pop %v2958
        %v2962 = vmul.f32 1.0, %v2961
        %v2963 = vxor.u32 %v2944, 2147483648
        %v2964 = vxor.u32 %v2948, 2147483648
        %v2965 = vmul.f32 %v2963, 1.442695
        %v2966 = vpow.pop %v2965
        %v2967 = vmul.f32 %v2964, 1.442695
        %v2968 = vpow.pop %v2967
        %v2969 = vadd.f32 %v2966, 1.0
        %v2970 = vadd.f32 %v2968, 1.0
        %v2971 = vrcp.pop %v2969
        %v2972 = vmul.f32 1.0, %v2971
        %v2973 = vrcp.pop %v2970
        %v2974 = vmul.f32 1.0, %v2973
        %v2975 = vtanh.pop %v2945
        %v2976 = vtanh.pop %v2949
        %v2977 = vxor.u32 %v2946, 2147483648
        %v2978 = vxor.u32 %v2950, 2147483648
        %v2979 = vmul.f32 %v2977, 1.442695
        %v2980 = vpow.pop %v2979
        %v2981 = vmul.f32 %v2978, 1.442695
        %v2982 = vpow.pop %v2981
        %v2983 = vadd.f32 %v2980, 1.0
        %v2984 = vadd.f32 %v2982, 1.0
        %v2985 = vrcp.pop %v2983
        %v2986 = vmul.f32 1.0, %v2985
        %v2987 = vrcp.pop %v2984
        %v2988 = vmul.f32 1.0, %v2987
        %v2989 = vmul.f32 %v2972, %v2840
        %v2990 = vmul.f32 %v2974, %v2841
        %v2991 = vmul.f32 %v2960, %v2975
        %v2992 = vmul.f32 %v2962, %v2976
        %v2993 = vadd.f32 %v2989, %v2991
        %v2994 = vadd.f32 %v2990, %v2992
        %v2995 = vtanh.pop %v2993
        %v2996 = vtanh.pop %v2994
        %v2997 = vmul.f32 %v2986, %v2995
        %v2998 = vmul.f32 %v2988, %v2996
        %vm2999 = vcmp.gt.s32.totalorder %v1529, 7
        %vm3000 = vcmp.gt.s32.totalorder %v1530, 7
        %v3001 = vsel %vm2999, %v2993, %v2840
        %v3002 = vsel %vm3000, %v2994, %v2841
        %v3003 = vsel %vm2999, %v2997, %v2842
        %v3004 = vsel %vm3000, %v2998, %v2843
        %s3005 = scalar_lea.vmem [#allocation2], 112
        %3006 = vst [vmem:[%s3005] sm:$0xff] %v3003
        %3007 = vst [vmem:[%s3005 + $0x8] sm:$0xff] %v3004
        %v3008 = vpack.c.bf16 %v3001, %v3001
        %v3009 = vld [vmem:[#allocation10] sm:$0xf]
        %v3010 = vld [vmem:[#allocation10 + $0x4] sm:$0xf]
        %v3011 = vld [vmem:[#allocation10 + $0x8] sm:$0xf]
        %v3012 = vld [vmem:[#allocation10 + $0xc] sm:$0xf]
        %v3013 = vld [vmem:[#allocation10 + $0x10] sm:$0xf]
        %v3014 = vld [vmem:[#allocation10 + $0x14] sm:$0xf]
        %v3015 = vld [vmem:[#allocation10 + $0x18] sm:$0xf]
        %v3016 = vld [vmem:[#allocation10 + $0x1c] sm:$0xf]
        %v3017 = vld [vmem:[#allocation10 + $0x20] sm:$0xf]
        %v3018 = vld [vmem:[#allocation10 + $0x24] sm:$0xf]
        %v3019 = vld [vmem:[#allocation10 + $0x28] sm:$0xf]
        %v3020 = vld [vmem:[#allocation10 + $0x2c] sm:$0xf]
        %v3021 = vld [vmem:[#allocation10 + $0x30] sm:$0xf]
        %v3022 = vld [vmem:[#allocation10 + $0x34] sm:$0xf]
        %v3023 = vld [vmem:[#allocation10 + $0x38] sm:$0xf]
        %v3024 = vld [vmem:[#allocation10 + $0x3c] sm:$0xf]
        %v3025 = vpack.c.bf16 %v3002, %v3002
        %v3026 = vld [vmem:[#allocation12] sm:$0xf]
        %v3027 = vld [vmem:[#allocation12 + $0x4] sm:$0xf]
        %v3028 = vld [vmem:[#allocation12 + $0x8] sm:$0xf]
        %v3029 = vld [vmem:[#allocation12 + $0xc] sm:$0xf]
        %v3030 = vld [vmem:[#allocation12 + $0x10] sm:$0xf]
        %v3031 = vld [vmem:[#allocation12 + $0x14] sm:$0xf]
        %v3032 = vld [vmem:[#allocation12 + $0x18] sm:$0xf]
        %v3033 = vld [vmem:[#allocation12 + $0x1c] sm:$0xf]
        %v3034 = vld [vmem:[#allocation12 + $0x20] sm:$0xf]
        %v3035 = vld [vmem:[#allocation12 + $0x24] sm:$0xf]
        %v3036 = vld [vmem:[#allocation12 + $0x28] sm:$0xf]
        %v3037 = vld [vmem:[#allocation12 + $0x2c] sm:$0xf]
        %v3038 = vld [vmem:[#allocation12 + $0x30] sm:$0xf]
        %v3039 = vld [vmem:[#allocation12 + $0x34] sm:$0xf]
        %v3040 = vld [vmem:[#allocation12 + $0x38] sm:$0xf]
        %v3041 = vld [vmem:[#allocation12 + $0x3c] sm:$0xf]
        %v3058 = vunpack.c.l.b16 %v3026
        %v3059 = vunpack.c.l.b16 %v3027
        %v3060 = vunpack.c.l.b16 %v3028
        %v3061 = vunpack.c.l.b16 %v3029
        %v3062 = vunpack.c.l.b16 %v3030
        %v3063 = vunpack.c.l.b16 %v3031
        %v3064 = vunpack.c.l.b16 %v3032
        %v3065 = vunpack.c.l.b16 %v3033
        %v3066 = vunpack.c.l.b16 %v3034
        %v3067 = vunpack.c.l.b16 %v3035
        %v3068 = vunpack.c.l.b16 %v3036
        %v3069 = vunpack.c.l.b16 %v3037
        %v3070 = vunpack.c.l.b16 %v3038
        %v3071 = vunpack.c.l.b16 %v3039
        %v3072 = vunpack.c.l.b16 %v3040
        %v3073 = vunpack.c.l.b16 %v3041
        %v3074 = vpack.c.b16 %v3059, %v3058
        %v3075 = vpack.c.b16 %v3061, %v3060
        %v3076 = vpack.c.b16 %v3063, %v3062
        %v3077 = vpack.c.b16 %v3065, %v3064
        %v3078 = vpack.c.b16 %v3067, %v3066
        %v3079 = vpack.c.b16 %v3069, %v3068
        %v3080 = vpack.c.b16 %v3071, %v3070
        %v3081 = vpack.c.b16 %v3073, %v3072
        %3090 = vmatprep.subr.bf16.mxu0 0
        %3091 = vmatpush1.bf16.msra.mxu0 %v3074
        %3092 = vmatprep.subr.bf16.mxu0 0
        %3093 = vmatpush1.bf16.msra.mxu0 %v3075
        %3094 = vmatprep.subr.bf16.mxu0 0
        %3095 = vmatpush1.bf16.msra.mxu0 %v3076
        %3096 = vmatprep.subr.bf16.mxu0 0
        %3097 = vmatpush1.bf16.msra.mxu0 %v3077
        %3098 = vmatprep.subr.bf16.mxu0 0
        %3099 = vmatpush1.bf16.msra.mxu0 %v3078
        %3100 = vmatprep.subr.bf16.mxu0 0
        %3101 = vmatpush1.bf16.msra.mxu0 %v3079
        %3102 = vmatprep.subr.bf16.mxu0 0
        %3103 = vmatpush1.bf16.msra.mxu0 %v3080
        %3104 = vmatprep.subr.bf16.mxu0 0
        %3105 = vmatpush1.bf16.msra.mxu0 %v3081
        %3106 = vmatprep.subr.bf16.mxu0 0
        %3107 = vmatpush1.bf16.msra.mxu0 0
        %3108 = vmatprep.subr.bf16.mxu0 0
        %3109 = vmatpush1.bf16.msra.mxu0 0
        %3110 = vmatprep.subr.bf16.mxu0 0
        %3111 = vmatpush1.bf16.msra.mxu0 0
        %3112 = vmatprep.subr.bf16.mxu0 0
        %3113 = vmatpush1.bf16.msra.mxu0 0
        %3114 = vmatprep.subr.bf16.mxu0 0
        %3115 = vmatpush1.bf16.msra.mxu0 0
        %3116 = vmatprep.subr.bf16.mxu0 0
        %3117 = vmatpush1.bf16.msra.mxu0 0
        %3118 = vmatprep.subr.bf16.mxu0 0
        %3119 = vmatpush1.bf16.msra.mxu0 0
        %3120 = vmatprep.subr.bf16.mxu0 0
        %3121 = vmatpush1.bf16.msra.mxu0 0
        %3122 = vmatprep.mubr.bf16.mxu0 0
        %3123 = vmatmul.mubr.bf16.gmra.mrb[0].mxu0 %v3025
        %v3124 = vpop.f32.mrb[0].mxu0
        %v3125 = vadd.f32 0.0, %v3124
        %v3126 = vpop.f32.mrb[0].mxu0
        %v3127 = vpop.f32.mrb[0].mxu0
        %v3128 = vpop.f32.mrb[0].mxu0
        %3129 = vdwg.mxu0
        %v3146 = vunpack.c.l.b16 %v3009
        %v3147 = vunpack.c.l.b16 %v3010
        %v3148 = vunpack.c.l.b16 %v3011
        %v3149 = vunpack.c.l.b16 %v3012
        %v3150 = vunpack.c.l.b16 %v3013
        %v3151 = vunpack.c.l.b16 %v3014
        %v3152 = vunpack.c.l.b16 %v3015
        %v3153 = vunpack.c.l.b16 %v3016
        %v3154 = vunpack.c.l.b16 %v3017
        %v3155 = vunpack.c.l.b16 %v3018
        %v3156 = vunpack.c.l.b16 %v3019
        %v3157 = vunpack.c.l.b16 %v3020
        %v3158 = vunpack.c.l.b16 %v3021
        %v3159 = vunpack.c.l.b16 %v3022
        %v3160 = vunpack.c.l.b16 %v3023
        %v3161 = vunpack.c.l.b16 %v3024
        %v3162 = vpack.c.b16 %v3147, %v3146
        %v3163 = vpack.c.b16 %v3149, %v3148
        %v3164 = vpack.c.b16 %v3151, %v3150
        %v3165 = vpack.c.b16 %v3153, %v3152
        %v3166 = vpack.c.b16 %v3155, %v3154
        %v3167 = vpack.c.b16 %v3157, %v3156
        %v3168 = vpack.c.b16 %v3159, %v3158
        %v3169 = vpack.c.b16 %v3161, %v3160
        %3178 = vmatprep.subr.bf16.mxu0 0
        %3179 = vmatpush1.bf16.msra.mxu0 %v3162
        %3180 = vmatprep.subr.bf16.mxu0 0
        %3181 = vmatpush1.bf16.msra.mxu0 %v3163
        %3182 = vmatprep.subr.bf16.mxu0 0
        %3183 = vmatpush1.bf16.msra.mxu0 %v3164
        %3184 = vmatprep.subr.bf16.mxu0 0
        %3185 = vmatpush1.bf16.msra.mxu0 %v3165
        %3186 = vmatprep.subr.bf16.mxu0 0
        %3187 = vmatpush1.bf16.msra.mxu0 %v3166
        %3188 = vmatprep.subr.bf16.mxu0 0
        %3189 = vmatpush1.bf16.msra.mxu0 %v3167
        %3190 = vmatprep.subr.bf16.mxu0 0
        %3191 = vmatpush1.bf16.msra.mxu0 %v3168
        %3192 = vmatprep.subr.bf16.mxu0 0
        %3193 = vmatpush1.bf16.msra.mxu0 %v3169
        %3194 = vmatprep.subr.bf16.mxu0 0
        %3195 = vmatpush1.bf16.msra.mxu0 0
        %3196 = vmatprep.subr.bf16.mxu0 0
        %3197 = vmatpush1.bf16.msra.mxu0 0
        %3198 = vmatprep.subr.bf16.mxu0 0
        %3199 = vmatpush1.bf16.msra.mxu0 0
        %3200 = vmatprep.subr.bf16.mxu0 0
        %3201 = vmatpush1.bf16.msra.mxu0 0
        %3202 = vmatprep.subr.bf16.mxu0 0
        %3203 = vmatpush1.bf16.msra.mxu0 0
        %3204 = vmatprep.subr.bf16.mxu0 0
        %3205 = vmatpush1.bf16.msra.mxu0 0
        %3206 = vmatprep.subr.bf16.mxu0 0
        %3207 = vmatpush1.bf16.msra.mxu0 0
        %3208 = vmatprep.subr.bf16.mxu0 0
        %3209 = vmatpush1.bf16.msra.mxu0 0
        %3210 = vmatprep.mubr.bf16.mxu0 0
        %3211 = vmatmul.mubr.bf16.gmra.mrb[0].mxu0 %v3008
        %v3212 = vpop.f32.mrb[0].mxu0
        %v3213 = vadd.f32 %v3125, %v3212
        %v3214 = vpop.f32.mrb[0].mxu0
        %v3215 = vpop.f32.mrb[0].mxu0
        %v3216 = vpop.f32.mrb[0].mxu0
        %3217 = vdwg.mxu0
        %v3218 = vld [vmem:[%s6] sm:$0x1]
        %v3220 = vlaneseq
        %v3221 = vshrl.u32 %v3220, 7
        %v3222 = vsub.s32 0, %v3221
        %v3223 = vrot.slane %v3218, %v3222
        %v3225 = vadd.f32 %v3213, %v3223
        %v3226 = vmax.f32 %v3225, 0.0
        %v3227 = vpack.c.bf16 %v3226, %v3226
        %v3228 = vld [vmem:[#allocation13] sm:$0xf]
        %v3229 = vld [vmem:[#allocation13 + $0x4] sm:$0xf]
        %v3230 = vld [vmem:[#allocation13 + $0x8] sm:$0xf]
        %v3231 = vld [vmem:[#allocation13 + $0xc] sm:$0xf]
        %v3232 = vld [vmem:[#allocation13 + $0x10] sm:$0xf]
        %v3233 = vld [vmem:[#allocation13 + $0x14] sm:$0xf]
        %v3234 = vld [vmem:[#allocation13 + $0x18] sm:$0xf]
        %v3235 = vld [vmem:[#allocation13 + $0x1c] sm:$0xf]
        %v3236 = vld [vmem:[#allocation13 + $0x20] sm:$0xf]
        %v3237 = vld [vmem:[#allocation13 + $0x24] sm:$0xf]
        %v3238 = vld [vmem:[#allocation13 + $0x28] sm:$0xf]
        %v3239 = vld [vmem:[#allocation13 + $0x2c] sm:$0xf]
        %v3240 = vld [vmem:[#allocation13 + $0x30] sm:$0xf]
        %v3241 = vld [vmem:[#allocation13 + $0x34] sm:$0xf]
        %v3242 = vld [vmem:[#allocation13 + $0x38] sm:$0xf]
        %v3243 = vld [vmem:[#allocation13 + $0x3c] sm:$0xf]
        %v3244 = vld [vmem:[%s8] sm:$0x1]
        %v3246 = vlaneseq
        %v3247 = vshrl.u32 %v3246, 7
        %v3248 = vsub.s32 0, %v3247
        %v3249 = vrot.slane %v3244, %v3248
        %v3267 = vunpack.c.l.b16 %v3228
        %v3268 = vunpack.c.l.b16 %v3229
        %v3269 = vunpack.c.l.b16 %v3230
        %v3270 = vunpack.c.l.b16 %v3231
        %v3271 = vunpack.c.l.b16 %v3232
        %v3272 = vunpack.c.l.b16 %v3233
        %v3273 = vunpack.c.l.b16 %v3234
        %v3274 = vunpack.c.l.b16 %v3235
        %v3275 = vunpack.c.l.b16 %v3236
        %v3276 = vunpack.c.l.b16 %v3237
        %v3277 = vunpack.c.l.b16 %v3238
        %v3278 = vunpack.c.l.b16 %v3239
        %v3279 = vunpack.c.l.b16 %v3240
        %v3280 = vunpack.c.l.b16 %v3241
        %v3281 = vunpack.c.l.b16 %v3242
        %v3282 = vunpack.c.l.b16 %v3243
        %v3283 = vpack.c.b16 %v3268, %v3267
        %v3284 = vpack.c.b16 %v3270, %v3269
        %v3285 = vpack.c.b16 %v3272, %v3271
        %v3286 = vpack.c.b16 %v3274, %v3273
        %v3287 = vpack.c.b16 %v3276, %v3275
        %v3288 = vpack.c.b16 %v3278, %v3277
        %v3289 = vpack.c.b16 %v3280, %v3279
        %v3290 = vpack.c.b16 %v3282, %v3281
        %3299 = vmatprep.subr.bf16.mxu0 0
        %3300 = vmatpush1.bf16.msra.mxu0 %v3283
        %3301 = vmatprep.subr.bf16.mxu0 0
        %3302 = vmatpush1.bf16.msra.mxu0 %v3284
        %3303 = vmatprep.subr.bf16.mxu0 0
        %3304 = vmatpush1.bf16.msra.mxu0 %v3285
        %3305 = vmatprep.subr.bf16.mxu0 0
        %3306 = vmatpush1.bf16.msra.mxu0 %v3286
        %3307 = vmatprep.subr.bf16.mxu0 0
        %3308 = vmatpush1.bf16.msra.mxu0 %v3287
        %3309 = vmatprep.subr.bf16.mxu0 0
        %3310 = vmatpush1.bf16.msra.mxu0 %v3288
        %3311 = vmatprep.subr.bf16.mxu0 0
        %3312 = vmatpush1.bf16.msra.mxu0 %v3289
        %3313 = vmatprep.subr.bf16.mxu0 0
        %3314 = vmatpush1.bf16.msra.mxu0 %v3290
        %3315 = vmatprep.subr.bf16.mxu0 0
        %3316 = vmatpush1.bf16.msra.mxu0 0
        %3317 = vmatprep.subr.bf16.mxu0 0
        %3318 = vmatpush1.bf16.msra.mxu0 0
        %3319 = vmatprep.subr.bf16.mxu0 0
        %3320 = vmatpush1.bf16.msra.mxu0 0
        %3321 = vmatprep.subr.bf16.mxu0 0
        %3322 = vmatpush1.bf16.msra.mxu0 0
        %3323 = vmatprep.subr.bf16.mxu0 0
        %3324 = vmatpush1.bf16.msra.mxu0 0
        %3325 = vmatprep.subr.bf16.mxu0 0
        %3326 = vmatpush1.bf16.msra.mxu0 0
        %3327 = vmatprep.subr.bf16.mxu0 0
        %3328 = vmatpush1.bf16.msra.mxu0 0
        %3329 = vmatprep.subr.bf16.mxu0 0
        %3330 = vmatpush1.bf16.msra.mxu0 0
        %3331 = vmatprep.mubr.bf16.mxu0 0
        %3332 = vmatmul.mubr.bf16.gmra.mrb[0].mxu0 %v3227
        %v3333 = vpop.f32.mrb[0].mxu0
        %v3334 = vadd.f32 %v3249, %v3333
        %v3335 = vpop.f32.mrb[0].mxu0
        %v3336 = vpop.f32.mrb[0].mxu0
        %v3337 = vpop.f32.mrb[0].mxu0
        %3338 = vdwg.mxu0
        %s3339 = smul.u32 %s27, 8
        %s3340 = scalar_lea.vmem [#allocation15], %s3339
        %3341 = vst [vmem:[%s3340] sm:$0xff] %v3334
        // Predicated region
        $region89: #{tpu_custom_call.1} parent=55 // pred_check
          %p3342 = pneg %p244
        $region90: #{tpu_custom_call.1} parent=55 // pred_check_branch
          %3344 = sbr.rel (%p3342) target = $region92
        $region91: #{tpu_custom_call.1} parent=55 // pred_region
          %s3346 = ssub.s32 256, 256
          %3347 = vsyncadd [#allocation6], %s3346
          %s3348 = sshll.u32 [#allocation15], 4
          %s3349 = int_to_ptr.vmem [resolvable:$true] %s3348
          %3354 = dma.vmem_to_hbm [thread:$0]  %s3349, 256, %s9, [#allocation6], 128, 128, 8
        $region92: #{tpu_custom_call.1} parent=55 // pred_fallthru
          _
        // Predicated region
        $region93: #{tpu_custom_call.1} parent=55 // pred_check
          %p3355 = pneg %p244
        $region94: #{tpu_custom_call.1} parent=55 // pred_check_branch
          %3357 = sbr.rel (%p3355) target = $region96
        $region95: #{tpu_custom_call.1} parent=55 // pred_region
          %3358 = dma.done [#allocation6], 256
        $region96: #{tpu_custom_call.1} parent=55 // pred_fallthru
          _
      $region56: #{tpu_custom_call.1} parent=5 // pred_fallthru
        _
      %p3359 = scmp.le.s32.totalorder 2, %s22
      // Predicated region
      $region97: #{tpu_custom_call.1} parent=5 // pred_check
        %p3360 = pneg %p3359
      $region98: #{tpu_custom_call.1} parent=5 // pred_check_branch
        %3362 = sbr.rel (%p3360) target = $region100
      $region99: #{tpu_custom_call.1} parent=5 // pred_region
        %s3363 = ssub.s32 %s22, 2
      $region100: #{tpu_custom_call.1} parent=5 // pred_fallthru
        _
    $region6: #{tpu_custom_call.1} parent=1 // loop_footer
      %s26 = sadd.s32 1, %s22
    $region7: #{tpu_custom_call.1} parent=1 // loop_footer_branch
      %21 = sbr.rel target = $region3
    $region8: #{tpu_custom_call.1} parent=1 // loop_exit
      _
    %3364 = vsyncpa [#allocation5], 1
    %s3365 = scalar_lea.sflag [#allocation5], 1
    %3366 = vsyncpa %s3365, 1
    %3367 = vsyncpa [#allocation8], 1
    %s3368 = scalar_lea.sflag [#allocation8], 1
    %3369 = vsyncpa %s3368, 1
    %3370 = vsyncpa [#allocation11], 1
    %3371 = vsyncpa [#allocation14], 1
    %3372 = vsyncpa [#allocation6], 1
    %s3373 = scalar_lea.sflag [#allocation6], 1
    %3374 = vsyncpa %s3373, 1

// kernel: tpu_custom_call.1
$region0: #{tpu_custom_call.1}
  #allocation0 [shape = 'u32[]', space=smem, size = 0x4, offset = 0x4, fixed_abs, tag = 'smem constant byte address 0x4 - core index']
  #allocation1 [shape = 'u32[144,128]{1,0:T(1,128)}', space=vmem, size = 0x12000, scoped, tag = 'internal scratch']
  #allocation2 [shape = 'f32[8,16,128]{2,1,0:T(8,128)}', space=vmem, size = 0x10000, scoped, tag = 'scratch operand']
  #allocation3 [shape = 'f32[8,16,512]{2,1,0:T(8,128)}', space=vmem, size = 0x40000, scoped, tag = 'scratch operand']
  %s0 = inlined_call_operand.hbm [shape: f32[8,16,128], index: 0, kind: input, shape index: {}]
  %s1 = inlined_call_operand.hbm [shape: bf16[2,128,512], index: 1, kind: input, shape index: {}]
  %s2 = inlined_call_operand.hbm [shape: bf16[2,128,512], index: 2, kind: input, shape index: {}]
  %s3 = inlined_call_operand.vmem [shape: f32[2,1,512], index: 3, kind: input, shape index: {}]
  %s4 = inlined_call_operand.hbm [shape: bf16[128,128], index: 4, kind: input, shape index: {}]
  %s5 = inlined_call_operand.hbm [shape: bf16[128,128], index: 5, kind: input, shape index: {}]
  %s6 = inlined_call_operand.vmem [shape: f32[1,128], index: 6, kind: input, shape index: {}]
  %s7 = inlined_call_operand.hbm [shape: bf16[128,128], index: 7, kind: input, shape index: {}]
  %s8 = inlined_call_operand.vmem [shape: f32[1,128], index: 8, kind: input, shape index: {}]
  %s9 = inlined_call_operand.hbm [shape: f32[2,8,128], index: 9, kind: output, shape index: {}]
  %s10 = sld [smem:[#allocation0]]
  $region101: #{tpu_custom_call.1} parent=0
    _
  %s12 = ssub.s32 1, %s10
  %s13 = scalar_select 0, %s12, %s10
  $region1: #{tpu_custom_call.1} parent=0
    #allocation4 [shape = 'u8[65536]{0}', space=vmem, size = 0x10000, scoped, tag = 'input window, operand 0, single buffered']
    #allocation5 [shape = 's32[2]{0}', space=sflag, size = 0x8, scoped, tag = 'scoped memory for tpu_custom_call.1']
    #allocation6 [shape = 's32[2]{0}', space=sflag, size = 0x8, scoped, tag = 'scoped memory for tpu_custom_call.1']
    #allocation7 [shape = 'u8[262144]{0}', space=vmem, size = 0x40000, scoped, tag = 'input window, operand 1']
    #allocation8 [shape = 's32[2]{0}', space=sflag, size = 0x8, scoped, tag = 'scoped memory for tpu_custom_call.1']
    #allocation9 [shape = 'u8[262144]{0}', space=vmem, size = 0x40000, scoped, tag = 'input window, operand 2']
    #allocation10 [shape = 'u8[32768]{0}', space=vmem, size = 0x8000, scoped, tag = 'input window, operand 4, single buffered']
    #allocation11 [shape = 's32[1]{0}', space=sflag, size = 0x4, scoped, tag = 'scoped memory for tpu_custom_call.1']
    #allocation12 [shape = 'u8[32768]{0}', space=vmem, size = 0x8000, scoped, tag = 'input window, operand 5, single buffered']
    #allocation13 [shape = 'u8[32768]{0}', space=vmem, size = 0x8000, scoped, tag = 'input window, operand 7, single buffered']
    #allocation14 [shape = 's32[1]{0}', space=sflag, size = 0x4, scoped, tag = 'scoped memory for tpu_custom_call.1']
    #allocation15 [shape = 'u8[8192]{0}', space=vmem, size = 0x2000, scoped, tag = 'output window, operand 0, single buffered']
    %14 = vsyncpa [#allocation5], 0
    %15 = vsyncpa [#allocation8], 0
    %s16 = scalar_lea.sflag [#allocation8], 1
    %17 = vsyncpa %s16, 0
    %18 = vsyncpa [#allocation11], 0
    %19 = vsyncpa [#allocation14], 0
    %20 = vsyncpa [#allocation6], 0
    loop: start=0, step=1, limit=4
    $region2: #{tpu_custom_call.1} parent=1 // loop_pre_header
      _
    $region3: #{tpu_custom_call.1} parent=1 // loop_header
      %s22 = sphi 0, %s26
      %p23 = scmp.ge.s32.totalorder %s22, 4
      %s30 = sphi 0, %s30
      %s32 = sphi 0, %s30
      %s33 = sphi 0, %s32
      %s47 = sphi 0, %s33
      %s53 = sphi 0, %s55
      %s56 = sphi 0, %s53
      %s57 = sphi 0, %s56
      %s73 = sphi 0, %s57
      %s79 = sphi 0, %s81
      %s82 = sphi 0, %s79
      %s83 = sphi 0, %s82
      %s99 = sphi 0, %s83
      %s105 = sphi 0, %s107
      %s108 = sphi 0, %s105
      %s109 = sphi 0, %s108
      %s125 = sphi 0, %s109
      %s129 = sphi 0, %s129
      %s131 = sphi 0, %s129
      %s132 = sphi 0, %s131
      %s146 = sphi 0, %s132
      %s150 = sphi 0, %s150
      %s152 = sphi 0, %s150
      %s153 = sphi 0, %s152
      %s167 = sphi 0, %s153
      %s171 = sphi 0, %s171
      %s173 = sphi 0, %s171
      %s174 = sphi 0, %s173
      %s188 = sphi 0, %s174
      %s192 = sphi 0, %s192
      %s194 = sphi 0, %s192
      %s195 = sphi 0, %s194
      %s209 = sphi 0, %s195
      %s213 = sphi 0, %s213
      %s215 = sphi 0, %s213
      %s216 = sphi 0, %s215
      %s230 = sphi 0, %s216
      %s234 = sphi 0, %s234
      %s236 = sphi 0, %s234
      %s237 = sphi 0, %s236
      %s251 = sphi 0, %s237
    $region4: #{tpu_custom_call.1} parent=1 // loop_header_branch
      %25 = sbr.rel (%p23) target = $region8
    $region5: #{tpu_custom_call.1} parent=1 // loop_body
      %s27 = ssub.s32 %s22, 1
      %s28 = ssub.s32 %s22, 2
      %s29 = sadd.s32 %s22, 1
      %s31 = sadd.s32 %s30, 1
      %p34 = scmp.eq.s32.totalorder %s22, 1
      %p35 = scmp.ne.s32.totalorder %s30, %s32
      %p36 = scmp.eq.s32.totalorder %s22, 0
      %p37 = por %p35, %p36
      %p38 = scmp.ne.s32.totalorder %s30, %s32
      %p39 = scmp.eq.s32.totalorder %s27, 1
      %p40 = por %p38, %p39
      %p41 = scmp.ne.s32.totalorder %s32, %s33
      %p42 = scmp.eq.s32.totalorder %s27, 0
      %p43 = por %p41, %p42
      %p44 = scmp.ne.s32.totalorder %s32, %s33
      %p45 = scmp.eq.s32.totalorder %s28, 1
      %p46 = por %p44, %p45
      %p48 = scmp.ne.s32.totalorder %s33, %s47
      %p49 = scmp.eq.s32.totalorder %s28, 0
      %p50 = por %p48, %p49
      %s51 = ssub.s32 %s22, %s29
      %p52 = scmp.eq.s32.totalorder %s51, 0
      %s54 = sadd.s32 %s53, 1
      %s55 = scalar_select %p52, %s53, %s54
      %p58 = pneg %p52
      %p59 = scmp.eq.s32.totalorder %s22, 1
      %p60 = por %p58, %p59
      %p61 = scmp.ne.s32.totalorder %s53, %s56
      %p62 = scmp.eq.s32.totalorder %s22, 0
      %p63 = por %p61, %p62
      %p64 = scmp.ne.s32.totalorder %s53, %s56
      %p65 = scmp.eq.s32.totalorder %s27, 1
      %p66 = por %p64, %p65
      %p67 = scmp.ne.s32.totalorder %s56, %s57
      %p68 = scmp.eq.s32.totalorder %s27, 0
      %p69 = por %p67, %p68
      %p70 = scmp.ne.s32.totalorder %s56, %s57
      %p71 = scmp.eq.s32.totalorder %s28, 1
      %p72 = por %p70, %p71
      %p74 = scmp.ne.s32.totalorder %s57, %s73
      %p75 = scmp.eq.s32.totalorder %s28, 0
      %p76 = por %p74, %p75
      %s77 = ssub.s32 %s22, %s29
      %p78 = scmp.eq.s32.totalorder %s77, 0
      %s80 = sadd.s32 %s79, 1
      %s81 = scalar_select %p78, %s79, %s80
      %p84 = pneg %p78
      %p85 = scmp.eq.s32.totalorder %s22, 1
      %p86 = por %p84, %p85
      %p87 = scmp.ne.s32.totalorder %s79, %s82
      %p88 = scmp.eq.s32.totalorder %s22, 0
      %p89 = por %p87, %p88
      %p90 = scmp.ne.s32.totalorder %s79, %s82
      %p91 = scmp.eq.s32.totalorder %s27, 1
      %p92 = por %p90, %p91
      %p93 = scmp.ne.s32.totalorder %s82, %s83
      %p94 = scmp.eq.s32.totalorder %s27, 0
      %p95 = por %p93, %p94
      %p96 = scmp.ne.s32.totalorder %s82, %s83
      %p97 = scmp.eq.s32.totalorder %s28, 1
      %p98 = por %p96, %p97
      %p100 = scmp.ne.s32.totalorder %s83, %s99
      %p101 = scmp.eq.s32.totalorder %s28, 0
      %p102 = por %p100, %p101
      %s103 = ssub.s32 %s22, %s29
      %p104 = scmp.eq.s32.totalorder %s103, 0
      %s106 = sadd.s32 %s105, 1
      %s107 = scalar_select %p104, %s105, %s106
      %p110 = pneg %p104
      %p111 = scmp.eq.s32.totalorder %s22, 1
      %p112 = por %p110, %p111
      %p113 = scmp.ne.s32.totalorder %s105, %s108
      %p114 = scmp.eq.s32.totalorder %s22, 0
      %p115 = por %p113, %p114
      %p116 = scmp.ne.s32.totalorder %s105, %s108
      %p117 = scmp.eq.s32.totalorder %s27, 1
      %p118 = por %p116, %p117
      %p119 = scmp.ne.s32.totalorder %s108, %s109
      %p120 = scmp.eq.s32.totalorder %s27, 0
      %p121 = por %p119, %p120
      %p122 = scmp.ne.s32.totalorder %s108, %s109
      %p123 = scmp.eq.s32.totalorder %s28, 1
      %p124 = por %p122, %p123
      %p126 = scmp.ne.s32.totalorder %s109, %s125
      %p127 = scmp.eq.s32.totalorder %s28, 0
      %p128 = por %p126, %p127
      %s130 = sadd.s32 %s129, 1
      %p133 = scmp.eq.s32.totalorder %s22, 1
      %p134 = scmp.ne.s32.totalorder %s129, %s131
      %p135 = scmp.eq.s32.totalorder %s22, 0
      %p136 = por %p134, %p135
      %p137 = scmp.ne.s32.totalorder %s129, %s131
      %p138 = scmp.eq.s32.totalorder %s27, 1
      %p139 = por %p137, %p138
      %p140 = scmp.ne.s32.totalorder %s131, %s132
      %p141 = scmp.eq.s32.totalorder %s27, 0
      %p142 = por %p140, %p141
      %p143 = scmp.ne.s32.totalorder %s131, %s132
      %p144 = scmp.eq.s32.totalorder %s28, 1
      %p145 = por %p143, %p144
      %p147 = scmp.ne.s32.totalorder %s132, %s146
      %p148 = scmp.eq.s32.totalorder %s28, 0
      %p149 = por %p147, %p148
      %s151 = sadd.s32 %s150, 1
      %p154 = scmp.eq.s32.totalorder %s22, 1
      %p155 = scmp.ne.s32.totalorder %s150, %s152
      %p156 = scmp.eq.s32.totalorder %s22, 0
      %p157 = por %p155, %p156
      %p158 = scmp.ne.s32.totalorder %s150, %s152
      %p159 = scmp.eq.s32.totalorder %s27, 1
      %p160 = por %p158, %p159
      %p161 = scmp.ne.s32.totalorder %s152, %s153
      %p162 = scmp.eq.s32.totalorder %s27, 0
      %p163 = por %p161, %p162
      %p164 = scmp.ne.s32.totalorder %s152, %s153
      %p165 = scmp.eq.s32.totalorder %s28, 1
      %p166 = por %p164, %p165
      %p168 = scmp.ne.s32.totalorder %s153, %s167
      %p169 = scmp.eq.s32.totalorder %s28, 0
      %p170 = por %p168, %p169
      %s172 = sadd.s32 %s171, 1
      %p175 = scmp.eq.s32.totalorder %s22, 1
      %p176 = scmp.ne.s32.totalorder %s171, %s173
      %p177 = scmp.eq.s32.totalorder %s22, 0
      %p178 = por %p176, %p177
      %p179 = scmp.ne.s32.totalorder %s171, %s173
      %p180 = scmp.eq.s32.totalorder %s27, 1
      %p181 = por %p179, %p180
      %p182 = scmp.ne.s32.totalorder %s173, %s174
      %p183 = scmp.eq.s32.totalorder %s27, 0
      %p184 = por %p182, %p183
      %p185 = scmp.ne.s32.totalorder %s173, %s174
      %p186 = scmp.eq.s32.totalorder %s28, 1
      %p187 = por %p185, %p186
      %p189 = scmp.ne.s32.totalorder %s174, %s188
      %p190 = scmp.eq.s32.totalorder %s28, 0
      %p191 = por %p189, %p190
      %s193 = sadd.s32 %s192, 1
      %p196 = scmp.eq.s32.totalorder %s22, 1
      %p197 = scmp.ne.s32.totalorder %s192, %s194
      %p198 = scmp.eq.s32.totalorder %s22, 0
      %p199 = por %p197, %p198
      %p200 = scmp.ne.s32.totalorder %s192, %s194
      %p201 = scmp.eq.s32.totalorder %s27, 1
      %p202 = por %p200, %p201
      %p203 = scmp.ne.s32.totalorder %s194, %s195
      %p204 = scmp.eq.s32.totalorder %s27, 0
      %p205 = por %p203, %p204
      %p206 = scmp.ne.s32.totalorder %s194, %s195
      %p207 = scmp.eq.s32.totalorder %s28, 1
      %p208 = por %p206, %p207
      %p210 = scmp.ne.s32.totalorder %s195, %s209
      %p211 = scmp.eq.s32.totalorder %s28, 0
      %p212 = por %p210, %p211
      %s214 = sadd.s32 %s213, 1
      %p217 = scmp.eq.s32.totalorder %s22, 1
      %p218 = scmp.ne.s32.totalorder %s213, %s215
      %p219 = scmp.eq.s32.totalorder %s22, 0
      %p220 = por %p218, %p219
      %p221 = scmp.ne.s32.totalorder %s213, %s215
      %p222 = scmp.eq.s32.totalorder %s27, 1
      %p223 = por %p221, %p222
      %p224 = scmp.ne.s32.totalorder %s215, %s216
      %p225 = scmp.eq.s32.totalorder %s27, 0
      %p226 = por %p224, %p225
      %p227 = scmp.ne.s32.totalorder %s215, %s216
      %p228 = scmp.eq.s32.totalorder %s28, 1
      %p229 = por %p227, %p228
      %p231 = scmp.ne.s32.totalorder %s216, %s230
      %p232 = scmp.eq.s32.totalorder %s28, 0
      %p233 = por %p231, %p232
      %s235 = sadd.s32 %s234, 1
      %p238 = scmp.eq.s32.totalorder %s22, 1
      %p239 = scmp.ne.s32.totalorder %s234, %s236
      %p240 = scmp.eq.s32.totalorder %s22, 0
      %p241 = por %p239, %p240
      %p242 = scmp.ne.s32.totalorder %s234, %s236
      %p243 = scmp.eq.s32.totalorder %s27, 1
      %p244 = por %p242, %p243
      %p245 = scmp.ne.s32.totalorder %s236, %s237
      %p246 = scmp.eq.s32.totalorder %s27, 0
      %p247 = por %p245, %p246
      %p248 = scmp.ne.s32.totalorder %s236, %s237
      %p249 = scmp.eq.s32.totalorder %s28, 1
      %p250 = por %p248, %p249
      %p252 = scmp.ne.s32.totalorder %s237, %s251
      %p253 = scmp.eq.s32.totalorder %s28, 0
      %p254 = por %p252, %p253
      %p255 = scmp.le.s32.totalorder 1, %s22
      %p256 = scmp.lt.s32.totalorder %s22, 3
      %p257 = pnand %p255, %p256
      %p258 = pneg %p257
      // Predicated region
      $region9: #{tpu_custom_call.1} parent=5 // pred_check
        _
      $region10: #{tpu_custom_call.1} parent=5 // pred_check_branch
        %260 = sbr.rel (%p257) target = $region12
      $region11: #{tpu_custom_call.1} parent=5 // pred_region
        %s261 = ssub.s32 %s22, 1
        // Predicated region
        $region13: #{tpu_custom_call.1} parent=11 // pred_check
          %p262 = pneg %p43
        $region14: #{tpu_custom_call.1} parent=11 // pred_check_branch
          %264 = sbr.rel (%p262) target = $region16
        $region15: #{tpu_custom_call.1} parent=11 // pred_region
          %s266 = ssub.s32 2048, 2048
          %267 = vsyncadd [#allocation5], %s266
          %s268 = sshll.u32 [#allocation4], 4
          %s269 = int_to_ptr.vmem [resolvable:$true] %s268
          %274 = dma.hbm_to_vmem [thread:$0]  %s0, 2048, %s269, [#allocation5], 128, 128, 8
        $region16: #{tpu_custom_call.1} parent=11 // pred_fallthru
          _
        // Predicated region
        $region17: #{tpu_custom_call.1} parent=11 // pred_check
          %p275 = pneg %p142
        $region18: #{tpu_custom_call.1} parent=11 // pred_check_branch
          %277 = sbr.rel (%p275) target = $region20
        $region19: #{tpu_custom_call.1} parent=11 // pred_region
          %s279 = ssub.s32 1024, 1024
          %280 = vsyncadd [#allocation11], %s279
          %s281 = sshll.u32 [#allocation10], 4
          %s282 = int_to_ptr.vmem [resolvable:$true] %s281
          %287 = dma.hbm_to_vmem [thread:$0]  %s4, 1024, %s282, [#allocation11], 64, 64, 4
        $region20: #{tpu_custom_call.1} parent=11 // pred_fallthru
          _
        // Predicated region
        $region21: #{tpu_custom_call.1} parent=11 // pred_check
          %p288 = pneg %p163
        $region22: #{tpu_custom_call.1} parent=11 // pred_check_branch
          %290 = sbr.rel (%p288) target = $region24
        $region23: #{tpu_custom_call.1} parent=11 // pred_region
          %s292 = ssub.s32 1024, 1024
          %293 = vsyncadd [#allocation11], %s292
          %s294 = sshll.u32 [#allocation12], 4
          %s295 = int_to_ptr.vmem [resolvable:$true] %s294
          %300 = dma.hbm_to_vmem [thread:$0]  %s5, 1024, %s295, [#allocation11], 64, 64, 4
        $region24: #{tpu_custom_call.1} parent=11 // pred_fallthru
          _
        // Predicated region
        $region25: #{tpu_custom_call.1} parent=11 // pred_check
          %p301 = pneg %p184
        $region26: #{tpu_custom_call.1} parent=11 // pred_check_branch
          %303 = sbr.rel (%p301) target = $region28
        $region27: #{tpu_custom_call.1} parent=11 // pred_region
          _
        $region28: #{tpu_custom_call.1} parent=11 // pred_fallthru
          _
        // Predicated region
        $region29: #{tpu_custom_call.1} parent=11 // pred_check
          %p304 = pneg %p205
        $region30: #{tpu_custom_call.1} parent=11 // pred_check_branch
          %306 = sbr.rel (%p304) target = $region32
        $region31: #{tpu_custom_call.1} parent=11 // pred_region
          %s308 = ssub.s32 1024, 1024
          %309 = vsyncadd [#allocation14], %s308
          %s310 = sshll.u32 [#allocation13], 4
          %s311 = int_to_ptr.vmem [resolvable:$true] %s310
          %316 = dma.hbm_to_vmem [thread:$0]  %s7, 1024, %s311, [#allocation14], 64, 64, 4
        $region32: #{tpu_custom_call.1} parent=11 // pred_fallthru
          _
        // Predicated region
        $region33: #{tpu_custom_call.1} parent=11 // pred_check
          %p317 = pneg %p226
        $region34: #{tpu_custom_call.1} parent=11 // pred_check_branch
          %319 = sbr.rel (%p317) target = $region36
        $region35: #{tpu_custom_call.1} parent=11 // pred_region
          _
        $region36: #{tpu_custom_call.1} parent=11 // pred_fallthru
          _
      $region12: #{tpu_custom_call.1} parent=5 // pred_fallthru
        _
      %p320 = scmp.lt.s32.totalorder %s22, 2
      // Predicated region
      $region37: #{tpu_custom_call.1} parent=5 // pred_check
        %p321 = pneg %p320
      $region38: #{tpu_custom_call.1} parent=5 // pred_check_branch
        %323 = sbr.rel (%p321) target = $region40
      $region39: #{tpu_custom_call.1} parent=5 // pred_region
        // Predicated region
        $region41: #{tpu_custom_call.1} parent=39 // pred_check
          %p324 = pneg %p63
        $region42: #{tpu_custom_call.1} parent=39 // pred_check_branch
          %326 = sbr.rel (%p324) target = $region44
        $region43: #{tpu_custom_call.1} parent=39 // pred_region
          %s327 = sand.u32 %s22, 1
          %s328 = scalar_lea.sflag [#allocation8], %s327
          %s329 = sand.u32 %s53, 1
          %s330 = smul.addr %s329, 256
          %s331 = scalar_lea.vmem [#allocation7], %s330
          %s333 = ssub.s32 4096, 4096
          %334 = vsyncadd %s328, %s333
          %s335 = smul.addr %s22, 64
          %s336 = smul.addr %s335, 64
          %s337 = scalar_lea.hbm %s1, %s336
          %s338 = sshll.u32 %s331, 4
          %s339 = int_to_ptr.vmem [resolvable:$true] %s338
          %344 = dma.hbm_to_vmem [thread:$0]  %s337, 4096, %s339, %s328, 256, 256, 16
        $region44: #{tpu_custom_call.1} parent=39 // pred_fallthru
          _
        // Predicated region
        $region45: #{tpu_custom_call.1} parent=39 // pred_check
          %p345 = pneg %p89
        $region46: #{tpu_custom_call.1} parent=39 // pred_check_branch
          %347 = sbr.rel (%p345) target = $region48
        $region47: #{tpu_custom_call.1} parent=39 // pred_region
          %s348 = sand.u32 %s22, 1
          %s349 = scalar_lea.sflag [#allocation8], %s348
          %s350 = sand.u32 %s79, 1
          %s351 = smul.addr %s350, 256
          %s352 = scalar_lea.vmem [#allocation9], %s351
          %s354 = ssub.s32 4096, 4096
          %355 = vsyncadd %s349, %s354
          %s356 = smul.addr %s22, 64
          %s357 = smul.addr %s356, 64
          %s358 = scalar_lea.hbm %s2, %s357
          %s359 = sshll.u32 %s352, 4
          %s360 = int_to_ptr.vmem [resolvable:$true] %s359
          %365 = dma.hbm_to_vmem [thread:$0]  %s358, 4096, %s360, %s349, 256, 256, 16
        $region48: #{tpu_custom_call.1} parent=39 // pred_fallthru
          _
        // Predicated region
        $region49: #{tpu_custom_call.1} parent=39 // pred_check
          %p366 = pneg %p115
        $region50: #{tpu_custom_call.1} parent=39 // pred_check_branch
          %368 = sbr.rel (%p366) target = $region52
        $region51: #{tpu_custom_call.1} parent=39 // pred_region
          %p369 = scmp.lt.s32.totalorder %s22, 1
          %s370 = scalar_select %p369, %s22, 1
          %s371 = smul.addr %s370, 4
          %s372 = scalar_lea.vmem %s3, %s371
        $region52: #{tpu_custom_call.1} parent=39 // pred_fallthru
          _
      $region40: #{tpu_custom_call.1} parent=5 // pred_fallthru
        _
      %p373 = scmp.le.s32.totalorder 1, %s22
      %p374 = scmp.lt.s32.totalorder %s22, 3
      %p375 = pnand %p373, %p374
      %p376 = pneg %p375
      // Predicated region
      $region53: #{tpu_custom_call.1} parent=5 // pred_check
        _
      $region54: #{tpu_custom_call.1} parent=5 // pred_check_branch
        %378 = sbr.rel (%p375) target = $region56
      $region55: #{tpu_custom_call.1} parent=5 // pred_region
        %s379 = ssub.s32 %s22, 1
        // Predicated region
        $region57: #{tpu_custom_call.1} parent=55 // pred_check
          %p380 = pneg %p43
        $region58: #{tpu_custom_call.1} parent=55 // pred_check_branch
          %382 = sbr.rel (%p380) target = $region60
        $region59: #{tpu_custom_call.1} parent=55 // pred_region
          %383 = dma.done [#allocation5], 2048
        $region60: #{tpu_custom_call.1} parent=55 // pred_fallthru
          _
        %s384 = sand.u32 %s27, 1
        %s385 = scalar_lea.sflag [#allocation8], %s384
        %s386 = sand.u32 %s56, 1
        %s387 = smul.addr %s386, 256
        %s388 = scalar_lea.vmem [#allocation7], %s387
        // Predicated region
        $region61: #{tpu_custom_call.1} parent=55 // pred_check
          %p389 = pneg %p69
        $region62: #{tpu_custom_call.1} parent=55 // pred_check_branch
          %391 = sbr.rel (%p389) target = $region64
        $region63: #{tpu_custom_call.1} parent=55 // pred_region
          %392 = dma.done %s385, 4096
        $region64: #{tpu_custom_call.1} parent=55 // pred_fallthru
          _
        %s393 = sand.u32 %s27, 1
        %s394 = scalar_lea.sflag [#allocation8], %s393
        %s395 = sand.u32 %s82, 1
        %s396 = smul.addr %s395, 256
        %s397 = scalar_lea.vmem [#allocation9], %s396
        // Predicated region
        $region65: #{tpu_custom_call.1} parent=55 // pred_check
          %p398 = pneg %p95
        $region66: #{tpu_custom_call.1} parent=55 // pred_check_branch
          %400 = sbr.rel (%p398) target = $region68
        $region67: #{tpu_custom_call.1} parent=55 // pred_region
          %401 = dma.done %s394, 4096
        $region68: #{tpu_custom_call.1} parent=55 // pred_fallthru
          _
        // Predicated region
        $region69: #{tpu_custom_call.1} parent=55 // pred_check
          %p402 = pneg %p142
        $region70: #{tpu_custom_call.1} parent=55 // pred_check_branch
          %404 = sbr.rel (%p402) target = $region72
        $region71: #{tpu_custom_call.1} parent=55 // pred_region
          %405 = dma.done [#allocation11], 1024
        $region72: #{tpu_custom_call.1} parent=55 // pred_fallthru
          _
        // Predicated region
        $region73: #{tpu_custom_call.1} parent=55 // pred_check
          %p406 = pneg %p163
        $region74: #{tpu_custom_call.1} parent=55 // pred_check_branch
          %408 = sbr.rel (%p406) target = $region76
        $region75: #{tpu_custom_call.1} parent=55 // pred_region
          %409 = dma.done [#allocation11], 1024
        $region76: #{tpu_custom_call.1} parent=55 // pred_fallthru
          _
        // Predicated region
        $region77: #{tpu_custom_call.1} parent=55 // pred_check
          %p410 = pneg %p205
        $region78: #{tpu_custom_call.1} parent=55 // pred_check_branch
          %412 = sbr.rel (%p410) target = $region80
        $region79: #{tpu_custom_call.1} parent=55 // pred_region
          %413 = dma.done [#allocation14], 1024
        $region80: #{tpu_custom_call.1} parent=55 // pred_fallthru
          _
        %p414 = pneg %p43
        %p415 = pneg %p40
        %s416 = sand.u32 %s27, 1
        %s417 = scalar_lea.sflag [#allocation8], %s416
        %s418 = sand.u32 %s56, 1
        %s419 = smul.addr %s418, 256
        %s420 = scalar_lea.vmem [#allocation7], %s419
        %p421 = pneg %p69
        %p422 = pneg %p66
        %s423 = sand.u32 %s27, 1
        %s424 = scalar_lea.sflag [#allocation8], %s423
        %s425 = sand.u32 %s82, 1
        %s426 = smul.addr %s425, 256
        %s427 = scalar_lea.vmem [#allocation9], %s426
        %p428 = pneg %p95
        %p429 = pneg %p92
        %p430 = scmp.lt.s32.totalorder %s27, 1
        %s431 = scalar_select %p430, %s27, 1
        %s432 = smul.addr %s431, 4
        %s433 = scalar_lea.vmem %s3, %s432
        %p434 = pneg %p121
        %p435 = pneg %p118
        %p436 = pneg %p142
        %p437 = pneg %p139
        %p438 = pneg %p163
        %p439 = pneg %p160
        %p440 = pneg %p184
        %p441 = pneg %p181
        %p442 = pneg %p205
        %p443 = pneg %p202
        %p444 = pneg %p226
        %p445 = pneg %p223
        %p446 = pneg %p247
        %p447 = pneg %p244
        %p448 = scmp.lt.s32.totalorder %s27, 1
        %s449 = scalar_select %p448, %s27, 1
        %s450 = smul.addr %s449, 4
        %s451 = scalar_lea.vmem %s3, %s450
        %v453 = vld [vmem:[%s451] sm:$0xf]
        %p454 = scmp.eq.s32.totalorder %s27, 0
        // Predicated region
        $region81: #{tpu_custom_call.1} parent=55 // pred_check
          %p455 = pneg %p454
        $region82: #{tpu_custom_call.1} parent=55 // pred_check_branch
          %457 = sbr.rel (%p455) target = $region84
        $region83: #{tpu_custom_call.1} parent=55 // pred_region
          %v458 = vld [vmem:[#allocation4] sm:$0xff]
          %v459 = vld [vmem:[#allocation4 + $0x8] sm:$0xff]
          %v460 = vld [vmem:[#allocation4 + $0x10] sm:$0xff]
          %v461 = vld [vmem:[#allocation4 + $0x18] sm:$0xff]
          %v462 = vld [vmem:[#allocation4 + $0x20] sm:$0xff]
          %v463 = vld [vmem:[#allocation4 + $0x28] sm:$0xff]
          %v464 = vld [vmem:[#allocation4 + $0x30] sm:$0xff]
          %v465 = vld [vmem:[#allocation4 + $0x38] sm:$0xff]
          %v466 = vld [vmem:[#allocation4 + $0x40] sm:$0xff]
          %v467 = vld [vmem:[#allocation4 + $0x48] sm:$0xff]
          %v468 = vld [vmem:[#allocation4 + $0x50] sm:$0xff]
          %v469 = vld [vmem:[#allocation4 + $0x58] sm:$0xff]
          %v470 = vld [vmem:[#allocation4 + $0x60] sm:$0xff]
          %v471 = vld [vmem:[#allocation4 + $0x68] sm:$0xff]
          %v472 = vld [vmem:[#allocation4 + $0x70] sm:$0xff]
          %v473 = vld [vmem:[#allocation4 + $0x78] sm:$0xff]
          %v474 = vpack.c.bf16 %v459, %v458
          %v475 = vpack.c.bf16 %v461, %v460
          %v476 = vpack.c.bf16 %v463, %v462
          %v477 = vpack.c.bf16 %v465, %v464
          %v478 = vpack.c.bf16 %v467, %v466
          %v479 = vpack.c.bf16 %v469, %v468
          %v480 = vpack.c.bf16 %v471, %v470
          %v481 = vpack.c.bf16 %v473, %v472
          %v482 = vld [vmem:[%s388] sm:$0xff]
          %v483 = vld [vmem:[%s388 + $0x8] sm:$0xff]
          %v484 = vld [vmem:[%s388 + $0x10] sm:$0xff]
          %v485 = vld [vmem:[%s388 + $0x18] sm:$0xff]
          %v486 = vld [vmem:[%s388 + $0x20] sm:$0xff]
          %v487 = vld [vmem:[%s388 + $0x28] sm:$0xff]
          %v488 = vld [vmem:[%s388 + $0x30] sm:$0xff]
          %v489 = vld [vmem:[%s388 + $0x38] sm:$0xff]
          %v490 = vld [vmem:[%s388 + $0x40] sm:$0xff]
          %v491 = vld [vmem:[%s388 + $0x48] sm:$0xff]
          %v492 = vld [vmem:[%s388 + $0x50] sm:$0xff]
          %v493 = vld [vmem:[%s388 + $0x58] sm:$0xff]
          %v494 = vld [vmem:[%s388 + $0x60] sm:$0xff]
          %v495 = vld [vmem:[%s388 + $0x68] sm:$0xff]
          %v496 = vld [vmem:[%s388 + $0x70] sm:$0xff]
          %v497 = vld [vmem:[%s388 + $0x78] sm:$0xff]
          %v498 = vld [vmem:[%s388 + $0x80] sm:$0xff]
          %v499 = vld [vmem:[%s388 + $0x88] sm:$0xff]
          %v500 = vld [vmem:[%s388 + $0x90] sm:$0xff]
          %v501 = vld [vmem:[%s388 + $0x98] sm:$0xff]
          %v502 = vld [vmem:[%s388 + $0xa0] sm:$0xff]
          %v503 = vld [vmem:[%s388 + $0xa8] sm:$0xff]
          %v504 = vld [vmem:[%s388 + $0xb0] sm:$0xff]
          %v505 = vld [vmem:[%s388 + $0xb8] sm:$0xff]
          %v506 = vld [vmem:[%s388 + $0xc0] sm:$0xff]
          %v507 = vld [vmem:[%s388 + $0xc8] sm:$0xff]
          %v508 = vld [vmem:[%s388 + $0xd0] sm:$0xff]
          %v509 = vld [vmem:[%s388 + $0xd8] sm:$0xff]
          %v510 = vld [vmem:[%s388 + $0xe0] sm:$0xff]
          %v511 = vld [vmem:[%s388 + $0xe8] sm:$0xff]
          %v512 = vld [vmem:[%s388 + $0xf0] sm:$0xff]
          %v513 = vld [vmem:[%s388 + $0xf8] sm:$0xff]
          %v515 = vlaneseq
          %v516 = vshrl.u32 %v515, 7
          %v517 = vsub.s32 0, %v516
          %v518 = vrot.slane %v453, %v517
          %v519 = vlaneseq
          %v520 = vshrl.u32 %v519, 7
          %v521 = vsub.s32 1, %v520
          %v522 = vrot.slane %v453, %v521
          %v523 = vlaneseq
          %v524 = vshrl.u32 %v523, 7
          %v525 = vsub.s32 2, %v524
          %v526 = vrot.slane %v453, %v525
          %v527 = vlaneseq
          %v528 = vshrl.u32 %v527, 7
          %v529 = vsub.s32 3, %v528
          %v530 = vrot.slane %v453, %v529
          %v567 = vunpack.c.l.b16 %v482
          %v568 = vunpack.c.h.b16 %v482
          %v569 = vunpack.c.l.b16 %v483
          %v570 = vunpack.c.h.b16 %v483
          %v571 = vunpack.c.l.b16 %v484
          %v572 = vunpack.c.h.b16 %v484
          %v573 = vunpack.c.l.b16 %v485
          %v574 = vunpack.c.h.b16 %v485
          %v575 = vunpack.c.l.b16 %v486
          %v576 = vunpack.c.h.b16 %v486
          %v577 = vunpack.c.l.b16 %v487
          %v578 = vunpack.c.h.b16 %v487
          %v579 = vunpack.c.l.b16 %v488
          %v580 = vunpack.c.h.b16 %v488
          %v581 = vunpack.c.l.b16 %v489
          %v582 = vunpack.c.h.b16 %v489
          %v583 = vunpack.c.l.b16 %v490
          %v584 = vunpack.c.h.b16 %v490
          %v585 = vunpack.c.l.b16 %v491
          %v586 = vunpack.c.h.b16 %v491
          %v587 = vunpack.c.l.b16 %v492
          %v588 = vunpack.c.h.b16 %v492
          %v589 = vunpack.c.l.b16 %v493
          %v590 = vunpack.c.h.b16 %v493
          %v591 = vunpack.c.l.b16 %v494
          %v592 = vunpack.c.h.b16 %v494
          %v593 = vunpack.c.l.b16 %v495
          %v594 = vunpack.c.h.b16 %v495
          %v595 = vunpack.c.l.b16 %v496
          %v596 = vunpack.c.h.b16 %v496
          %v597 = vunpack.c.l.b16 %v497
          %v598 = vunpack.c.h.b16 %v497
          %v599 = vunpack.c.l.b16 %v498
          %v600 = vunpack.c.h.b16 %v498
          %v601 = vunpack.c.l.b16 %v499
          %v602 = vunpack.c.h.b16 %v499
          %v603 = vunpack.c.l.b16 %v500
          %v604 = vunpack.c.h.b16 %v500
          %v605 = vunpack.c.l.b16 %v501
          %v606 = vunpack.c.h.b16 %v501
          %v607 = vunpack.c.l.b16 %v502
          %v608 = vunpack.c.h.b16 %v502
          %v609 = vunpack.c.l.b16 %v503
          %v610 = vunpack.c.h.b16 %v503
          %v611 = vunpack.c.l.b16 %v504
          %v612 = vunpack.c.h.b16 %v504
          %v613 = vunpack.c.l.b16 %v505
          %v614 = vunpack.c.h.b16 %v505
          %v615 = vunpack.c.l.b16 %v506
          %v616 = vunpack.c.h.b16 %v506
          %v617 = vunpack.c.l.b16 %v507
          %v618 = vunpack.c.h.b16 %v507
          %v619 = vunpack.c.l.b16 %v508
          %v620 = vunpack.c.h.b16 %v508
          %v621 = vunpack.c.l.b16 %v509
          %v622 = vunpack.c.h.b16 %v509
          %v623 = vunpack.c.l.b16 %v510
          %v624 = vunpack.c.h.b16 %v510
          %v625 = vunpack.c.l.b16 %v511
          %v626 = vunpack.c.h.b16 %v511
          %v627 = vunpack.c.l.b16 %v512
          %v628 = vunpack.c.h.b16 %v512
          %v629 = vunpack.c.l.b16 %v513
          %v630 = vunpack.c.h.b16 %v513
          %v631 = vpack.c.b16 %v571, %v567
          %v632 = vpack.c.b16 %v572, %v568
          %v633 = vpack.c.b16 %v573, %v569
          %v634 = vpack.c.b16 %v574, %v570
          %v635 = vpack.c.b16 %v579, %v575
          %v636 = vpack.c.b16 %v580, %v576
          %v637 = vpack.c.b16 %v581, %v577
          %v638 = vpack.c.b16 %v582, %v578
          %v639 = vpack.c.b16 %v587, %v583
          %v640 = vpack.c.b16 %v588, %v584
          %v641 = vpack.c.b16 %v589, %v585
          %v642 = vpack.c.b16 %v590, %v586
          %v643 = vpack.c.b16 %v595, %v591
          %v644 = vpack.c.b16 %v596, %v592
          %v645 = vpack.c.b16 %v597, %v593
          %v646 = vpack.c.b16 %v598, %v594
          %v647 = vpack.c.b16 %v603, %v599
          %v648 = vpack.c.b16 %v604, %v600
          %v649 = vpack.c.b16 %v605, %v601
          %v650 = vpack.c.b16 %v606, %v602
          %v651 = vpack.c.b16 %v611, %v607
          %v652 = vpack.c.b16 %v612, %v608
          %v653 = vpack.c.b16 %v613, %v609
          %v654 = vpack.c.b16 %v614, %v610
          %v655 = vpack.c.b16 %v619, %v615
          %v656 = vpack.c.b16 %v620, %v616
          %v657 = vpack.c.b16 %v621, %v617
          %v658 = vpack.c.b16 %v622, %v618
          %v659 = vpack.c.b16 %v627, %v623
          %v660 = vpack.c.b16 %v628, %v624
          %v661 = vpack.c.b16 %v629, %v625
          %v662 = vpack.c.b16 %v630, %v626
          %695 = vmatprep.subr.bf16.mxu0 %v632
          %696 = vmatpush1.bf16.msra.mxu0 %v631
          %697 = vmatprep.subr.bf16.mxu0 %v636
          %698 = vmatpush1.bf16.msra.mxu0 %v635
          %699 = vmatprep.subr.bf16.mxu0 %v640
          %700 = vmatpush1.bf16.msra.mxu0 %v639
          %701 = vmatprep.subr.bf16.mxu0 %v644
          %702 = vmatpush1.bf16.msra.mxu0 %v643
          %703 = vmatprep.subr.bf16.mxu0 %v648
          %704 = vmatpush1.bf16.msra.mxu0 %v647
          %705 = vmatprep.subr.bf16.mxu0 %v652
          %706 = vmatpush1.bf16.msra.mxu0 %v651
          %707 = vmatprep.subr.bf16.mxu0 %v656
          %708 = vmatpush1.bf16.msra.mxu0 %v655
          %709 = vmatprep.subr.bf16.mxu0 %v660
          %710 = vmatpush1.bf16.msra.mxu0 %v659
          %711 = vmatprep.subr.bf16.mxu0 0
          %712 = vmatpush1.bf16.msra.mxu0 0
          %713 = vmatprep.subr.bf16.mxu0 0
          %714 = vmatpush1.bf16.msra.mxu0 0
          %715 = vmatprep.subr.bf16.mxu0 0
          %716 = vmatpush1.bf16.msra.mxu0 0
          %717 = vmatprep.subr.bf16.mxu0 0
          %718 = vmatpush1.bf16.msra.mxu0 0
          %719 = vmatprep.subr.bf16.mxu0 0
          %720 = vmatpush1.bf16.msra.mxu0 0
          %721 = vmatprep.subr.bf16.mxu0 0
          %722 = vmatpush1.bf16.msra.mxu0 0
          %723 = vmatprep.subr.bf16.mxu0 0
          %724 = vmatpush1.bf16.msra.mxu0 0
          %725 = vmatprep.subr.bf16.mxu0 0
          %726 = vmatpush1.bf16.msra.mxu0 0
          %727 = vmatprep.mubr.bf16.mxu0 0
          %728 = vmatmul.mubr.bf16.gmra.mrb[0].mxu0 %v474
          %v729 = vpop.f32.mrb[0].mxu0
          %v730 = vadd.f32 %v518, %v729
          %v731 = vpop.f32.mrb[0].mxu0
          %v732 = vadd.f32 %v522, %v731
          %v733 = vpop.f32.mrb[0].mxu0
          %v734 = vadd.f32 %v518, %v733
          %v735 = vpop.f32.mrb[0].mxu0
          %v736 = vadd.f32 %v522, %v735
          %737 = vmatprep.mubr.bf16.mxu0 0
          %738 = vmatmul.mubr.bf16.gmra.mrb[0].mxu0 %v475
          %v739 = vpop.f32.mrb[0].mxu0
          %v740 = vadd.f32 %v518, %v739
          %v741 = vpop.f32.mrb[0].mxu0
          %v742 = vadd.f32 %v522, %v741
          %v743 = vpop.f32.mrb[0].mxu0
          %v744 = vadd.f32 %v518, %v743
          %v745 = vpop.f32.mrb[0].mxu0
          %v746 = vadd.f32 %v522, %v745
          %747 = vmatprep.mubr.bf16.mxu0 0
          %748 = vmatmul.mubr.bf16.gmra.mrb[0].mxu0 %v476
          %v749 = vpop.f32.mrb[0].mxu0
          %v750 = vadd.f32 %v518, %v749
          %v751 = vpop.f32.mrb[0].mxu0
          %v752 = vadd.f32 %v522, %v751
          %v753 = vpop.f32.mrb[0].mxu0
          %v754 = vadd.f32 %v518, %v753
          %v755 = vpop.f32.mrb[0].mxu0
          %v756 = vadd.f32 %v522, %v755
          %757 = vmatprep.mubr.bf16.mxu0 0
          %758 = vmatmul.mubr.bf16.gmra.mrb[0].mxu0 %v477
          %v759 = vpop.f32.mrb[0].mxu0
          %v760 = vadd.f32 %v518, %v759
          %v761 = vpop.f32.mrb[0].mxu0
          %v762 = vadd.f32 %v522, %v761
          %v763 = vpop.f32.mrb[0].mxu0
          %v764 = vadd.f32 %v518, %v763
          %v765 = vpop.f32.mrb[0].mxu0
          %v766 = vadd.f32 %v522, %v765
          %767 = vmatprep.mubr.bf16.mxu0 0
          %768 = vmatmul.mubr.bf16.gmra.mrb[0].mxu0 %v478
          %v769 = vpop.f32.mrb[0].mxu0
          %v770 = vadd.f32 %v518, %v769
          %v771 = vpop.f32.mrb[0].mxu0
          %v772 = vadd.f32 %v522, %v771
          %v773 = vpop.f32.mrb[0].mxu0
          %v774 = vadd.f32 %v518, %v773
          %v775 = vpop.f32.mrb[0].mxu0
          %v776 = vadd.f32 %v522, %v775
          %777 = vmatprep.mubr.bf16.mxu0 0
          %778 = vmatmul.mubr.bf16.gmra.mrb[0].mxu0 %v479
          %v779 = vpop.f32.mrb[0].mxu0
          %v780 = vadd.f32 %v518, %v779
          %v781 = vpop.f32.mrb[0].mxu0
          %v782 = vadd.f32 %v522, %v781
          %v783 = vpop.f32.mrb[0].mxu0
          %v784 = vadd.f32 %v518, %v783
          %v785 = vpop.f32.mrb[0].mxu0
          %v786 = vadd.f32 %v522, %v785
          %787 = vmatprep.mubr.bf16.mxu0 0
          %788 = vmatmul.mubr.bf16.gmra.mrb[0].mxu0 %v480
          %v789 = vpop.f32.mrb[0].mxu0
          %v790 = vadd.f32 %v518, %v789
          %v791 = vpop.f32.mrb[0].mxu0
          %v792 = vadd.f32 %v522, %v791
          %v793 = vpop.f32.mrb[0].mxu0
          %v794 = vadd.f32 %v518, %v793
          %v795 = vpop.f32.mrb[0].mxu0
          %v796 = vadd.f32 %v522, %v795
          %797 = vmatprep.mubr.bf16.mxu0 0
          %798 = vmatmul.mubr.bf16.gmra.mrb[0].mxu0 %v481
          %v799 = vpop.f32.mrb[0].mxu0
          %v800 = vadd.f32 %v518, %v799
          %v801 = vpop.f32.mrb[0].mxu0
          %v802 = vadd.f32 %v522, %v801
          %v803 = vpop.f32.mrb[0].mxu0
          %v804 = vadd.f32 %v518, %v803
          %v805 = vpop.f32.mrb[0].mxu0
          %v806 = vadd.f32 %v522, %v805
          %807 = vdwg.mxu0
          %808 = vmatprep.subr.bf16.mxu0 %v634
          %809 = vmatpush1.bf16.msra.mxu0 %v633
          %810 = vmatprep.subr.bf16.mxu0 %v638
          %811 = vmatpush1.bf16.msra.mxu0 %v637
          %812 = vmatprep.subr.bf16.mxu0 %v642
          %813 = vmatpush1.bf16.msra.mxu0 %v641
          %814 = vmatprep.subr.bf16.mxu0 %v646
          %815 = vmatpush1.bf16.msra.mxu0 %v645
          %816 = vmatprep.subr.bf16.mxu0 %v650
          %817 = vmatpush1.bf16.msra.mxu0 %v649
          %818 = vmatprep.subr.bf16.mxu0 %v654
          %819 = vmatpush1.bf16.msra.mxu0 %v653
          %820 = vmatprep.subr.bf16.mxu0 %v658
          %821 = vmatpush1.bf16.msra.mxu0 %v657
          %822 = vmatprep.subr.bf16.mxu0 %v662
          %823 = vmatpush1.bf16.msra.mxu0 %v661
          %824 = vmatprep.subr.bf16.mxu0 0
          %825 = vmatpush1.bf16.msra.mxu0 0
          %826 = vmatprep.subr.bf16.mxu0 0
          %827 = vmatpush1.bf16.msra.mxu0 0
          %828 = vmatprep.subr.bf16.mxu0 0
          %829 = vmatpush1.bf16.msra.mxu0 0
          %830 = vmatprep.subr.bf16.mxu0 0
          %831 = vmatpush1.bf16.msra.mxu0 0
          %832 = vmatprep.subr.bf16.mxu0 0
          %833 = vmatpush1.bf16.msra.mxu0 0
          %834 = vmatprep.subr.bf16.mxu0 0
          %835 = vmatpush1.bf16.msra.mxu0 0
          %836 = vmatprep.subr.bf16.mxu0 0
          %837 = vmatpush1.bf16.msra.mxu0 0
          %838 = vmatprep.subr.bf16.mxu0 0
          %839 = vmatpush1.bf16.msra.mxu0 0
          %840 = vmatprep.mubr.bf16.mxu0 0
          %841 = vmatmul.mubr.bf16.gmra.mrb[0].mxu0 %v474
          %v842 = vpop.f32.mrb[0].mxu0
          %v843 = vadd.f32 %v526, %v842
          %v844 = vpop.f32.mrb[0].mxu0
          %v845 = vadd.f32 %v530, %v844
          %v846 = vpop.f32.mrb[0].mxu0
          %v847 = vadd.f32 %v526, %v846
          %v848 = vpop.f32.mrb[0].mxu0
          %v849 = vadd.f32 %v530, %v848
          %850 = vmatprep.mubr.bf16.mxu0 0
          %851 = vmatmul.mubr.bf16.gmra.mrb[0].mxu0 %v475
          %v852 = vpop.f32.mrb[0].mxu0
          %v853 = vadd.f32 %v526, %v852
          %v854 = vpop.f32.mrb[0].mxu0
          %v855 = vadd.f32 %v530, %v854
          %v856 = vpop.f32.mrb[0].mxu0
          %v857 = vadd.f32 %v526, %v856
          %v858 = vpop.f32.mrb[0].mxu0
          %v859 = vadd.f32 %v530, %v858
          %860 = vmatprep.mubr.bf16.mxu0 0
          %861 = vmatmul.mubr.bf16.gmra.mrb[0].mxu0 %v476
          %v862 = vpop.f32.mrb[0].mxu0
          %v863 = vadd.f32 %v526, %v862
          %v864 = vpop.f32.mrb[0].mxu0
          %v865 = vadd.f32 %v530, %v864
          %v866 = vpop.f32.mrb[0].mxu0
          %v867 = vadd.f32 %v526, %v866
          %v868 = vpop.f32.mrb[0].mxu0
          %v869 = vadd.f32 %v530, %v868
          %870 = vmatprep.mubr.bf16.mxu0 0
          %871 = vmatmul.mubr.bf16.gmra.mrb[0].mxu0 %v477
          %v872 = vpop.f32.mrb[0].mxu0
          %v873 = vadd.f32 %v526, %v872
          %v874 = vpop.f32.mrb[0].mxu0
          %v875 = vadd.f32 %v530, %v874
          %v876 = vpop.f32.mrb[0].mxu0
          %v877 = vadd.f32 %v526, %v876
          %v878 = vpop.f32.mrb[0].mxu0
          %v879 = vadd.f32 %v530, %v878
          %880 = vmatprep.mubr.bf16.mxu0 0
          %881 = vmatmul.mubr.bf16.gmra.mrb[0].mxu0 %v478
          %v882 = vpop.f32.mrb[0].mxu0
          %v883 = vadd.f32 %v526, %v882
          %v884 = vpop.f32.mrb[0].mxu0
          %v885 = vadd.f32 %v530, %v884
          %v886 = vpop.f32.mrb[0].mxu0
          %v887 = vadd.f32 %v526, %v886
          %v888 = vpop.f32.mrb[0].mxu0
          %v889 = vadd.f32 %v530, %v888
          %890 = vmatprep.mubr.bf16.mxu0 0
          %891 = vmatmul.mubr.bf16.gmra.mrb[0].mxu0 %v479
          %v892 = vpop.f32.mrb[0].mxu0
          %v893 = vadd.f32 %v526, %v892
          %v894 = vpop.f32.mrb[0].mxu0
          %v895 = vadd.f32 %v530, %v894
          %v896 = vpop.f32.mrb[0].mxu0
          %v897 = vadd.f32 %v526, %v896
          %v898 = vpop.f32.mrb[0].mxu0
          %v899 = vadd.f32 %v530, %v898
          %900 = vmatprep.mubr.bf16.mxu0 0
          %901 = vmatmul.mubr.bf16.gmra.mrb[0].mxu0 %v480
          %v902 = vpop.f32.mrb[0].mxu0
          %v903 = vadd.f32 %v526, %v902
          %v904 = vpop.f32.mrb[0].mxu0
          %v905 = vadd.f32 %v530, %v904
          %v906 = vpop.f32.mrb[0].mxu0
          %v907 = vadd.f32 %v526, %v906
          %v908 = vpop.f32.mrb[0].mxu0
          %v909 = vadd.f32 %v530, %v908
          %910 = vmatprep.mubr.bf16.mxu0 0
          %911 = vmatmul.mubr.bf16.gmra.mrb[0].mxu0 %v481
          %v912 = vpop.f32.mrb[0].mxu0
          %v913 = vadd.f32 %v526, %v912
          %v914 = vpop.f32.mrb[0].mxu0
          %v915 = vadd.f32 %v530, %v914
          %v916 = vpop.f32.mrb[0].mxu0
          %v917 = vadd.f32 %v526, %v916
          %v918 = vpop.f32.mrb[0].mxu0
          %v919 = vadd.f32 %v530, %v918
          %920 = vdwg.mxu0
          %921 = vst [vmem:[#allocation3] sm:$0xff] %v730
          %922 = vst [vmem:[#allocation3 + $0x8] sm:$0xff] %v732
          %923 = vst [vmem:[#allocation3 + $0x10] sm:$0xff] %v843
          %924 = vst [vmem:[#allocation3 + $0x18] sm:$0xff] %v845
          %925 = vst [vmem:[#allocation3 + $0x20] sm:$0xff] %v734
          %926 = vst [vmem:[#allocation3 + $0x28] sm:$0xff] %v736
          %927 = vst [vmem:[#allocation3 + $0x30] sm:$0xff] %v847
          %928 = vst [vmem:[#allocation3 + $0x38] sm:$0xff] %v849
          %929 = vst [vmem:[#allocation3 + $0x40] sm:$0xff] %v740
          %930 = vst [vmem:[#allocation3 + $0x48] sm:$0xff] %v742
          %931 = vst [vmem:[#allocation3 + $0x50] sm:$0xff] %v853
          %932 = vst [vmem:[#allocation3 + $0x58] sm:$0xff] %v855
          %933 = vst [vmem:[#allocation3 + $0x60] sm:$0xff] %v744
          %934 = vst [vmem:[#allocation3 + $0x68] sm:$0xff] %v746
          %935 = vst [vmem:[#allocation3 + $0x70] sm:$0xff] %v857
          %936 = vst [vmem:[#allocation3 + $0x78] sm:$0xff] %v859
          %937 = vst [vmem:[#allocation3 + $0x80] sm:$0xff] %v750
          %938 = vst [vmem:[#allocation3 + $0x88] sm:$0xff] %v752
          %939 = vst [vmem:[#allocation3 + $0x90] sm:$0xff] %v863
          %940 = vst [vmem:[#allocation3 + $0x98] sm:$0xff] %v865
          %941 = vst [vmem:[#allocation3 + $0xa0] sm:$0xff] %v754
          %942 = vst [vmem:[#allocation3 + $0xa8] sm:$0xff] %v756
          %943 = vst [vmem:[#allocation3 + $0xb0] sm:$0xff] %v867
          %944 = vst [vmem:[#allocation3 + $0xb8] sm:$0xff] %v869
          %945 = vst [vmem:[#allocation3 + $0xc0] sm:$0xff] %v760
          %946 = vst [vmem:[#allocation3 + $0xc8] sm:$0xff] %v762
          %947 = vst [vmem:[#allocation3 + $0xd0] sm:$0xff] %v873
          %948 = vst [vmem:[#allocation3 + $0xd8] sm:$0xff] %v875
          %949 = vst [vmem:[#allocation3 + $0xe0] sm:$0xff] %v764
          %950 = vst [vmem:[#allocation3 + $0xe8] sm:$0xff] %v766
          %951 = vst [vmem:[#allocation3 + $0xf0] sm:$0xff] %v877
          %952 = vst [vmem:[#allocation3 + $0xf8] sm:$0xff] %v879
          %953 = vst [vmem:[#allocation3 + $0x100] sm:$0xff] %v770
          %954 = vst [vmem:[#allocation3 + $0x108] sm:$0xff] %v772
          %955 = vst [vmem:[#allocation3 + $0x110] sm:$0xff] %v883
          %956 = vst [vmem:[#allocation3 + $0x118] sm:$0xff] %v885
          %957 = vst [vmem:[#allocation3 + $0x120] sm:$0xff] %v774
          %958 = vst [vmem:[#allocation3 + $0x128] sm:$0xff] %v776
          %959 = vst [vmem:[#allocation3 + $0x130] sm:$0xff] %v887
          %960 = vst [vmem:[#allocation3 + $0x138] sm:$0xff] %v889
          %961 = vst [vmem:[#allocation3 + $0x140] sm:$0xff] %v780
          %962 = vst [vmem:[#allocation3 + $0x148] sm:$0xff] %v782
          %963 = vst [vmem:[#allocation3 + $0x150] sm:$0xff] %v893
          %964 = vst [vmem:[#allocation3 + $0x158] sm:$0xff] %v895
          %965 = vst [vmem:[#allocation3 + $0x160] sm:$0xff] %v784
          %966 = vst [vmem:[#allocation3 + $0x168] sm:$0xff] %v786
          %967 = vst [vmem:[#allocation3 + $0x170] sm:$0xff] %v897
          %968 = vst [vmem:[#allocation3 + $0x178] sm:$0xff] %v899
          %969 = vst [vmem:[#allocation3 + $0x180] sm:$0xff] %v790
          %970 = vst [vmem:[#allocation3 + $0x188] sm:$0xff] %v792
          %971 = vst [vmem:[#allocation3 + $0x190] sm:$0xff] %v903
          %972 = vst [vmem:[#allocation3 + $0x198] sm:$0xff] %v905
          %973 = vst [vmem:[#allocation3 + $0x1a0] sm:$0xff] %v794
          %974 = vst [vmem:[#allocation3 + $0x1a8] sm:$0xff] %v796
          %975 = vst [vmem:[#allocation3 + $0x1b0] sm:$0xff] %v907
          %976 = vst [vmem:[#allocation3 + $0x1b8] sm:$0xff] %v909
          %977 = vst [vmem:[#allocation3 + $0x1c0] sm:$0xff] %v800
          %978 = vst [vmem:[#allocation3 + $0x1c8] sm:$0xff] %v802
          %979 = vst [vmem:[#allocation3 + $0x1d0] sm:$0xff] %v913
          %980 = vst [vmem:[#allocation3 + $0x1d8] sm:$0xff] %v915
          %981 = vst [vmem:[#allocation3 + $0x1e0] sm:$0xff] %v804
          %982 = vst [vmem:[#allocation3 + $0x1e8] sm:$0xff] %v806
          %983 = vst [vmem:[#allocation3 + $0x1f0] sm:$0xff] %v917
          %984 = vst [vmem:[#allocation3 + $0x1f8] sm:$0xff] %v919
        $region84: #{tpu_custom_call.1} parent=55 // pred_fallthru
          _
        %p985 = scmp.ne.s32.totalorder %s27, 0
        // Predicated region
        $region85: #{tpu_custom_call.1} parent=55 // pred_check
          %p986 = pneg %p985
        $region86: #{tpu_custom_call.1} parent=55 // pred_check_branch
          %988 = sbr.rel (%p986) target = $region88
        $region87: #{tpu_custom_call.1} parent=55 // pred_region
          %v989 = vld [vmem:[#allocation2] sm:$0xff]
          %v990 = vld [vmem:[#allocation2 + $0x8] sm:$0xff]
          %v991 = vld [vmem:[#allocation2 + $0x10] sm:$0xff]
          %v992 = vld [vmem:[#allocation2 + $0x18] sm:$0xff]
          %v993 = vld [vmem:[#allocation2 + $0x20] sm:$0xff]
          %v994 = vld [vmem:[#allocation2 + $0x28] sm:$0xff]
          %v995 = vld [vmem:[#allocation2 + $0x30] sm:$0xff]
          %v996 = vld [vmem:[#allocation2 + $0x38] sm:$0xff]
          %v997 = vld [vmem:[#allocation2 + $0x40] sm:$0xff]
          %v998 = vld [vmem:[#allocation2 + $0x48] sm:$0xff]
          %v999 = vld [vmem:[#allocation2 + $0x50] sm:$0xff]
          %v1000 = vld [vmem:[#allocation2 + $0x58] sm:$0xff]
          %v1001 = vld [vmem:[#allocation2 + $0x60] sm:$0xff]
          %v1002 = vld [vmem:[#allocation2 + $0x68] sm:$0xff]
          %v1003 = vld [vmem:[#allocation2 + $0x70] sm:$0xff]
          %v1004 = vld [vmem:[#allocation2 + $0x78] sm:$0xff]
          %v1005 = vpack.c.bf16 %v990, %v989
          %v1006 = vpack.c.bf16 %v992, %v991
          %v1007 = vpack.c.bf16 %v994, %v993
          %v1008 = vpack.c.bf16 %v996, %v995
          %v1009 = vpack.c.bf16 %v998, %v997
          %v1010 = vpack.c.bf16 %v1000, %v999
          %v1011 = vpack.c.bf16 %v1002, %v1001
          %v1012 = vpack.c.bf16 %v1004, %v1003
          %v1013 = vld [vmem:[%s388] sm:$0xff]
          %v1014 = vld [vmem:[%s388 + $0x8] sm:$0xff]
          %v1015 = vld [vmem:[%s388 + $0x10] sm:$0xff]
          %v1016 = vld [vmem:[%s388 + $0x18] sm:$0xff]
          %v1017 = vld [vmem:[%s388 + $0x20] sm:$0xff]
          %v1018 = vld [vmem:[%s388 + $0x28] sm:$0xff]
          %v1019 = vld [vmem:[%s388 + $0x30] sm:$0xff]
          %v1020 = vld [vmem:[%s388 + $0x38] sm:$0xff]
          %v1021 = vld [vmem:[%s388 + $0x40] sm:$0xff]
          %v1022 = vld [vmem:[%s388 + $0x48] sm:$0xff]
          %v1023 = vld [vmem:[%s388 + $0x50] sm:$0xff]
          %v1024 = vld [vmem:[%s388 + $0x58] sm:$0xff]
          %v1025 = vld [vmem:[%s388 + $0x60] sm:$0xff]
          %v1026 = vld [vmem:[%s388 + $0x68] sm:$0xff]
          %v1027 = vld [vmem:[%s388 + $0x70] sm:$0xff]
          %v1028 = vld [vmem:[%s388 + $0x78] sm:$0xff]
          %v1029 = vld [vmem:[%s388 + $0x80] sm:$0xff]
          %v1030 = vld [vmem:[%s388 + $0x88] sm:$0xff]
          %v1031 = vld [vmem:[%s388 + $0x90] sm:$0xff]
          %v1032 = vld [vmem:[%s388 + $0x98] sm:$0xff]
          %v1033 = vld [vmem:[%s388 + $0xa0] sm:$0xff]
          %v1034 = vld [vmem:[%s388 + $0xa8] sm:$0xff]
          %v1035 = vld [vmem:[%s388 + $0xb0] sm:$0xff]
          %v1036 = vld [vmem:[%s388 + $0xb8] sm:$0xff]
          %v1037 = vld [vmem:[%s388 + $0xc0] sm:$0xff]
          %v1038 = vld [vmem:[%s388 + $0xc8] sm:$0xff]
          %v1039 = vld [vmem:[%s388 + $0xd0] sm:$0xff]
          %v1040 = vld [vmem:[%s388 + $0xd8] sm:$0xff]
          %v1041 = vld [vmem:[%s388 + $0xe0] sm:$0xff]
          %v1042 = vld [vmem:[%s388 + $0xe8] sm:$0xff]
          %v1043 = vld [vmem:[%s388 + $0xf0] sm:$0xff]
          %v1044 = vld [vmem:[%s388 + $0xf8] sm:$0xff]
          %v1046 = vlaneseq
          %v1047 = vshrl.u32 %v1046, 7
          %v1048 = vsub.s32 0, %v1047
          %v1049 = vrot.slane %v453, %v1048
          %v1050 = vlaneseq
          %v1051 = vshrl.u32 %v1050, 7
          %v1052 = vsub.s32 1, %v1051
          %v1053 = vrot.slane %v453, %v1052
          %v1054 = vlaneseq
          %v1055 = vshrl.u32 %v1054, 7
          %v1056 = vsub.s32 2, %v1055
          %v1057 = vrot.slane %v453, %v1056
          %v1058 = vlaneseq
          %v1059 = vshrl.u32 %v1058, 7
          %v1060 = vsub.s32 3, %v1059
          %v1061 = vrot.slane %v453, %v1060
          %v1098 = vunpack.c.l.b16 %v1013
          %v1099 = vunpack.c.h.b16 %v1013
          %v1100 = vunpack.c.l.b16 %v1014
          %v1101 = vunpack.c.h.b16 %v1014
          %v1102 = vunpack.c.l.b16 %v1015
          %v1103 = vunpack.c.h.b16 %v1015
          %v1104 = vunpack.c.l.b16 %v1016
          %v1105 = vunpack.c.h.b16 %v1016
          %v1106 = vunpack.c.l.b16 %v1017
          %v1107 = vunpack.c.h.b16 %v1017
          %v1108 = vunpack.c.l.b16 %v1018
          %v1109 = vunpack.c.h.b16 %v1018
          %v1110 = vunpack.c.l.b16 %v1019
          %v1111 = vunpack.c.h.b16 %v1019
          %v1112 = vunpack.c.l.b16 %v1020
          %v1113 = vunpack.c.h.b16 %v1020
          %v1114 = vunpack.c.l.b16 %v1021
          %v1115 = vunpack.c.h.b16 %v1021
          %v1116 = vunpack.c.l.b16 %v1022
          %v1117 = vunpack.c.h.b16 %v1022
          %v1118 = vunpack.c.l.b16 %v1023
          %v1119 = vunpack.c.h.b16 %v1023
          %v1120 = vunpack.c.l.b16 %v1024
          %v1121 = vunpack.c.h.b16 %v1024
          %v1122 = vunpack.c.l.b16 %v1025
          %v1123 = vunpack.c.h.b16 %v1025
          %v1124 = vunpack.c.l.b16 %v1026
          %v1125 = vunpack.c.h.b16 %v1026
          %v1126 = vunpack.c.l.b16 %v1027
          %v1127 = vunpack.c.h.b16 %v1027
          %v1128 = vunpack.c.l.b16 %v1028
          %v1129 = vunpack.c.h.b16 %v1028
          %v1130 = vunpack.c.l.b16 %v1029
          %v1131 = vunpack.c.h.b16 %v1029
          %v1132 = vunpack.c.l.b16 %v1030
          %v1133 = vunpack.c.h.b16 %v1030
          %v1134 = vunpack.c.l.b16 %v1031
          %v1135 = vunpack.c.h.b16 %v1031
          %v1136 = vunpack.c.l.b16 %v1032
          %v1137 = vunpack.c.h.b16 %v1032
          %v1138 = vunpack.c.l.b16 %v1033
          %v1139 = vunpack.c.h.b16 %v1033
          %v1140 = vunpack.c.l.b16 %v1034
          %v1141 = vunpack.c.h.b16 %v1034
          %v1142 = vunpack.c.l.b16 %v1035
          %v1143 = vunpack.c.h.b16 %v1035
          %v1144 = vunpack.c.l.b16 %v1036
          %v1145 = vunpack.c.h.b16 %v1036
          %v1146 = vunpack.c.l.b16 %v1037
          %v1147 = vunpack.c.h.b16 %v1037
          %v1148 = vunpack.c.l.b16 %v1038
          %v1149 = vunpack.c.h.b16 %v1038
          %v1150 = vunpack.c.l.b16 %v1039
          %v1151 = vunpack.c.h.b16 %v1039
          %v1152 = vunpack.c.l.b16 %v1040
          %v1153 = vunpack.c.h.b16 %v1040
          %v1154 = vunpack.c.l.b16 %v1041
          %v1155 = vunpack.c.h.b16 %v1041
          %v1156 = vunpack.c.l.b16 %v1042
          %v1157 = vunpack.c.h.b16 %v1042
          %v1158 = vunpack.c.l.b16 %v1043
          %v1159 = vunpack.c.h.b16 %v1043
          %v1160 = vunpack.c.l.b16 %v1044
          %v1161 = vunpack.c.h.b16 %v1044
          %v1162 = vpack.c.b16 %v1102, %v1098
          %v1163 = vpack.c.b16 %v1103, %v1099
          %v1164 = vpack.c.b16 %v1104, %v1100
          %v1165 = vpack.c.b16 %v1105, %v1101
          %v1166 = vpack.c.b16 %v1110, %v1106
          %v1167 = vpack.c.b16 %v1111, %v1107
          %v1168 = vpack.c.b16 %v1112, %v1108
          %v1169 = vpack.c.b16 %v1113, %v1109
          %v1170 = vpack.c.b16 %v1118, %v1114
          %v1171 = vpack.c.b16 %v1119, %v1115
          %v1172 = vpack.c.b16 %v1120, %v1116
          %v1173 = vpack.c.b16 %v1121, %v1117
          %v1174 = vpack.c.b16 %v1126, %v1122
          %v1175 = vpack.c.b16 %v1127, %v1123
          %v1176 = vpack.c.b16 %v1128, %v1124
          %v1177 = vpack.c.b16 %v1129, %v1125
          %v1178 = vpack.c.b16 %v1134, %v1130
          %v1179 = vpack.c.b16 %v1135, %v1131
          %v1180 = vpack.c.b16 %v1136, %v1132
          %v1181 = vpack.c.b16 %v1137, %v1133
          %v1182 = vpack.c.b16 %v1142, %v1138
          %v1183 = vpack.c.b16 %v1143, %v1139
          %v1184 = vpack.c.b16 %v1144, %v1140
          %v1185 = vpack.c.b16 %v1145, %v1141
          %v1186 = vpack.c.b16 %v1150, %v1146
          %v1187 = vpack.c.b16 %v1151, %v1147
          %v1188 = vpack.c.b16 %v1152, %v1148
          %v1189 = vpack.c.b16 %v1153, %v1149
          %v1190 = vpack.c.b16 %v1158, %v1154
          %v1191 = vpack.c.b16 %v1159, %v1155
          %v1192 = vpack.c.b16 %v1160, %v1156
          %v1193 = vpack.c.b16 %v1161, %v1157
          %1226 = vmatprep.subr.bf16.mxu0 %v1163
          %1227 = vmatpush1.bf16.msra.mxu0 %v1162
          %1228 = vmatprep.subr.bf16.mxu0 %v1167
          %1229 = vmatpush1.bf16.msra.mxu0 %v1166
          %1230 = vmatprep.subr.bf16.mxu0 %v1171
          %1231 = vmatpush1.bf16.msra.mxu0 %v1170
          %1232 = vmatprep.subr.bf16.mxu0 %v1175
          %1233 = vmatpush1.bf16.msra.mxu0 %v1174
          %1234 = vmatprep.subr.bf16.mxu0 %v1179
          %1235 = vmatpush1.bf16.msra.mxu0 %v1178
          %1236 = vmatprep.subr.bf16.mxu0 %v1183
          %1237 = vmatpush1.bf16.msra.mxu0 %v1182
          %1238 = vmatprep.subr.bf16.mxu0 %v1187
          %1239 = vmatpush1.bf16.msra.mxu0 %v1186
          %1240 = vmatprep.subr.bf16.mxu0 %v1191
          %1241 = vmatpush1.bf16.msra.mxu0 %v1190
          %1242 = vmatprep.subr.bf16.mxu0 0
          %1243 = vmatpush1.bf16.msra.mxu0 0
          %1244 = vmatprep.subr.bf16.mxu0 0
          %1245 = vmatpush1.bf16.msra.mxu0 0
          %1246 = vmatprep.subr.bf16.mxu0 0
          %1247 = vmatpush1.bf16.msra.mxu0 0
          %1248 = vmatprep.subr.bf16.mxu0 0
          %1249 = vmatpush1.bf16.msra.mxu0 0
          %1250 = vmatprep.subr.bf16.mxu0 0
          %1251 = vmatpush1.bf16.msra.mxu0 0
          %1252 = vmatprep.subr.bf16.mxu0 0
          %1253 = vmatpush1.bf16.msra.mxu0 0
          %1254 = vmatprep.subr.bf16.mxu0 0
          %1255 = vmatpush1.bf16.msra.mxu0 0
          %1256 = vmatprep.subr.bf16.mxu0 0
          %1257 = vmatpush1.bf16.msra.mxu0 0
          %1258 = vmatprep.mubr.bf16.mxu0 0
          %1259 = vmatmul.mubr.bf16.gmra.mrb[0].mxu0 %v1005
          %v1260 = vpop.f32.mrb[0].mxu0
          %v1261 = vadd.f32 %v1049, %v1260
          %v1262 = vpop.f32.mrb[0].mxu0
          %v1263 = vadd.f32 %v1053, %v1262
          %v1264 = vpop.f32.mrb[0].mxu0
          %v1265 = vadd.f32 %v1049, %v1264
          %v1266 = vpop.f32.mrb[0].mxu0
          %v1267 = vadd.f32 %v1053, %v1266
          %1268 = vmatprep.mubr.bf16.mxu0 0
          %1269 = vmatmul.mubr.bf16.gmra.mrb[0].mxu0 %v1006
          %v1270 = vpop.f32.mrb[0].mxu0
          %v1271 = vadd.f32 %v1049, %v1270
          %v1272 = vpop.f32.mrb[0].mxu0
          %v1273 = vadd.f32 %v1053, %v1272
          %v1274 = vpop.f32.mrb[0].mxu0
          %v1275 = vadd.f32 %v1049, %v1274
          %v1276 = vpop.f32.mrb[0].mxu0
          %v1277 = vadd.f32 %v1053, %v1276
          %1278 = vmatprep.mubr.bf16.mxu0 0
          %1279 = vmatmul.mubr.bf16.gmra.mrb[0].mxu0 %v1007
          %v1280 = vpop.f32.mrb[0].mxu0
          %v1281 = vadd.f32 %v1049, %v1280
          %v1282 = vpop.f32.mrb[0].mxu0
          %v1283 = vadd.f32 %v1053, %v1282
          %v1284 = vpop.f32.mrb[0].mxu0
          %v1285 = vadd.f32 %v1049, %v1284
          %v1286 = vpop.f32.mrb[0].mxu0
          %v1287 = vadd.f32 %v1053, %v1286
          %1288 = vmatprep.mubr.bf16.mxu0 0
          %1289 = vmatmul.mubr.bf16.gmra.mrb[0].mxu0 %v1008
          %v1290 = vpop.f32.mrb[0].mxu0
          %v1291 = vadd.f32 %v1049, %v1290
          %v1292 = vpop.f32.mrb[0].mxu0
          %v1293 = vadd.f32 %v1053, %v1292
          %v1294 = vpop.f32.mrb[0].mxu0
          %v1295 = vadd.f32 %v1049, %v1294
          %v1296 = vpop.f32.mrb[0].mxu0
          %v1297 = vadd.f32 %v1053, %v1296
          %1298 = vmatprep.mubr.bf16.mxu0 0
          %1299 = vmatmul.mubr.bf16.gmra.mrb[0].mxu0 %v1009
          %v1300 = vpop.f32.mrb[0].mxu0
          %v1301 = vadd.f32 %v1049, %v1300
          %v1302 = vpop.f32.mrb[0].mxu0
          %v1303 = vadd.f32 %v1053, %v1302
          %v1304 = vpop.f32.mrb[0].mxu0
          %v1305 = vadd.f32 %v1049, %v1304
          %v1306 = vpop.f32.mrb[0].mxu0
          %v1307 = vadd.f32 %v1053, %v1306
          %1308 = vmatprep.mubr.bf16.mxu0 0
          %1309 = vmatmul.mubr.bf16.gmra.mrb[0].mxu0 %v1010
          %v1310 = vpop.f32.mrb[0].mxu0
          %v1311 = vadd.f32 %v1049, %v1310
          %v1312 = vpop.f32.mrb[0].mxu0
          %v1313 = vadd.f32 %v1053, %v1312
          %v1314 = vpop.f32.mrb[0].mxu0
          %v1315 = vadd.f32 %v1049, %v1314
          %v1316 = vpop.f32.mrb[0].mxu0
          %v1317 = vadd.f32 %v1053, %v1316
          %1318 = vmatprep.mubr.bf16.mxu0 0
          %1319 = vmatmul.mubr.bf16.gmra.mrb[0].mxu0 %v1011
          %v1320 = vpop.f32.mrb[0].mxu0
          %v1321 = vadd.f32 %v1049, %v1320
          %v1322 = vpop.f32.mrb[0].mxu0
          %v1323 = vadd.f32 %v1053, %v1322
          %v1324 = vpop.f32.mrb[0].mxu0
          %v1325 = vadd.f32 %v1049, %v1324
          %v1326 = vpop.f32.mrb[0].mxu0
          %v1327 = vadd.f32 %v1053, %v1326
          %1328 = vmatprep.mubr.bf16.mxu0 0
          %1329 = vmatmul.mubr.bf16.gmra.mrb[0].mxu0 %v1012
          %v1330 = vpop.f32.mrb[0].mxu0
          %v1331 = vadd.f32 %v1049, %v1330
          %v1332 = vpop.f32.mrb[0].mxu0
          %v1333 = vadd.f32 %v1053, %v1332
          %v1334 = vpop.f32.mrb[0].mxu0
          %v1335 = vadd.f32 %v1049, %v1334
          %v1336 = vpop.f32.mrb[0].mxu0
          %v1337 = vadd.f32 %v1053, %v1336
          %1338 = vdwg.mxu0
          %1339 = vmatprep.subr.bf16.mxu0 %v1165
          %1340 = vmatpush1.bf16.msra.mxu0 %v1164
          %1341 = vmatprep.subr.bf16.mxu0 %v1169
          %1342 = vmatpush1.bf16.msra.mxu0 %v1168
          %1343 = vmatprep.subr.bf16.mxu0 %v1173
          %1344 = vmatpush1.bf16.msra.mxu0 %v1172
          %1345 = vmatprep.subr.bf16.mxu0 %v1177
          %1346 = vmatpush1.bf16.msra.mxu0 %v1176
          %1347 = vmatprep.subr.bf16.mxu0 %v1181
          %1348 = vmatpush1.bf16.msra.mxu0 %v1180
          %1349 = vmatprep.subr.bf16.mxu0 %v1185
          %1350 = vmatpush1.bf16.msra.mxu0 %v1184
          %1351 = vmatprep.subr.bf16.mxu0 %v1189
          %1352 = vmatpush1.bf16.msra.mxu0 %v1188
          %1353 = vmatprep.subr.bf16.mxu0 %v1193
          %1354 = vmatpush1.bf16.msra.mxu0 %v1192
          %1355 = vmatprep.subr.bf16.mxu0 0
          %1356 = vmatpush1.bf16.msra.mxu0 0
          %1357 = vmatprep.subr.bf16.mxu0 0
          %1358 = vmatpush1.bf16.msra.mxu0 0
          %1359 = vmatprep.subr.bf16.mxu0 0
          %1360 = vmatpush1.bf16.msra.mxu0 0
          %1361 = vmatprep.subr.bf16.mxu0 0
          %1362 = vmatpush1.bf16.msra.mxu0 0
          %1363 = vmatprep.subr.bf16.mxu0 0
          %1364 = vmatpush1.bf16.msra.mxu0 0
          %1365 = vmatprep.subr.bf16.mxu0 0
          %1366 = vmatpush1.bf16.msra.mxu0 0
          %1367 = vmatprep.subr.bf16.mxu0 0
          %1368 = vmatpush1.bf16.msra.mxu0 0
          %1369 = vmatprep.subr.bf16.mxu0 0
          %1370 = vmatpush1.bf16.msra.mxu0 0
          %1371 = vmatprep.mubr.bf16.mxu0 0
          %1372 = vmatmul.mubr.bf16.gmra.mrb[0].mxu0 %v1005
          %v1373 = vpop.f32.mrb[0].mxu0
          %v1374 = vadd.f32 %v1057, %v1373
          %v1375 = vpop.f32.mrb[0].mxu0
          %v1376 = vadd.f32 %v1061, %v1375
          %v1377 = vpop.f32.mrb[0].mxu0
          %v1378 = vadd.f32 %v1057, %v1377
          %v1379 = vpop.f32.mrb[0].mxu0
          %v1380 = vadd.f32 %v1061, %v1379
          %1381 = vmatprep.mubr.bf16.mxu0 0
          %1382 = vmatmul.mubr.bf16.gmra.mrb[0].mxu0 %v1006
          %v1383 = vpop.f32.mrb[0].mxu0
          %v1384 = vadd.f32 %v1057, %v1383
          %v1385 = vpop.f32.mrb[0].mxu0
          %v1386 = vadd.f32 %v1061, %v1385
          %v1387 = vpop.f32.mrb[0].mxu0
          %v1388 = vadd.f32 %v1057, %v1387
          %v1389 = vpop.f32.mrb[0].mxu0
          %v1390 = vadd.f32 %v1061, %v1389
          %1391 = vmatprep.mubr.bf16.mxu0 0
          %1392 = vmatmul.mubr.bf16.gmra.mrb[0].mxu0 %v1007
          %v1393 = vpop.f32.mrb[0].mxu0
          %v1394 = vadd.f32 %v1057, %v1393
          %v1395 = vpop.f32.mrb[0].mxu0
          %v1396 = vadd.f32 %v1061, %v1395
          %v1397 = vpop.f32.mrb[0].mxu0
          %v1398 = vadd.f32 %v1057, %v1397
          %v1399 = vpop.f32.mrb[0].mxu0
          %v1400 = vadd.f32 %v1061, %v1399
          %1401 = vmatprep.mubr.bf16.mxu0 0
          %1402 = vmatmul.mubr.bf16.gmra.mrb[0].mxu0 %v1008
          %v1403 = vpop.f32.mrb[0].mxu0
          %v1404 = vadd.f32 %v1057, %v1403
          %v1405 = vpop.f32.mrb[0].mxu0
          %v1406 = vadd.f32 %v1061, %v1405
          %v1407 = vpop.f32.mrb[0].mxu0
          %v1408 = vadd.f32 %v1057, %v1407
          %v1409 = vpop.f32.mrb[0].mxu0
          %v1410 = vadd.f32 %v1061, %v1409
          %1411 = vmatprep.mubr.bf16.mxu0 0
          %1412 = vmatmul.mubr.bf16.gmra.mrb[0].mxu0 %v1009
          %v1413 = vpop.f32.mrb[0].mxu0
          %v1414 = vadd.f32 %v1057, %v1413
          %v1415 = vpop.f32.mrb[0].mxu0
          %v1416 = vadd.f32 %v1061, %v1415
          %v1417 = vpop.f32.mrb[0].mxu0
          %v1418 = vadd.f32 %v1057, %v1417
          %v1419 = vpop.f32.mrb[0].mxu0
          %v1420 = vadd.f32 %v1061, %v1419
          %1421 = vmatprep.mubr.bf16.mxu0 0
          %1422 = vmatmul.mubr.bf16.gmra.mrb[0].mxu0 %v1010
          %v1423 = vpop.f32.mrb[0].mxu0
          %v1424 = vadd.f32 %v1057, %v1423
          %v1425 = vpop.f32.mrb[0].mxu0
          %v1426 = vadd.f32 %v1061, %v1425
          %v1427 = vpop.f32.mrb[0].mxu0
          %v1428 = vadd.f32 %v1057, %v1427
          %v1429 = vpop.f32.mrb[0].mxu0
          %v1430 = vadd.f32 %v1061, %v1429
          %1431 = vmatprep.mubr.bf16.mxu0 0
          %1432 = vmatmul.mubr.bf16.gmra.mrb[0].mxu0 %v1011
          %v1433 = vpop.f32.mrb[0].mxu0
          %v1434 = vadd.f32 %v1057, %v1433
          %v1435 = vpop.f32.mrb[0].mxu0
          %v1436 = vadd.f32 %v1061, %v1435
          %v1437 = vpop.f32.mrb[0].mxu0
          %v1438 = vadd.f32 %v1057, %v1437
          %v1439 = vpop.f32.mrb[0].mxu0
          %v1440 = vadd.f32 %v1061, %v1439
          %1441 = vmatprep.mubr.bf16.mxu0 0
          %1442 = vmatmul.mubr.bf16.gmra.mrb[0].mxu0 %v1012
          %v1443 = vpop.f32.mrb[0].mxu0
          %v1444 = vadd.f32 %v1057, %v1443
          %v1445 = vpop.f32.mrb[0].mxu0
          %v1446 = vadd.f32 %v1061, %v1445
          %v1447 = vpop.f32.mrb[0].mxu0
          %v1448 = vadd.f32 %v1057, %v1447
          %v1449 = vpop.f32.mrb[0].mxu0
          %v1450 = vadd.f32 %v1061, %v1449
          %1451 = vdwg.mxu0
          %1452 = vst [vmem:[#allocation3] sm:$0xff] %v1261
          %1453 = vst [vmem:[#allocation3 + $0x8] sm:$0xff] %v1263
          %1454 = vst [vmem:[#allocation3 + $0x10] sm:$0xff] %v1374
          %1455 = vst [vmem:[#allocation3 + $0x18] sm:$0xff] %v1376
          %1456 = vst [vmem:[#allocation3 + $0x20] sm:$0xff] %v1265
          %1457 = vst [vmem:[#allocation3 + $0x28] sm:$0xff] %v1267
          %1458 = vst [vmem:[#allocation3 + $0x30] sm:$0xff] %v1378
          %1459 = vst [vmem:[#allocation3 + $0x38] sm:$0xff] %v1380
          %1460 = vst [vmem:[#allocation3 + $0x40] sm:$0xff] %v1271
          %1461 = vst [vmem:[#allocation3 + $0x48] sm:$0xff] %v1273
          %1462 = vst [vmem:[#allocation3 + $0x50] sm:$0xff] %v1384
          %1463 = vst [vmem:[#allocation3 + $0x58] sm:$0xff] %v1386
          %1464 = vst [vmem:[#allocation3 + $0x60] sm:$0xff] %v1275
          %1465 = vst [vmem:[#allocation3 + $0x68] sm:$0xff] %v1277
          %1466 = vst [vmem:[#allocation3 + $0x70] sm:$0xff] %v1388
          %1467 = vst [vmem:[#allocation3 + $0x78] sm:$0xff] %v1390
          %1468 = vst [vmem:[#allocation3 + $0x80] sm:$0xff] %v1281
          %1469 = vst [vmem:[#allocation3 + $0x88] sm:$0xff] %v1283
          %1470 = vst [vmem:[#allocation3 + $0x90] sm:$0xff] %v1394
          %1471 = vst [vmem:[#allocation3 + $0x98] sm:$0xff] %v1396
          %1472 = vst [vmem:[#allocation3 + $0xa0] sm:$0xff] %v1285
          %1473 = vst [vmem:[#allocation3 + $0xa8] sm:$0xff] %v1287
          %1474 = vst [vmem:[#allocation3 + $0xb0] sm:$0xff] %v1398
          %1475 = vst [vmem:[#allocation3 + $0xb8] sm:$0xff] %v1400
          %1476 = vst [vmem:[#allocation3 + $0xc0] sm:$0xff] %v1291
          %1477 = vst [vmem:[#allocation3 + $0xc8] sm:$0xff] %v1293
          %1478 = vst [vmem:[#allocation3 + $0xd0] sm:$0xff] %v1404
          %1479 = vst [vmem:[#allocation3 + $0xd8] sm:$0xff] %v1406
          %1480 = vst [vmem:[#allocation3 + $0xe0] sm:$0xff] %v1295
          %1481 = vst [vmem:[#allocation3 + $0xe8] sm:$0xff] %v1297
          %1482 = vst [vmem:[#allocation3 + $0xf0] sm:$0xff] %v1408
          %1483 = vst [vmem:[#allocation3 + $0xf8] sm:$0xff] %v1410
          %1484 = vst [vmem:[#allocation3 + $0x100] sm:$0xff] %v1301
          %1485 = vst [vmem:[#allocation3 + $0x108] sm:$0xff] %v1303
          %1486 = vst [vmem:[#allocation3 + $0x110] sm:$0xff] %v1414
          %1487 = vst [vmem:[#allocation3 + $0x118] sm:$0xff] %v1416
          %1488 = vst [vmem:[#allocation3 + $0x120] sm:$0xff] %v1305
          %1489 = vst [vmem:[#allocation3 + $0x128] sm:$0xff] %v1307
          %1490 = vst [vmem:[#allocation3 + $0x130] sm:$0xff] %v1418
          %1491 = vst [vmem:[#allocation3 + $0x138] sm:$0xff] %v1420
          %1492 = vst [vmem:[#allocation3 + $0x140] sm:$0xff] %v1311
          %1493 = vst [vmem:[#allocation3 + $0x148] sm:$0xff] %v1313
          %1494 = vst [vmem:[#allocation3 + $0x150] sm:$0xff] %v1424
          %1495 = vst [vmem:[#allocation3 + $0x158] sm:$0xff] %v1426
          %1496 = vst [vmem:[#allocation3 + $0x160] sm:$0xff] %v1315
          %1497 = vst [vmem:[#allocation3 + $0x168] sm:$0xff] %v1317
          %1498 = vst [vmem:[#allocation3 + $0x170] sm:$0xff] %v1428
          %1499 = vst [vmem:[#allocation3 + $0x178] sm:$0xff] %v1430
          %1500 = vst [vmem:[#allocation3 + $0x180] sm:$0xff] %v1321
          %1501 = vst [vmem:[#allocation3 + $0x188] sm:$0xff] %v1323
          %1502 = vst [vmem:[#allocation3 + $0x190] sm:$0xff] %v1434
          %1503 = vst [vmem:[#allocation3 + $0x198] sm:$0xff] %v1436
          %1504 = vst [vmem:[#allocation3 + $0x1a0] sm:$0xff] %v1325
          %1505 = vst [vmem:[#allocation3 + $0x1a8] sm:$0xff] %v1327
          %1506 = vst [vmem:[#allocation3 + $0x1b0] sm:$0xff] %v1438
          %1507 = vst [vmem:[#allocation3 + $0x1b8] sm:$0xff] %v1440
          %1508 = vst [vmem:[#allocation3 + $0x1c0] sm:$0xff] %v1331
          %1509 = vst [vmem:[#allocation3 + $0x1c8] sm:$0xff] %v1333
          %1510 = vst [vmem:[#allocation3 + $0x1d0] sm:$0xff] %v1444
          %1511 = vst [vmem:[#allocation3 + $0x1d8] sm:$0xff] %v1446
          %1512 = vst [vmem:[#allocation3 + $0x1e0] sm:$0xff] %v1335
          %1513 = vst [vmem:[#allocation3 + $0x1e8] sm:$0xff] %v1337
          %1514 = vst [vmem:[#allocation3 + $0x1f0] sm:$0xff] %v1448
          %1515 = vst [vmem:[#allocation3 + $0x1f8] sm:$0xff] %v1450
        $region88: #{tpu_custom_call.1} parent=55 // pred_fallthru
          _
        %v1516 = vlaneseq
        %v1517 = vshrl.u32 %v1516, 7
        %v1518 = vadd.s32 %v1517, 8
        %vm1519 = vcmp.lt.s32.totalorder %v1517, 2
        %vm1520 = vcmp.lt.s32.totalorder %v1518, 2
        %vm1521 = vcmp.ge.s32.totalorder %v1517, 8
        %vm1522 = vcmp.ge.s32.totalorder %v1518, 8
        %vm1523 = vcmp.lt.s32.totalorder %v1517, 10
        %vm1524 = vcmp.lt.s32.totalorder %v1518, 10
        %vm1525 = vmand %vm1521, %vm1523
        %vm1526 = vmand %vm1522, %vm1524
        %v1527 = vsel %vm1525, 6, 0
        %v1528 = vsel %vm1526, 6, 0
        %v1529 = vsel %vm1519, 8, %v1527
        %v1530 = vsel %vm1520, 8, %v1528
        %v1531 = vld [vmem:[%s397] sm:$0xff]
        %v1532 = vld [vmem:[%s397 + $0x8] sm:$0xff]
        %v1533 = vld [vmem:[%s397 + $0x10] sm:$0xff]
        %v1534 = vld [vmem:[%s397 + $0x18] sm:$0xff]
        %v1535 = vld [vmem:[%s397 + $0x20] sm:$0xff]
        %v1536 = vld [vmem:[%s397 + $0x28] sm:$0xff]
        %v1537 = vld [vmem:[%s397 + $0x30] sm:$0xff]
        %v1538 = vld [vmem:[%s397 + $0x38] sm:$0xff]
        %v1539 = vld [vmem:[%s397 + $0x40] sm:$0xff]
        %v1540 = vld [vmem:[%s397 + $0x48] sm:$0xff]
        %v1541 = vld [vmem:[%s397 + $0x50] sm:$0xff]
        %v1542 = vld [vmem:[%s397 + $0x58] sm:$0xff]
        %v1543 = vld [vmem:[%s397 + $0x60] sm:$0xff]
        %v1544 = vld [vmem:[%s397 + $0x68] sm:$0xff]
        %v1545 = vld [vmem:[%s397 + $0x70] sm:$0xff]
        %v1546 = vld [vmem:[%s397 + $0x78] sm:$0xff]
        %v1547 = vld [vmem:[%s397 + $0x80] sm:$0xff]
        %v1548 = vld [vmem:[%s397 + $0x88] sm:$0xff]
        %v1549 = vld [vmem:[%s397 + $0x90] sm:$0xff]
        %v1550 = vld [vmem:[%s397 + $0x98] sm:$0xff]
        %v1551 = vld [vmem:[%s397 + $0xa0] sm:$0xff]
        %v1552 = vld [vmem:[%s397 + $0xa8] sm:$0xff]
        %v1553 = vld [vmem:[%s397 + $0xb0] sm:$0xff]
        %v1554 = vld [vmem:[%s397 + $0xb8] sm:$0xff]
        %v1555 = vld [vmem:[%s397 + $0xc0] sm:$0xff]
        %v1556 = vld [vmem:[%s397 + $0xc8] sm:$0xff]
        %v1557 = vld [vmem:[%s397 + $0xd0] sm:$0xff]
        %v1558 = vld [vmem:[%s397 + $0xd8] sm:$0xff]
        %v1559 = vld [vmem:[%s397 + $0xe0] sm:$0xff]
        %v1560 = vld [vmem:[%s397 + $0xe8] sm:$0xff]
        %v1561 = vld [vmem:[%s397 + $0xf0] sm:$0xff]
        %v1562 = vld [vmem:[%s397 + $0xf8] sm:$0xff]
        %v1563 = vld [vmem:[#allocation3] sm:$0xff]
        %v1564 = vld [vmem:[#allocation3 + $0x8] sm:$0xff]
        %v1565 = vld [vmem:[#allocation3 + $0x10] sm:$0xff]
        %v1566 = vld [vmem:[#allocation3 + $0x18] sm:$0xff]
        %v1567 = vld [vmem:[#allocation3 + $0x20] sm:$0xff]
        %v1568 = vld [vmem:[#allocation3 + $0x28] sm:$0xff]
        %v1569 = vld [vmem:[#allocation3 + $0x30] sm:$0xff]
        %v1570 = vld [vmem:[#allocation3 + $0x38] sm:$0xff]
        %v1603 = vunpack.c.l.b16 %v1531
        %v1604 = vunpack.c.h.b16 %v1531
        %v1605 = vunpack.c.l.b16 %v1532
        %v1606 = vunpack.c.h.b16 %v1532
        %v1607 = vunpack.c.l.b16 %v1533
        %v1608 = vunpack.c.h.b16 %v1533
        %v1609 = vunpack.c.l.b16 %v1534
        %v1610 = vunpack.c.h.b16 %v1534
        %v1611 = vunpack.c.l.b16 %v1535
        %v1612 = vunpack.c.h.b16 %v1535
        %v1613 = vunpack.c.l.b16 %v1536
        %v1614 = vunpack.c.h.b16 %v1536
        %v1615 = vunpack.c.l.b16 %v1537
        %v1616 = vunpack.c.h.b16 %v1537
        %v1617 = vunpack.c.l.b16 %v1538
        %v1618 = vunpack.c.h.b16 %v1538
        %v1619 = vunpack.c.l.b16 %v1539
        %v1620 = vunpack.c.h.b16 %v1539
        %v1621 = vunpack.c.l.b16 %v1540
        %v1622 = vunpack.c.h.b16 %v1540
        %v1623 = vunpack.c.l.b16 %v1541
        %v1624 = vunpack.c.h.b16 %v1541
        %v1625 = vunpack.c.l.b16 %v1542
        %v1626 = vunpack.c.h.b16 %v1542
        %v1627 = vunpack.c.l.b16 %v1543
        %v1628 = vunpack.c.h.b16 %v1543
        %v1629 = vunpack.c.l.b16 %v1544
        %v1630 = vunpack.c.h.b16 %v1544
        %v1631 = vunpack.c.l.b16 %v1545
        %v1632 = vunpack.c.h.b16 %v1545
        %v1633 = vunpack.c.l.b16 %v1546
        %v1634 = vunpack.c.h.b16 %v1546
        %v1635 = vunpack.c.l.b16 %v1547
        %v1636 = vunpack.c.h.b16 %v1547
        %v1637 = vunpack.c.l.b16 %v1548
        %v1638 = vunpack.c.h.b16 %v1548
        %v1639 = vunpack.c.l.b16 %v1549
        %v1640 = vunpack.c.h.b16 %v1549
        %v1641 = vunpack.c.l.b16 %v1550
        %v1642 = vunpack.c.h.b16 %v1550
        %v1643 = vunpack.c.l.b16 %v1551
        %v1644 = vunpack.c.h.b16 %v1551
        %v1645 = vunpack.c.l.b16 %v1552
        %v1646 = vunpack.c.h.b16 %v1552
        %v1647 = vunpack.c.l.b16 %v1553
        %v1648 = vunpack.c.h.b16 %v1553
        %v1649 = vunpack.c.l.b16 %v1554
        %v1650 = vunpack.c.h.b16 %v1554
        %v1651 = vunpack.c.l.b16 %v1555
        %v1652 = vunpack.c.h.b16 %v1555
        %v1653 = vunpack.c.l.b16 %v1556
        %v1654 = vunpack.c.h.b16 %v1556
        %v1655 = vunpack.c.l.b16 %v1557
        %v1656 = vunpack.c.h.b16 %v1557
        %v1657 = vunpack.c.l.b16 %v1558
        %v1658 = vunpack.c.h.b16 %v1558
        %v1659 = vunpack.c.l.b16 %v1559
        %v1660 = vunpack.c.h.b16 %v1559
        %v1661 = vunpack.c.l.b16 %v1560
        %v1662 = vunpack.c.h.b16 %v1560
        %v1663 = vunpack.c.l.b16 %v1561
        %v1664 = vunpack.c.h.b16 %v1561
        %v1665 = vunpack.c.l.b16 %v1562
        %v1666 = vunpack.c.h.b16 %v1562
        %v1667 = vpack.c.b16 %v1607, %v1603
        %v1668 = vpack.c.b16 %v1608, %v1604
        %v1669 = vpack.c.b16 %v1609, %v1605
        %v1670 = vpack.c.b16 %v1610, %v1606
        %v1671 = vpack.c.b16 %v1615, %v1611
        %v1672 = vpack.c.b16 %v1616, %v1612
        %v1673 = vpack.c.b16 %v1617, %v1613
        %v1674 = vpack.c.b16 %v1618, %v1614
        %v1675 = vpack.c.b16 %v1623, %v1619
        %v1676 = vpack.c.b16 %v1624, %v1620
        %v1677 = vpack.c.b16 %v1625, %v1621
        %v1678 = vpack.c.b16 %v1626, %v1622
        %v1679 = vpack.c.b16 %v1631, %v1627
        %v1680 = vpack.c.b16 %v1632, %v1628
        %v1681 = vpack.c.b16 %v1633, %v1629
        %v1682 = vpack.c.b16 %v1634, %v1630
        %v1683 = vpack.c.b16 %v1639, %v1635
        %v1684 = vpack.c.b16 %v1640, %v1636
        %v1685 = vpack.c.b16 %v1641, %v1637
        %v1686 = vpack.c.b16 %v1642, %v1638
        %v1687 = vpack.c.b16 %v1647, %v1643
        %v1688 = vpack.c.b16 %v1648, %v1644
        %v1689 = vpack.c.b16 %v1649, %v1645
        %v1690 = vpack.c.b16 %v1650, %v1646
        %v1691 = vpack.c.b16 %v1655, %v1651
        %v1692 = vpack.c.b16 %v1656, %v1652
        %v1693 = vpack.c.b16 %v1657, %v1653
        %v1694 = vpack.c.b16 %v1658, %v1654
        %v1695 = vpack.c.b16 %v1663, %v1659
        %v1696 = vpack.c.b16 %v1664, %v1660
        %v1697 = vpack.c.b16 %v1665, %v1661
        %v1698 = vpack.c.b16 %v1666, %v1662
        %1731 = vmatprep.subr.bf16.mxu0 %v1668
        %1732 = vmatpush1.bf16.msra.mxu0 %v1667
        %1733 = vmatprep.subr.bf16.mxu0 %v1672
        %1734 = vmatpush1.bf16.msra.mxu0 %v1671
        %1735 = vmatprep.subr.bf16.mxu0 %v1676
        %1736 = vmatpush1.bf16.msra.mxu0 %v1675
        %1737 = vmatprep.subr.bf16.mxu0 %v1680
        %1738 = vmatpush1.bf16.msra.mxu0 %v1679
        %1739 = vmatprep.subr.bf16.mxu0 %v1684
        %1740 = vmatpush1.bf16.msra.mxu0 %v1683
        %1741 = vmatprep.subr.bf16.mxu0 %v1688
        %1742 = vmatpush1.bf16.msra.mxu0 %v1687
        %1743 = vmatprep.subr.bf16.mxu0 %v1692
        %1744 = vmatpush1.bf16.msra.mxu0 %v1691
        %1745 = vmatprep.subr.bf16.mxu0 %v1696
        %1746 = vmatpush1.bf16.msra.mxu0 %v1695
        %1747 = vmatprep.subr.bf16.mxu0 0
        %1748 = vmatpush1.bf16.msra.mxu0 0
        %1749 = vmatprep.subr.bf16.mxu0 0
        %1750 = vmatpush1.bf16.msra.mxu0 0
        %1751 = vmatprep.subr.bf16.mxu0 0
        %1752 = vmatpush1.bf16.msra.mxu0 0
        %1753 = vmatprep.subr.bf16.mxu0 0
        %1754 = vmatpush1.bf16.msra.mxu0 0
        %1755 = vmatprep.subr.bf16.mxu0 0
        %1756 = vmatpush1.bf16.msra.mxu0 0
        %1757 = vmatprep.subr.bf16.mxu0 0
        %1758 = vmatpush1.bf16.msra.mxu0 0
        %1759 = vmatprep.subr.bf16.mxu0 0
        %1760 = vmatpush1.bf16.msra.mxu0 0
        %1761 = vmatprep.subr.bf16.mxu0 0
        %1762 = vmatpush1.bf16.msra.mxu0 0
        %1763 = vmatprep.mubr.bf16.mxu0 0
        %1764 = vmatmul.mubr.bf16.gmra.mrb[0].mxu0 0
        %v1765 = vpop.f32.mrb[0].mxu0
        %v1766 = vadd.f32 0.0, %v1765
        %v1767 = vpop.f32.mrb[0].mxu0
        %v1768 = vadd.f32 0.0, %v1767
        %v1769 = vpop.f32.mrb[0].mxu0
        %v1770 = vadd.f32 0.0, %v1769
        %v1771 = vpop.f32.mrb[0].mxu0
        %v1772 = vadd.f32 0.0, %v1771
        %1773 = vdwg.mxu0
        %1774 = vmatprep.subr.bf16.mxu0 %v1670
        %1775 = vmatpush1.bf16.msra.mxu0 %v1669
        %1776 = vmatprep.subr.bf16.mxu0 %v1674
        %1777 = vmatpush1.bf16.msra.mxu0 %v1673
        %1778 = vmatprep.subr.bf16.mxu0 %v1678
        %1779 = vmatpush1.bf16.msra.mxu0 %v1677
        %1780 = vmatprep.subr.bf16.mxu0 %v1682
        %1781 = vmatpush1.bf16.msra.mxu0 %v1681
        %1782 = vmatprep.subr.bf16.mxu0 %v1686
        %1783 = vmatpush1.bf16.msra.mxu0 %v1685
        %1784 = vmatprep.subr.bf16.mxu0 %v1690
        %1785 = vmatpush1.bf16.msra.mxu0 %v1689
        %1786 = vmatprep.subr.bf16.mxu0 %v1694
        %1787 = vmatpush1.bf16.msra.mxu0 %v1693
        %1788 = vmatprep.subr.bf16.mxu0 %v1698
        %1789 = vmatpush1.bf16.msra.mxu0 %v1697
        %1790 = vmatprep.subr.bf16.mxu0 0
        %1791 = vmatpush1.bf16.msra.mxu0 0
        %1792 = vmatprep.subr.bf16.mxu0 0
        %1793 = vmatpush1.bf16.msra.mxu0 0
        %1794 = vmatprep.subr.bf16.mxu0 0
        %1795 = vmatpush1.bf16.msra.mxu0 0
        %1796 = vmatprep.subr.bf16.mxu0 0
        %1797 = vmatpush1.bf16.msra.mxu0 0
        %1798 = vmatprep.subr.bf16.mxu0 0
        %1799 = vmatpush1.bf16.msra.mxu0 0
        %1800 = vmatprep.subr.bf16.mxu0 0
        %1801 = vmatpush1.bf16.msra.mxu0 0
        %1802 = vmatprep.subr.bf16.mxu0 0
        %1803 = vmatpush1.bf16.msra.mxu0 0
        %1804 = vmatprep.subr.bf16.mxu0 0
        %1805 = vmatpush1.bf16.msra.mxu0 0
        %1806 = vmatprep.mubr.bf16.mxu0 0
        %1807 = vmatmul.mubr.bf16.gmra.mrb[0].mxu0 0
        %v1808 = vpop.f32.mrb[0].mxu0
        %v1809 = vadd.f32 0.0, %v1808
        %v1810 = vpop.f32.mrb[0].mxu0
        %v1811 = vadd.f32 0.0, %v1810
        %v1812 = vpop.f32.mrb[0].mxu0
        %v1813 = vadd.f32 0.0, %v1812
        %v1814 = vpop.f32.mrb[0].mxu0
        %v1815 = vadd.f32 0.0, %v1814
        %1816 = vdwg.mxu0
        %v1817 = vadd.f32 %v1563, %v1766
        %v1818 = vadd.f32 %v1564, %v1768
        %v1819 = vadd.f32 %v1565, %v1809
        %v1820 = vadd.f32 %v1566, %v1811
        %v1821 = vadd.f32 %v1567, %v1770
        %v1822 = vadd.f32 %v1568, %v1772
        %v1823 = vadd.f32 %v1569, %v1813
        %v1824 = vadd.f32 %v1570, %v1815
        %v1825 = vxor.u32 %v1817, 2147483648
        %v1826 = vxor.u32 %v1821, 2147483648
        %v1827 = vmul.f32 %v1825, 1.442695
        %v1828 = vpow.pop %v1827
        %v1829 = vmul.f32 %v1826, 1.442695
        %v1830 = vpow.pop %v1829
        %v1831 = vadd.f32 %v1828, 1.0
        %v1832 = vadd.f32 %v1830, 1.0
        %v1833 = vrcp.pop %v1831
        %v1834 = vmul.f32 1.0, %v1833
        %v1835 = vrcp.pop %v1832
        %v1836 = vmul.f32 1.0, %v1835
        %v1837 = vxor.u32 %v1818, 2147483648
        %v1838 = vxor.u32 %v1822, 2147483648
        %v1839 = vmul.f32 %v1837, 1.442695
        %v1840 = vpow.pop %v1839
        %v1841 = vmul.f32 %v1838, 1.442695
        %v1842 = vpow.pop %v1841
        %v1843 = vadd.f32 %v1840, 1.0
        %v1844 = vadd.f32 %v1842, 1.0
        %v1845 = vrcp.pop %v1843
        %v1846 = vmul.f32 1.0, %v1845
        %v1847 = vrcp.pop %v1844
        %v1848 = vmul.f32 1.0, %v1847
        %v1849 = vtanh.pop %v1819
        %v1850 = vtanh.pop %v1823
        %v1851 = vxor.u32 %v1820, 2147483648
        %v1852 = vxor.u32 %v1824, 2147483648
        %v1853 = vmul.f32 %v1851, 1.442695
        %v1854 = vpow.pop %v1853
        %v1855 = vmul.f32 %v1852, 1.442695
        %v1856 = vpow.pop %v1855
        %v1857 = vadd.f32 %v1854, 1.0
        %v1858 = vadd.f32 %v1856, 1.0
        %v1859 = vrcp.pop %v1857
        %v1860 = vmul.f32 1.0, %v1859
        %v1861 = vrcp.pop %v1858
        %v1862 = vmul.f32 1.0, %v1861
        %v1863 = vmul.f32 %v1846, 0.0
        %v1864 = vmul.f32 %v1848, 0.0
        %v1865 = vmul.f32 %v1834, %v1849
        %v1866 = vmul.f32 %v1836, %v1850
        %v1867 = vadd.f32 %v1863, %v1865
        %v1868 = vadd.f32 %v1864, %v1866
        %v1869 = vtanh.pop %v1867
        %v1870 = vtanh.pop %v1868
        %v1871 = vmul.f32 %v1860, %v1869
        %v1872 = vmul.f32 %v1862, %v1870
        %vm1873 = vcmp.gt.s32.totalorder %v1529, 0
        %vm1874 = vcmp.gt.s32.totalorder %v1530, 0
        %v1875 = vsel %vm1873, %v1867, 0.0
        %v1876 = vsel %vm1874, %v1868, 0.0
        %v1877 = vsel %vm1873, %v1871, 0.0
        %v1878 = vsel %vm1874, %v1872, 0.0
        %1879 = vst [vmem:[#allocation2] sm:$0xff] %v1877
        %1880 = vst [vmem:[#allocation2 + $0x8] sm:$0xff] %v1878
        %s1881 = scalar_lea.vmem [#allocation3], 64
        %v1882 = vld [vmem:[%s1881] sm:$0xff]
        %v1883 = vld [vmem:[%s1881 + $0x8] sm:$0xff]
        %v1884 = vld [vmem:[%s1881 + $0x10] sm:$0xff]
        %v1885 = vld [vmem:[%s1881 + $0x18] sm:$0xff]
        %v1886 = vld [vmem:[%s1881 + $0x20] sm:$0xff]
        %v1887 = vld [vmem:[%s1881 + $0x28] sm:$0xff]
        %v1888 = vld [vmem:[%s1881 + $0x30] sm:$0xff]
        %v1889 = vld [vmem:[%s1881 + $0x38] sm:$0xff]
        %v1890 = vpack.c.bf16 %v1878, %v1877
        %1891 = vmatprep.subr.bf16.mxu0 %v1668
        %1892 = vmatpush1.bf16.msra.mxu0 %v1667
        %1893 = vmatprep.subr.bf16.mxu0 %v1672
        %1894 = vmatpush1.bf16.msra.mxu0 %v1671
        %1895 = vmatprep.subr.bf16.mxu0 %v1676
        %1896 = vmatpush1.bf16.msra.mxu0 %v1675
        %1897 = vmatprep.subr.bf16.mxu0 %v1680
        %1898 = vmatpush1.bf16.msra.mxu0 %v1679
        %1899 = vmatprep.subr.bf16.mxu0 %v1684
        %1900 = vmatpush1.bf16.msra.mxu0 %v1683
        %1901 = vmatprep.subr.bf16.mxu0 %v1688
        %1902 = vmatpush1.bf16.msra.mxu0 %v1687
        %1903 = vmatprep.subr.bf16.mxu0 %v1692
        %1904 = vmatpush1.bf16.msra.mxu0 %v1691
        %1905 = vmatprep.subr.bf16.mxu0 %v1696
        %1906 = vmatpush1.bf16.msra.mxu0 %v1695
        %1907 = vmatprep.subr.bf16.mxu0 0
        %1908 = vmatpush1.bf16.msra.mxu0 0
        %1909 = vmatprep.subr.bf16.mxu0 0
        %1910 = vmatpush1.bf16.msra.mxu0 0
        %1911 = vmatprep.subr.bf16.mxu0 0
        %1912 = vmatpush1.bf16.msra.mxu0 0
        %1913 = vmatprep.subr.bf16.mxu0 0
        %1914 = vmatpush1.bf16.msra.mxu0 0
        %1915 = vmatprep.subr.bf16.mxu0 0
        %1916 = vmatpush1.bf16.msra.mxu0 0
        %1917 = vmatprep.subr.bf16.mxu0 0
        %1918 = vmatpush1.bf16.msra.mxu0 0
        %1919 = vmatprep.subr.bf16.mxu0 0
        %1920 = vmatpush1.bf16.msra.mxu0 0
        %1921 = vmatprep.subr.bf16.mxu0 0
        %1922 = vmatpush1.bf16.msra.mxu0 0
        %1923 = vmatprep.mubr.bf16.mxu0 0
        %1924 = vmatmul.mubr.bf16.gmra.mrb[0].mxu0 %v1890
        %v1925 = vpop.f32.mrb[0].mxu0
        %v1926 = vadd.f32 0.0, %v1925
        %v1927 = vpop.f32.mrb[0].mxu0
        %v1928 = vadd.f32 0.0, %v1927
        %v1929 = vpop.f32.mrb[0].mxu0
        %v1930 = vadd.f32 0.0, %v1929
        %v1931 = vpop.f32.mrb[0].mxu0
        %v1932 = vadd.f32 0.0, %v1931
        %1933 = vdwg.mxu0
        %1934 = vmatprep.subr.bf16.mxu0 %v1670
        %1935 = vmatpush1.bf16.msra.mxu0 %v1669
        %1936 = vmatprep.subr.bf16.mxu0 %v1674
        %1937 = vmatpush1.bf16.msra.mxu0 %v1673
        %1938 = vmatprep.subr.bf16.mxu0 %v1678
        %1939 = vmatpush1.bf16.msra.mxu0 %v1677
        %1940 = vmatprep.subr.bf16.mxu0 %v1682
        %1941 = vmatpush1.bf16.msra.mxu0 %v1681
        %1942 = vmatprep.subr.bf16.mxu0 %v1686
        %1943 = vmatpush1.bf16.msra.mxu0 %v1685
        %1944 = vmatprep.subr.bf16.mxu0 %v1690
        %1945 = vmatpush1.bf16.msra.mxu0 %v1689
        %1946 = vmatprep.subr.bf16.mxu0 %v1694
        %1947 = vmatpush1.bf16.msra.mxu0 %v1693
        %1948 = vmatprep.subr.bf16.mxu0 %v1698
        %1949 = vmatpush1.bf16.msra.mxu0 %v1697
        %1950 = vmatprep.subr.bf16.mxu0 0
        %1951 = vmatpush1.bf16.msra.mxu0 0
        %1952 = vmatprep.subr.bf16.mxu0 0
        %1953 = vmatpush1.bf16.msra.mxu0 0
        %1954 = vmatprep.subr.bf16.mxu0 0
        %1955 = vmatpush1.bf16.msra.mxu0 0
        %1956 = vmatprep.subr.bf16.mxu0 0
        %1957 = vmatpush1.bf16.msra.mxu0 0
        %1958 = vmatprep.subr.bf16.mxu0 0
        %1959 = vmatpush1.bf16.msra.mxu0 0
        %1960 = vmatprep.subr.bf16.mxu0 0
        %1961 = vmatpush1.bf16.msra.mxu0 0
        %1962 = vmatprep.subr.bf16.mxu0 0
        %1963 = vmatpush1.bf16.msra.mxu0 0
        %1964 = vmatprep.subr.bf16.mxu0 0
        %1965 = vmatpush1.bf16.msra.mxu0 0
        %1966 = vmatprep.mubr.bf16.mxu0 0
        %1967 = vmatmul.mubr.bf16.gmra.mrb[0].mxu0 %v1890
        %v1968 = vpop.f32.mrb[0].mxu0
        %v1969 = vadd.f32 0.0, %v1968
        %v1970 = vpop.f32.mrb[0].mxu0
        %v1971 = vadd.f32 0.0, %v1970
        %v1972 = vpop.f32.mrb[0].mxu0
        %v1973 = vadd.f32 0.0, %v1972
        %v1974 = vpop.f32.mrb[0].mxu0
        %v1975 = vadd.f32 0.0, %v1974
        %1976 = vdwg.mxu0
        %v1977 = vadd.f32 %v1882, %v1926
        %v1978 = vadd.f32 %v1883, %v1928
        %v1979 = vadd.f32 %v1884, %v1969
        %v1980 = vadd.f32 %v1885, %v1971
        %v1981 = vadd.f32 %v1886, %v1930
        %v1982 = vadd.f32 %v1887, %v1932
        %v1983 = vadd.f32 %v1888, %v1973
        %v1984 = vadd.f32 %v1889, %v1975
        %v1985 = vxor.u32 %v1977, 2147483648
        %v1986 = vxor.u32 %v1981, 2147483648
        %v1987 = vmul.f32 %v1985, 1.442695
        %v1988 = vpow.pop %v1987
        %v1989 = vmul.f32 %v1986, 1.442695
        %v1990 = vpow.pop %v1989
        %v1991 = vadd.f32 %v1988, 1.0
        %v1992 = vadd.f32 %v1990, 1.0
        %v1993 = vrcp.pop %v1991
        %v1994 = vmul.f32 1.0, %v1993
        %v1995 = vrcp.pop %v1992
        %v1996 = vmul.f32 1.0, %v1995
        %v1997 = vxor.u32 %v1978, 2147483648
        %v1998 = vxor.u32 %v1982, 2147483648
        %v1999 = vmul.f32 %v1997, 1.442695
        %v2000 = vpow.pop %v1999
        %v2001 = vmul.f32 %v1998, 1.442695
        %v2002 = vpow.pop %v2001
        %v2003 = vadd.f32 %v2000, 1.0
        %v2004 = vadd.f32 %v2002, 1.0
        %v2005 = vrcp.pop %v2003
        %v2006 = vmul.f32 1.0, %v2005
        %v2007 = vrcp.pop %v2004
        %v2008 = vmul.f32 1.0, %v2007
        %v2009 = vtanh.pop %v1979
        %v2010 = vtanh.pop %v1983
        %v2011 = vxor.u32 %v1980, 2147483648
        %v2012 = vxor.u32 %v1984, 2147483648
        %v2013 = vmul.f32 %v2011, 1.442695
        %v2014 = vpow.pop %v2013
        %v2015 = vmul.f32 %v2012, 1.442695
        %v2016 = vpow.pop %v2015
        %v2017 = vadd.f32 %v2014, 1.0
        %v2018 = vadd.f32 %v2016, 1.0
        %v2019 = vrcp.pop %v2017
        %v2020 = vmul.f32 1.0, %v2019
        %v2021 = vrcp.pop %v2018
        %v2022 = vmul.f32 1.0, %v2021
        %v2023 = vmul.f32 %v2006, %v1875
        %v2024 = vmul.f32 %v2008, %v1876
        %v2025 = vmul.f32 %v1994, %v2009
        %v2026 = vmul.f32 %v1996, %v2010
        %v2027 = vadd.f32 %v2023, %v2025
        %v2028 = vadd.f32 %v2024, %v2026
        %v2029 = vtanh.pop %v2027
        %v2030 = vtanh.pop %v2028
        %v2031 = vmul.f32 %v2020, %v2029
        %v2032 = vmul.f32 %v2022, %v2030
        %vm2033 = vcmp.gt.s32.totalorder %v1529, 1
        %vm2034 = vcmp.gt.s32.totalorder %v1530, 1
        %v2035 = vsel %vm2033, %v2027, %v1875
        %v2036 = vsel %vm2034, %v2028, %v1876
        %v2037 = vsel %vm2033, %v2031, %v1877
        %v2038 = vsel %vm2034, %v2032, %v1878
        %s2039 = scalar_lea.vmem [#allocation2], 16
        %2040 = vst [vmem:[%s2039] sm:$0xff] %v2037
        %2041 = vst [vmem:[%s2039 + $0x8] sm:$0xff] %v2038
        %s2042 = scalar_lea.vmem [#allocation3], 128
        %v2043 = vld [vmem:[%s2042] sm:$0xff]
        %v2044 = vld [vmem:[%s2042 + $0x8] sm:$0xff]
        %v2045 = vld [vmem:[%s2042 + $0x10] sm:$0xff]
        %v2046 = vld [vmem:[%s2042 + $0x18] sm:$0xff]
        %v2047 = vld [vmem:[%s2042 + $0x20] sm:$0xff]
        %v2048 = vld [vmem:[%s2042 + $0x28] sm:$0xff]
        %v2049 = vld [vmem:[%s2042 + $0x30] sm:$0xff]
        %v2050 = vld [vmem:[%s2042 + $0x38] sm:$0xff]
        %v2051 = vpack.c.bf16 %v2038, %v2037
        %2052 = vmatprep.subr.bf16.mxu0 %v1668
        %2053 = vmatpush1.bf16.msra.mxu0 %v1667
        %2054 = vmatprep.subr.bf16.mxu0 %v1672
        %2055 = vmatpush1.bf16.msra.mxu0 %v1671
        %2056 = vmatprep.subr.bf16.mxu0 %v1676
        %2057 = vmatpush1.bf16.msra.mxu0 %v1675
        %2058 = vmatprep.subr.bf16.mxu0 %v1680
        %2059 = vmatpush1.bf16.msra.mxu0 %v1679
        %2060 = vmatprep.subr.bf16.mxu0 %v1684
        %2061 = vmatpush1.bf16.msra.mxu0 %v1683
        %2062 = vmatprep.subr.bf16.mxu0 %v1688
        %2063 = vmatpush1.bf16.msra.mxu0 %v1687
        %2064 = vmatprep.subr.bf16.mxu0 %v1692
        %2065 = vmatpush1.bf16.msra.mxu0 %v1691
        %2066 = vmatprep.subr.bf16.mxu0 %v1696
        %2067 = vmatpush1.bf16.msra.mxu0 %v1695
        %2068 = vmatprep.subr.bf16.mxu0 0
        %2069 = vmatpush1.bf16.msra.mxu0 0
        %2070 = vmatprep.subr.bf16.mxu0 0
        %2071 = vmatpush1.bf16.msra.mxu0 0
        %2072 = vmatprep.subr.bf16.mxu0 0
        %2073 = vmatpush1.bf16.msra.mxu0 0
        %2074 = vmatprep.subr.bf16.mxu0 0
        %2075 = vmatpush1.bf16.msra.mxu0 0
        %2076 = vmatprep.subr.bf16.mxu0 0
        %2077 = vmatpush1.bf16.msra.mxu0 0
        %2078 = vmatprep.subr.bf16.mxu0 0
        %2079 = vmatpush1.bf16.msra.mxu0 0
        %2080 = vmatprep.subr.bf16.mxu0 0
        %2081 = vmatpush1.bf16.msra.mxu0 0
        %2082 = vmatprep.subr.bf16.mxu0 0
        %2083 = vmatpush1.bf16.msra.mxu0 0
        %2084 = vmatprep.mubr.bf16.mxu0 0
        %2085 = vmatmul.mubr.bf16.gmra.mrb[0].mxu0 %v2051
        %v2086 = vpop.f32.mrb[0].mxu0
        %v2087 = vadd.f32 0.0, %v2086
        %v2088 = vpop.f32.mrb[0].mxu0
        %v2089 = vadd.f32 0.0, %v2088
        %v2090 = vpop.f32.mrb[0].mxu0
        %v2091 = vadd.f32 0.0, %v2090
        %v2092 = vpop.f32.mrb[0].mxu0
        %v2093 = vadd.f32 0.0, %v2092
        %2094 = vdwg.mxu0
        %2095 = vmatprep.subr.bf16.mxu0 %v1670
        %2096 = vmatpush1.bf16.msra.mxu0 %v1669
        %2097 = vmatprep.subr.bf16.mxu0 %v1674
        %2098 = vmatpush1.bf16.msra.mxu0 %v1673
        %2099 = vmatprep.subr.bf16.mxu0 %v1678
        %2100 = vmatpush1.bf16.msra.mxu0 %v1677
        %2101 = vmatprep.subr.bf16.mxu0 %v1682
        %2102 = vmatpush1.bf16.msra.mxu0 %v1681
        %2103 = vmatprep.subr.bf16.mxu0 %v1686
        %2104 = vmatpush1.bf16.msra.mxu0 %v1685
        %2105 = vmatprep.subr.bf16.mxu0 %v1690
        %2106 = vmatpush1.bf16.msra.mxu0 %v1689
        %2107 = vmatprep.subr.bf16.mxu0 %v1694
        %2108 = vmatpush1.bf16.msra.mxu0 %v1693
        %2109 = vmatprep.subr.bf16.mxu0 %v1698
        %2110 = vmatpush1.bf16.msra.mxu0 %v1697
        %2111 = vmatprep.subr.bf16.mxu0 0
        %2112 = vmatpush1.bf16.msra.mxu0 0
        %2113 = vmatprep.subr.bf16.mxu0 0
        %2114 = vmatpush1.bf16.msra.mxu0 0
        %2115 = vmatprep.subr.bf16.mxu0 0
        %2116 = vmatpush1.bf16.msra.mxu0 0
        %2117 = vmatprep.subr.bf16.mxu0 0
        %2118 = vmatpush1.bf16.msra.mxu0 0
        %2119 = vmatprep.subr.bf16.mxu0 0
        %2120 = vmatpush1.bf16.msra.mxu0 0
        %2121 = vmatprep.subr.bf16.mxu0 0
        %2122 = vmatpush1.bf16.msra.mxu0 0
        %2123 = vmatprep.subr.bf16.mxu0 0
        %2124 = vmatpush1.bf16.msra.mxu0 0
        %2125 = vmatprep.subr.bf16.mxu0 0
        %2126 = vmatpush1.bf16.msra.mxu0 0
        %2127 = vmatprep.mubr.bf16.mxu0 0
        %2128 = vmatmul.mubr.bf16.gmra.mrb[0].mxu0 %v2051
        %v2129 = vpop.f32.mrb[0].mxu0
        %v2130 = vadd.f32 0.0, %v2129
        %v2131 = vpop.f32.mrb[0].mxu0
        %v2132 = vadd.f32 0.0, %v2131
        %v2133 = vpop.f32.mrb[0].mxu0
        %v2134 = vadd.f32 0.0, %v2133
        %v2135 = vpop.f32.mrb[0].mxu0
        %v2136 = vadd.f32 0.0, %v2135
        %2137 = vdwg.mxu0
        %v2138 = vadd.f32 %v2043, %v2087
        %v2139 = vadd.f32 %v2044, %v2089
        %v2140 = vadd.f32 %v2045, %v2130
        %v2141 = vadd.f32 %v2046, %v2132
        %v2142 = vadd.f32 %v2047, %v2091
        %v2143 = vadd.f32 %v2048, %v2093
        %v2144 = vadd.f32 %v2049, %v2134
        %v2145 = vadd.f32 %v2050, %v2136
        %v2146 = vxor.u32 %v2138, 2147483648
        %v2147 = vxor.u32 %v2142, 2147483648
        %v2148 = vmul.f32 %v2146, 1.442695
        %v2149 = vpow.pop %v2148
        %v2150 = vmul.f32 %v2147, 1.442695
        %v2151 = vpow.pop %v2150
        %v2152 = vadd.f32 %v2149, 1.0
        %v2153 = vadd.f32 %v2151, 1.0
        %v2154 = vrcp.pop %v2152
        %v2155 = vmul.f32 1.0, %v2154
        %v2156 = vrcp.pop %v2153
        %v2157 = vmul.f32 1.0, %v2156
        %v2158 = vxor.u32 %v2139, 2147483648
        %v2159 = vxor.u32 %v2143, 2147483648
        %v2160 = vmul.f32 %v2158, 1.442695
        %v2161 = vpow.pop %v2160
        %v2162 = vmul.f32 %v2159, 1.442695
        %v2163 = vpow.pop %v2162
        %v2164 = vadd.f32 %v2161, 1.0
        %v2165 = vadd.f32 %v2163, 1.0
        %v2166 = vrcp.pop %v2164
        %v2167 = vmul.f32 1.0, %v2166
        %v2168 = vrcp.pop %v2165
        %v2169 = vmul.f32 1.0, %v2168
        %v2170 = vtanh.pop %v2140
        %v2171 = vtanh.pop %v2144
        %v2172 = vxor.u32 %v2141, 2147483648
        %v2173 = vxor.u32 %v2145, 2147483648
        %v2174 = vmul.f32 %v2172, 1.442695
        %v2175 = vpow.pop %v2174
        %v2176 = vmul.f32 %v2173, 1.442695
        %v2177 = vpow.pop %v2176
        %v2178 = vadd.f32 %v2175, 1.0
        %v2179 = vadd.f32 %v2177, 1.0
        %v2180 = vrcp.pop %v2178
        %v2181 = vmul.f32 1.0, %v2180
        %v2182 = vrcp.pop %v2179
        %v2183 = vmul.f32 1.0, %v2182
        %v2184 = vmul.f32 %v2167, %v2035
        %v2185 = vmul.f32 %v2169, %v2036
        %v2186 = vmul.f32 %v2155, %v2170
        %v2187 = vmul.f32 %v2157, %v2171
        %v2188 = vadd.f32 %v2184, %v2186
        %v2189 = vadd.f32 %v2185, %v2187
        %v2190 = vtanh.pop %v2188
        %v2191 = vtanh.pop %v2189
        %v2192 = vmul.f32 %v2181, %v2190
        %v2193 = vmul.f32 %v2183, %v2191
        %vm2194 = vcmp.gt.s32.totalorder %v1529, 2
        %vm2195 = vcmp.gt.s32.totalorder %v1530, 2
        %v2196 = vsel %vm2194, %v2188, %v2035
        %v2197 = vsel %vm2195, %v2189, %v2036
        %v2198 = vsel %vm2194, %v2192, %v2037
        %v2199 = vsel %vm2195, %v2193, %v2038
        %s2200 = scalar_lea.vmem [#allocation2], 32
        %2201 = vst [vmem:[%s2200] sm:$0xff] %v2198
        %2202 = vst [vmem:[%s2200 + $0x8] sm:$0xff] %v2199
        %s2203 = scalar_lea.vmem [#allocation3], 192
        %v2204 = vld [vmem:[%s2203] sm:$0xff]
        %v2205 = vld [vmem:[%s2203 + $0x8] sm:$0xff]
        %v2206 = vld [vmem:[%s2203 + $0x10] sm:$0xff]
        %v2207 = vld [vmem:[%s2203 + $0x18] sm:$0xff]
        %v2208 = vld [vmem:[%s2203 + $0x20] sm:$0xff]
        %v2209 = vld [vmem:[%s2203 + $0x28] sm:$0xff]
        %v2210 = vld [vmem:[%s2203 + $0x30] sm:$0xff]
        %v2211 = vld [vmem:[%s2203 + $0x38] sm:$0xff]
        %v2212 = vpack.c.bf16 %v2199, %v2198
        %2213 = vmatprep.subr.bf16.mxu0 %v1668
        %2214 = vmatpush1.bf16.msra.mxu0 %v1667
        %2215 = vmatprep.subr.bf16.mxu0 %v1672
        %2216 = vmatpush1.bf16.msra.mxu0 %v1671
        %2217 = vmatprep.subr.bf16.mxu0 %v1676
        %2218 = vmatpush1.bf16.msra.mxu0 %v1675
        %2219 = vmatprep.subr.bf16.mxu0 %v1680
        %2220 = vmatpush1.bf16.msra.mxu0 %v1679
        %2221 = vmatprep.subr.bf16.mxu0 %v1684
        %2222 = vmatpush1.bf16.msra.mxu0 %v1683
        %2223 = vmatprep.subr.bf16.mxu0 %v1688
        %2224 = vmatpush1.bf16.msra.mxu0 %v1687
        %2225 = vmatprep.subr.bf16.mxu0 %v1692
        %2226 = vmatpush1.bf16.msra.mxu0 %v1691
        %2227 = vmatprep.subr.bf16.mxu0 %v1696
        %2228 = vmatpush1.bf16.msra.mxu0 %v1695
        %2229 = vmatprep.subr.bf16.mxu0 0
        %2230 = vmatpush1.bf16.msra.mxu0 0
        %2231 = vmatprep.subr.bf16.mxu0 0
        %2232 = vmatpush1.bf16.msra.mxu0 0
        %2233 = vmatprep.subr.bf16.mxu0 0
        %2234 = vmatpush1.bf16.msra.mxu0 0
        %2235 = vmatprep.subr.bf16.mxu0 0
        %2236 = vmatpush1.bf16.msra.mxu0 0
        %2237 = vmatprep.subr.bf16.mxu0 0
        %2238 = vmatpush1.bf16.msra.mxu0 0
        %2239 = vmatprep.subr.bf16.mxu0 0
        %2240 = vmatpush1.bf16.msra.mxu0 0
        %2241 = vmatprep.subr.bf16.mxu0 0
        %2242 = vmatpush1.bf16.msra.mxu0 0
        %2243 = vmatprep.subr.bf16.mxu0 0
        %2244 = vmatpush1.bf16.msra.mxu0 0
        %2245 = vmatprep.mubr.bf16.mxu0 0
        %2246 = vmatmul.mubr.bf16.gmra.mrb[0].mxu0 %v2212
        %v2247 = vpop.f32.mrb[0].mxu0
        %v2248 = vadd.f32 0.0, %v2247
        %v2249 = vpop.f32.mrb[0].mxu0
        %v2250 = vadd.f32 0.0, %v2249
        %v2251 = vpop.f32.mrb[0].mxu0
        %v2252 = vadd.f32 0.0, %v2251
        %v2253 = vpop.f32.mrb[0].mxu0
        %v2254 = vadd.f32 0.0, %v2253
        %2255 = vdwg.mxu0
        %2256 = vmatprep.subr.bf16.mxu0 %v1670
        %2257 = vmatpush1.bf16.msra.mxu0 %v1669
        %2258 = vmatprep.subr.bf16.mxu0 %v1674
        %2259 = vmatpush1.bf16.msra.mxu0 %v1673
        %2260 = vmatprep.subr.bf16.mxu0 %v1678
        %2261 = vmatpush1.bf16.msra.mxu0 %v1677
        %2262 = vmatprep.subr.bf16.mxu0 %v1682
        %2263 = vmatpush1.bf16.msra.mxu0 %v1681
        %2264 = vmatprep.subr.bf16.mxu0 %v1686
        %2265 = vmatpush1.bf16.msra.mxu0 %v1685
        %2266 = vmatprep.subr.bf16.mxu0 %v1690
        %2267 = vmatpush1.bf16.msra.mxu0 %v1689
        %2268 = vmatprep.subr.bf16.mxu0 %v1694
        %2269 = vmatpush1.bf16.msra.mxu0 %v1693
        %2270 = vmatprep.subr.bf16.mxu0 %v1698
        %2271 = vmatpush1.bf16.msra.mxu0 %v1697
        %2272 = vmatprep.subr.bf16.mxu0 0
        %2273 = vmatpush1.bf16.msra.mxu0 0
        %2274 = vmatprep.subr.bf16.mxu0 0
        %2275 = vmatpush1.bf16.msra.mxu0 0
        %2276 = vmatprep.subr.bf16.mxu0 0
        %2277 = vmatpush1.bf16.msra.mxu0 0
        %2278 = vmatprep.subr.bf16.mxu0 0
        %2279 = vmatpush1.bf16.msra.mxu0 0
        %2280 = vmatprep.subr.bf16.mxu0 0
        %2281 = vmatpush1.bf16.msra.mxu0 0
        %2282 = vmatprep.subr.bf16.mxu0 0
        %2283 = vmatpush1.bf16.msra.mxu0 0
        %2284 = vmatprep.subr.bf16.mxu0 0
        %2285 = vmatpush1.bf16.msra.mxu0 0
        %2286 = vmatprep.subr.bf16.mxu0 0
        %2287 = vmatpush1.bf16.msra.mxu0 0
        %2288 = vmatprep.mubr.bf16.mxu0 0
        %2289 = vmatmul.mubr.bf16.gmra.mrb[0].mxu0 %v2212
        %v2290 = vpop.f32.mrb[0].mxu0
        %v2291 = vadd.f32 0.0, %v2290
        %v2292 = vpop.f32.mrb[0].mxu0
        %v2293 = vadd.f32 0.0, %v2292
        %v2294 = vpop.f32.mrb[0].mxu0
        %v2295 = vadd.f32 0.0, %v2294
        %v2296 = vpop.f32.mrb[0].mxu0
        %v2297 = vadd.f32 0.0, %v2296
        %2298 = vdwg.mxu0
        %v2299 = vadd.f32 %v2204, %v2248
        %v2300 = vadd.f32 %v2205, %v2250
        %v2301 = vadd.f32 %v2206, %v2291
        %v2302 = vadd.f32 %v2207, %v2293
        %v2303 = vadd.f32 %v2208, %v2252
        %v2304 = vadd.f32 %v2209, %v2254
        %v2305 = vadd.f32 %v2210, %v2295
        %v2306 = vadd.f32 %v2211, %v2297
        %v2307 = vxor.u32 %v2299, 2147483648
        %v2308 = vxor.u32 %v2303, 2147483648
        %v2309 = vmul.f32 %v2307, 1.442695
        %v2310 = vpow.pop %v2309
        %v2311 = vmul.f32 %v2308, 1.442695
        %v2312 = vpow.pop %v2311
        %v2313 = vadd.f32 %v2310, 1.0
        %v2314 = vadd.f32 %v2312, 1.0
        %v2315 = vrcp.pop %v2313
        %v2316 = vmul.f32 1.0, %v2315
        %v2317 = vrcp.pop %v2314
        %v2318 = vmul.f32 1.0, %v2317
        %v2319 = vxor.u32 %v2300, 2147483648
        %v2320 = vxor.u32 %v2304, 2147483648
        %v2321 = vmul.f32 %v2319, 1.442695
        %v2322 = vpow.pop %v2321
        %v2323 = vmul.f32 %v2320, 1.442695
        %v2324 = vpow.pop %v2323
        %v2325 = vadd.f32 %v2322, 1.0
        %v2326 = vadd.f32 %v2324, 1.0
        %v2327 = vrcp.pop %v2325
        %v2328 = vmul.f32 1.0, %v2327
        %v2329 = vrcp.pop %v2326
        %v2330 = vmul.f32 1.0, %v2329
        %v2331 = vtanh.pop %v2301
        %v2332 = vtanh.pop %v2305
        %v2333 = vxor.u32 %v2302, 2147483648
        %v2334 = vxor.u32 %v2306, 2147483648
        %v2335 = vmul.f32 %v2333, 1.442695
        %v2336 = vpow.pop %v2335
        %v2337 = vmul.f32 %v2334, 1.442695
        %v2338 = vpow.pop %v2337
        %v2339 = vadd.f32 %v2336, 1.0
        %v2340 = vadd.f32 %v2338, 1.0
        %v2341 = vrcp.pop %v2339
        %v2342 = vmul.f32 1.0, %v2341
        %v2343 = vrcp.pop %v2340
        %v2344 = vmul.f32 1.0, %v2343
        %v2345 = vmul.f32 %v2328, %v2196
        %v2346 = vmul.f32 %v2330, %v2197
        %v2347 = vmul.f32 %v2316, %v2331
        %v2348 = vmul.f32 %v2318, %v2332
        %v2349 = vadd.f32 %v2345, %v2347
        %v2350 = vadd.f32 %v2346, %v2348
        %v2351 = vtanh.pop %v2349
        %v2352 = vtanh.pop %v2350
        %v2353 = vmul.f32 %v2342, %v2351
        %v2354 = vmul.f32 %v2344, %v2352
        %vm2355 = vcmp.gt.s32.totalorder %v1529, 3
        %vm2356 = vcmp.gt.s32.totalorder %v1530, 3
        %v2357 = vsel %vm2355, %v2349, %v2196
        %v2358 = vsel %vm2356, %v2350, %v2197
        %v2359 = vsel %vm2355, %v2353, %v2198
        %v2360 = vsel %vm2356, %v2354, %v2199
        %s2361 = scalar_lea.vmem [#allocation2], 48
        %2362 = vst [vmem:[%s2361] sm:$0xff] %v2359
        %2363 = vst [vmem:[%s2361 + $0x8] sm:$0xff] %v2360
        %s2364 = scalar_lea.vmem [#allocation3], 256
        %v2365 = vld [vmem:[%s2364] sm:$0xff]
        %v2366 = vld [vmem:[%s2364 + $0x8] sm:$0xff]
        %v2367 = vld [vmem:[%s2364 + $0x10] sm:$0xff]
        %v2368 = vld [vmem:[%s2364 + $0x18] sm:$0xff]
        %v2369 = vld [vmem:[%s2364 + $0x20] sm:$0xff]
        %v2370 = vld [vmem:[%s2364 + $0x28] sm:$0xff]
        %v2371 = vld [vmem:[%s2364 + $0x30] sm:$0xff]
        %v2372 = vld [vmem:[%s2364 + $0x38] sm:$0xff]
        %v2373 = vpack.c.bf16 %v2360, %v2359
        %2374 = vmatprep.subr.bf16.mxu0 %v1668
        %2375 = vmatpush1.bf16.msra.mxu0 %v1667
        %2376 = vmatprep.subr.bf16.mxu0 %v1672
        %2377 = vmatpush1.bf16.msra.mxu0 %v1671
        %2378 = vmatprep.subr.bf16.mxu0 %v1676
        %2379 = vmatpush1.bf16.msra.mxu0 %v1675
        %2380 = vmatprep.subr.bf16.mxu0 %v1680
        %2381 = vmatpush1.bf16.msra.mxu0 %v1679
        %2382 = vmatprep.subr.bf16.mxu0 %v1684
        %2383 = vmatpush1.bf16.msra.mxu0 %v1683
        %2384 = vmatprep.subr.bf16.mxu0 %v1688
        %2385 = vmatpush1.bf16.msra.mxu0 %v1687
        %2386 = vmatprep.subr.bf16.mxu0 %v1692
        %2387 = vmatpush1.bf16.msra.mxu0 %v1691
        %2388 = vmatprep.subr.bf16.mxu0 %v1696
        %2389 = vmatpush1.bf16.msra.mxu0 %v1695
        %2390 = vmatprep.subr.bf16.mxu0 0
        %2391 = vmatpush1.bf16.msra.mxu0 0
        %2392 = vmatprep.subr.bf16.mxu0 0
        %2393 = vmatpush1.bf16.msra.mxu0 0
        %2394 = vmatprep.subr.bf16.mxu0 0
        %2395 = vmatpush1.bf16.msra.mxu0 0
        %2396 = vmatprep.subr.bf16.mxu0 0
        %2397 = vmatpush1.bf16.msra.mxu0 0
        %2398 = vmatprep.subr.bf16.mxu0 0
        %2399 = vmatpush1.bf16.msra.mxu0 0
        %2400 = vmatprep.subr.bf16.mxu0 0
        %2401 = vmatpush1.bf16.msra.mxu0 0
        %2402 = vmatprep.subr.bf16.mxu0 0
        %2403 = vmatpush1.bf16.msra.mxu0 0
        %2404 = vmatprep.subr.bf16.mxu0 0
        %2405 = vmatpush1.bf16.msra.mxu0 0
        %2406 = vmatprep.mubr.bf16.mxu0 0
        %2407 = vmatmul.mubr.bf16.gmra.mrb[0].mxu0 %v2373
        %v2408 = vpop.f32.mrb[0].mxu0
        %v2409 = vadd.f32 0.0, %v2408
        %v2410 = vpop.f32.mrb[0].mxu0
        %v2411 = vadd.f32 0.0, %v2410
        %v2412 = vpop.f32.mrb[0].mxu0
        %v2413 = vadd.f32 0.0, %v2412
        %v2414 = vpop.f32.mrb[0].mxu0
        %v2415 = vadd.f32 0.0, %v2414
        %2416 = vdwg.mxu0
        %2417 = vmatprep.subr.bf16.mxu0 %v1670
        %2418 = vmatpush1.bf16.msra.mxu0 %v1669
        %2419 = vmatprep.subr.bf16.mxu0 %v1674
        %2420 = vmatpush1.bf16.msra.mxu0 %v1673
        %2421 = vmatprep.subr.bf16.mxu0 %v1678
        %2422 = vmatpush1.bf16.msra.mxu0 %v1677
        %2423 = vmatprep.subr.bf16.mxu0 %v1682
        %2424 = vmatpush1.bf16.msra.mxu0 %v1681
        %2425 = vmatprep.subr.bf16.mxu0 %v1686
        %2426 = vmatpush1.bf16.msra.mxu0 %v1685
        %2427 = vmatprep.subr.bf16.mxu0 %v1690
        %2428 = vmatpush1.bf16.msra.mxu0 %v1689
        %2429 = vmatprep.subr.bf16.mxu0 %v1694
        %2430 = vmatpush1.bf16.msra.mxu0 %v1693
        %2431 = vmatprep.subr.bf16.mxu0 %v1698
        %2432 = vmatpush1.bf16.msra.mxu0 %v1697
        %2433 = vmatprep.subr.bf16.mxu0 0
        %2434 = vmatpush1.bf16.msra.mxu0 0
        %2435 = vmatprep.subr.bf16.mxu0 0
        %2436 = vmatpush1.bf16.msra.mxu0 0
        %2437 = vmatprep.subr.bf16.mxu0 0
        %2438 = vmatpush1.bf16.msra.mxu0 0
        %2439 = vmatprep.subr.bf16.mxu0 0
        %2440 = vmatpush1.bf16.msra.mxu0 0
        %2441 = vmatprep.subr.bf16.mxu0 0
        %2442 = vmatpush1.bf16.msra.mxu0 0
        %2443 = vmatprep.subr.bf16.mxu0 0
        %2444 = vmatpush1.bf16.msra.mxu0 0
        %2445 = vmatprep.subr.bf16.mxu0 0
        %2446 = vmatpush1.bf16.msra.mxu0 0
        %2447 = vmatprep.subr.bf16.mxu0 0
        %2448 = vmatpush1.bf16.msra.mxu0 0
        %2449 = vmatprep.mubr.bf16.mxu0 0
        %2450 = vmatmul.mubr.bf16.gmra.mrb[0].mxu0 %v2373
        %v2451 = vpop.f32.mrb[0].mxu0
        %v2452 = vadd.f32 0.0, %v2451
        %v2453 = vpop.f32.mrb[0].mxu0
        %v2454 = vadd.f32 0.0, %v2453
        %v2455 = vpop.f32.mrb[0].mxu0
        %v2456 = vadd.f32 0.0, %v2455
        %v2457 = vpop.f32.mrb[0].mxu0
        %v2458 = vadd.f32 0.0, %v2457
        %2459 = vdwg.mxu0
        %v2460 = vadd.f32 %v2365, %v2409
        %v2461 = vadd.f32 %v2366, %v2411
        %v2462 = vadd.f32 %v2367, %v2452
        %v2463 = vadd.f32 %v2368, %v2454
        %v2464 = vadd.f32 %v2369, %v2413
        %v2465 = vadd.f32 %v2370, %v2415
        %v2466 = vadd.f32 %v2371, %v2456
        %v2467 = vadd.f32 %v2372, %v2458
        %v2468 = vxor.u32 %v2460, 2147483648
        %v2469 = vxor.u32 %v2464, 2147483648
        %v2470 = vmul.f32 %v2468, 1.442695
        %v2471 = vpow.pop %v2470
        %v2472 = vmul.f32 %v2469, 1.442695
        %v2473 = vpow.pop %v2472
        %v2474 = vadd.f32 %v2471, 1.0
        %v2475 = vadd.f32 %v2473, 1.0
        %v2476 = vrcp.pop %v2474
        %v2477 = vmul.f32 1.0, %v2476
        %v2478 = vrcp.pop %v2475
        %v2479 = vmul.f32 1.0, %v2478
        %v2480 = vxor.u32 %v2461, 2147483648
        %v2481 = vxor.u32 %v2465, 2147483648
        %v2482 = vmul.f32 %v2480, 1.442695
        %v2483 = vpow.pop %v2482
        %v2484 = vmul.f32 %v2481, 1.442695
        %v2485 = vpow.pop %v2484
        %v2486 = vadd.f32 %v2483, 1.0
        %v2487 = vadd.f32 %v2485, 1.0
        %v2488 = vrcp.pop %v2486
        %v2489 = vmul.f32 1.0, %v2488
        %v2490 = vrcp.pop %v2487
        %v2491 = vmul.f32 1.0, %v2490
        %v2492 = vtanh.pop %v2462
        %v2493 = vtanh.pop %v2466
        %v2494 = vxor.u32 %v2463, 2147483648
        %v2495 = vxor.u32 %v2467, 2147483648
        %v2496 = vmul.f32 %v2494, 1.442695
        %v2497 = vpow.pop %v2496
        %v2498 = vmul.f32 %v2495, 1.442695
        %v2499 = vpow.pop %v2498
        %v2500 = vadd.f32 %v2497, 1.0
        %v2501 = vadd.f32 %v2499, 1.0
        %v2502 = vrcp.pop %v2500
        %v2503 = vmul.f32 1.0, %v2502
        %v2504 = vrcp.pop %v2501
        %v2505 = vmul.f32 1.0, %v2504
        %v2506 = vmul.f32 %v2489, %v2357
        %v2507 = vmul.f32 %v2491, %v2358
        %v2508 = vmul.f32 %v2477, %v2492
        %v2509 = vmul.f32 %v2479, %v2493
        %v2510 = vadd.f32 %v2506, %v2508
        %v2511 = vadd.f32 %v2507, %v2509
        %v2512 = vtanh.pop %v2510
        %v2513 = vtanh.pop %v2511
        %v2514 = vmul.f32 %v2503, %v2512
        %v2515 = vmul.f32 %v2505, %v2513
        %vm2516 = vcmp.gt.s32.totalorder %v1529, 4
        %vm2517 = vcmp.gt.s32.totalorder %v1530, 4
        %v2518 = vsel %vm2516, %v2510, %v2357
        %v2519 = vsel %vm2517, %v2511, %v2358
        %v2520 = vsel %vm2516, %v2514, %v2359
        %v2521 = vsel %vm2517, %v2515, %v2360
        %s2522 = scalar_lea.vmem [#allocation2], 64
        %2523 = vst [vmem:[%s2522] sm:$0xff] %v2520
        %2524 = vst [vmem:[%s2522 + $0x8] sm:$0xff] %v2521
        %s2525 = scalar_lea.vmem [#allocation3], 320
        %v2526 = vld [vmem:[%s2525] sm:$0xff]
        %v2527 = vld [vmem:[%s2525 + $0x8] sm:$0xff]
        %v2528 = vld [vmem:[%s2525 + $0x10] sm:$0xff]
        %v2529 = vld [vmem:[%s2525 + $0x18] sm:$0xff]
        %v2530 = vld [vmem:[%s2525 + $0x20] sm:$0xff]
        %v2531 = vld [vmem:[%s2525 + $0x28] sm:$0xff]
        %v2532 = vld [vmem:[%s2525 + $0x30] sm:$0xff]
        %v2533 = vld [vmem:[%s2525 + $0x38] sm:$0xff]
        %v2534 = vpack.c.bf16 %v2521, %v2520
        %2535 = vmatprep.subr.bf16.mxu0 %v1668
        %2536 = vmatpush1.bf16.msra.mxu0 %v1667
        %2537 = vmatprep.subr.bf16.mxu0 %v1672
        %2538 = vmatpush1.bf16.msra.mxu0 %v1671
        %2539 = vmatprep.subr.bf16.mxu0 %v1676
        %2540 = vmatpush1.bf16.msra.mxu0 %v1675
        %2541 = vmatprep.subr.bf16.mxu0 %v1680
        %2542 = vmatpush1.bf16.msra.mxu0 %v1679
        %2543 = vmatprep.subr.bf16.mxu0 %v1684
        %2544 = vmatpush1.bf16.msra.mxu0 %v1683
        %2545 = vmatprep.subr.bf16.mxu0 %v1688
        %2546 = vmatpush1.bf16.msra.mxu0 %v1687
        %2547 = vmatprep.subr.bf16.mxu0 %v1692
        %2548 = vmatpush1.bf16.msra.mxu0 %v1691
        %2549 = vmatprep.subr.bf16.mxu0 %v1696
        %2550 = vmatpush1.bf16.msra.mxu0 %v1695
        %2551 = vmatprep.subr.bf16.mxu0 0
        %2552 = vmatpush1.bf16.msra.mxu0 0
        %2553 = vmatprep.subr.bf16.mxu0 0
        %2554 = vmatpush1.bf16.msra.mxu0 0
        %2555 = vmatprep.subr.bf16.mxu0 0
        %2556 = vmatpush1.bf16.msra.mxu0 0
        %2557 = vmatprep.subr.bf16.mxu0 0
        %2558 = vmatpush1.bf16.msra.mxu0 0
        %2559 = vmatprep.subr.bf16.mxu0 0
        %2560 = vmatpush1.bf16.msra.mxu0 0
        %2561 = vmatprep.subr.bf16.mxu0 0
        %2562 = vmatpush1.bf16.msra.mxu0 0
        %2563 = vmatprep.subr.bf16.mxu0 0
        %2564 = vmatpush1.bf16.msra.mxu0 0
        %2565 = vmatprep.subr.bf16.mxu0 0
        %2566 = vmatpush1.bf16.msra.mxu0 0
        %2567 = vmatprep.mubr.bf16.mxu0 0
        %2568 = vmatmul.mubr.bf16.gmra.mrb[0].mxu0 %v2534
        %v2569 = vpop.f32.mrb[0].mxu0
        %v2570 = vadd.f32 0.0, %v2569
        %v2571 = vpop.f32.mrb[0].mxu0
        %v2572 = vadd.f32 0.0, %v2571
        %v2573 = vpop.f32.mrb[0].mxu0
        %v2574 = vadd.f32 0.0, %v2573
        %v2575 = vpop.f32.mrb[0].mxu0
        %v2576 = vadd.f32 0.0, %v2575
        %2577 = vdwg.mxu0
        %2578 = vmatprep.subr.bf16.mxu0 %v1670
        %2579 = vmatpush1.bf16.msra.mxu0 %v1669
        %2580 = vmatprep.subr.bf16.mxu0 %v1674
        %2581 = vmatpush1.bf16.msra.mxu0 %v1673
        %2582 = vmatprep.subr.bf16.mxu0 %v1678
        %2583 = vmatpush1.bf16.msra.mxu0 %v1677
        %2584 = vmatprep.subr.bf16.mxu0 %v1682
        %2585 = vmatpush1.bf16.msra.mxu0 %v1681
        %2586 = vmatprep.subr.bf16.mxu0 %v1686
        %2587 = vmatpush1.bf16.msra.mxu0 %v1685
        %2588 = vmatprep.subr.bf16.mxu0 %v1690
        %2589 = vmatpush1.bf16.msra.mxu0 %v1689
        %2590 = vmatprep.subr.bf16.mxu0 %v1694
        %2591 = vmatpush1.bf16.msra.mxu0 %v1693
        %2592 = vmatprep.subr.bf16.mxu0 %v1698
        %2593 = vmatpush1.bf16.msra.mxu0 %v1697
        %2594 = vmatprep.subr.bf16.mxu0 0
        %2595 = vmatpush1.bf16.msra.mxu0 0
        %2596 = vmatprep.subr.bf16.mxu0 0
        %2597 = vmatpush1.bf16.msra.mxu0 0
        %2598 = vmatprep.subr.bf16.mxu0 0
        %2599 = vmatpush1.bf16.msra.mxu0 0
        %2600 = vmatprep.subr.bf16.mxu0 0
        %2601 = vmatpush1.bf16.msra.mxu0 0
        %2602 = vmatprep.subr.bf16.mxu0 0
        %2603 = vmatpush1.bf16.msra.mxu0 0
        %2604 = vmatprep.subr.bf16.mxu0 0
        %2605 = vmatpush1.bf16.msra.mxu0 0
        %2606 = vmatprep.subr.bf16.mxu0 0
        %2607 = vmatpush1.bf16.msra.mxu0 0
        %2608 = vmatprep.subr.bf16.mxu0 0
        %2609 = vmatpush1.bf16.msra.mxu0 0
        %2610 = vmatprep.mubr.bf16.mxu0 0
        %2611 = vmatmul.mubr.bf16.gmra.mrb[0].mxu0 %v2534
        %v2612 = vpop.f32.mrb[0].mxu0
        %v2613 = vadd.f32 0.0, %v2612
        %v2614 = vpop.f32.mrb[0].mxu0
        %v2615 = vadd.f32 0.0, %v2614
        %v2616 = vpop.f32.mrb[0].mxu0
        %v2617 = vadd.f32 0.0, %v2616
        %v2618 = vpop.f32.mrb[0].mxu0
        %v2619 = vadd.f32 0.0, %v2618
        %2620 = vdwg.mxu0
        %v2621 = vadd.f32 %v2526, %v2570
        %v2622 = vadd.f32 %v2527, %v2572
        %v2623 = vadd.f32 %v2528, %v2613
        %v2624 = vadd.f32 %v2529, %v2615
        %v2625 = vadd.f32 %v2530, %v2574
        %v2626 = vadd.f32 %v2531, %v2576
        %v2627 = vadd.f32 %v2532, %v2617
        %v2628 = vadd.f32 %v2533, %v2619
        %v2629 = vxor.u32 %v2621, 2147483648
        %v2630 = vxor.u32 %v2625, 2147483648
        %v2631 = vmul.f32 %v2629, 1.442695
        %v2632 = vpow.pop %v2631
        %v2633 = vmul.f32 %v2630, 1.442695
        %v2634 = vpow.pop %v2633
        %v2635 = vadd.f32 %v2632, 1.0
        %v2636 = vadd.f32 %v2634, 1.0
        %v2637 = vrcp.pop %v2635
        %v2638 = vmul.f32 1.0, %v2637
        %v2639 = vrcp.pop %v2636
        %v2640 = vmul.f32 1.0, %v2639
        %v2641 = vxor.u32 %v2622, 2147483648
        %v2642 = vxor.u32 %v2626, 2147483648
        %v2643 = vmul.f32 %v2641, 1.442695
        %v2644 = vpow.pop %v2643
        %v2645 = vmul.f32 %v2642, 1.442695
        %v2646 = vpow.pop %v2645
        %v2647 = vadd.f32 %v2644, 1.0
        %v2648 = vadd.f32 %v2646, 1.0
        %v2649 = vrcp.pop %v2647
        %v2650 = vmul.f32 1.0, %v2649
        %v2651 = vrcp.pop %v2648
        %v2652 = vmul.f32 1.0, %v2651
        %v2653 = vtanh.pop %v2623
        %v2654 = vtanh.pop %v2627
        %v2655 = vxor.u32 %v2624, 2147483648
        %v2656 = vxor.u32 %v2628, 2147483648
        %v2657 = vmul.f32 %v2655, 1.442695
        %v2658 = vpow.pop %v2657
        %v2659 = vmul.f32 %v2656, 1.442695
        %v2660 = vpow.pop %v2659
        %v2661 = vadd.f32 %v2658, 1.0
        %v2662 = vadd.f32 %v2660, 1.0
        %v2663 = vrcp.pop %v2661
        %v2664 = vmul.f32 1.0, %v2663
        %v2665 = vrcp.pop %v2662
        %v2666 = vmul.f32 1.0, %v2665
        %v2667 = vmul.f32 %v2650, %v2518
        %v2668 = vmul.f32 %v2652, %v2519
        %v2669 = vmul.f32 %v2638, %v2653
        %v2670 = vmul.f32 %v2640, %v2654
        %v2671 = vadd.f32 %v2667, %v2669
        %v2672 = vadd.f32 %v2668, %v2670
        %v2673 = vtanh.pop %v2671
        %v2674 = vtanh.pop %v2672
        %v2675 = vmul.f32 %v2664, %v2673
        %v2676 = vmul.f32 %v2666, %v2674
        %vm2677 = vcmp.gt.s32.totalorder %v1529, 5
        %vm2678 = vcmp.gt.s32.totalorder %v1530, 5
        %v2679 = vsel %vm2677, %v2671, %v2518
        %v2680 = vsel %vm2678, %v2672, %v2519
        %v2681 = vsel %vm2677, %v2675, %v2520
        %v2682 = vsel %vm2678, %v2676, %v2521
        %s2683 = scalar_lea.vmem [#allocation2], 80
        %2684 = vst [vmem:[%s2683] sm:$0xff] %v2681
        %2685 = vst [vmem:[%s2683 + $0x8] sm:$0xff] %v2682
        %s2686 = scalar_lea.vmem [#allocation3], 384
        %v2687 = vld [vmem:[%s2686] sm:$0xff]
        %v2688 = vld [vmem:[%s2686 + $0x8] sm:$0xff]
        %v2689 = vld [vmem:[%s2686 + $0x10] sm:$0xff]
        %v2690 = vld [vmem:[%s2686 + $0x18] sm:$0xff]
        %v2691 = vld [vmem:[%s2686 + $0x20] sm:$0xff]
        %v2692 = vld [vmem:[%s2686 + $0x28] sm:$0xff]
        %v2693 = vld [vmem:[%s2686 + $0x30] sm:$0xff]
        %v2694 = vld [vmem:[%s2686 + $0x38] sm:$0xff]
        %v2695 = vpack.c.bf16 %v2682, %v2681
        %2696 = vmatprep.subr.bf16.mxu0 %v1668
        %2697 = vmatpush1.bf16.msra.mxu0 %v1667
        %2698 = vmatprep.subr.bf16.mxu0 %v1672
        %2699 = vmatpush1.bf16.msra.mxu0 %v1671
        %2700 = vmatprep.subr.bf16.mxu0 %v1676
        %2701 = vmatpush1.bf16.msra.mxu0 %v1675
        %2702 = vmatprep.subr.bf16.mxu0 %v1680
        %2703 = vmatpush1.bf16.msra.mxu0 %v1679
        %2704 = vmatprep.subr.bf16.mxu0 %v1684
        %2705 = vmatpush1.bf16.msra.mxu0 %v1683
        %2706 = vmatprep.subr.bf16.mxu0 %v1688
        %2707 = vmatpush1.bf16.msra.mxu0 %v1687
        %2708 = vmatprep.subr.bf16.mxu0 %v1692
        %2709 = vmatpush1.bf16.msra.mxu0 %v1691
        %2710 = vmatprep.subr.bf16.mxu0 %v1696
        %2711 = vmatpush1.bf16.msra.mxu0 %v1695
        %2712 = vmatprep.subr.bf16.mxu0 0
        %2713 = vmatpush1.bf16.msra.mxu0 0
        %2714 = vmatprep.subr.bf16.mxu0 0
        %2715 = vmatpush1.bf16.msra.mxu0 0
        %2716 = vmatprep.subr.bf16.mxu0 0
        %2717 = vmatpush1.bf16.msra.mxu0 0
        %2718 = vmatprep.subr.bf16.mxu0 0
        %2719 = vmatpush1.bf16.msra.mxu0 0
        %2720 = vmatprep.subr.bf16.mxu0 0
        %2721 = vmatpush1.bf16.msra.mxu0 0
        %2722 = vmatprep.subr.bf16.mxu0 0
        %2723 = vmatpush1.bf16.msra.mxu0 0
        %2724 = vmatprep.subr.bf16.mxu0 0
        %2725 = vmatpush1.bf16.msra.mxu0 0
        %2726 = vmatprep.subr.bf16.mxu0 0
        %2727 = vmatpush1.bf16.msra.mxu0 0
        %2728 = vmatprep.mubr.bf16.mxu0 0
        %2729 = vmatmul.mubr.bf16.gmra.mrb[0].mxu0 %v2695
        %v2730 = vpop.f32.mrb[0].mxu0
        %v2731 = vadd.f32 0.0, %v2730
        %v2732 = vpop.f32.mrb[0].mxu0
        %v2733 = vadd.f32 0.0, %v2732
        %v2734 = vpop.f32.mrb[0].mxu0
        %v2735 = vadd.f32 0.0, %v2734
        %v2736 = vpop.f32.mrb[0].mxu0
        %v2737 = vadd.f32 0.0, %v2736
        %2738 = vdwg.mxu0
        %2739 = vmatprep.subr.bf16.mxu0 %v1670
        %2740 = vmatpush1.bf16.msra.mxu0 %v1669
        %2741 = vmatprep.subr.bf16.mxu0 %v1674
        %2742 = vmatpush1.bf16.msra.mxu0 %v1673
        %2743 = vmatprep.subr.bf16.mxu0 %v1678
        %2744 = vmatpush1.bf16.msra.mxu0 %v1677
        %2745 = vmatprep.subr.bf16.mxu0 %v1682
        %2746 = vmatpush1.bf16.msra.mxu0 %v1681
        %2747 = vmatprep.subr.bf16.mxu0 %v1686
        %2748 = vmatpush1.bf16.msra.mxu0 %v1685
        %2749 = vmatprep.subr.bf16.mxu0 %v1690
        %2750 = vmatpush1.bf16.msra.mxu0 %v1689
        %2751 = vmatprep.subr.bf16.mxu0 %v1694
        %2752 = vmatpush1.bf16.msra.mxu0 %v1693
        %2753 = vmatprep.subr.bf16.mxu0 %v1698
        %2754 = vmatpush1.bf16.msra.mxu0 %v1697
        %2755 = vmatprep.subr.bf16.mxu0 0
        %2756 = vmatpush1.bf16.msra.mxu0 0
        %2757 = vmatprep.subr.bf16.mxu0 0
        %2758 = vmatpush1.bf16.msra.mxu0 0
        %2759 = vmatprep.subr.bf16.mxu0 0
        %2760 = vmatpush1.bf16.msra.mxu0 0
        %2761 = vmatprep.subr.bf16.mxu0 0
        %2762 = vmatpush1.bf16.msra.mxu0 0
        %2763 = vmatprep.subr.bf16.mxu0 0
        %2764 = vmatpush1.bf16.msra.mxu0 0
        %2765 = vmatprep.subr.bf16.mxu0 0
        %2766 = vmatpush1.bf16.msra.mxu0 0
        %2767 = vmatprep.subr.bf16.mxu0 0
        %2768 = vmatpush1.bf16.msra.mxu0 0
        %2769 = vmatprep.subr.bf16.mxu0 0
        %2770 = vmatpush1.bf16.msra.mxu0 0
        %2771 = vmatprep.mubr.bf16.mxu0 0
        %2772 = vmatmul.mubr.bf16.gmra.mrb[0].mxu0 %v2695
        %v2773 = vpop.f32.mrb[0].mxu0
        %v2774 = vadd.f32 0.0, %v2773
        %v2775 = vpop.f32.mrb[0].mxu0
        %v2776 = vadd.f32 0.0, %v2775
        %v2777 = vpop.f32.mrb[0].mxu0
        %v2778 = vadd.f32 0.0, %v2777
        %v2779 = vpop.f32.mrb[0].mxu0
        %v2780 = vadd.f32 0.0, %v2779
        %2781 = vdwg.mxu0
        %v2782 = vadd.f32 %v2687, %v2731
        %v2783 = vadd.f32 %v2688, %v2733
        %v2784 = vadd.f32 %v2689, %v2774
        %v2785 = vadd.f32 %v2690, %v2776
        %v2786 = vadd.f32 %v2691, %v2735
        %v2787 = vadd.f32 %v2692, %v2737
        %v2788 = vadd.f32 %v2693, %v2778
        %v2789 = vadd.f32 %v2694, %v2780
        %v2790 = vxor.u32 %v2782, 2147483648
        %v2791 = vxor.u32 %v2786, 2147483648
        %v2792 = vmul.f32 %v2790, 1.442695
        %v2793 = vpow.pop %v2792
        %v2794 = vmul.f32 %v2791, 1.442695
        %v2795 = vpow.pop %v2794
        %v2796 = vadd.f32 %v2793, 1.0
        %v2797 = vadd.f32 %v2795, 1.0
        %v2798 = vrcp.pop %v2796
        %v2799 = vmul.f32 1.0, %v2798
        %v2800 = vrcp.pop %v2797
        %v2801 = vmul.f32 1.0, %v2800
        %v2802 = vxor.u32 %v2783, 2147483648
        %v2803 = vxor.u32 %v2787, 2147483648
        %v2804 = vmul.f32 %v2802, 1.442695
        %v2805 = vpow.pop %v2804
        %v2806 = vmul.f32 %v2803, 1.442695
        %v2807 = vpow.pop %v2806
        %v2808 = vadd.f32 %v2805, 1.0
        %v2809 = vadd.f32 %v2807, 1.0
        %v2810 = vrcp.pop %v2808
        %v2811 = vmul.f32 1.0, %v2810
        %v2812 = vrcp.pop %v2809
        %v2813 = vmul.f32 1.0, %v2812
        %v2814 = vtanh.pop %v2784
        %v2815 = vtanh.pop %v2788
        %v2816 = vxor.u32 %v2785, 2147483648
        %v2817 = vxor.u32 %v2789, 2147483648
        %v2818 = vmul.f32 %v2816, 1.442695
        %v2819 = vpow.pop %v2818
        %v2820 = vmul.f32 %v2817, 1.442695
        %v2821 = vpow.pop %v2820
        %v2822 = vadd.f32 %v2819, 1.0
        %v2823 = vadd.f32 %v2821, 1.0
        %v2824 = vrcp.pop %v2822
        %v2825 = vmul.f32 1.0, %v2824
        %v2826 = vrcp.pop %v2823
        %v2827 = vmul.f32 1.0, %v2826
        %v2828 = vmul.f32 %v2811, %v2679
        %v2829 = vmul.f32 %v2813, %v2680
        %v2830 = vmul.f32 %v2799, %v2814
        %v2831 = vmul.f32 %v2801, %v2815
        %v2832 = vadd.f32 %v2828, %v2830
        %v2833 = vadd.f32 %v2829, %v2831
        %v2834 = vtanh.pop %v2832
        %v2835 = vtanh.pop %v2833
        %v2836 = vmul.f32 %v2825, %v2834
        %v2837 = vmul.f32 %v2827, %v2835
        %vm2838 = vcmp.gt.s32.totalorder %v1529, 6
        %vm2839 = vcmp.gt.s32.totalorder %v1530, 6
        %v2840 = vsel %vm2838, %v2832, %v2679
        %v2841 = vsel %vm2839, %v2833, %v2680
        %v2842 = vsel %vm2838, %v2836, %v2681
        %v2843 = vsel %vm2839, %v2837, %v2682
        %s2844 = scalar_lea.vmem [#allocation2], 96
        %2845 = vst [vmem:[%s2844] sm:$0xff] %v2842
        %2846 = vst [vmem:[%s2844 + $0x8] sm:$0xff] %v2843
        %s2847 = scalar_lea.vmem [#allocation3], 448
        %v2848 = vld [vmem:[%s2847] sm:$0xff]
        %v2849 = vld [vmem:[%s2847 + $0x8] sm:$0xff]
        %v2850 = vld [vmem:[%s2847 + $0x10] sm:$0xff]
        %v2851 = vld [vmem:[%s2847 + $0x18] sm:$0xff]
        %v2852 = vld [vmem:[%s2847 + $0x20] sm:$0xff]
        %v2853 = vld [vmem:[%s2847 + $0x28] sm:$0xff]
        %v2854 = vld [vmem:[%s2847 + $0x30] sm:$0xff]
        %v2855 = vld [vmem:[%s2847 + $0x38] sm:$0xff]
        %v2856 = vpack.c.bf16 %v2843, %v2842
        %2857 = vmatprep.subr.bf16.mxu0 %v1668
        %2858 = vmatpush1.bf16.msra.mxu0 %v1667
        %2859 = vmatprep.subr.bf16.mxu0 %v1672
        %2860 = vmatpush1.bf16.msra.mxu0 %v1671
        %2861 = vmatprep.subr.bf16.mxu0 %v1676
        %2862 = vmatpush1.bf16.msra.mxu0 %v1675
        %2863 = vmatprep.subr.bf16.mxu0 %v1680
        %2864 = vmatpush1.bf16.msra.mxu0 %v1679
        %2865 = vmatprep.subr.bf16.mxu0 %v1684
        %2866 = vmatpush1.bf16.msra.mxu0 %v1683
        %2867 = vmatprep.subr.bf16.mxu0 %v1688
        %2868 = vmatpush1.bf16.msra.mxu0 %v1687
        %2869 = vmatprep.subr.bf16.mxu0 %v1692
        %2870 = vmatpush1.bf16.msra.mxu0 %v1691
        %2871 = vmatprep.subr.bf16.mxu0 %v1696
        %2872 = vmatpush1.bf16.msra.mxu0 %v1695
        %2873 = vmatprep.subr.bf16.mxu0 0
        %2874 = vmatpush1.bf16.msra.mxu0 0
        %2875 = vmatprep.subr.bf16.mxu0 0
        %2876 = vmatpush1.bf16.msra.mxu0 0
        %2877 = vmatprep.subr.bf16.mxu0 0
        %2878 = vmatpush1.bf16.msra.mxu0 0
        %2879 = vmatprep.subr.bf16.mxu0 0
        %2880 = vmatpush1.bf16.msra.mxu0 0
        %2881 = vmatprep.subr.bf16.mxu0 0
        %2882 = vmatpush1.bf16.msra.mxu0 0
        %2883 = vmatprep.subr.bf16.mxu0 0
        %2884 = vmatpush1.bf16.msra.mxu0 0
        %2885 = vmatprep.subr.bf16.mxu0 0
        %2886 = vmatpush1.bf16.msra.mxu0 0
        %2887 = vmatprep.subr.bf16.mxu0 0
        %2888 = vmatpush1.bf16.msra.mxu0 0
        %2889 = vmatprep.mubr.bf16.mxu0 0
        %2890 = vmatmul.mubr.bf16.gmra.mrb[0].mxu0 %v2856
        %v2891 = vpop.f32.mrb[0].mxu0
        %v2892 = vadd.f32 0.0, %v2891
        %v2893 = vpop.f32.mrb[0].mxu0
        %v2894 = vadd.f32 0.0, %v2893
        %v2895 = vpop.f32.mrb[0].mxu0
        %v2896 = vadd.f32 0.0, %v2895
        %v2897 = vpop.f32.mrb[0].mxu0
        %v2898 = vadd.f32 0.0, %v2897
        %2899 = vdwg.mxu0
        %2900 = vmatprep.subr.bf16.mxu0 %v1670
        %2901 = vmatpush1.bf16.msra.mxu0 %v1669
        %2902 = vmatprep.subr.bf16.mxu0 %v1674
        %2903 = vmatpush1.bf16.msra.mxu0 %v1673
        %2904 = vmatprep.subr.bf16.mxu0 %v1678
        %2905 = vmatpush1.bf16.msra.mxu0 %v1677
        %2906 = vmatprep.subr.bf16.mxu0 %v1682
        %2907 = vmatpush1.bf16.msra.mxu0 %v1681
        %2908 = vmatprep.subr.bf16.mxu0 %v1686
        %2909 = vmatpush1.bf16.msra.mxu0 %v1685
        %2910 = vmatprep.subr.bf16.mxu0 %v1690
        %2911 = vmatpush1.bf16.msra.mxu0 %v1689
        %2912 = vmatprep.subr.bf16.mxu0 %v1694
        %2913 = vmatpush1.bf16.msra.mxu0 %v1693
        %2914 = vmatprep.subr.bf16.mxu0 %v1698
        %2915 = vmatpush1.bf16.msra.mxu0 %v1697
        %2916 = vmatprep.subr.bf16.mxu0 0
        %2917 = vmatpush1.bf16.msra.mxu0 0
        %2918 = vmatprep.subr.bf16.mxu0 0
        %2919 = vmatpush1.bf16.msra.mxu0 0
        %2920 = vmatprep.subr.bf16.mxu0 0
        %2921 = vmatpush1.bf16.msra.mxu0 0
        %2922 = vmatprep.subr.bf16.mxu0 0
        %2923 = vmatpush1.bf16.msra.mxu0 0
        %2924 = vmatprep.subr.bf16.mxu0 0
        %2925 = vmatpush1.bf16.msra.mxu0 0
        %2926 = vmatprep.subr.bf16.mxu0 0
        %2927 = vmatpush1.bf16.msra.mxu0 0
        %2928 = vmatprep.subr.bf16.mxu0 0
        %2929 = vmatpush1.bf16.msra.mxu0 0
        %2930 = vmatprep.subr.bf16.mxu0 0
        %2931 = vmatpush1.bf16.msra.mxu0 0
        %2932 = vmatprep.mubr.bf16.mxu0 0
        %2933 = vmatmul.mubr.bf16.gmra.mrb[0].mxu0 %v2856
        %v2934 = vpop.f32.mrb[0].mxu0
        %v2935 = vadd.f32 0.0, %v2934
        %v2936 = vpop.f32.mrb[0].mxu0
        %v2937 = vadd.f32 0.0, %v2936
        %v2938 = vpop.f32.mrb[0].mxu0
        %v2939 = vadd.f32 0.0, %v2938
        %v2940 = vpop.f32.mrb[0].mxu0
        %v2941 = vadd.f32 0.0, %v2940
        %2942 = vdwg.mxu0
        %v2943 = vadd.f32 %v2848, %v2892
        %v2944 = vadd.f32 %v2849, %v2894
        %v2945 = vadd.f32 %v2850, %v2935
        %v2946 = vadd.f32 %v2851, %v2937
        %v2947 = vadd.f32 %v2852, %v2896
        %v2948 = vadd.f32 %v2853, %v2898
        %v2949 = vadd.f32 %v2854, %v2939
        %v2950 = vadd.f32 %v2855, %v2941
        %v2951 = vxor.u32 %v2943, 2147483648
        %v2952 = vxor.u32 %v2947, 2147483648
        %v2953 = vmul.f32 %v2951, 1.442695
        %v2954 = vpow.pop %v2953
        %v2955 = vmul.f32 %v2952, 1.442695
        %v2956 = vpow.pop %v2955
        %v2957 = vadd.f32 %v2954, 1.0
        %v2958 = vadd.f32 %v2956, 1.0
        %v2959 = vrcp.pop %v2957
        %v2960 = vmul.f32 1.0, %v2959
        %v2961 = vrcp.pop %v2958
        %v2962 = vmul.f32 1.0, %v2961
        %v2963 = vxor.u32 %v2944, 2147483648
        %v2964 = vxor.u32 %v2948, 2147483648
        %v2965 = vmul.f32 %v2963, 1.442695
        %v2966 = vpow.pop %v2965
        %v2967 = vmul.f32 %v2964, 1.442695
        %v2968 = vpow.pop %v2967
        %v2969 = vadd.f32 %v2966, 1.0
        %v2970 = vadd.f32 %v2968, 1.0
        %v2971 = vrcp.pop %v2969
        %v2972 = vmul.f32 1.0, %v2971
        %v2973 = vrcp.pop %v2970
        %v2974 = vmul.f32 1.0, %v2973
        %v2975 = vtanh.pop %v2945
        %v2976 = vtanh.pop %v2949
        %v2977 = vxor.u32 %v2946, 2147483648
        %v2978 = vxor.u32 %v2950, 2147483648
        %v2979 = vmul.f32 %v2977, 1.442695
        %v2980 = vpow.pop %v2979
        %v2981 = vmul.f32 %v2978, 1.442695
        %v2982 = vpow.pop %v2981
        %v2983 = vadd.f32 %v2980, 1.0
        %v2984 = vadd.f32 %v2982, 1.0
        %v2985 = vrcp.pop %v2983
        %v2986 = vmul.f32 1.0, %v2985
        %v2987 = vrcp.pop %v2984
        %v2988 = vmul.f32 1.0, %v2987
        %v2989 = vmul.f32 %v2972, %v2840
        %v2990 = vmul.f32 %v2974, %v2841
        %v2991 = vmul.f32 %v2960, %v2975
        %v2992 = vmul.f32 %v2962, %v2976
        %v2993 = vadd.f32 %v2989, %v2991
        %v2994 = vadd.f32 %v2990, %v2992
        %v2995 = vtanh.pop %v2993
        %v2996 = vtanh.pop %v2994
        %v2997 = vmul.f32 %v2986, %v2995
        %v2998 = vmul.f32 %v2988, %v2996
        %vm2999 = vcmp.gt.s32.totalorder %v1529, 7
        %vm3000 = vcmp.gt.s32.totalorder %v1530, 7
        %v3001 = vsel %vm2999, %v2993, %v2840
        %v3002 = vsel %vm3000, %v2994, %v2841
        %v3003 = vsel %vm2999, %v2997, %v2842
        %v3004 = vsel %vm3000, %v2998, %v2843
        %s3005 = scalar_lea.vmem [#allocation2], 112
        %3006 = vst [vmem:[%s3005] sm:$0xff] %v3003
        %3007 = vst [vmem:[%s3005 + $0x8] sm:$0xff] %v3004
        %v3008 = vpack.c.bf16 %v3001, %v3001
        %v3009 = vld [vmem:[#allocation10] sm:$0xf]
        %v3010 = vld [vmem:[#allocation10 + $0x4] sm:$0xf]
        %v3011 = vld [vmem:[#allocation10 + $0x8] sm:$0xf]
        %v3012 = vld [vmem:[#allocation10 + $0xc] sm:$0xf]
        %v3013 = vld [vmem:[#allocation10 + $0x10] sm:$0xf]
        %v3014 = vld [vmem:[#allocation10 + $0x14] sm:$0xf]
        %v3015 = vld [vmem:[#allocation10 + $0x18] sm:$0xf]
        %v3016 = vld [vmem:[#allocation10 + $0x1c] sm:$0xf]
        %v3017 = vld [vmem:[#allocation10 + $0x20] sm:$0xf]
        %v3018 = vld [vmem:[#allocation10 + $0x24] sm:$0xf]
        %v3019 = vld [vmem:[#allocation10 + $0x28] sm:$0xf]
        %v3020 = vld [vmem:[#allocation10 + $0x2c] sm:$0xf]
        %v3021 = vld [vmem:[#allocation10 + $0x30] sm:$0xf]
        %v3022 = vld [vmem:[#allocation10 + $0x34] sm:$0xf]
        %v3023 = vld [vmem:[#allocation10 + $0x38] sm:$0xf]
        %v3024 = vld [vmem:[#allocation10 + $0x3c] sm:$0xf]
        %v3025 = vpack.c.bf16 %v3002, %v3002
        %v3026 = vld [vmem:[#allocation12] sm:$0xf]
        %v3027 = vld [vmem:[#allocation12 + $0x4] sm:$0xf]
        %v3028 = vld [vmem:[#allocation12 + $0x8] sm:$0xf]
        %v3029 = vld [vmem:[#allocation12 + $0xc] sm:$0xf]
        %v3030 = vld [vmem:[#allocation12 + $0x10] sm:$0xf]
        %v3031 = vld [vmem:[#allocation12 + $0x14] sm:$0xf]
        %v3032 = vld [vmem:[#allocation12 + $0x18] sm:$0xf]
        %v3033 = vld [vmem:[#allocation12 + $0x1c] sm:$0xf]
        %v3034 = vld [vmem:[#allocation12 + $0x20] sm:$0xf]
        %v3035 = vld [vmem:[#allocation12 + $0x24] sm:$0xf]
        %v3036 = vld [vmem:[#allocation12 + $0x28] sm:$0xf]
        %v3037 = vld [vmem:[#allocation12 + $0x2c] sm:$0xf]
        %v3038 = vld [vmem:[#allocation12 + $0x30] sm:$0xf]
        %v3039 = vld [vmem:[#allocation12 + $0x34] sm:$0xf]
        %v3040 = vld [vmem:[#allocation12 + $0x38] sm:$0xf]
        %v3041 = vld [vmem:[#allocation12 + $0x3c] sm:$0xf]
        %v3058 = vunpack.c.l.b16 %v3026
        %v3059 = vunpack.c.l.b16 %v3027
        %v3060 = vunpack.c.l.b16 %v3028
        %v3061 = vunpack.c.l.b16 %v3029
        %v3062 = vunpack.c.l.b16 %v3030
        %v3063 = vunpack.c.l.b16 %v3031
        %v3064 = vunpack.c.l.b16 %v3032
        %v3065 = vunpack.c.l.b16 %v3033
        %v3066 = vunpack.c.l.b16 %v3034
        %v3067 = vunpack.c.l.b16 %v3035
        %v3068 = vunpack.c.l.b16 %v3036
        %v3069 = vunpack.c.l.b16 %v3037
        %v3070 = vunpack.c.l.b16 %v3038
        %v3071 = vunpack.c.l.b16 %v3039
        %v3072 = vunpack.c.l.b16 %v3040
        %v3073 = vunpack.c.l.b16 %v3041
        %v3074 = vpack.c.b16 %v3059, %v3058
        %v3075 = vpack.c.b16 %v3061, %v3060
        %v3076 = vpack.c.b16 %v3063, %v3062
        %v3077 = vpack.c.b16 %v3065, %v3064
        %v3078 = vpack.c.b16 %v3067, %v3066
        %v3079 = vpack.c.b16 %v3069, %v3068
        %v3080 = vpack.c.b16 %v3071, %v3070
        %v3081 = vpack.c.b16 %v3073, %v3072
        %3090 = vmatprep.subr.bf16.mxu0 0
        %3091 = vmatpush1.bf16.msra.mxu0 %v3074
        %3092 = vmatprep.subr.bf16.mxu0 0
        %3093 = vmatpush1.bf16.msra.mxu0 %v3075
        %3094 = vmatprep.subr.bf16.mxu0 0
        %3095 = vmatpush1.bf16.msra.mxu0 %v3076
        %3096 = vmatprep.subr.bf16.mxu0 0
        %3097 = vmatpush1.bf16.msra.mxu0 %v3077
        %3098 = vmatprep.subr.bf16.mxu0 0
        %3099 = vmatpush1.bf16.msra.mxu0 %v3078
        %3100 = vmatprep.subr.bf16.mxu0 0
        %3101 = vmatpush1.bf16.msra.mxu0 %v3079
        %3102 = vmatprep.subr.bf16.mxu0 0
        %3103 = vmatpush1.bf16.msra.mxu0 %v3080
        %3104 = vmatprep.subr.bf16.mxu0 0
        %3105 = vmatpush1.bf16.msra.mxu0 %v3081
        %3106 = vmatprep.subr.bf16.mxu0 0
        %3107 = vmatpush1.bf16.msra.mxu0 0
        %3108 = vmatprep.subr.bf16.mxu0 0
        %3109 = vmatpush1.bf16.msra.mxu0 0
        %3110 = vmatprep.subr.bf16.mxu0 0
        %3111 = vmatpush1.bf16.msra.mxu0 0
        %3112 = vmatprep.subr.bf16.mxu0 0
        %3113 = vmatpush1.bf16.msra.mxu0 0
        %3114 = vmatprep.subr.bf16.mxu0 0
        %3115 = vmatpush1.bf16.msra.mxu0 0
        %3116 = vmatprep.subr.bf16.mxu0 0
        %3117 = vmatpush1.bf16.msra.mxu0 0
        %3118 = vmatprep.subr.bf16.mxu0 0
        %3119 = vmatpush1.bf16.msra.mxu0 0
        %3120 = vmatprep.subr.bf16.mxu0 0
        %3121 = vmatpush1.bf16.msra.mxu0 0
        %3122 = vmatprep.mubr.bf16.mxu0 0
        %3123 = vmatmul.mubr.bf16.gmra.mrb[0].mxu0 %v3025
        %v3124 = vpop.f32.mrb[0].mxu0
        %v3125 = vadd.f32 0.0, %v3124
        %v3126 = vpop.f32.mrb[0].mxu0
        %v3127 = vpop.f32.mrb[0].mxu0
        %v3128 = vpop.f32.mrb[0].mxu0
        %3129 = vdwg.mxu0
        %v3146 = vunpack.c.l.b16 %v3009
        %v3147 = vunpack.c.l.b16 %v3010
        %v3148 = vunpack.c.l.b16 %v3011
        %v3149 = vunpack.c.l.b16 %v3012
        %v3150 = vunpack.c.l.b16 %v3013
        %v3151 = vunpack.c.l.b16 %v3014
        %v3152 = vunpack.c.l.b16 %v3015
        %v3153 = vunpack.c.l.b16 %v3016
        %v3154 = vunpack.c.l.b16 %v3017
        %v3155 = vunpack.c.l.b16 %v3018
        %v3156 = vunpack.c.l.b16 %v3019
        %v3157 = vunpack.c.l.b16 %v3020
        %v3158 = vunpack.c.l.b16 %v3021
        %v3159 = vunpack.c.l.b16 %v3022
        %v3160 = vunpack.c.l.b16 %v3023
        %v3161 = vunpack.c.l.b16 %v3024
        %v3162 = vpack.c.b16 %v3147, %v3146
        %v3163 = vpack.c.b16 %v3149, %v3148
        %v3164 = vpack.c.b16 %v3151, %v3150
        %v3165 = vpack.c.b16 %v3153, %v3152
        %v3166 = vpack.c.b16 %v3155, %v3154
        %v3167 = vpack.c.b16 %v3157, %v3156
        %v3168 = vpack.c.b16 %v3159, %v3158
        %v3169 = vpack.c.b16 %v3161, %v3160
        %3178 = vmatprep.subr.bf16.mxu0 0
        %3179 = vmatpush1.bf16.msra.mxu0 %v3162
        %3180 = vmatprep.subr.bf16.mxu0 0
        %3181 = vmatpush1.bf16.msra.mxu0 %v3163
        %3182 = vmatprep.subr.bf16.mxu0 0
        %3183 = vmatpush1.bf16.msra.mxu0 %v3164
        %3184 = vmatprep.subr.bf16.mxu0 0
        %3185 = vmatpush1.bf16.msra.mxu0 %v3165
        %3186 = vmatprep.subr.bf16.mxu0 0
        %3187 = vmatpush1.bf16.msra.mxu0 %v3166
        %3188 = vmatprep.subr.bf16.mxu0 0
        %3189 = vmatpush1.bf16.msra.mxu0 %v3167
        %3190 = vmatprep.subr.bf16.mxu0 0
        %3191 = vmatpush1.bf16.msra.mxu0 %v3168
        %3192 = vmatprep.subr.bf16.mxu0 0
        %3193 = vmatpush1.bf16.msra.mxu0 %v3169
        %3194 = vmatprep.subr.bf16.mxu0 0
        %3195 = vmatpush1.bf16.msra.mxu0 0
        %3196 = vmatprep.subr.bf16.mxu0 0
        %3197 = vmatpush1.bf16.msra.mxu0 0
        %3198 = vmatprep.subr.bf16.mxu0 0
        %3199 = vmatpush1.bf16.msra.mxu0 0
        %3200 = vmatprep.subr.bf16.mxu0 0
        %3201 = vmatpush1.bf16.msra.mxu0 0
        %3202 = vmatprep.subr.bf16.mxu0 0
        %3203 = vmatpush1.bf16.msra.mxu0 0
        %3204 = vmatprep.subr.bf16.mxu0 0
        %3205 = vmatpush1.bf16.msra.mxu0 0
        %3206 = vmatprep.subr.bf16.mxu0 0
        %3207 = vmatpush1.bf16.msra.mxu0 0
        %3208 = vmatprep.subr.bf16.mxu0 0
        %3209 = vmatpush1.bf16.msra.mxu0 0
        %3210 = vmatprep.mubr.bf16.mxu0 0
        %3211 = vmatmul.mubr.bf16.gmra.mrb[0].mxu0 %v3008
        %v3212 = vpop.f32.mrb[0].mxu0
        %v3213 = vadd.f32 %v3125, %v3212
        %v3214 = vpop.f32.mrb[0].mxu0
        %v3215 = vpop.f32.mrb[0].mxu0
        %v3216 = vpop.f32.mrb[0].mxu0
        %3217 = vdwg.mxu0
        %v3218 = vld [vmem:[%s6] sm:$0x1]
        %v3220 = vlaneseq
        %v3221 = vshrl.u32 %v3220, 7
        %v3222 = vsub.s32 0, %v3221
        %v3223 = vrot.slane %v3218, %v3222
        %v3225 = vadd.f32 %v3213, %v3223
        %v3226 = vmax.f32 %v3225, 0.0
        %v3227 = vpack.c.bf16 %v3226, %v3226
        %v3228 = vld [vmem:[#allocation13] sm:$0xf]
        %v3229 = vld [vmem:[#allocation13 + $0x4] sm:$0xf]
        %v3230 = vld [vmem:[#allocation13 + $0x8] sm:$0xf]
        %v3231 = vld [vmem:[#allocation13 + $0xc] sm:$0xf]
        %v3232 = vld [vmem:[#allocation13 + $0x10] sm:$0xf]
        %v3233 = vld [vmem:[#allocation13 + $0x14] sm:$0xf]
        %v3234 = vld [vmem:[#allocation13 + $0x18] sm:$0xf]
        %v3235 = vld [vmem:[#allocation13 + $0x1c] sm:$0xf]
        %v3236 = vld [vmem:[#allocation13 + $0x20] sm:$0xf]
        %v3237 = vld [vmem:[#allocation13 + $0x24] sm:$0xf]
        %v3238 = vld [vmem:[#allocation13 + $0x28] sm:$0xf]
        %v3239 = vld [vmem:[#allocation13 + $0x2c] sm:$0xf]
        %v3240 = vld [vmem:[#allocation13 + $0x30] sm:$0xf]
        %v3241 = vld [vmem:[#allocation13 + $0x34] sm:$0xf]
        %v3242 = vld [vmem:[#allocation13 + $0x38] sm:$0xf]
        %v3243 = vld [vmem:[#allocation13 + $0x3c] sm:$0xf]
        %v3244 = vld [vmem:[%s8] sm:$0x1]
        %v3246 = vlaneseq
        %v3247 = vshrl.u32 %v3246, 7
        %v3248 = vsub.s32 0, %v3247
        %v3249 = vrot.slane %v3244, %v3248
        %v3267 = vunpack.c.l.b16 %v3228
        %v3268 = vunpack.c.l.b16 %v3229
        %v3269 = vunpack.c.l.b16 %v3230
        %v3270 = vunpack.c.l.b16 %v3231
        %v3271 = vunpack.c.l.b16 %v3232
        %v3272 = vunpack.c.l.b16 %v3233
        %v3273 = vunpack.c.l.b16 %v3234
        %v3274 = vunpack.c.l.b16 %v3235
        %v3275 = vunpack.c.l.b16 %v3236
        %v3276 = vunpack.c.l.b16 %v3237
        %v3277 = vunpack.c.l.b16 %v3238
        %v3278 = vunpack.c.l.b16 %v3239
        %v3279 = vunpack.c.l.b16 %v3240
        %v3280 = vunpack.c.l.b16 %v3241
        %v3281 = vunpack.c.l.b16 %v3242
        %v3282 = vunpack.c.l.b16 %v3243
        %v3283 = vpack.c.b16 %v3268, %v3267
        %v3284 = vpack.c.b16 %v3270, %v3269
        %v3285 = vpack.c.b16 %v3272, %v3271
        %v3286 = vpack.c.b16 %v3274, %v3273
        %v3287 = vpack.c.b16 %v3276, %v3275
        %v3288 = vpack.c.b16 %v3278, %v3277
        %v3289 = vpack.c.b16 %v3280, %v3279
        %v3290 = vpack.c.b16 %v3282, %v3281
        %3299 = vmatprep.subr.bf16.mxu0 0
        %3300 = vmatpush1.bf16.msra.mxu0 %v3283
        %3301 = vmatprep.subr.bf16.mxu0 0
        %3302 = vmatpush1.bf16.msra.mxu0 %v3284
        %3303 = vmatprep.subr.bf16.mxu0 0
        %3304 = vmatpush1.bf16.msra.mxu0 %v3285
        %3305 = vmatprep.subr.bf16.mxu0 0
        %3306 = vmatpush1.bf16.msra.mxu0 %v3286
        %3307 = vmatprep.subr.bf16.mxu0 0
        %3308 = vmatpush1.bf16.msra.mxu0 %v3287
        %3309 = vmatprep.subr.bf16.mxu0 0
        %3310 = vmatpush1.bf16.msra.mxu0 %v3288
        %3311 = vmatprep.subr.bf16.mxu0 0
        %3312 = vmatpush1.bf16.msra.mxu0 %v3289
        %3313 = vmatprep.subr.bf16.mxu0 0
        %3314 = vmatpush1.bf16.msra.mxu0 %v3290
        %3315 = vmatprep.subr.bf16.mxu0 0
        %3316 = vmatpush1.bf16.msra.mxu0 0
        %3317 = vmatprep.subr.bf16.mxu0 0
        %3318 = vmatpush1.bf16.msra.mxu0 0
        %3319 = vmatprep.subr.bf16.mxu0 0
        %3320 = vmatpush1.bf16.msra.mxu0 0
        %3321 = vmatprep.subr.bf16.mxu0 0
        %3322 = vmatpush1.bf16.msra.mxu0 0
        %3323 = vmatprep.subr.bf16.mxu0 0
        %3324 = vmatpush1.bf16.msra.mxu0 0
        %3325 = vmatprep.subr.bf16.mxu0 0
        %3326 = vmatpush1.bf16.msra.mxu0 0
        %3327 = vmatprep.subr.bf16.mxu0 0
        %3328 = vmatpush1.bf16.msra.mxu0 0
        %3329 = vmatprep.subr.bf16.mxu0 0
        %3330 = vmatpush1.bf16.msra.mxu0 0
        %3331 = vmatprep.mubr.bf16.mxu0 0
        %3332 = vmatmul.mubr.bf16.gmra.mrb[0].mxu0 %v3227
        %v3333 = vpop.f32.mrb[0].mxu0
        %v3334 = vadd.f32 %v3249, %v3333
        %v3335 = vpop.f32.mrb[0].mxu0
        %v3336 = vpop.f32.mrb[0].mxu0
        %v3337 = vpop.f32.mrb[0].mxu0
        %3338 = vdwg.mxu0
        %s3339 = smul.u32 %s27, 8
        %s3340 = scalar_lea.vmem [#allocation15], %s3339
        %3341 = vst [vmem:[%s3340] sm:$0xff] %v3334
        // Predicated region
        $region89: #{tpu_custom_call.1} parent=55 // pred_check
          %p3342 = pneg %p244
        $region90: #{tpu_custom_call.1} parent=55 // pred_check_branch
          %3344 = sbr.rel (%p3342) target = $region92
        $region91: #{tpu_custom_call.1} parent=55 // pred_region
          %s3346 = ssub.s32 256, 256
          %3347 = vsyncadd [#allocation6], %s3346
          %s3348 = sshll.u32 [#allocation15], 4
          %s3349 = int_to_ptr.vmem [resolvable:$true] %s3348
          %3354 = dma.vmem_to_hbm [thread:$0]  %s3349, 256, %s9, [#allocation6], 128, 128, 8
        $region92: #{tpu_custom_call.1} parent=55 // pred_fallthru
          _
        // Predicated region
        $region93: #{tpu_custom_call.1} parent=55 // pred_check
          %p3355 = pneg %p244
        $region94: #{tpu_custom_call.1} parent=55 // pred_check_branch
          %3357 = sbr.rel (%p3355) target = $region96
        $region95: #{tpu_custom_call.1} parent=55 // pred_region
          %3358 = dma.done [#allocation6], 256
        $region96: #{tpu_custom_call.1} parent=55 // pred_fallthru
          _
      $region56: #{tpu_custom_call.1} parent=5 // pred_fallthru
        _
      %p3359 = scmp.le.s32.totalorder 2, %s22
      // Predicated region
      $region97: #{tpu_custom_call.1} parent=5 // pred_check
        %p3360 = pneg %p3359
      $region98: #{tpu_custom_call.1} parent=5 // pred_check_branch
        %3362 = sbr.rel (%p3360) target = $region100
      $region99: #{tpu_custom_call.1} parent=5 // pred_region
        %s3363 = ssub.s32 %s22, 2
      $region100: #{tpu_custom_call.1} parent=5 // pred_fallthru
        _
    $region6: #{tpu_custom_call.1} parent=1 // loop_footer
      %s26 = sadd.s32 1, %s22
    $region7: #{tpu_custom_call.1} parent=1 // loop_footer_branch
      %21 = sbr.rel target = $region3
    $region8: #{tpu_custom_call.1} parent=1 // loop_exit
      _
    %3364 = vsyncpa [#allocation5], 1
    %s3365 = scalar_lea.sflag [#allocation5], 1
    %3366 = vsyncpa %s3365, 1
    %3367 = vsyncpa [#allocation8], 1
    %s3368 = scalar_lea.sflag [#allocation8], 1
    %3369 = vsyncpa %s3368, 1
    %3370 = vsyncpa [#allocation11], 1
    %3371 = vsyncpa [#allocation14], 1
    %3372 = vsyncpa [#allocation6], 1
    %s3373 = scalar_lea.sflag [#allocation6], 1
    %3374 = vsyncpa %s3373, 1

</llo_original>
